<compile_context>
chip_gen: v6e
topology: v6e:2x2x1
jax: 0.10.0
libtpu: 0.0.40
codegen_flags: <defaults>
</compile_context>

<pallas_src>
import jax
import jax.numpy as jnp
from jax.experimental import pallas as pl
from jax.experimental.pallas import tpu as pltpu

EPS = 1e-5  # PyTorch BatchNorm default eps


# ------------------------------ kernel bodies -------------------------------

def _conv_bn_relu_pool(p, w, y_scr):
    """conv (im2col matmul, bf16 x bf16 -> f32) -> BN (train-mode batch stats,
    affine=False) -> ReLU -> 2x2 maxpool.

    Rows of `p` are ordered (pool_h, pool_w, ...), so pooling is a max over
    four contiguous row blocks.  BN stats are computed pre-pool over all rows;
    normalize+ReLU are applied post-pool (valid since scale > 0, ReLU monotone).
    """
    y = jnp.dot(p, w, preferred_element_type=jnp.float32)        # (4*Q, C)
    m = y.shape[0]
    mean = jnp.sum(y, axis=0, keepdims=True) * (1.0 / m)
    var = jnp.maximum(
        jnp.sum(y * y, axis=0, keepdims=True) * (1.0 / m) - mean * mean, 0.0)
    inv = jax.lax.rsqrt(var + EPS)
    y_scr[...] = y                                               # VMEM scratch
    q = m // 4
    pooled = jnp.maximum(
        jnp.maximum(y_scr[pl.ds(0, q), :], y_scr[pl.ds(q, q), :]),
        jnp.maximum(y_scr[pl.ds(2 * q, q), :], y_scr[pl.ds(3 * q, q), :]))
    return jnp.maximum((pooled - mean) * inv, 0.0)               # (Q, C) f32


def _conv_block_kernel(p_ref, w_ref, o_ref, y_scr):
    """Fused conv1 block: conv -> BN2d -> ReLU -> maxpool."""
    o_ref[...] = _conv_bn_relu_pool(p_ref[...], w_ref[...], y_scr).astype(o_ref.dtype)


def _conv_classifier_kernel(p_ref, w_ref, fc1_ref, fc2_ref, b2_ref, o_ref,
                            y_scr, h2_scr):
    """Fused conv2 block + classifier.

    p_ref   : (4*R*N, Cin*25) conv2 im2col patches, rows (ph,pw,i2,j2,n)
    w_ref   : (Cin*25, C2)
    fc1_ref : (R, C2, HID)   re-packed LinearVarianceUnif weight
    fc2_ref : (HID, OUT), b2_ref : (1, OUT)
    o_ref   : (N, OUT)
    """
    h2 = _conv_bn_relu_pool(p_ref[...], w_ref[...], y_scr)       # (R*N, C2), rows (r, n)
    h2_scr[...] = h2.astype(h2_scr.dtype)                        # bf16 for MXU

    nb = o_ref.shape[0]            # batch N
    nr = fc1_ref.shape[0]          # R = pooled spatial positions (25)
    hid = fc1_ref.shape[2]         # 500

    # TODO(synk): vl.LinearVarianceUnif's stochastic/variance semantics are not
    # available; implemented as a deterministic bias-free Linear.
    # The PyTorch (C,H,W) flatten is folded into R K-chunk matmuls so no
    # in-kernel reshape is needed.
    acc = jnp.zeros((nb, hid), jnp.float32)
    for r in range(nr):
        acc = acc + jnp.dot(h2_scr[pl.ds(r * nb, nb), :], fc1_ref[r],
                            preferred_element_type=jnp.float32)

    # BatchNorm1d (train-mode batch stats, affine=False) + ReLU
    mu = jnp.mean(acc, axis=0, keepdims=True)
    va = jnp.maximum(jnp.mean(acc * acc, axis=0, keepdims=True) - mu * mu, 0.0)
    h = jnp.maximum((acc - mu) * jax.lax.rsqrt(va + EPS), 0.0)

    # Final Linear (+bias)
    o_ref[...] = jnp.dot(h.astype(fc2_ref.dtype), fc2_ref[...],
                         preferred_element_type=jnp.float32) + b2_ref[...]


# ----------------------------- wrapper-side glue -----------------------------

def _conv1_patches(x, k=5):
    """NCHW -> im2col rows ordered (ph, pw, n, i, j); lanes (ci, kh, kw)."""
    n, cin, hh, ww = x.shape
    oh, ow = hh - k + 1, ww - k + 1
    cols = jnp.stack([x[:, :, kh:kh + oh, kw:kw + ow]
                      for kh in range(k) for kw in range(k)], axis=-1)  # (n,ci,oh,ow,k*k)
    cols = cols.transpose(0, 2, 3, 1, 4)                                # (n,oh,ow,ci,k*k)
    cols = cols.reshape(n, oh, ow, cin * k * k)
    cols = cols.reshape(n, oh // 2, 2, ow // 2, 2, cin * k * k)         # (n,i,ph,j,pw,F)
    cols = cols.transpose(2, 4, 0, 1, 3, 5)                             # (ph,pw,n,i,j,F)
    return cols.reshape(4 * n * (oh // 2) * (ow // 2), cin * k * k).astype(jnp.bfloat16)


def _conv2_patches(h1, n, hh, ww, k=5):
    """Pooled conv1 output (n*hh*ww, C1) -> conv2 im2col rows ordered
    (ph, pw, i2, j2, n); lanes (ci, kh, kw)."""
    c1 = h1.shape[-1]
    oh, ow = hh - k + 1, ww - k + 1
    h4 = h1.reshape(n, hh, ww, c1)
    cols = jnp.stack([h4[:, kh:kh + oh, kw:kw + ow, :]
                      for kh in range(k) for kw in range(k)], axis=-1)  # (n,oh,ow,c1,k*k)
    cols = cols.reshape(n, oh, ow, c1 * k * k)
    cols = cols.reshape(n, oh // 2, 2, ow // 2, 2, c1 * k * k)          # (n,i2,ph,j2,pw,F)
    cols = cols.transpose(2, 4, 1, 3, 0, 5)                             # (ph,pw,i2,j2,n,F)
    return cols.reshape(4 * (oh // 2) * (ow // 2) * n, c1 * k * k)


def prepare_params(torch_params):
    """One-time (outside jit) re-pack of PyTorch-layout weights into the
    kernel layouts (bf16 MXU operands, no per-call .T / reshape inside jit)."""
    conv1_w = torch_params["conv1_w"]          # (C1, Cin, 5, 5), no bias
    conv2_w = torch_params["conv2_w"]          # (C2, C1,  5, 5), no bias
    fc1_w = torch_params["fc1_w"]              # (HID, C2*R)  LinearVarianceUnif, no bias
    fc2_w = torch_params["fc2_w"]              # (OUT, HID)
    fc2_b = torch_params["fc2_b"]              # (OUT,)

    c1, c2, hid = conv1_w.shape[0], conv2_w.shape[0], fc1_w.shape[0]
    r = fc1_w.shape[1] // c2                   # pooled spatial positions (25)

    w1m = conv1_w.reshape(c1, -1).T.astype(jnp.bfloat16)       # (Cin*25, C1)
    w2m = conv2_w.reshape(c2, -1).T.astype(jnp.bfloat16)       # (C1*25,  C2)
    # fc1s[rr, co, u] = fc1_w[u, co*R + rr]  (PyTorch flatten order is (C,H,W))
    fc1s = fc1_w.reshape(hid, c2, r).transpose(2, 1, 0).astype(jnp.bfloat16)
    fc2m = fc2_w.T.astype(jnp.bfloat16)                        # (HID, OUT)
    fc2b = fc2_b.reshape(1, -1).astype(jnp.float32)            # (1, OUT)
    return {"w1m": w1m, "w2m": w2m, "fc1s": fc1s, "fc2m": fc2m, "fc2b": fc2b}


def lenet5_fc_variance_unif_forward(x, params):
    n, _, hh, ww = x.shape
    c1 = params["w1m"].shape[1]                # 20
    c2 = params["w2m"].shape[1]                # 50
    out_classes = params["fc2m"].shape[1]

    oh1, ow1 = hh - 4, ww - 4                  # conv1 output spatial
    ph1, pw1 = oh1 // 2, ow1 // 2              # after pool1
    oh2, ow2 = ph1 - 4, pw1 - 4                # conv2 output spatial
    ph2, pw2 = oh2 // 2, ow2 // 2              # after pool2

    vmem_spec = pl.BlockSpec(memory_space=pltpu.MemorySpace.VMEM)

    # ---- kernel 1: conv1 + BN2d + ReLU + maxpool (single fused call) ----
    p1 = _conv1_patches(x)                                         # (4*n*ph1*pw1, Cin*25)
    h1_rows = n * ph1 * pw1
    h1 = pl.pallas_call(
        _conv_block_kernel,
        out_shape=jax.ShapeDtypeStruct((h1_rows, c1), jnp.bfloat16),
        in_specs=[vmem_spec, vmem_spec],
        out_specs=vmem_spec,
        scratch_shapes=[pltpu.VMEM((p1.shape[0], c1), jnp.float32)],
        compiler_params=pltpu.CompilerParams(vmem_limit_bytes=16 * 1024 * 1024),
        cost_estimate=pl.CostEstimate(
            flops=2 * p1.shape[0] * p1.shape[1] * c1,
            transcendentals=c1,
            bytes_accessed=2 * (p1.size + params["w1m"].size + h1_rows * c1)),
    )(p1, params["w1m"])

    # ---- kernel 2: conv2 + BN2d + ReLU + maxpool + flatten + classifier ----
    p2 = _conv2_patches(h1, n, ph1, pw1)                           # (4*ph2*pw2*n, C1*25)
    h2_rows = ph2 * pw2 * n
    out = pl.pallas_call(
        _conv_classifier_kernel,
        out_shape=jax.ShapeDtypeStruct((n, out_classes), jnp.float32),
        in_specs=[vmem_spec] * 5,
        out_specs=vmem_spec,
        scratch_shapes=[pltpu.VMEM((p2.shape[0], c2), jnp.float32),
                        pltpu.VMEM((h2_rows, c2), jnp.bfloat16)],
        compiler_params=pltpu.CompilerParams(vmem_limit_bytes=16 * 1024 * 1024),
        cost_estimate=pl.CostEstimate(
            flops=(2 * p2.shape[0] * p2.shape[1] * c2
                   + 2 * n * params["fc1s"].size
                   + 2 * n * params["fc2m"].size),
            transcendentals=c2 + params["fc1s"].shape[2],
            bytes_accessed=(2 * (p2.size + params["w2m"].size
                                 + params["fc1s"].size + params["fc2m"].size)
                            + 4 * (n * out_classes + out_classes))),
    )(p2, params["w2m"], params["fc1s"], params["fc2m"], params["fc2b"])
    return out


# ---------------------------------- main -------------------------------------

if __name__ == "__main__":
    key = jax.random.PRNGKey(0)
    ks = jax.random.split(key, 6)

    # Classic LeNet-5 geometry: (1, 32, 32) -> 28 -> 14 -> 10 -> 5,
    # flattened features = 50 * 5 * 5 = 1250, out_classes = 10, batch = 2.
    n, cin, hh, ww = 2, 1, 32, 32
    out_classes = 10
    feat = 50 * 5 * 5

    x = jax.random.normal(ks[0], (n, cin, hh, ww), jnp.float32)
    torch_params = {
        "conv1_w": 0.10 * jax.random.normal(ks[1], (20, cin, 5, 5), jnp.float32),
        "conv2_w": 0.05 * jax.random.normal(ks[2], (50, 20, 5, 5), jnp.float32),
        "fc1_w":   0.03 * jax.random.normal(ks[3], (500, feat), jnp.float32),
        "fc2_w":   0.05 * jax.random.normal(ks[4], (out_classes, 500), jnp.float32),
        "fc2_b":   0.01 * jax.random.normal(ks[5], (out_classes,), jnp.float32),
    }

    params = prepare_params(torch_params)      # one-time re-pack, outside jit
    fwd = jax.jit(lenet5_fc_variance_unif_forward)
    out = fwd(x, params)
    jax.block_until_ready(out)
    assert out.shape == (n, out_classes), out.shape
    print("KERNEL_OK")
</pallas_src>

<mosaic_0001>
module attributes {stable_mosaic.version = 11 : i64} {
  func.func @_conv_block_kernel(%arg0: memref<1568x25xbf16, #tpu.memory_space<vmem>>, %arg1: memref<25x20xbf16, #tpu.memory_space<vmem>>, %arg2: memref<392x20xbf16, #tpu.memory_space<vmem>>, %arg3: memref<1568x20xf32, #tpu.memory_space<vmem>>) attributes {dimension_semantics = [], scalar_prefetch = 0 : i64, scratch_operands = 1 : i64, tpu.core_type = #tpu.core_type<tc>} {
    %c0 = arith.constant 0 : index
    %c0_0 = arith.constant 0 : index
    %0 = vector.load %arg0[%c0, %c0_0] : memref<1568x25xbf16, #tpu.memory_space<vmem>>, vector<1568x25xbf16>
    %c0_1 = arith.constant 0 : index
    %c0_2 = arith.constant 0 : index
    %1 = vector.load %arg1[%c0_1, %c0_2] : memref<25x20xbf16, #tpu.memory_space<vmem>>, vector<25x20xbf16>
    %cst = arith.constant dense<0.000000e+00> : vector<1568x20xf32>
    %2 = tpu.matmul %0, %1, %cst {dimension_numbers = #tpu.dot_dimension_numbers<[1], [0], [0], [1], [0, 0, 1, 1], [], []>} : vector<1568x25xbf16>, vector<25x20xbf16>, vector<1568x20xf32> -> vector<1568x20xf32>
    %cst_3 = arith.constant dense<0.000000e+00> : vector<20xf32>
    %3 = vector.multi_reduction <add>, %2, %cst_3 [0] : vector<1568x20xf32> to vector<20xf32>
    %4 = vector.shape_cast %3 : vector<20xf32> to vector<1x20xf32>
    %cst_4 = arith.constant 6.37755089E-4 : f32
    %5 = vector.broadcast %cst_4 : f32 to vector<1x20xf32>
    %6 = arith.mulf %4, %5 : vector<1x20xf32>
    %7 = arith.mulf %2, %2 : vector<1568x20xf32>
    %cst_5 = arith.constant dense<0.000000e+00> : vector<20xf32>
    %8 = vector.multi_reduction <add>, %7, %cst_5 [0] : vector<1568x20xf32> to vector<20xf32>
    %9 = vector.shape_cast %8 : vector<20xf32> to vector<1x20xf32>
    %cst_6 = arith.constant 6.37755089E-4 : f32
    %10 = vector.broadcast %cst_6 : f32 to vector<1x20xf32>
    %11 = arith.mulf %9, %10 : vector<1x20xf32>
    %12 = arith.mulf %6, %6 : vector<1x20xf32>
    %13 = arith.subf %11, %12 : vector<1x20xf32>
    %cst_7 = arith.constant 0.000000e+00 : f32
    %14 = vector.broadcast %cst_7 : f32 to vector<1x20xf32>
    %15 = arith.maximumf %13, %14 : vector<1x20xf32>
    %cst_8 = arith.constant 9.99999974E-6 : f32
    %16 = vector.broadcast %cst_8 : f32 to vector<1x20xf32>
    %17 = arith.addf %15, %16 : vector<1x20xf32>
    %18 = math.rsqrt %17 : vector<1x20xf32>
    %c0_9 = arith.constant 0 : index
    %c0_10 = arith.constant 0 : index
    %19 = vector.load %arg3[%c0_9, %c0_10] : memref<1568x20xf32, #tpu.memory_space<vmem>>, vector<1568x20xf32>
    tpu.vector_store %arg3[%c0_9, %c0_10], %2 {strides = array<i32>} : memref<1568x20xf32, #tpu.memory_space<vmem>>, vector<1568x20xf32>,
    %c0_11 = arith.constant 0 : index
    %c0_12 = arith.constant 0 : index
    %20 = vector.load %arg3[%c0_11, %c0_12] : memref<1568x20xf32, #tpu.memory_space<vmem>>, vector<392x20xf32>
    %c392 = arith.constant 392 : index
    %c0_13 = arith.constant 0 : index
    %21 = vector.load %arg3[%c392, %c0_13] : memref<1568x20xf32, #tpu.memory_space<vmem>>, vector<392x20xf32>
    %22 = arith.maximumf %20, %21 : vector<392x20xf32>
    %c784 = arith.constant 784 : index
    %c0_14 = arith.constant 0 : index
    %23 = vector.load %arg3[%c784, %c0_14] : memref<1568x20xf32, #tpu.memory_space<vmem>>, vector<392x20xf32>
    %c1176 = arith.constant 1176 : index
    %c0_15 = arith.constant 0 : index
    %24 = vector.load %arg3[%c1176, %c0_15] : memref<1568x20xf32, #tpu.memory_space<vmem>>, vector<392x20xf32>
    %25 = arith.maximumf %23, %24 : vector<392x20xf32>
    %26 = arith.maximumf %22, %25 : vector<392x20xf32>
    %27 = vector.broadcast %6 : vector<1x20xf32> to vector<392x20xf32>
    %28 = arith.subf %26, %27 : vector<392x20xf32>
    %29 = vector.broadcast %18 : vector<1x20xf32> to vector<392x20xf32>
    %30 = arith.mulf %28, %29 : vector<392x20xf32>
    %cst_16 = arith.constant 0.000000e+00 : f32
    %31 = vector.broadcast %cst_16 : f32 to vector<392x20xf32>
    %32 = arith.maximumf %30, %31 : vector<392x20xf32>
    %33 = arith.truncf %32 : vector<392x20xf32> to vector<392x20xbf16>
    %c0_17 = arith.constant 0 : index
    %c0_18 = arith.constant 0 : index
    %34 = vector.load %arg2[%c0_17, %c0_18] : memref<392x20xbf16, #tpu.memory_space<vmem>>, vector<392x20xbf16>
    tpu.vector_store %arg2[%c0_17, %c0_18], %33 {strides = array<i32>} : memref<392x20xbf16, #tpu.memory_space<vmem>>, vector<392x20xbf16>,
    return
  }
}

module attributes {stable_mosaic.version = 11 : i64} {
  func.func @_conv_classifier_kernel(%arg0: memref<200x500xbf16, #tpu.memory_space<vmem>>, %arg1: memref<500x50xbf16, #tpu.memory_space<vmem>>, %arg2: memref<25x50x500xbf16, #tpu.memory_space<vmem>>, %arg3: memref<500x10xbf16, #tpu.memory_space<vmem>>, %arg4: memref<1x10xf32, #tpu.memory_space<vmem>>, %arg5: memref<2x10xf32, #tpu.memory_space<vmem>>, %arg6: memref<200x50xf32, #tpu.memory_space<vmem>>, %arg7: memref<50x50xbf16, #tpu.memory_space<vmem>>) attributes {dimension_semantics = [], scalar_prefetch = 0 : i64, scratch_operands = 2 : i64, tpu.core_type = #tpu.core_type<tc>} {
    %c0 = arith.constant 0 : index
    %c0_0 = arith.constant 0 : index
    %0 = vector.load %arg0[%c0, %c0_0] : memref<200x500xbf16, #tpu.memory_space<vmem>>, vector<200x500xbf16>
    %c0_1 = arith.constant 0 : index
    %c0_2 = arith.constant 0 : index
    %1 = vector.load %arg1[%c0_1, %c0_2] : memref<500x50xbf16, #tpu.memory_space<vmem>>, vector<500x50xbf16>
    %cst = arith.constant dense<0.000000e+00> : vector<200x50xf32>
    %2 = tpu.matmul %0, %1, %cst {dimension_numbers = #tpu.dot_dimension_numbers<[1], [0], [0], [1], [0, 0, 1, 1], [], []>} : vector<200x500xbf16>, vector<500x50xbf16>, vector<200x50xf32> -> vector<200x50xf32>
    %cst_3 = arith.constant dense<0.000000e+00> : vector<50xf32>
    %3 = vector.multi_reduction <add>, %2, %cst_3 [0] : vector<200x50xf32> to vector<50xf32>
    %4 = vector.shape_cast %3 : vector<50xf32> to vector<1x50xf32>
    %cst_4 = arith.constant 5.000000e-03 : f32
    %5 = vector.broadcast %cst_4 : f32 to vector<1x50xf32>
    %6 = arith.mulf %4, %5 : vector<1x50xf32>
    %7 = arith.mulf %2, %2 : vector<200x50xf32>
    %cst_5 = arith.constant dense<0.000000e+00> : vector<50xf32>
    %8 = vector.multi_reduction <add>, %7, %cst_5 [0] : vector<200x50xf32> to vector<50xf32>
    %9 = vector.shape_cast %8 : vector<50xf32> to vector<1x50xf32>
    %cst_6 = arith.constant 5.000000e-03 : f32
    %10 = vector.broadcast %cst_6 : f32 to vector<1x50xf32>
    %11 = arith.mulf %9, %10 : vector<1x50xf32>
    %12 = arith.mulf %6, %6 : vector<1x50xf32>
    %13 = arith.subf %11, %12 : vector<1x50xf32>
    %cst_7 = arith.constant 0.000000e+00 : f32
    %14 = vector.broadcast %cst_7 : f32 to vector<1x50xf32>
    %15 = arith.maximumf %13, %14 : vector<1x50xf32>
    %cst_8 = arith.constant 9.99999974E-6 : f32
    %16 = vector.broadcast %cst_8 : f32 to vector<1x50xf32>
    %17 = arith.addf %15, %16 : vector<1x50xf32>
    %18 = math.rsqrt %17 : vector<1x50xf32>
    %c0_9 = arith.constant 0 : index
    %c0_10 = arith.constant 0 : index
    %19 = vector.load %arg6[%c0_9, %c0_10] : memref<200x50xf32, #tpu.memory_space<vmem>>, vector<200x50xf32>
    tpu.vector_store %arg6[%c0_9, %c0_10], %2 {strides = array<i32>} : memref<200x50xf32, #tpu.memory_space<vmem>>, vector<200x50xf32>,
    %c0_11 = arith.constant 0 : index
    %c0_12 = arith.constant 0 : index
    %20 = vector.load %arg6[%c0_11, %c0_12] : memref<200x50xf32, #tpu.memory_space<vmem>>, vector<50x50xf32>
    %c50 = arith.constant 50 : index
    %c0_13 = arith.constant 0 : index
    %21 = vector.load %arg6[%c50, %c0_13] : memref<200x50xf32, #tpu.memory_space<vmem>>, vector<50x50xf32>
    %22 = arith.maximumf %20, %21 : vector<50x50xf32>
    %c100 = arith.constant 100 : index
    %c0_14 = arith.constant 0 : index
    %23 = vector.load %arg6[%c100, %c0_14] : memref<200x50xf32, #tpu.memory_space<vmem>>, vector<50x50xf32>
    %c150 = arith.constant 150 : index
    %c0_15 = arith.constant 0 : index
    %24 = vector.load %arg6[%c150, %c0_15] : memref<200x50xf32, #tpu.memory_space<vmem>>, vector<50x50xf32>
    %25 = arith.maximumf %23, %24 : vector<50x50xf32>
    %26 = arith.maximumf %22, %25 : vector<50x50xf32>
    %27 = vector.broadcast %6 : vector<1x50xf32> to vector<50x50xf32>
    %28 = arith.subf %26, %27 : vector<50x50xf32>
    %29 = vector.broadcast %18 : vector<1x50xf32> to vector<50x50xf32>
    %30 = arith.mulf %28, %29 : vector<50x50xf32>
    %cst_16 = arith.constant 0.000000e+00 : f32
    %31 = vector.broadcast %cst_16 : f32 to vector<50x50xf32>
    %32 = arith.maximumf %30, %31 : vector<50x50xf32>
    %33 = arith.truncf %32 : vector<50x50xf32> to vector<50x50xbf16>
    %c0_17 = arith.constant 0 : index
    %c0_18 = arith.constant 0 : index
    %34 = vector.load %arg7[%c0_17, %c0_18] : memref<50x50xbf16, #tpu.memory_space<vmem>>, vector<50x50xbf16>
    tpu.vector_store %arg7[%c0_17, %c0_18], %33 {strides = array<i32>} : memref<50x50xbf16, #tpu.memory_space<vmem>>, vector<50x50xbf16>,
    %cst_19 = arith.constant 0.000000e+00 : f32
    %35 = vector.broadcast %cst_19 : f32 to vector<2x500xf32>
    %c0_20 = arith.constant 0 : index
    %c0_21 = arith.constant 0 : index
    %36 = vector.load %arg7[%c0_20, %c0_21] : memref<50x50xbf16, #tpu.memory_space<vmem>>, vector<2x50xbf16>
    %c0_22 = arith.constant 0 : index
    %c0_23 = arith.constant 0 : index
    %c0_24 = arith.constant 0 : index
    %37 = vector.load %arg2[%c0_22, %c0_23, %c0_24] : memref<25x50x500xbf16, #tpu.memory_space<vmem>>, vector<1x50x500xbf16>
    %38 = vector.shape_cast %37 : vector<1x50x500xbf16> to vector<50x500xbf16>
    %cst_25 = arith.constant dense<0.000000e+00> : vector<2x500xf32>
    %39 = tpu.matmul %36, %38, %cst_25 {dimension_numbers = #tpu.dot_dimension_numbers<[1], [0], [0], [1], [0, 0, 1, 1], [], []>} : vector<2x50xbf16>, vector<50x500xbf16>, vector<2x500xf32> -> vector<2x500xf32>
    %40 = arith.addf %35, %39 : vector<2x500xf32>
    %c2 = arith.constant 2 : index
    %c0_26 = arith.constant 0 : index
    %41 = vector.load %arg7[%c2, %c0_26] : memref<50x50xbf16, #tpu.memory_space<vmem>>, vector<2x50xbf16>
    %c1 = arith.constant 1 : index
    %c0_27 = arith.constant 0 : index
    %c0_28 = arith.constant 0 : index
    %42 = vector.load %arg2[%c1, %c0_27, %c0_28] : memref<25x50x500xbf16, #tpu.memory_space<vmem>>, vector<1x50x500xbf16>
    %43 = vector.shape_cast %42 : vector<1x50x500xbf16> to vector<50x500xbf16>
    %cst_29 = arith.constant dense<0.000000e+00> : vector<2x500xf32>
    %44 = tpu.matmul %41, %43, %cst_29 {dimension_numbers = #tpu.dot_dimension_numbers<[1], [0], [0], [1], [0, 0, 1, 1], [], []>} : vector<2x50xbf16>, vector<50x500xbf16>, vector<2x500xf32> -> vector<2x500xf32>
    %45 = arith.addf %40, %44 : vector<2x500xf32>
    %c4 = arith.constant 4 : index
    %c0_30 = arith.constant 0 : index
    %46 = vector.load %arg7[%c4, %c0_30] : memref<50x50xbf16, #tpu.memory_space<vmem>>, vector<2x50xbf16>
    %c2_31 = arith.constant 2 : index
    %c0_32 = arith.constant 0 : index
    %c0_33 = arith.constant 0 : index
    %47 = vector.load %arg2[%c2_31, %c0_32, %c0_33] : memref<25x50x500xbf16, #tpu.memory_space<vmem>>, vector<1x50x500xbf16>
    %48 = vector.shape_cast %47 : vector<1x50x500xbf16> to vector<50x500xbf16>
    %cst_34 = arith.constant dense<0.000000e+00> : vector<2x500xf32>
    %49 = tpu.matmul %46, %48, %cst_34 {dimension_numbers = #tpu.dot_dimension_numbers<[1], [0], [0], [1], [0, 0, 1, 1], [], []>} : vector<2x50xbf16>, vector<50x500xbf16>, vector<2x500xf32> -> vector<2x500xf32>
    %50 = arith.addf %45, %49 : vector<2x500xf32>
    %c6 = arith.constant 6 : index
    %c0_35 = arith.constant 0 : index
    %51 = vector.load %arg7[%c6, %c0_35] : memref<50x50xbf16, #tpu.memory_space<vmem>>, vector<2x50xbf16>
    %c3 = arith.constant 3 : index
    %c0_36 = arith.constant 0 : index
    %c0_37 = arith.constant 0 : index
    %52 = vector.load %arg2[%c3, %c0_36, %c0_37] : memref<25x50x500xbf16, #tpu.memory_space<vmem>>, vector<1x50x500xbf16>
    %53 = vector.shape_cast %52 : vector<1x50x500xbf16> to vector<50x500xbf16>
    %cst_38 = arith.constant dense<0.000000e+00> : vector<2x500xf32>
    %54 = tpu.matmul %51, %53, %cst_38 {dimension_numbers = #tpu.dot_dimension_numbers<[1], [0], [0], [1], [0, 0, 1, 1], [], []>} : vector<2x50xbf16>, vector<50x500xbf16>, vector<2x500xf32> -> vector<2x500xf32>
    %55 = arith.addf %50, %54 : vector<2x500xf32>
    %c8 = arith.constant 8 : index
    %c0_39 = arith.constant 0 : index
    %56 = vector.load %arg7[%c8, %c0_39] : memref<50x50xbf16, #tpu.memory_space<vmem>>, vector<2x50xbf16>
    %c4_40 = arith.constant 4 : index
    %c0_41 = arith.constant 0 : index
    %c0_42 = arith.constant 0 : index
    %57 = vector.load %arg2[%c4_40, %c0_41, %c0_42] : memref<25x50x500xbf16, #tpu.memory_space<vmem>>, vector<1x50x500xbf16>
    %58 = vector.shape_cast %57 : vector<1x50x500xbf16> to vector<50x500xbf16>
    %cst_43 = arith.constant dense<0.000000e+00> : vector<2x500xf32>
    %59 = tpu.matmul %56, %58, %cst_43 {dimension_numbers = #tpu.dot_dimension_numbers<[1], [0], [0], [1], [0, 0, 1, 1], [], []>} : vector<2x50xbf16>, vector<50x500xbf16>, vector<2x500xf32> -> vector<2x500xf32>
    %60 = arith.addf %55, %59 : vector<2x500xf32>
    %c10 = arith.constant 10 : index
    %c0_44 = arith.constant 0 : index
    %61 = vector.load %arg7[%c10, %c0_44] : memref<50x50xbf16, #tpu.memory_space<vmem>>, vector<2x50xbf16>
    %c5 = arith.constant 5 : index
    %c0_45 = arith.constant 0 : index
    %c0_46 = arith.constant 0 : index
    %62 = vector.load %arg2[%c5, %c0_45, %c0_46] : memref<25x50x500xbf16, #tpu.memory_space<vmem>>, vector<1x50x500xbf16>
    %63 = vector.shape_cast %62 : vector<1x50x500xbf16> to vector<50x500xbf16>
    %cst_47 = arith.constant dense<0.000000e+00> : vector<2x500xf32>
    %64 = tpu.matmul %61, %63, %cst_47 {dimension_numbers = #tpu.dot_dimension_numbers<[1], [0], [0], [1], [0, 0, 1, 1], [], []>} : vector<2x50xbf16>, vector<50x500xbf16>, vector<2x500xf32> -> vector<2x500xf32>
    %65 = arith.addf %60, %64 : vector<2x500xf32>
    %c12 = arith.constant 12 : index
    %c0_48 = arith.constant 0 : index
    %66 = vector.load %arg7[%c12, %c0_48] : memref<50x50xbf16, #tpu.memory_space<vmem>>, vector<2x50xbf16>
    %c6_49 = arith.constant 6 : index
    %c0_50 = arith.constant 0 : index
    %c0_51 = arith.constant 0 : index
    %67 = vector.load %arg2[%c6_49, %c0_50, %c0_51] : memref<25x50x500xbf16, #tpu.memory_space<vmem>>, vector<1x50x500xbf16>
    %68 = vector.shape_cast %67 : vector<1x50x500xbf16> to vector<50x500xbf16>
    %cst_52 = arith.constant dense<0.000000e+00> : vector<2x500xf32>
    %69 = tpu.matmul %66, %68, %cst_52 {dimension_numbers = #tpu.dot_dimension_numbers<[1], [0], [0], [1], [0, 0, 1, 1], [], []>} : vector<2x50xbf16>, vector<50x500xbf16>, vector<2x500xf32> -> vector<2x500xf32>
    %70 = arith.addf %65, %69 : vector<2x500xf32>
    %c14 = arith.constant 14 : index
    %c0_53 = arith.constant 0 : index
    %71 = vector.load %arg7[%c14, %c0_53] : memref<50x50xbf16, #tpu.memory_space<vmem>>, vector<2x50xbf16>
    %c7 = arith.constant 7 : index
    %c0_54 = arith.constant 0 : index
    %c0_55 = arith.constant 0 : index
    %72 = vector.load %arg2[%c7, %c0_54, %c0_55] : memref<25x50x500xbf16, #tpu.memory_space<vmem>>, vector<1x50x500xbf16>
    %73 = vector.shape_cast %72 : vector<1x50x500xbf16> to vector<50x500xbf16>
    %cst_56 = arith.constant dense<0.000000e+00> : vector<2x500xf32>
    %74 = tpu.matmul %71, %73, %cst_56 {dimension_numbers = #tpu.dot_dimension_numbers<[1], [0], [0], [1], [0, 0, 1, 1], [], []>} : vector<2x50xbf16>, vector<50x500xbf16>, vector<2x500xf32> -> vector<2x500xf32>
    %75 = arith.addf %70, %74 : vector<2x500xf32>
    %c16 = arith.constant 16 : index
    %c0_57 = arith.constant 0 : index
    %76 = vector.load %arg7[%c16, %c0_57] : memref<50x50xbf16, #tpu.memory_space<vmem>>, vector<2x50xbf16>
    %c8_58 = arith.constant 8 : index
    %c0_59 = arith.constant 0 : index
    %c0_60 = arith.constant 0 : index
    %77 = vector.load %arg2[%c8_58, %c0_59, %c0_60] : memref<25x50x500xbf16, #tpu.memory_space<vmem>>, vector<1x50x500xbf16>
    %78 = vector.shape_cast %77 : vector<1x50x500xbf16> to vector<50x500xbf16>
    %cst_61 = arith.constant dense<0.000000e+00> : vector<2x500xf32>
    %79 = tpu.matmul %76, %78, %cst_61 {dimension_numbers = #tpu.dot_dimension_numbers<[1], [0], [0], [1], [0, 0, 1, 1], [], []>} : vector<2x50xbf16>, vector<50x500xbf16>, vector<2x500xf32> -> vector<2x500xf32>
    %80 = arith.addf %75, %79 : vector<2x500xf32>
    %c18 = arith.constant 18 : index
    %c0_62 = arith.constant 0 : index
    %81 = vector.load %arg7[%c18, %c0_62] : memref<50x50xbf16, #tpu.memory_space<vmem>>, vector<2x50xbf16>
    %c9 = arith.constant 9 : index
    %c0_63 = arith.constant 0 : index
    %c0_64 = arith.constant 0 : index
    %82 = vector.load %arg2[%c9, %c0_63, %c0_64] : memref<25x50x500xbf16, #tpu.memory_space<vmem>>, vector<1x50x500xbf16>
    %83 = vector.shape_cast %82 : vector<1x50x500xbf16> to vector<50x500xbf16>
    %cst_65 = arith.constant dense<0.000000e+00> : vector<2x500xf32>
    %84 = tpu.matmul %81, %83, %cst_65 {dimension_numbers = #tpu.dot_dimension_numbers<[1], [0], [0], [1], [0, 0, 1, 1], [], []>} : vector<2x50xbf16>, vector<50x500xbf16>, vector<2x500xf32> -> vector<2x500xf32>
    %85 = arith.addf %80, %84 : vector<2x500xf32>
    %c20 = arith.constant 20 : index
    %c0_66 = arith.constant 0 : index
    %86 = vector.load %arg7[%c20, %c0_66] : memref<50x50xbf16, #tpu.memory_space<vmem>>, vector<2x50xbf16>
    %c10_67 = arith.constant 10 : index
    %c0_68 = arith.constant 0 : index
    %c0_69 = arith.constant 0 : index
    %87 = vector.load %arg2[%c10_67, %c0_68, %c0_69] : memref<25x50x500xbf16, #tpu.memory_space<vmem>>, vector<1x50x500xbf16>
    %88 = vector.shape_cast %87 : vector<1x50x500xbf16> to vector<50x500xbf16>
    %cst_70 = arith.constant dense<0.000000e+00> : vector<2x500xf32>
    %89 = tpu.matmul %86, %88, %cst_70 {dimension_numbers = #tpu.dot_dimension_numbers<[1], [0], [0], [1], [0, 0, 1, 1], [], []>} : vector<2x50xbf16>, vector<50x500xbf16>, vector<2x500xf32> -> vector<2x500xf32>
    %90 = arith.addf %85, %89 : vector<2x500xf32>
    %c22 = arith.constant 22 : index
    %c0_71 = arith.constant 0 : index
    %91 = vector.load %arg7[%c22, %c0_71] : memref<50x50xbf16, #tpu.memory_space<vmem>>, vector<2x50xbf16>
    %c11 = arith.constant 11 : index
    %c0_72 = arith.constant 0 : index
    %c0_73 = arith.constant 0 : index
    %92 = vector.load %arg2[%c11, %c0_72, %c0_73] : memref<25x50x500xbf16, #tpu.memory_space<vmem>>, vector<1x50x500xbf16>
    %93 = vector.shape_cast %92 : vector<1x50x500xbf16> to vector<50x500xbf16>
    %cst_74 = arith.constant dense<0.000000e+00> : vector<2x500xf32>
    %94 = tpu.matmul %91, %93, %cst_74 {dimension_numbers = #tpu.dot_dimension_numbers<[1], [0], [0], [1], [0, 0, 1, 1], [], []>} : vector<2x50xbf16>, vector<50x500xbf16>, vector<2x500xf32> -> vector<2x500xf32>
    %95 = arith.addf %90, %94 : vector<2x500xf32>
    %c24 = arith.constant 24 : index
    %c0_75 = arith.constant 0 : index
    %96 = vector.load %arg7[%c24, %c0_75] : memref<50x50xbf16, #tpu.memory_space<vmem>>, vector<2x50xbf16>
    %c12_76 = arith.constant 12 : index
    %c0_77 = arith.constant 0 : index
    %c0_78 = arith.constant 0 : index
    %97 = vector.load %arg2[%c12_76, %c0_77, %c0_78] : memref<25x50x500xbf16, #tpu.memory_space<vmem>>, vector<1x50x500xbf16>
    %98 = vector.shape_cast %97 : vector<1x50x500xbf16> to vector<50x500xbf16>
    %cst_79 = arith.constant dense<0.000000e+00> : vector<2x500xf32>
    %99 = tpu.matmul %96, %98, %cst_79 {dimension_numbers = #tpu.dot_dimension_numbers<[1], [0], [0], [1], [0, 0, 1, 1], [], []>} : vector<2x50xbf16>, vector<50x500xbf16>, vector<2x500xf32> -> vector<2x500xf32>
    %100 = arith.addf %95, %99 : vector<2x500xf32>
    %c26 = arith.constant 26 : index
    %c0_80 = arith.constant 0 : index
    %101 = vector.load %arg7[%c26, %c0_80] : memref<50x50xbf16, #tpu.memory_space<vmem>>, vector<2x50xbf16>
    %c13 = arith.constant 13 : index
    %c0_81 = arith.constant 0 : index
    %c0_82 = arith.constant 0 : index
    %102 = vector.load %arg2[%c13, %c0_81, %c0_82] : memref<25x50x500xbf16, #tpu.memory_space<vmem>>, vector<1x50x500xbf16>
    %103 = vector.shape_cast %102 : vector<1x50x500xbf16> to vector<50x500xbf16>
    %cst_83 = arith.constant dense<0.000000e+00> : vector<2x500xf32>
    %104 = tpu.matmul %101, %103, %cst_83 {dimension_numbers = #tpu.dot_dimension_numbers<[1], [0], [0], [1], [0, 0, 1, 1], [], []>} : vector<2x50xbf16>, vector<50x500xbf16>, vector<2x500xf32> -> vector<2x500xf32>
    %105 = arith.addf %100, %104 : vector<2x500xf32>
    %c28 = arith.constant 28 : index
    %c0_84 = arith.constant 0 : index
    %106 = vector.load %arg7[%c28, %c0_84] : memref<50x50xbf16, #tpu.memory_space<vmem>>, vector<2x50xbf16>
    %c14_85 = arith.constant 14 : index
    %c0_86 = arith.constant 0 : index
    %c0_87 = arith.constant 0 : index
    %107 = vector.load %arg2[%c14_85, %c0_86, %c0_87] : memref<25x50x500xbf16, #tpu.memory_space<vmem>>, vector<1x50x500xbf16>
    %108 = vector.shape_cast %107 : vector<1x50x500xbf16> to vector<50x500xbf16>
    %cst_88 = arith.constant dense<0.000000e+00> : vector<2x500xf32>
    %109 = tpu.matmul %106, %108, %cst_88 {dimension_numbers = #tpu.dot_dimension_numbers<[1], [0], [0], [1], [0, 0, 1, 1], [], []>} : vector<2x50xbf16>, vector<50x500xbf16>, vector<2x500xf32> -> vector<2x500xf32>
    %110 = arith.addf %105, %109 : vector<2x500xf32>
    %c30 = arith.constant 30 : index
    %c0_89 = arith.constant 0 : index
    %111 = vector.load %arg7[%c30, %c0_89] : memref<50x50xbf16, #tpu.memory_space<vmem>>, vector<2x50xbf16>
    %c15 = arith.constant 15 : index
    %c0_90 = arith.constant 0 : index
    %c0_91 = arith.constant 0 : index
    %112 = vector.load %arg2[%c15, %c0_90, %c0_91] : memref<25x50x500xbf16, #tpu.memory_space<vmem>>, vector<1x50x500xbf16>
    %113 = vector.shape_cast %112 : vector<1x50x500xbf16> to vector<50x500xbf16>
    %cst_92 = arith.constant dense<0.000000e+00> : vector<2x500xf32>
    %114 = tpu.matmul %111, %113, %cst_92 {dimension_numbers = #tpu.dot_dimension_numbers<[1], [0], [0], [1], [0, 0, 1, 1], [], []>} : vector<2x50xbf16>, vector<50x500xbf16>, vector<2x500xf32> -> vector<2x500xf32>
    %115 = arith.addf %110, %114 : vector<2x500xf32>
    %c32 = arith.constant 32 : index
    %c0_93 = arith.constant 0 : index
    %116 = vector.load %arg7[%c32, %c0_93] : memref<50x50xbf16, #tpu.memory_space<vmem>>, vector<2x50xbf16>
    %c16_94 = arith.constant 16 : index
    %c0_95 = arith.constant 0 : index
    %c0_96 = arith.constant 0 : index
    %117 = vector.load %arg2[%c16_94, %c0_95, %c0_96] : memref<25x50x500xbf16, #tpu.memory_space<vmem>>, vector<1x50x500xbf16>
    %118 = vector.shape_cast %117 : vector<1x50x500xbf16> to vector<50x500xbf16>
    %cst_97 = arith.constant dense<0.000000e+00> : vector<2x500xf32>
    %119 = tpu.matmul %116, %118, %cst_97 {dimension_numbers = #tpu.dot_dimension_numbers<[1], [0], [0], [1], [0, 0, 1, 1], [], []>} : vector<2x50xbf16>, vector<50x500xbf16>, vector<2x500xf32> -> vector<2x500xf32>
    %120 = arith.addf %115, %119 : vector<2x500xf32>
    %c34 = arith.constant 34 : index
    %c0_98 = arith.constant 0 : index
    %121 = vector.load %arg7[%c34, %c0_98] : memref<50x50xbf16, #tpu.memory_space<vmem>>, vector<2x50xbf16>
    %c17 = arith.constant 17 : index
    %c0_99 = arith.constant 0 : index
    %c0_100 = arith.constant 0 : index
    %122 = vector.load %arg2[%c17, %c0_99, %c0_100] : memref<25x50x500xbf16, #tpu.memory_space<vmem>>, vector<1x50x500xbf16>
    %123 = vector.shape_cast %122 : vector<1x50x500xbf16> to vector<50x500xbf16>
    %cst_101 = arith.constant dense<0.000000e+00> : vector<2x500xf32>
    %124 = tpu.matmul %121, %123, %cst_101 {dimension_numbers = #tpu.dot_dimension_numbers<[1], [0], [0], [1], [0, 0, 1, 1], [], []>} : vector<2x50xbf16>, vector<50x500xbf16>, vector<2x500xf32> -> vector<2x500xf32>
    %125 = arith.addf %120, %124 : vector<2x500xf32>
    %c36 = arith.constant 36 : index
    %c0_102 = arith.constant 0 : index
    %126 = vector.load %arg7[%c36, %c0_102] : memref<50x50xbf16, #tpu.memory_space<vmem>>, vector<2x50xbf16>
    %c18_103 = arith.constant 18 : index
    %c0_104 = arith.constant 0 : index
    %c0_105 = arith.constant 0 : index
    %127 = vector.load %arg2[%c18_103, %c0_104, %c0_105] : memref<25x50x500xbf16, #tpu.memory_space<vmem>>, vector<1x50x500xbf16>
    %128 = vector.shape_cast %127 : vector<1x50x500xbf16> to vector<50x500xbf16>
    %cst_106 = arith.constant dense<0.000000e+00> : vector<2x500xf32>
    %129 = tpu.matmul %126, %128, %cst_106 {dimension_numbers = #tpu.dot_dimension_numbers<[1], [0], [0], [1], [0, 0, 1, 1], [], []>} : vector<2x50xbf16>, vector<50x500xbf16>, vector<2x500xf32> -> vector<2x500xf32>
    %130 = arith.addf %125, %129 : vector<2x500xf32>
    %c38 = arith.constant 38 : index
    %c0_107 = arith.constant 0 : index
    %131 = vector.load %arg7[%c38, %c0_107] : memref<50x50xbf16, #tpu.memory_space<vmem>>, vector<2x50xbf16>
    %c19 = arith.constant 19 : index
    %c0_108 = arith.constant 0 : index
    %c0_109 = arith.constant 0 : index
    %132 = vector.load %arg2[%c19, %c0_108, %c0_109] : memref<25x50x500xbf16, #tpu.memory_space<vmem>>, vector<1x50x500xbf16>
    %133 = vector.shape_cast %132 : vector<1x50x500xbf16> to vector<50x500xbf16>
    %cst_110 = arith.constant dense<0.000000e+00> : vector<2x500xf32>
    %134 = tpu.matmul %131, %133, %cst_110 {dimension_numbers = #tpu.dot_dimension_numbers<[1], [0], [0], [1], [0, 0, 1, 1], [], []>} : vector<2x50xbf16>, vector<50x500xbf16>, vector<2x500xf32> -> vector<2x500xf32>
    %135 = arith.addf %130, %134 : vector<2x500xf32>
    %c40 = arith.constant 40 : index
    %c0_111 = arith.constant 0 : index
    %136 = vector.load %arg7[%c40, %c0_111] : memref<50x50xbf16, #tpu.memory_space<vmem>>, vector<2x50xbf16>
    %c20_112 = arith.constant 20 : index
    %c0_113 = arith.constant 0 : index
    %c0_114 = arith.constant 0 : index
    %137 = vector.load %arg2[%c20_112, %c0_113, %c0_114] : memref<25x50x500xbf16, #tpu.memory_space<vmem>>, vector<1x50x500xbf16>
    %138 = vector.shape_cast %137 : vector<1x50x500xbf16> to vector<50x500xbf16>
    %cst_115 = arith.constant dense<0.000000e+00> : vector<2x500xf32>
    %139 = tpu.matmul %136, %138, %cst_115 {dimension_numbers = #tpu.dot_dimension_numbers<[1], [0], [0], [1], [0, 0, 1, 1], [], []>} : vector<2x50xbf16>, vector<50x500xbf16>, vector<2x500xf32> -> vector<2x500xf32>
    %140 = arith.addf %135, %139 : vector<2x500xf32>
    %c42 = arith.constant 42 : index
    %c0_116 = arith.constant 0 : index
    %141 = vector.load %arg7[%c42, %c0_116] : memref<50x50xbf16, #tpu.memory_space<vmem>>, vector<2x50xbf16>
    %c21 = arith.constant 21 : index
    %c0_117 = arith.constant 0 : index
    %c0_118 = arith.constant 0 : index
    %142 = vector.load %arg2[%c21, %c0_117, %c0_118] : memref<25x50x500xbf16, #tpu.memory_space<vmem>>, vector<1x50x500xbf16>
    %143 = vector.shape_cast %142 : vector<1x50x500xbf16> to vector<50x500xbf16>
    %cst_119 = arith.constant dense<0.000000e+00> : vector<2x500xf32>
    %144 = tpu.matmul %141, %143, %cst_119 {dimension_numbers = #tpu.dot_dimension_numbers<[1], [0], [0], [1], [0, 0, 1, 1], [], []>} : vector<2x50xbf16>, vector<50x500xbf16>, vector<2x500xf32> -> vector<2x500xf32>
    %145 = arith.addf %140, %144 : vector<2x500xf32>
    %c44 = arith.constant 44 : index
    %c0_120 = arith.constant 0 : index
    %146 = vector.load %arg7[%c44, %c0_120] : memref<50x50xbf16, #tpu.memory_space<vmem>>, vector<2x50xbf16>
    %c22_121 = arith.constant 22 : index
    %c0_122 = arith.constant 0 : index
    %c0_123 = arith.constant 0 : index
    %147 = vector.load %arg2[%c22_121, %c0_122, %c0_123] : memref<25x50x500xbf16, #tpu.memory_space<vmem>>, vector<1x50x500xbf16>
    %148 = vector.shape_cast %147 : vector<1x50x500xbf16> to vector<50x500xbf16>
    %cst_124 = arith.constant dense<0.000000e+00> : vector<2x500xf32>
    %149 = tpu.matmul %146, %148, %cst_124 {dimension_numbers = #tpu.dot_dimension_numbers<[1], [0], [0], [1], [0, 0, 1, 1], [], []>} : vector<2x50xbf16>, vector<50x500xbf16>, vector<2x500xf32> -> vector<2x500xf32>
    %150 = arith.addf %145, %149 : vector<2x500xf32>
    %c46 = arith.constant 46 : index
    %c0_125 = arith.constant 0 : index
    %151 = vector.load %arg7[%c46, %c0_125] : memref<50x50xbf16, #tpu.memory_space<vmem>>, vector<2x50xbf16>
    %c23 = arith.constant 23 : index
    %c0_126 = arith.constant 0 : index
    %c0_127 = arith.constant 0 : index
    %152 = vector.load %arg2[%c23, %c0_126, %c0_127] : memref<25x50x500xbf16, #tpu.memory_space<vmem>>, vector<1x50x500xbf16>
    %153 = vector.shape_cast %152 : vector<1x50x500xbf16> to vector<50x500xbf16>
    %cst_128 = arith.constant dense<0.000000e+00> : vector<2x500xf32>
    %154 = tpu.matmul %151, %153, %cst_128 {dimension_numbers = #tpu.dot_dimension_numbers<[1], [0], [0], [1], [0, 0, 1, 1], [], []>} : vector<2x50xbf16>, vector<50x500xbf16>, vector<2x500xf32> -> vector<2x500xf32>
    %155 = arith.addf %150, %154 : vector<2x500xf32>
    %c48 = arith.constant 48 : index
    %c0_129 = arith.constant 0 : index
    %156 = vector.load %arg7[%c48, %c0_129] : memref<50x50xbf16, #tpu.memory_space<vmem>>, vector<2x50xbf16>
    %c24_130 = arith.constant 24 : index
    %c0_131 = arith.constant 0 : index
    %c0_132 = arith.constant 0 : index
    %157 = vector.load %arg2[%c24_130, %c0_131, %c0_132] : memref<25x50x500xbf16, #tpu.memory_space<vmem>>, vector<1x50x500xbf16>
    %158 = vector.shape_cast %157 : vector<1x50x500xbf16> to vector<50x500xbf16>
    %cst_133 = arith.constant dense<0.000000e+00> : vector<2x500xf32>
    %159 = tpu.matmul %156, %158, %cst_133 {dimension_numbers = #tpu.dot_dimension_numbers<[1], [0], [0], [1], [0, 0, 1, 1], [], []>} : vector<2x50xbf16>, vector<50x500xbf16>, vector<2x500xf32> -> vector<2x500xf32>
    %160 = arith.addf %155, %159 : vector<2x500xf32>
    %cst_134 = arith.constant dense<0.000000e+00> : vector<500xf32>
    %161 = vector.multi_reduction <add>, %160, %cst_134 [0] : vector<2x500xf32> to vector<500xf32>
    %162 = vector.shape_cast %161 : vector<500xf32> to vector<1x500xf32>
    %cst_135 = arith.constant 2.000000e+00 : f32
    %163 = vector.broadcast %cst_135 : f32 to vector<1x500xf32>
    %164 = arith.divf %162, %163 : vector<1x500xf32>
    %165 = arith.mulf %160, %160 : vector<2x500xf32>
    %cst_136 = arith.constant dense<0.000000e+00> : vector<500xf32>
    %166 = vector.multi_reduction <add>, %165, %cst_136 [0] : vector<2x500xf32> to vector<500xf32>
    %167 = vector.shape_cast %166 : vector<500xf32> to vector<1x500xf32>
    %cst_137 = arith.constant 2.000000e+00 : f32
    %168 = vector.broadcast %cst_137 : f32 to vector<1x500xf32>
    %169 = arith.divf %167, %168 : vector<1x500xf32>
    %170 = arith.mulf %164, %164 : vector<1x500xf32>
    %171 = arith.subf %169, %170 : vector<1x500xf32>
    %cst_138 = arith.constant 0.000000e+00 : f32
    %172 = vector.broadcast %cst_138 : f32 to vector<1x500xf32>
    %173 = arith.maximumf %171, %172 : vector<1x500xf32>
    %174 = vector.broadcast %164 : vector<1x500xf32> to vector<2x500xf32>
    %175 = arith.subf %160, %174 : vector<2x500xf32>
    %cst_139 = arith.constant 9.99999974E-6 : f32
    %176 = vector.broadcast %cst_139 : f32 to vector<1x500xf32>
    %177 = arith.addf %173, %176 : vector<1x500xf32>
    %178 = math.rsqrt %177 : vector<1x500xf32>
    %179 = vector.broadcast %178 : vector<1x500xf32> to vector<2x500xf32>
    %180 = arith.mulf %175, %179 : vector<2x500xf32>
    %cst_140 = arith.constant 0.000000e+00 : f32
    %181 = vector.broadcast %cst_140 : f32 to vector<2x500xf32>
    %182 = arith.maximumf %180, %181 : vector<2x500xf32>
    %183 = arith.truncf %182 : vector<2x500xf32> to vector<2x500xbf16>
    %c0_141 = arith.constant 0 : index
    %c0_142 = arith.constant 0 : index
    %184 = vector.load %arg3[%c0_141, %c0_142] : memref<500x10xbf16, #tpu.memory_space<vmem>>, vector<500x10xbf16>
    %cst_143 = arith.constant dense<0.000000e+00> : vector<2x10xf32>
    %185 = tpu.matmul %183, %184, %cst_143 {dimension_numbers = #tpu.dot_dimension_numbers<[1], [0], [0], [1], [0, 0, 1, 1], [], []>} : vector<2x500xbf16>, vector<500x10xbf16>, vector<2x10xf32> -> vector<2x10xf32>
    %c0_144 = arith.constant 0 : index
    %c0_145 = arith.constant 0 : index
    %186 = vector.load %arg4[%c0_144, %c0_145] : memref<1x10xf32, #tpu.memory_space<vmem>>, vector<1x10xf32>
    %187 = vector.broadcast %186 : vector<1x10xf32> to vector<2x10xf32>
    %188 = arith.addf %185, %187 : vector<2x10xf32>
    %c0_146 = arith.constant 0 : index
    %c0_147 = arith.constant 0 : index
    %189 = vector.load %arg5[%c0_146, %c0_147] : memref<2x10xf32, #tpu.memory_space<vmem>>, vector<2x10xf32>
    tpu.vector_store %arg5[%c0_146, %c0_147], %188 {strides = array<i32>} : memref<2x10xf32, #tpu.memory_space<vmem>>, vector<2x10xf32>,
    return
  }
}

</mosaic_0001>

<llo_original>
// kernel: lenet5_fc_variance_unif_forward.2
$region0: #{lenet5_fc_variance_unif_forward.2}
  #allocation0 [shape = 'u32[]', space=smem, size = 0x4, offset = 0x4, fixed_abs, tag = 'smem constant byte address 0x4 - core index']
  #allocation1 [shape = 'u32[144,128]{1,0:T(1,128)}', space=vmem, size = 0x12000, scoped, tag = 'internal scratch']
  #allocation2 [shape = 'f32[1568,20]{1,0:T(8,128)}', space=vmem, size = 0xc4000, scoped, tag = 'scratch operand']
  %s0 = inlined_call_operand.vmem [shape: bf16[1568,25], index: 0, kind: input, shape index: {}]
  %s1 = inlined_call_operand.vmem [shape: bf16[25,20], index: 1, kind: input, shape index: {}]
  %s2 = inlined_call_operand.vmem [shape: bf16[392,20], index: 2, kind: output, shape index: {}]
  %s3 = sld [smem:[#allocation0]]
  $region18: #{lenet5_fc_variance_unif_forward.2} parent=0
    _
  %s5 = ssub.s32 1, %s3
  %s6 = scalar_select 0, %s5, %s3
  // Predicated region
  $region2: #{lenet5_fc_variance_unif_forward.2} parent=0 // pred_check
    _
  $region3: #{lenet5_fc_variance_unif_forward.2} parent=0 // pred_check_branch
    %8 = sbr.rel (0) target = $region5
  $region4: #{lenet5_fc_variance_unif_forward.2} parent=0 // pred_region
    _
  $region5: #{lenet5_fc_variance_unif_forward.2} parent=0 // pred_fallthru
    _
  // Predicated region
  $region6: #{lenet5_fc_variance_unif_forward.2} parent=0 // pred_check
    _
  $region7: #{lenet5_fc_variance_unif_forward.2} parent=0 // pred_check_branch
    %10 = sbr.rel (0) target = $region9
  $region8: #{lenet5_fc_variance_unif_forward.2} parent=0 // pred_region
    _
  $region9: #{lenet5_fc_variance_unif_forward.2} parent=0 // pred_fallthru
    _
  %v12 = vld [vmem:[%s0] sm:$0xf]
  %v13 = vld [vmem:[%s0 + $0x4] sm:$0xf]
  %v14 = vld [vmem:[%s0 + $0x8] sm:$0xf]
  %v15 = vld [vmem:[%s0 + $0xc] sm:$0xf]
  %v16 = vld [vmem:[%s0 + $0x10] sm:$0xf]
  %v17 = vld [vmem:[%s0 + $0x14] sm:$0xf]
  %v18 = vld [vmem:[%s0 + $0x18] sm:$0xf]
  %v19 = vld [vmem:[%s0 + $0x1c] sm:$0xf]
  %v20 = vld [vmem:[%s0 + $0x20] sm:$0xf]
  %v21 = vld [vmem:[%s0 + $0x24] sm:$0xf]
  %v22 = vld [vmem:[%s0 + $0x28] sm:$0xf]
  %v23 = vld [vmem:[%s0 + $0x2c] sm:$0xf]
  %v24 = vld [vmem:[%s0 + $0x30] sm:$0xf]
  %v25 = vld [vmem:[%s0 + $0x34] sm:$0xf]
  %v26 = vld [vmem:[%s0 + $0x38] sm:$0xf]
  %v27 = vld [vmem:[%s0 + $0x3c] sm:$0xf]
  %v28 = vld [vmem:[%s0 + $0x40] sm:$0xf]
  %v29 = vld [vmem:[%s0 + $0x44] sm:$0xf]
  %v30 = vld [vmem:[%s0 + $0x48] sm:$0xf]
  %v31 = vld [vmem:[%s0 + $0x4c] sm:$0xf]
  %v32 = vld [vmem:[%s0 + $0x50] sm:$0xf]
  %v33 = vld [vmem:[%s0 + $0x54] sm:$0xf]
  %v34 = vld [vmem:[%s0 + $0x58] sm:$0xf]
  %v35 = vld [vmem:[%s0 + $0x5c] sm:$0xf]
  %v36 = vld [vmem:[%s0 + $0x60] sm:$0xf]
  %v37 = vld [vmem:[%s0 + $0x64] sm:$0xf]
  %v38 = vld [vmem:[%s0 + $0x68] sm:$0xf]
  %v39 = vld [vmem:[%s0 + $0x6c] sm:$0xf]
  %v40 = vld [vmem:[%s0 + $0x70] sm:$0xf]
  %v41 = vld [vmem:[%s0 + $0x74] sm:$0xf]
  %v42 = vld [vmem:[%s0 + $0x78] sm:$0xf]
  %v43 = vld [vmem:[%s0 + $0x7c] sm:$0xf]
  %v44 = vld [vmem:[%s0 + $0x80] sm:$0xf]
  %v45 = vld [vmem:[%s0 + $0x84] sm:$0xf]
  %v46 = vld [vmem:[%s0 + $0x88] sm:$0xf]
  %v47 = vld [vmem:[%s0 + $0x8c] sm:$0xf]
  %v48 = vld [vmem:[%s0 + $0x90] sm:$0xf]
  %v49 = vld [vmem:[%s0 + $0x94] sm:$0xf]
  %v50 = vld [vmem:[%s0 + $0x98] sm:$0xf]
  %v51 = vld [vmem:[%s0 + $0x9c] sm:$0xf]
  %v52 = vld [vmem:[%s0 + $0xa0] sm:$0xf]
  %v53 = vld [vmem:[%s0 + $0xa4] sm:$0xf]
  %v54 = vld [vmem:[%s0 + $0xa8] sm:$0xf]
  %v55 = vld [vmem:[%s0 + $0xac] sm:$0xf]
  %v56 = vld [vmem:[%s0 + $0xb0] sm:$0xf]
  %v57 = vld [vmem:[%s0 + $0xb4] sm:$0xf]
  %v58 = vld [vmem:[%s0 + $0xb8] sm:$0xf]
  %v59 = vld [vmem:[%s0 + $0xbc] sm:$0xf]
  %v60 = vld [vmem:[%s0 + $0xc0] sm:$0xf]
  %v61 = vld [vmem:[%s0 + $0xc4] sm:$0xf]
  %v62 = vld [vmem:[%s0 + $0xc8] sm:$0xf]
  %v63 = vld [vmem:[%s0 + $0xcc] sm:$0xf]
  %v64 = vld [vmem:[%s0 + $0xd0] sm:$0xf]
  %v65 = vld [vmem:[%s0 + $0xd4] sm:$0xf]
  %v66 = vld [vmem:[%s0 + $0xd8] sm:$0xf]
  %v67 = vld [vmem:[%s0 + $0xdc] sm:$0xf]
  %v68 = vld [vmem:[%s0 + $0xe0] sm:$0xf]
  %v69 = vld [vmem:[%s0 + $0xe4] sm:$0xf]
  %v70 = vld [vmem:[%s0 + $0xe8] sm:$0xf]
  %v71 = vld [vmem:[%s0 + $0xec] sm:$0xf]
  %v72 = vld [vmem:[%s0 + $0xf0] sm:$0xf]
  %v73 = vld [vmem:[%s0 + $0xf4] sm:$0xf]
  %v74 = vld [vmem:[%s0 + $0xf8] sm:$0xf]
  %v75 = vld [vmem:[%s0 + $0xfc] sm:$0xf]
  %v76 = vld [vmem:[%s0 + $0x100] sm:$0xf]
  %v77 = vld [vmem:[%s0 + $0x104] sm:$0xf]
  %v78 = vld [vmem:[%s0 + $0x108] sm:$0xf]
  %v79 = vld [vmem:[%s0 + $0x10c] sm:$0xf]
  %v80 = vld [vmem:[%s0 + $0x110] sm:$0xf]
  %v81 = vld [vmem:[%s0 + $0x114] sm:$0xf]
  %v82 = vld [vmem:[%s0 + $0x118] sm:$0xf]
  %v83 = vld [vmem:[%s0 + $0x11c] sm:$0xf]
  %v84 = vld [vmem:[%s0 + $0x120] sm:$0xf]
  %v85 = vld [vmem:[%s0 + $0x124] sm:$0xf]
  %v86 = vld [vmem:[%s0 + $0x128] sm:$0xf]
  %v87 = vld [vmem:[%s0 + $0x12c] sm:$0xf]
  %v88 = vld [vmem:[%s0 + $0x130] sm:$0xf]
  %v89 = vld [vmem:[%s0 + $0x134] sm:$0xf]
  %v90 = vld [vmem:[%s0 + $0x138] sm:$0xf]
  %v91 = vld [vmem:[%s0 + $0x13c] sm:$0xf]
  %v92 = vld [vmem:[%s0 + $0x140] sm:$0xf]
  %v93 = vld [vmem:[%s0 + $0x144] sm:$0xf]
  %v94 = vld [vmem:[%s0 + $0x148] sm:$0xf]
  %v95 = vld [vmem:[%s0 + $0x14c] sm:$0xf]
  %v96 = vld [vmem:[%s0 + $0x150] sm:$0xf]
  %v97 = vld [vmem:[%s0 + $0x154] sm:$0xf]
  %v98 = vld [vmem:[%s0 + $0x158] sm:$0xf]
  %v99 = vld [vmem:[%s0 + $0x15c] sm:$0xf]
  %v100 = vld [vmem:[%s0 + $0x160] sm:$0xf]
  %v101 = vld [vmem:[%s0 + $0x164] sm:$0xf]
  %v102 = vld [vmem:[%s0 + $0x168] sm:$0xf]
  %v103 = vld [vmem:[%s0 + $0x16c] sm:$0xf]
  %v104 = vld [vmem:[%s0 + $0x170] sm:$0xf]
  %v105 = vld [vmem:[%s0 + $0x174] sm:$0xf]
  %v106 = vld [vmem:[%s0 + $0x178] sm:$0xf]
  %v107 = vld [vmem:[%s0 + $0x17c] sm:$0xf]
  %v108 = vld [vmem:[%s0 + $0x180] sm:$0xf]
  %v109 = vld [vmem:[%s0 + $0x184] sm:$0xf]
  %v110 = vld [vmem:[%s0 + $0x188] sm:$0xf]
  %v111 = vld [vmem:[%s0 + $0x18c] sm:$0xf]
  %v112 = vld [vmem:[%s0 + $0x190] sm:$0xf]
  %v113 = vld [vmem:[%s0 + $0x194] sm:$0xf]
  %v114 = vld [vmem:[%s0 + $0x198] sm:$0xf]
  %v115 = vld [vmem:[%s0 + $0x19c] sm:$0xf]
  %v116 = vld [vmem:[%s0 + $0x1a0] sm:$0xf]
  %v117 = vld [vmem:[%s0 + $0x1a4] sm:$0xf]
  %v118 = vld [vmem:[%s0 + $0x1a8] sm:$0xf]
  %v119 = vld [vmem:[%s0 + $0x1ac] sm:$0xf]
  %v120 = vld [vmem:[%s0 + $0x1b0] sm:$0xf]
  %v121 = vld [vmem:[%s0 + $0x1b4] sm:$0xf]
  %v122 = vld [vmem:[%s0 + $0x1b8] sm:$0xf]
  %v123 = vld [vmem:[%s0 + $0x1bc] sm:$0xf]
  %v124 = vld [vmem:[%s0 + $0x1c0] sm:$0xf]
  %v125 = vld [vmem:[%s0 + $0x1c4] sm:$0xf]
  %v126 = vld [vmem:[%s0 + $0x1c8] sm:$0xf]
  %v127 = vld [vmem:[%s0 + $0x1cc] sm:$0xf]
  %v128 = vld [vmem:[%s0 + $0x1d0] sm:$0xf]
  %v129 = vld [vmem:[%s0 + $0x1d4] sm:$0xf]
  %v130 = vld [vmem:[%s0 + $0x1d8] sm:$0xf]
  %v131 = vld [vmem:[%s0 + $0x1dc] sm:$0xf]
  %v132 = vld [vmem:[%s0 + $0x1e0] sm:$0xf]
  %v133 = vld [vmem:[%s0 + $0x1e4] sm:$0xf]
  %v134 = vld [vmem:[%s0 + $0x1e8] sm:$0xf]
  %v135 = vld [vmem:[%s0 + $0x1ec] sm:$0xf]
  %v136 = vld [vmem:[%s0 + $0x1f0] sm:$0xf]
  %v137 = vld [vmem:[%s0 + $0x1f4] sm:$0xf]
  %v138 = vld [vmem:[%s0 + $0x1f8] sm:$0xf]
  %v139 = vld [vmem:[%s0 + $0x1fc] sm:$0xf]
  %v140 = vld [vmem:[%s0 + $0x200] sm:$0xf]
  %v141 = vld [vmem:[%s0 + $0x204] sm:$0xf]
  %v142 = vld [vmem:[%s0 + $0x208] sm:$0xf]
  %v143 = vld [vmem:[%s0 + $0x20c] sm:$0xf]
  %v144 = vld [vmem:[%s0 + $0x210] sm:$0xf]
  %v145 = vld [vmem:[%s0 + $0x214] sm:$0xf]
  %v146 = vld [vmem:[%s0 + $0x218] sm:$0xf]
  %v147 = vld [vmem:[%s0 + $0x21c] sm:$0xf]
  %v148 = vld [vmem:[%s0 + $0x220] sm:$0xf]
  %v149 = vld [vmem:[%s0 + $0x224] sm:$0xf]
  %v150 = vld [vmem:[%s0 + $0x228] sm:$0xf]
  %v151 = vld [vmem:[%s0 + $0x22c] sm:$0xf]
  %v152 = vld [vmem:[%s0 + $0x230] sm:$0xf]
  %v153 = vld [vmem:[%s0 + $0x234] sm:$0xf]
  %v154 = vld [vmem:[%s0 + $0x238] sm:$0xf]
  %v155 = vld [vmem:[%s0 + $0x23c] sm:$0xf]
  %v156 = vld [vmem:[%s0 + $0x240] sm:$0xf]
  %v157 = vld [vmem:[%s0 + $0x244] sm:$0xf]
  %v158 = vld [vmem:[%s0 + $0x248] sm:$0xf]
  %v159 = vld [vmem:[%s0 + $0x24c] sm:$0xf]
  %v160 = vld [vmem:[%s0 + $0x250] sm:$0xf]
  %v161 = vld [vmem:[%s0 + $0x254] sm:$0xf]
  %v162 = vld [vmem:[%s0 + $0x258] sm:$0xf]
  %v163 = vld [vmem:[%s0 + $0x25c] sm:$0xf]
  %v164 = vld [vmem:[%s0 + $0x260] sm:$0xf]
  %v165 = vld [vmem:[%s0 + $0x264] sm:$0xf]
  %v166 = vld [vmem:[%s0 + $0x268] sm:$0xf]
  %v167 = vld [vmem:[%s0 + $0x26c] sm:$0xf]
  %v168 = vld [vmem:[%s0 + $0x270] sm:$0xf]
  %v169 = vld [vmem:[%s0 + $0x274] sm:$0xf]
  %v170 = vld [vmem:[%s0 + $0x278] sm:$0xf]
  %v171 = vld [vmem:[%s0 + $0x27c] sm:$0xf]
  %v172 = vld [vmem:[%s0 + $0x280] sm:$0xf]
  %v173 = vld [vmem:[%s0 + $0x284] sm:$0xf]
  %v174 = vld [vmem:[%s0 + $0x288] sm:$0xf]
  %v175 = vld [vmem:[%s0 + $0x28c] sm:$0xf]
  %v176 = vld [vmem:[%s0 + $0x290] sm:$0xf]
  %v177 = vld [vmem:[%s0 + $0x294] sm:$0xf]
  %v178 = vld [vmem:[%s0 + $0x298] sm:$0xf]
  %v179 = vld [vmem:[%s0 + $0x29c] sm:$0xf]
  %v180 = vld [vmem:[%s0 + $0x2a0] sm:$0xf]
  %v181 = vld [vmem:[%s0 + $0x2a4] sm:$0xf]
  %v182 = vld [vmem:[%s0 + $0x2a8] sm:$0xf]
  %v183 = vld [vmem:[%s0 + $0x2ac] sm:$0xf]
  %v184 = vld [vmem:[%s0 + $0x2b0] sm:$0xf]
  %v185 = vld [vmem:[%s0 + $0x2b4] sm:$0xf]
  %v186 = vld [vmem:[%s0 + $0x2b8] sm:$0xf]
  %v187 = vld [vmem:[%s0 + $0x2bc] sm:$0xf]
  %v188 = vld [vmem:[%s0 + $0x2c0] sm:$0xf]
  %v189 = vld [vmem:[%s0 + $0x2c4] sm:$0xf]
  %v190 = vld [vmem:[%s0 + $0x2c8] sm:$0xf]
  %v191 = vld [vmem:[%s0 + $0x2cc] sm:$0xf]
  %v192 = vld [vmem:[%s0 + $0x2d0] sm:$0xf]
  %v193 = vld [vmem:[%s0 + $0x2d4] sm:$0xf]
  %v194 = vld [vmem:[%s0 + $0x2d8] sm:$0xf]
  %v195 = vld [vmem:[%s0 + $0x2dc] sm:$0xf]
  %v196 = vld [vmem:[%s0 + $0x2e0] sm:$0xf]
  %v197 = vld [vmem:[%s0 + $0x2e4] sm:$0xf]
  %v198 = vld [vmem:[%s0 + $0x2e8] sm:$0xf]
  %v199 = vld [vmem:[%s0 + $0x2ec] sm:$0xf]
  %v200 = vld [vmem:[%s0 + $0x2f0] sm:$0xf]
  %v201 = vld [vmem:[%s0 + $0x2f4] sm:$0xf]
  %v202 = vld [vmem:[%s0 + $0x2f8] sm:$0xf]
  %v203 = vld [vmem:[%s0 + $0x2fc] sm:$0xf]
  %v204 = vld [vmem:[%s0 + $0x300] sm:$0xf]
  %v205 = vld [vmem:[%s0 + $0x304] sm:$0xf]
  %v206 = vld [vmem:[%s0 + $0x308] sm:$0xf]
  %v207 = vld [vmem:[%s0 + $0x30c] sm:$0xf]
  %v208 = vld [vmem:[%s1] sm:$0xf]
  %v209 = vld [vmem:[%s1 + $0x4] sm:$0xf]
  %v210 = vld [vmem:[%s1 + $0x8] sm:$0xf]
  %v211 = vld [vmem:[%s1 + $0xc] sm:$0x1]
  %v408 = vunpack.c.l.b16 %v12
  %v409 = vunpack.c.l.b16 %v13
  %v410 = vunpack.c.l.b16 %v14
  %v411 = vunpack.c.l.b16 %v15
  %v412 = vunpack.c.l.b16 %v16
  %v413 = vunpack.c.l.b16 %v17
  %v414 = vunpack.c.l.b16 %v18
  %v415 = vunpack.c.l.b16 %v19
  %v416 = vunpack.c.l.b16 %v20
  %v417 = vunpack.c.l.b16 %v21
  %v418 = vunpack.c.l.b16 %v22
  %v419 = vunpack.c.l.b16 %v23
  %v420 = vunpack.c.l.b16 %v24
  %v421 = vunpack.c.l.b16 %v25
  %v422 = vunpack.c.l.b16 %v26
  %v423 = vunpack.c.l.b16 %v27
  %v424 = vunpack.c.l.b16 %v28
  %v425 = vunpack.c.l.b16 %v29
  %v426 = vunpack.c.l.b16 %v30
  %v427 = vunpack.c.l.b16 %v31
  %v428 = vunpack.c.l.b16 %v32
  %v429 = vunpack.c.l.b16 %v33
  %v430 = vunpack.c.l.b16 %v34
  %v431 = vunpack.c.l.b16 %v35
  %v432 = vunpack.c.l.b16 %v36
  %v433 = vunpack.c.l.b16 %v37
  %v434 = vunpack.c.l.b16 %v38
  %v435 = vunpack.c.l.b16 %v39
  %v436 = vunpack.c.l.b16 %v40
  %v437 = vunpack.c.l.b16 %v41
  %v438 = vunpack.c.l.b16 %v42
  %v439 = vunpack.c.l.b16 %v43
  %v440 = vunpack.c.l.b16 %v44
  %v441 = vunpack.c.l.b16 %v45
  %v442 = vunpack.c.l.b16 %v46
  %v443 = vunpack.c.l.b16 %v47
  %v444 = vunpack.c.l.b16 %v48
  %v445 = vunpack.c.l.b16 %v49
  %v446 = vunpack.c.l.b16 %v50
  %v447 = vunpack.c.l.b16 %v51
  %v448 = vunpack.c.l.b16 %v52
  %v449 = vunpack.c.l.b16 %v53
  %v450 = vunpack.c.l.b16 %v54
  %v451 = vunpack.c.l.b16 %v55
  %v452 = vunpack.c.l.b16 %v56
  %v453 = vunpack.c.l.b16 %v57
  %v454 = vunpack.c.l.b16 %v58
  %v455 = vunpack.c.l.b16 %v59
  %v456 = vunpack.c.l.b16 %v60
  %v457 = vunpack.c.l.b16 %v61
  %v458 = vunpack.c.l.b16 %v62
  %v459 = vunpack.c.l.b16 %v63
  %v460 = vunpack.c.l.b16 %v64
  %v461 = vunpack.c.l.b16 %v65
  %v462 = vunpack.c.l.b16 %v66
  %v463 = vunpack.c.l.b16 %v67
  %v464 = vunpack.c.l.b16 %v68
  %v465 = vunpack.c.l.b16 %v69
  %v466 = vunpack.c.l.b16 %v70
  %v467 = vunpack.c.l.b16 %v71
  %v468 = vunpack.c.l.b16 %v72
  %v469 = vunpack.c.l.b16 %v73
  %v470 = vunpack.c.l.b16 %v74
  %v471 = vunpack.c.l.b16 %v75
  %v472 = vunpack.c.l.b16 %v76
  %v473 = vunpack.c.l.b16 %v77
  %v474 = vunpack.c.l.b16 %v78
  %v475 = vunpack.c.l.b16 %v79
  %v476 = vunpack.c.l.b16 %v80
  %v477 = vunpack.c.l.b16 %v81
  %v478 = vunpack.c.l.b16 %v82
  %v479 = vunpack.c.l.b16 %v83
  %v480 = vunpack.c.l.b16 %v84
  %v481 = vunpack.c.l.b16 %v85
  %v482 = vunpack.c.l.b16 %v86
  %v483 = vunpack.c.l.b16 %v87
  %v484 = vunpack.c.l.b16 %v88
  %v485 = vunpack.c.l.b16 %v89
  %v486 = vunpack.c.l.b16 %v90
  %v487 = vunpack.c.l.b16 %v91
  %v488 = vunpack.c.l.b16 %v92
  %v489 = vunpack.c.l.b16 %v93
  %v490 = vunpack.c.l.b16 %v94
  %v491 = vunpack.c.l.b16 %v95
  %v492 = vunpack.c.l.b16 %v96
  %v493 = vunpack.c.l.b16 %v97
  %v494 = vunpack.c.l.b16 %v98
  %v495 = vunpack.c.l.b16 %v99
  %v496 = vunpack.c.l.b16 %v100
  %v497 = vunpack.c.l.b16 %v101
  %v498 = vunpack.c.l.b16 %v102
  %v499 = vunpack.c.l.b16 %v103
  %v500 = vunpack.c.l.b16 %v104
  %v501 = vunpack.c.l.b16 %v105
  %v502 = vunpack.c.l.b16 %v106
  %v503 = vunpack.c.l.b16 %v107
  %v504 = vunpack.c.l.b16 %v108
  %v505 = vunpack.c.l.b16 %v109
  %v506 = vunpack.c.l.b16 %v110
  %v507 = vunpack.c.l.b16 %v111
  %v508 = vunpack.c.l.b16 %v112
  %v509 = vunpack.c.l.b16 %v113
  %v510 = vunpack.c.l.b16 %v114
  %v511 = vunpack.c.l.b16 %v115
  %v512 = vunpack.c.l.b16 %v116
  %v513 = vunpack.c.l.b16 %v117
  %v514 = vunpack.c.l.b16 %v118
  %v515 = vunpack.c.l.b16 %v119
  %v516 = vunpack.c.l.b16 %v120
  %v517 = vunpack.c.l.b16 %v121
  %v518 = vunpack.c.l.b16 %v122
  %v519 = vunpack.c.l.b16 %v123
  %v520 = vunpack.c.l.b16 %v124
  %v521 = vunpack.c.l.b16 %v125
  %v522 = vunpack.c.l.b16 %v126
  %v523 = vunpack.c.l.b16 %v127
  %v524 = vunpack.c.l.b16 %v128
  %v525 = vunpack.c.l.b16 %v129
  %v526 = vunpack.c.l.b16 %v130
  %v527 = vunpack.c.l.b16 %v131
  %v528 = vunpack.c.l.b16 %v132
  %v529 = vunpack.c.l.b16 %v133
  %v530 = vunpack.c.l.b16 %v134
  %v531 = vunpack.c.l.b16 %v135
  %v532 = vunpack.c.l.b16 %v136
  %v533 = vunpack.c.l.b16 %v137
  %v534 = vunpack.c.l.b16 %v138
  %v535 = vunpack.c.l.b16 %v139
  %v536 = vunpack.c.l.b16 %v140
  %v537 = vunpack.c.l.b16 %v141
  %v538 = vunpack.c.l.b16 %v142
  %v539 = vunpack.c.l.b16 %v143
  %v540 = vunpack.c.l.b16 %v144
  %v541 = vunpack.c.l.b16 %v145
  %v542 = vunpack.c.l.b16 %v146
  %v543 = vunpack.c.l.b16 %v147
  %v544 = vunpack.c.l.b16 %v148
  %v545 = vunpack.c.l.b16 %v149
  %v546 = vunpack.c.l.b16 %v150
  %v547 = vunpack.c.l.b16 %v151
  %v548 = vunpack.c.l.b16 %v152
  %v549 = vunpack.c.l.b16 %v153
  %v550 = vunpack.c.l.b16 %v154
  %v551 = vunpack.c.l.b16 %v155
  %v552 = vunpack.c.l.b16 %v156
  %v553 = vunpack.c.l.b16 %v157
  %v554 = vunpack.c.l.b16 %v158
  %v555 = vunpack.c.l.b16 %v159
  %v556 = vunpack.c.l.b16 %v160
  %v557 = vunpack.c.l.b16 %v161
  %v558 = vunpack.c.l.b16 %v162
  %v559 = vunpack.c.l.b16 %v163
  %v560 = vunpack.c.l.b16 %v164
  %v561 = vunpack.c.l.b16 %v165
  %v562 = vunpack.c.l.b16 %v166
  %v563 = vunpack.c.l.b16 %v167
  %v564 = vunpack.c.l.b16 %v168
  %v565 = vunpack.c.l.b16 %v169
  %v566 = vunpack.c.l.b16 %v170
  %v567 = vunpack.c.l.b16 %v171
  %v568 = vunpack.c.l.b16 %v172
  %v569 = vunpack.c.l.b16 %v173
  %v570 = vunpack.c.l.b16 %v174
  %v571 = vunpack.c.l.b16 %v175
  %v572 = vunpack.c.l.b16 %v176
  %v573 = vunpack.c.l.b16 %v177
  %v574 = vunpack.c.l.b16 %v178
  %v575 = vunpack.c.l.b16 %v179
  %v576 = vunpack.c.l.b16 %v180
  %v577 = vunpack.c.l.b16 %v181
  %v578 = vunpack.c.l.b16 %v182
  %v579 = vunpack.c.l.b16 %v183
  %v580 = vunpack.c.l.b16 %v184
  %v581 = vunpack.c.l.b16 %v185
  %v582 = vunpack.c.l.b16 %v186
  %v583 = vunpack.c.l.b16 %v187
  %v584 = vunpack.c.l.b16 %v188
  %v585 = vunpack.c.l.b16 %v189
  %v586 = vunpack.c.l.b16 %v190
  %v587 = vunpack.c.l.b16 %v191
  %v588 = vunpack.c.l.b16 %v192
  %v589 = vunpack.c.l.b16 %v193
  %v590 = vunpack.c.l.b16 %v194
  %v591 = vunpack.c.l.b16 %v195
  %v592 = vunpack.c.l.b16 %v196
  %v593 = vunpack.c.l.b16 %v197
  %v594 = vunpack.c.l.b16 %v198
  %v595 = vunpack.c.l.b16 %v199
  %v596 = vunpack.c.l.b16 %v200
  %v597 = vunpack.c.l.b16 %v201
  %v598 = vunpack.c.l.b16 %v202
  %v599 = vunpack.c.l.b16 %v203
  %v600 = vunpack.c.l.b16 %v204
  %v601 = vunpack.c.l.b16 %v205
  %v602 = vunpack.c.l.b16 %v206
  %v603 = vunpack.c.l.b16 %v207
  %v604 = vpack.c.b16 %v409, %v408
  %v605 = vpack.c.b16 %v411, %v410
  %v606 = vpack.c.b16 %v413, %v412
  %v607 = vpack.c.b16 %v415, %v414
  %v608 = vpack.c.b16 %v417, %v416
  %v609 = vpack.c.b16 %v419, %v418
  %v610 = vpack.c.b16 %v421, %v420
  %v611 = vpack.c.b16 %v423, %v422
  %v612 = vpack.c.b16 %v425, %v424
  %v613 = vpack.c.b16 %v427, %v426
  %v614 = vpack.c.b16 %v429, %v428
  %v615 = vpack.c.b16 %v431, %v430
  %v616 = vpack.c.b16 %v433, %v432
  %v617 = vpack.c.b16 %v435, %v434
  %v618 = vpack.c.b16 %v437, %v436
  %v619 = vpack.c.b16 %v439, %v438
  %v620 = vpack.c.b16 %v441, %v440
  %v621 = vpack.c.b16 %v443, %v442
  %v622 = vpack.c.b16 %v445, %v444
  %v623 = vpack.c.b16 %v447, %v446
  %v624 = vpack.c.b16 %v449, %v448
  %v625 = vpack.c.b16 %v451, %v450
  %v626 = vpack.c.b16 %v453, %v452
  %v627 = vpack.c.b16 %v455, %v454
  %v628 = vpack.c.b16 %v457, %v456
  %v629 = vpack.c.b16 %v459, %v458
  %v630 = vpack.c.b16 %v461, %v460
  %v631 = vpack.c.b16 %v463, %v462
  %v632 = vpack.c.b16 %v465, %v464
  %v633 = vpack.c.b16 %v467, %v466
  %v634 = vpack.c.b16 %v469, %v468
  %v635 = vpack.c.b16 %v471, %v470
  %v636 = vpack.c.b16 %v473, %v472
  %v637 = vpack.c.b16 %v475, %v474
  %v638 = vpack.c.b16 %v477, %v476
  %v639 = vpack.c.b16 %v479, %v478
  %v640 = vpack.c.b16 %v481, %v480
  %v641 = vpack.c.b16 %v483, %v482
  %v642 = vpack.c.b16 %v485, %v484
  %v643 = vpack.c.b16 %v487, %v486
  %v644 = vpack.c.b16 %v489, %v488
  %v645 = vpack.c.b16 %v491, %v490
  %v646 = vpack.c.b16 %v493, %v492
  %v647 = vpack.c.b16 %v495, %v494
  %v648 = vpack.c.b16 %v497, %v496
  %v649 = vpack.c.b16 %v499, %v498
  %v650 = vpack.c.b16 %v501, %v500
  %v651 = vpack.c.b16 %v503, %v502
  %v652 = vpack.c.b16 %v505, %v504
  %v653 = vpack.c.b16 %v507, %v506
  %v654 = vpack.c.b16 %v509, %v508
  %v655 = vpack.c.b16 %v511, %v510
  %v656 = vpack.c.b16 %v513, %v512
  %v657 = vpack.c.b16 %v515, %v514
  %v658 = vpack.c.b16 %v517, %v516
  %v659 = vpack.c.b16 %v519, %v518
  %v660 = vpack.c.b16 %v521, %v520
  %v661 = vpack.c.b16 %v523, %v522
  %v662 = vpack.c.b16 %v525, %v524
  %v663 = vpack.c.b16 %v527, %v526
  %v664 = vpack.c.b16 %v529, %v528
  %v665 = vpack.c.b16 %v531, %v530
  %v666 = vpack.c.b16 %v533, %v532
  %v667 = vpack.c.b16 %v535, %v534
  %v668 = vpack.c.b16 %v537, %v536
  %v669 = vpack.c.b16 %v539, %v538
  %v670 = vpack.c.b16 %v541, %v540
  %v671 = vpack.c.b16 %v543, %v542
  %v672 = vpack.c.b16 %v545, %v544
  %v673 = vpack.c.b16 %v547, %v546
  %v674 = vpack.c.b16 %v549, %v548
  %v675 = vpack.c.b16 %v551, %v550
  %v676 = vpack.c.b16 %v553, %v552
  %v677 = vpack.c.b16 %v555, %v554
  %v678 = vpack.c.b16 %v557, %v556
  %v679 = vpack.c.b16 %v559, %v558
  %v680 = vpack.c.b16 %v561, %v560
  %v681 = vpack.c.b16 %v563, %v562
  %v682 = vpack.c.b16 %v565, %v564
  %v683 = vpack.c.b16 %v567, %v566
  %v684 = vpack.c.b16 %v569, %v568
  %v685 = vpack.c.b16 %v571, %v570
  %v686 = vpack.c.b16 %v573, %v572
  %v687 = vpack.c.b16 %v575, %v574
  %v688 = vpack.c.b16 %v577, %v576
  %v689 = vpack.c.b16 %v579, %v578
  %v690 = vpack.c.b16 %v581, %v580
  %v691 = vpack.c.b16 %v583, %v582
  %v692 = vpack.c.b16 %v585, %v584
  %v693 = vpack.c.b16 %v587, %v586
  %v694 = vpack.c.b16 %v589, %v588
  %v695 = vpack.c.b16 %v591, %v590
  %v696 = vpack.c.b16 %v593, %v592
  %v697 = vpack.c.b16 %v595, %v594
  %v698 = vpack.c.b16 %v597, %v596
  %v699 = vpack.c.b16 %v599, %v598
  %v700 = vpack.c.b16 %v601, %v600
  %v701 = vpack.c.b16 %v603, %v602
  %v706 = vunpack.c.l.b16 %v208
  %v707 = vunpack.c.l.b16 %v209
  %v708 = vunpack.c.l.b16 %v210
  %v709 = vunpack.c.l.b16 %v211
  %v710 = vpack.c.b16 %v707, %v706
  %v711 = vpack.c.b16 %v709, %v708
  %vm713 = vcmask 203776
  %v715 = vsel %vm713, %v604, 0
  %v718 = vsel %vm713, %v605, 0
  %v721 = vsel %vm713, %v606, 0
  %v724 = vsel %vm713, %v607, 0
  %v727 = vsel %vm713, %v608, 0
  %v730 = vsel %vm713, %v609, 0
  %v733 = vsel %vm713, %v610, 0
  %v736 = vsel %vm713, %v611, 0
  %v739 = vsel %vm713, %v612, 0
  %v742 = vsel %vm713, %v613, 0
  %v745 = vsel %vm713, %v614, 0
  %v748 = vsel %vm713, %v615, 0
  %v751 = vsel %vm713, %v616, 0
  %v754 = vsel %vm713, %v617, 0
  %v757 = vsel %vm713, %v618, 0
  %v760 = vsel %vm713, %v619, 0
  %v763 = vsel %vm713, %v620, 0
  %v766 = vsel %vm713, %v621, 0
  %v769 = vsel %vm713, %v622, 0
  %v772 = vsel %vm713, %v623, 0
  %v775 = vsel %vm713, %v624, 0
  %v778 = vsel %vm713, %v625, 0
  %v781 = vsel %vm713, %v626, 0
  %v784 = vsel %vm713, %v627, 0
  %v787 = vsel %vm713, %v628, 0
  %v790 = vsel %vm713, %v629, 0
  %v793 = vsel %vm713, %v630, 0
  %v796 = vsel %vm713, %v631, 0
  %v799 = vsel %vm713, %v632, 0
  %v802 = vsel %vm713, %v633, 0
  %v805 = vsel %vm713, %v634, 0
  %v808 = vsel %vm713, %v635, 0
  %v811 = vsel %vm713, %v636, 0
  %v814 = vsel %vm713, %v637, 0
  %v817 = vsel %vm713, %v638, 0
  %v820 = vsel %vm713, %v639, 0
  %v823 = vsel %vm713, %v640, 0
  %v826 = vsel %vm713, %v641, 0
  %v829 = vsel %vm713, %v642, 0
  %v832 = vsel %vm713, %v643, 0
  %v835 = vsel %vm713, %v644, 0
  %v838 = vsel %vm713, %v645, 0
  %v841 = vsel %vm713, %v646, 0
  %v844 = vsel %vm713, %v647, 0
  %v847 = vsel %vm713, %v648, 0
  %v850 = vsel %vm713, %v649, 0
  %v853 = vsel %vm713, %v650, 0
  %v856 = vsel %vm713, %v651, 0
  %v859 = vsel %vm713, %v652, 0
  %v862 = vsel %vm713, %v653, 0
  %v865 = vsel %vm713, %v654, 0
  %v868 = vsel %vm713, %v655, 0
  %v871 = vsel %vm713, %v656, 0
  %v874 = vsel %vm713, %v657, 0
  %v877 = vsel %vm713, %v658, 0
  %v880 = vsel %vm713, %v659, 0
  %v883 = vsel %vm713, %v660, 0
  %v886 = vsel %vm713, %v661, 0
  %v889 = vsel %vm713, %v662, 0
  %v892 = vsel %vm713, %v663, 0
  %v895 = vsel %vm713, %v664, 0
  %v898 = vsel %vm713, %v665, 0
  %v901 = vsel %vm713, %v666, 0
  %v904 = vsel %vm713, %v667, 0
  %v907 = vsel %vm713, %v668, 0
  %v910 = vsel %vm713, %v669, 0
  %v913 = vsel %vm713, %v670, 0
  %v916 = vsel %vm713, %v671, 0
  %v919 = vsel %vm713, %v672, 0
  %v922 = vsel %vm713, %v673, 0
  %v925 = vsel %vm713, %v674, 0
  %v928 = vsel %vm713, %v675, 0
  %v931 = vsel %vm713, %v676, 0
  %v934 = vsel %vm713, %v677, 0
  %v937 = vsel %vm713, %v678, 0
  %v940 = vsel %vm713, %v679, 0
  %v943 = vsel %vm713, %v680, 0
  %v946 = vsel %vm713, %v681, 0
  %v949 = vsel %vm713, %v682, 0
  %v952 = vsel %vm713, %v683, 0
  %v955 = vsel %vm713, %v684, 0
  %v958 = vsel %vm713, %v685, 0
  %v961 = vsel %vm713, %v686, 0
  %v964 = vsel %vm713, %v687, 0
  %v967 = vsel %vm713, %v688, 0
  %v970 = vsel %vm713, %v689, 0
  %v973 = vsel %vm713, %v690, 0
  %v976 = vsel %vm713, %v691, 0
  %v979 = vsel %vm713, %v692, 0
  %v982 = vsel %vm713, %v693, 0
  %v985 = vsel %vm713, %v694, 0
  %v988 = vsel %vm713, %v695, 0
  %v991 = vsel %vm713, %v696, 0
  %v994 = vsel %vm713, %v697, 0
  %v997 = vsel %vm713, %v698, 0
  %v1000 = vsel %vm713, %v699, 0
  %v1003 = vsel %vm713, %v700, 0
  %v1006 = vsel %vm713, %v701, 0
  %vm1008 = vcmask 1043456
  %vm1009 = vcmask 1044480
  %v1010 = vsel %vm1008, 4294967295, 65535
  %v1011 = vsel %vm1009, %v1010, 0
  %v1013 = vand.u32 %v711, %v1011
  %1015 = vmatprep.subr.bf16.mxu0 0
  %1016 = vmatpush1.bf16.msra.mxu0 0
  %1017 = vmatprep.subr.bf16.mxu0 0
  %1018 = vmatpush1.bf16.msra.mxu0 0
  %1019 = vmatprep.subr.bf16.mxu0 0
  %1020 = vmatpush1.bf16.msra.mxu0 0
  %1021 = vmatprep.subr.bf16.mxu0 0
  %1022 = vmatpush1.bf16.msra.mxu0 0
  %1023 = vmatprep.subr.bf16.mxu0 0
  %1024 = vmatpush1.bf16.msra.mxu0 0
  %1025 = vmatprep.subr.bf16.mxu0 0
  %1026 = vmatpush1.bf16.msra.mxu0 0
  %1027 = vmatprep.subr.bf16.mxu0 0
  %1028 = vmatpush1.bf16.msra.mxu0 %v1013
  %1029 = vmatprep.subr.bf16.mxu0 0
  %1030 = vmatpush1.bf16.msra.mxu0 %v710
  %1031 = vmatprep.subr.bf16.mxu0 0
  %1032 = vmatpush2.bf16.msra.mxu0 0
  %1033 = vmatprep.subr.bf16.mxu0 0
  %1034 = vmatpush2.bf16.msra.mxu0 0
  %1035 = vmatprep.subr.bf16.mxu0 0
  %1036 = vmatpush2.bf16.msra.mxu0 0
  %1037 = vmatprep.subr.bf16.mxu0 0
  %1038 = vmatpush2.bf16.msra.mxu0 0
  %1039 = vmatprep.subr.bf16.mxu0 0
  %1040 = vmatpush2.bf16.msra.mxu0 0
  %1041 = vmatprep.subr.bf16.mxu0 0
  %1042 = vmatpush2.bf16.msra.mxu0 0
  %1043 = vmatprep.subr.bf16.mxu0 0
  %1044 = vmatpush2.bf16.msra.mxu0 0
  %1045 = vmatprep.subr.bf16.mxu0 0
  %1046 = vmatpush2.bf16.msra.mxu0 0
  %1047 = vmatprep.mubr.bf16.mxu0 0
  %1048 = vmatmul.mubr.bf16.gmra.mxu0 %v715
  %v1049 = vpop.f32.mrf.mxu0
  %v1050 = vadd.f32 0.0, %v1049
  %v1051 = vpop.f32.mrf.mxu0
  %v1052 = vpop.f32.mrf.mxu0
  %v1053 = vadd.f32 0.0, %v1052
  %v1054 = vpop.f32.mrf.mxu0
  %1055 = vmatprep.mubr.bf16.mxu0 0
  %1056 = vmatmul.mubr.bf16.gmra.mxu0 %v718
  %v1057 = vpop.f32.mrf.mxu0
  %v1058 = vadd.f32 0.0, %v1057
  %v1059 = vpop.f32.mrf.mxu0
  %v1060 = vpop.f32.mrf.mxu0
  %v1061 = vadd.f32 0.0, %v1060
  %v1062 = vpop.f32.mrf.mxu0
  %1063 = vmatprep.mubr.bf16.mxu0 0
  %1064 = vmatmul.mubr.bf16.gmra.mxu0 %v721
  %v1065 = vpop.f32.mrf.mxu0
  %v1066 = vadd.f32 0.0, %v1065
  %v1067 = vpop.f32.mrf.mxu0
  %v1068 = vpop.f32.mrf.mxu0
  %v1069 = vadd.f32 0.0, %v1068
  %v1070 = vpop.f32.mrf.mxu0
  %1071 = vmatprep.mubr.bf16.mxu0 0
  %1072 = vmatmul.mubr.bf16.gmra.mxu0 %v724
  %v1073 = vpop.f32.mrf.mxu0
  %v1074 = vadd.f32 0.0, %v1073
  %v1075 = vpop.f32.mrf.mxu0
  %v1076 = vpop.f32.mrf.mxu0
  %v1077 = vadd.f32 0.0, %v1076
  %v1078 = vpop.f32.mrf.mxu0
  %1079 = vmatprep.mubr.bf16.mxu0 0
  %1080 = vmatmul.mubr.bf16.gmra.mxu0 %v727
  %v1081 = vpop.f32.mrf.mxu0
  %v1082 = vadd.f32 0.0, %v1081
  %v1083 = vpop.f32.mrf.mxu0
  %v1084 = vpop.f32.mrf.mxu0
  %v1085 = vadd.f32 0.0, %v1084
  %v1086 = vpop.f32.mrf.mxu0
  %1087 = vmatprep.mubr.bf16.mxu0 0
  %1088 = vmatmul.mubr.bf16.gmra.mxu0 %v730
  %v1089 = vpop.f32.mrf.mxu0
  %v1090 = vadd.f32 0.0, %v1089
  %v1091 = vpop.f32.mrf.mxu0
  %v1092 = vpop.f32.mrf.mxu0
  %v1093 = vadd.f32 0.0, %v1092
  %v1094 = vpop.f32.mrf.mxu0
  %1095 = vmatprep.mubr.bf16.mxu0 0
  %1096 = vmatmul.mubr.bf16.gmra.mxu0 %v733
  %v1097 = vpop.f32.mrf.mxu0
  %v1098 = vadd.f32 0.0, %v1097
  %v1099 = vpop.f32.mrf.mxu0
  %v1100 = vpop.f32.mrf.mxu0
  %v1101 = vadd.f32 0.0, %v1100
  %v1102 = vpop.f32.mrf.mxu0
  %1103 = vmatprep.mubr.bf16.mxu0 0
  %1104 = vmatmul.mubr.bf16.gmra.mxu0 %v736
  %v1105 = vpop.f32.mrf.mxu0
  %v1106 = vadd.f32 0.0, %v1105
  %v1107 = vpop.f32.mrf.mxu0
  %v1108 = vpop.f32.mrf.mxu0
  %v1109 = vadd.f32 0.0, %v1108
  %v1110 = vpop.f32.mrf.mxu0
  %1111 = vmatprep.mubr.bf16.mxu0 0
  %1112 = vmatmul.mubr.bf16.gmra.mxu0 %v739
  %v1113 = vpop.f32.mrf.mxu0
  %v1114 = vadd.f32 0.0, %v1113
  %v1115 = vpop.f32.mrf.mxu0
  %v1116 = vpop.f32.mrf.mxu0
  %v1117 = vadd.f32 0.0, %v1116
  %v1118 = vpop.f32.mrf.mxu0
  %1119 = vmatprep.mubr.bf16.mxu0 0
  %1120 = vmatmul.mubr.bf16.gmra.mxu0 %v742
  %v1121 = vpop.f32.mrf.mxu0
  %v1122 = vadd.f32 0.0, %v1121
  %v1123 = vpop.f32.mrf.mxu0
  %v1124 = vpop.f32.mrf.mxu0
  %v1125 = vadd.f32 0.0, %v1124
  %v1126 = vpop.f32.mrf.mxu0
  %1127 = vmatprep.mubr.bf16.mxu0 0
  %1128 = vmatmul.mubr.bf16.gmra.mxu0 %v745
  %v1129 = vpop.f32.mrf.mxu0
  %v1130 = vadd.f32 0.0, %v1129
  %v1131 = vpop.f32.mrf.mxu0
  %v1132 = vpop.f32.mrf.mxu0
  %v1133 = vadd.f32 0.0, %v1132
  %v1134 = vpop.f32.mrf.mxu0
  %1135 = vmatprep.mubr.bf16.mxu0 0
  %1136 = vmatmul.mubr.bf16.gmra.mxu0 %v748
  %v1137 = vpop.f32.mrf.mxu0
  %v1138 = vadd.f32 0.0, %v1137
  %v1139 = vpop.f32.mrf.mxu0
  %v1140 = vpop.f32.mrf.mxu0
  %v1141 = vadd.f32 0.0, %v1140
  %v1142 = vpop.f32.mrf.mxu0
  %1143 = vmatprep.mubr.bf16.mxu0 0
  %1144 = vmatmul.mubr.bf16.gmra.mxu0 %v751
  %v1145 = vpop.f32.mrf.mxu0
  %v1146 = vadd.f32 0.0, %v1145
  %v1147 = vpop.f32.mrf.mxu0
  %v1148 = vpop.f32.mrf.mxu0
  %v1149 = vadd.f32 0.0, %v1148
  %v1150 = vpop.f32.mrf.mxu0
  %1151 = vmatprep.mubr.bf16.mxu0 0
  %1152 = vmatmul.mubr.bf16.gmra.mxu0 %v754
  %v1153 = vpop.f32.mrf.mxu0
  %v1154 = vadd.f32 0.0, %v1153
  %v1155 = vpop.f32.mrf.mxu0
  %v1156 = vpop.f32.mrf.mxu0
  %v1157 = vadd.f32 0.0, %v1156
  %v1158 = vpop.f32.mrf.mxu0
  %1159 = vmatprep.mubr.bf16.mxu0 0
  %1160 = vmatmul.mubr.bf16.gmra.mxu0 %v757
  %v1161 = vpop.f32.mrf.mxu0
  %v1162 = vadd.f32 0.0, %v1161
  %v1163 = vpop.f32.mrf.mxu0
  %v1164 = vpop.f32.mrf.mxu0
  %v1165 = vadd.f32 0.0, %v1164
  %v1166 = vpop.f32.mrf.mxu0
  %1167 = vmatprep.mubr.bf16.mxu0 0
  %1168 = vmatmul.mubr.bf16.gmra.mxu0 %v760
  %v1169 = vpop.f32.mrf.mxu0
  %v1170 = vadd.f32 0.0, %v1169
  %v1171 = vpop.f32.mrf.mxu0
  %v1172 = vpop.f32.mrf.mxu0
  %v1173 = vadd.f32 0.0, %v1172
  %v1174 = vpop.f32.mrf.mxu0
  %1175 = vmatprep.mubr.bf16.mxu0 0
  %1176 = vmatmul.mubr.bf16.gmra.mxu0 %v763
  %v1177 = vpop.f32.mrf.mxu0
  %v1178 = vadd.f32 0.0, %v1177
  %v1179 = vpop.f32.mrf.mxu0
  %v1180 = vpop.f32.mrf.mxu0
  %v1181 = vadd.f32 0.0, %v1180
  %v1182 = vpop.f32.mrf.mxu0
  %1183 = vmatprep.mubr.bf16.mxu0 0
  %1184 = vmatmul.mubr.bf16.gmra.mxu0 %v766
  %v1185 = vpop.f32.mrf.mxu0
  %v1186 = vadd.f32 0.0, %v1185
  %v1187 = vpop.f32.mrf.mxu0
  %v1188 = vpop.f32.mrf.mxu0
  %v1189 = vadd.f32 0.0, %v1188
  %v1190 = vpop.f32.mrf.mxu0
  %1191 = vmatprep.mubr.bf16.mxu0 0
  %1192 = vmatmul.mubr.bf16.gmra.mxu0 %v769
  %v1193 = vpop.f32.mrf.mxu0
  %v1194 = vadd.f32 0.0, %v1193
  %v1195 = vpop.f32.mrf.mxu0
  %v1196 = vpop.f32.mrf.mxu0
  %v1197 = vadd.f32 0.0, %v1196
  %v1198 = vpop.f32.mrf.mxu0
  %1199 = vmatprep.mubr.bf16.mxu0 0
  %1200 = vmatmul.mubr.bf16.gmra.mxu0 %v772
  %v1201 = vpop.f32.mrf.mxu0
  %v1202 = vadd.f32 0.0, %v1201
  %v1203 = vpop.f32.mrf.mxu0
  %v1204 = vpop.f32.mrf.mxu0
  %v1205 = vadd.f32 0.0, %v1204
  %v1206 = vpop.f32.mrf.mxu0
  %1207 = vmatprep.mubr.bf16.mxu0 0
  %1208 = vmatmul.mubr.bf16.gmra.mxu0 %v775
  %v1209 = vpop.f32.mrf.mxu0
  %v1210 = vadd.f32 0.0, %v1209
  %v1211 = vpop.f32.mrf.mxu0
  %v1212 = vpop.f32.mrf.mxu0
  %v1213 = vadd.f32 0.0, %v1212
  %v1214 = vpop.f32.mrf.mxu0
  %1215 = vmatprep.mubr.bf16.mxu0 0
  %1216 = vmatmul.mubr.bf16.gmra.mxu0 %v778
  %v1217 = vpop.f32.mrf.mxu0
  %v1218 = vadd.f32 0.0, %v1217
  %v1219 = vpop.f32.mrf.mxu0
  %v1220 = vpop.f32.mrf.mxu0
  %v1221 = vadd.f32 0.0, %v1220
  %v1222 = vpop.f32.mrf.mxu0
  %1223 = vmatprep.mubr.bf16.mxu0 0
  %1224 = vmatmul.mubr.bf16.gmra.mxu0 %v781
  %v1225 = vpop.f32.mrf.mxu0
  %v1226 = vadd.f32 0.0, %v1225
  %v1227 = vpop.f32.mrf.mxu0
  %v1228 = vpop.f32.mrf.mxu0
  %v1229 = vadd.f32 0.0, %v1228
  %v1230 = vpop.f32.mrf.mxu0
  %1231 = vmatprep.mubr.bf16.mxu0 0
  %1232 = vmatmul.mubr.bf16.gmra.mxu0 %v784
  %v1233 = vpop.f32.mrf.mxu0
  %v1234 = vadd.f32 0.0, %v1233
  %v1235 = vpop.f32.mrf.mxu0
  %v1236 = vpop.f32.mrf.mxu0
  %v1237 = vadd.f32 0.0, %v1236
  %v1238 = vpop.f32.mrf.mxu0
  %1239 = vmatprep.mubr.bf16.mxu0 0
  %1240 = vmatmul.mubr.bf16.gmra.mxu0 %v787
  %v1241 = vpop.f32.mrf.mxu0
  %v1242 = vadd.f32 0.0, %v1241
  %v1243 = vpop.f32.mrf.mxu0
  %v1244 = vpop.f32.mrf.mxu0
  %v1245 = vadd.f32 0.0, %v1244
  %v1246 = vpop.f32.mrf.mxu0
  %1247 = vmatprep.mubr.bf16.mxu0 0
  %1248 = vmatmul.mubr.bf16.gmra.mxu0 %v790
  %v1249 = vpop.f32.mrf.mxu0
  %v1250 = vadd.f32 0.0, %v1249
  %v1251 = vpop.f32.mrf.mxu0
  %v1252 = vpop.f32.mrf.mxu0
  %v1253 = vadd.f32 0.0, %v1252
  %v1254 = vpop.f32.mrf.mxu0
  %1255 = vmatprep.mubr.bf16.mxu0 0
  %1256 = vmatmul.mubr.bf16.gmra.mxu0 %v793
  %v1257 = vpop.f32.mrf.mxu0
  %v1258 = vadd.f32 0.0, %v1257
  %v1259 = vpop.f32.mrf.mxu0
  %v1260 = vpop.f32.mrf.mxu0
  %v1261 = vadd.f32 0.0, %v1260
  %v1262 = vpop.f32.mrf.mxu0
  %1263 = vmatprep.mubr.bf16.mxu0 0
  %1264 = vmatmul.mubr.bf16.gmra.mxu0 %v796
  %v1265 = vpop.f32.mrf.mxu0
  %v1266 = vadd.f32 0.0, %v1265
  %v1267 = vpop.f32.mrf.mxu0
  %v1268 = vpop.f32.mrf.mxu0
  %v1269 = vadd.f32 0.0, %v1268
  %v1270 = vpop.f32.mrf.mxu0
  %1271 = vmatprep.mubr.bf16.mxu0 0
  %1272 = vmatmul.mubr.bf16.gmra.mxu0 %v799
  %v1273 = vpop.f32.mrf.mxu0
  %v1274 = vadd.f32 0.0, %v1273
  %v1275 = vpop.f32.mrf.mxu0
  %v1276 = vpop.f32.mrf.mxu0
  %v1277 = vadd.f32 0.0, %v1276
  %v1278 = vpop.f32.mrf.mxu0
  %1279 = vmatprep.mubr.bf16.mxu0 0
  %1280 = vmatmul.mubr.bf16.gmra.mxu0 %v802
  %v1281 = vpop.f32.mrf.mxu0
  %v1282 = vadd.f32 0.0, %v1281
  %v1283 = vpop.f32.mrf.mxu0
  %v1284 = vpop.f32.mrf.mxu0
  %v1285 = vadd.f32 0.0, %v1284
  %v1286 = vpop.f32.mrf.mxu0
  %1287 = vmatprep.mubr.bf16.mxu0 0
  %1288 = vmatmul.mubr.bf16.gmra.mxu0 %v805
  %v1289 = vpop.f32.mrf.mxu0
  %v1290 = vadd.f32 0.0, %v1289
  %v1291 = vpop.f32.mrf.mxu0
  %v1292 = vpop.f32.mrf.mxu0
  %v1293 = vadd.f32 0.0, %v1292
  %v1294 = vpop.f32.mrf.mxu0
  %1295 = vmatprep.mubr.bf16.mxu0 0
  %1296 = vmatmul.mubr.bf16.gmra.mxu0 %v808
  %v1297 = vpop.f32.mrf.mxu0
  %v1298 = vadd.f32 0.0, %v1297
  %v1299 = vpop.f32.mrf.mxu0
  %v1300 = vpop.f32.mrf.mxu0
  %v1301 = vadd.f32 0.0, %v1300
  %v1302 = vpop.f32.mrf.mxu0
  %1303 = vmatprep.mubr.bf16.mxu0 0
  %1304 = vmatmul.mubr.bf16.gmra.mxu0 %v811
  %v1305 = vpop.f32.mrf.mxu0
  %v1306 = vadd.f32 0.0, %v1305
  %v1307 = vpop.f32.mrf.mxu0
  %v1308 = vpop.f32.mrf.mxu0
  %v1309 = vadd.f32 0.0, %v1308
  %v1310 = vpop.f32.mrf.mxu0
  %1311 = vmatprep.mubr.bf16.mxu0 0
  %1312 = vmatmul.mubr.bf16.gmra.mxu0 %v814
  %v1313 = vpop.f32.mrf.mxu0
  %v1314 = vadd.f32 0.0, %v1313
  %v1315 = vpop.f32.mrf.mxu0
  %v1316 = vpop.f32.mrf.mxu0
  %v1317 = vadd.f32 0.0, %v1316
  %v1318 = vpop.f32.mrf.mxu0
  %1319 = vmatprep.mubr.bf16.mxu0 0
  %1320 = vmatmul.mubr.bf16.gmra.mxu0 %v817
  %v1321 = vpop.f32.mrf.mxu0
  %v1322 = vadd.f32 0.0, %v1321
  %v1323 = vpop.f32.mrf.mxu0
  %v1324 = vpop.f32.mrf.mxu0
  %v1325 = vadd.f32 0.0, %v1324
  %v1326 = vpop.f32.mrf.mxu0
  %1327 = vmatprep.mubr.bf16.mxu0 0
  %1328 = vmatmul.mubr.bf16.gmra.mxu0 %v820
  %v1329 = vpop.f32.mrf.mxu0
  %v1330 = vadd.f32 0.0, %v1329
  %v1331 = vpop.f32.mrf.mxu0
  %v1332 = vpop.f32.mrf.mxu0
  %v1333 = vadd.f32 0.0, %v1332
  %v1334 = vpop.f32.mrf.mxu0
  %1335 = vmatprep.mubr.bf16.mxu0 0
  %1336 = vmatmul.mubr.bf16.gmra.mxu0 %v823
  %v1337 = vpop.f32.mrf.mxu0
  %v1338 = vadd.f32 0.0, %v1337
  %v1339 = vpop.f32.mrf.mxu0
  %v1340 = vpop.f32.mrf.mxu0
  %v1341 = vadd.f32 0.0, %v1340
  %v1342 = vpop.f32.mrf.mxu0
  %1343 = vmatprep.mubr.bf16.mxu0 0
  %1344 = vmatmul.mubr.bf16.gmra.mxu0 %v826
  %v1345 = vpop.f32.mrf.mxu0
  %v1346 = vadd.f32 0.0, %v1345
  %v1347 = vpop.f32.mrf.mxu0
  %v1348 = vpop.f32.mrf.mxu0
  %v1349 = vadd.f32 0.0, %v1348
  %v1350 = vpop.f32.mrf.mxu0
  %1351 = vmatprep.mubr.bf16.mxu0 0
  %1352 = vmatmul.mubr.bf16.gmra.mxu0 %v829
  %v1353 = vpop.f32.mrf.mxu0
  %v1354 = vadd.f32 0.0, %v1353
  %v1355 = vpop.f32.mrf.mxu0
  %v1356 = vpop.f32.mrf.mxu0
  %v1357 = vadd.f32 0.0, %v1356
  %v1358 = vpop.f32.mrf.mxu0
  %1359 = vmatprep.mubr.bf16.mxu0 0
  %1360 = vmatmul.mubr.bf16.gmra.mxu0 %v832
  %v1361 = vpop.f32.mrf.mxu0
  %v1362 = vadd.f32 0.0, %v1361
  %v1363 = vpop.f32.mrf.mxu0
  %v1364 = vpop.f32.mrf.mxu0
  %v1365 = vadd.f32 0.0, %v1364
  %v1366 = vpop.f32.mrf.mxu0
  %1367 = vmatprep.mubr.bf16.mxu0 0
  %1368 = vmatmul.mubr.bf16.gmra.mxu0 %v835
  %v1369 = vpop.f32.mrf.mxu0
  %v1370 = vadd.f32 0.0, %v1369
  %v1371 = vpop.f32.mrf.mxu0
  %v1372 = vpop.f32.mrf.mxu0
  %v1373 = vadd.f32 0.0, %v1372
  %v1374 = vpop.f32.mrf.mxu0
  %1375 = vmatprep.mubr.bf16.mxu0 0
  %1376 = vmatmul.mubr.bf16.gmra.mxu0 %v838
  %v1377 = vpop.f32.mrf.mxu0
  %v1378 = vadd.f32 0.0, %v1377
  %v1379 = vpop.f32.mrf.mxu0
  %v1380 = vpop.f32.mrf.mxu0
  %v1381 = vadd.f32 0.0, %v1380
  %v1382 = vpop.f32.mrf.mxu0
  %1383 = vmatprep.mubr.bf16.mxu0 0
  %1384 = vmatmul.mubr.bf16.gmra.mxu0 %v841
  %v1385 = vpop.f32.mrf.mxu0
  %v1386 = vadd.f32 0.0, %v1385
  %v1387 = vpop.f32.mrf.mxu0
  %v1388 = vpop.f32.mrf.mxu0
  %v1389 = vadd.f32 0.0, %v1388
  %v1390 = vpop.f32.mrf.mxu0
  %1391 = vmatprep.mubr.bf16.mxu0 0
  %1392 = vmatmul.mubr.bf16.gmra.mxu0 %v844
  %v1393 = vpop.f32.mrf.mxu0
  %v1394 = vadd.f32 0.0, %v1393
  %v1395 = vpop.f32.mrf.mxu0
  %v1396 = vpop.f32.mrf.mxu0
  %v1397 = vadd.f32 0.0, %v1396
  %v1398 = vpop.f32.mrf.mxu0
  %1399 = vmatprep.mubr.bf16.mxu0 0
  %1400 = vmatmul.mubr.bf16.gmra.mxu0 %v847
  %v1401 = vpop.f32.mrf.mxu0
  %v1402 = vadd.f32 0.0, %v1401
  %v1403 = vpop.f32.mrf.mxu0
  %v1404 = vpop.f32.mrf.mxu0
  %v1405 = vadd.f32 0.0, %v1404
  %v1406 = vpop.f32.mrf.mxu0
  %1407 = vmatprep.mubr.bf16.mxu0 0
  %1408 = vmatmul.mubr.bf16.gmra.mxu0 %v850
  %v1409 = vpop.f32.mrf.mxu0
  %v1410 = vadd.f32 0.0, %v1409
  %v1411 = vpop.f32.mrf.mxu0
  %v1412 = vpop.f32.mrf.mxu0
  %v1413 = vadd.f32 0.0, %v1412
  %v1414 = vpop.f32.mrf.mxu0
  %1415 = vmatprep.mubr.bf16.mxu0 0
  %1416 = vmatmul.mubr.bf16.gmra.mxu0 %v853
  %v1417 = vpop.f32.mrf.mxu0
  %v1418 = vadd.f32 0.0, %v1417
  %v1419 = vpop.f32.mrf.mxu0
  %v1420 = vpop.f32.mrf.mxu0
  %v1421 = vadd.f32 0.0, %v1420
  %v1422 = vpop.f32.mrf.mxu0
  %1423 = vmatprep.mubr.bf16.mxu0 0
  %1424 = vmatmul.mubr.bf16.gmra.mxu0 %v856
  %v1425 = vpop.f32.mrf.mxu0
  %v1426 = vadd.f32 0.0, %v1425
  %v1427 = vpop.f32.mrf.mxu0
  %v1428 = vpop.f32.mrf.mxu0
  %v1429 = vadd.f32 0.0, %v1428
  %v1430 = vpop.f32.mrf.mxu0
  %1431 = vmatprep.mubr.bf16.mxu0 0
  %1432 = vmatmul.mubr.bf16.gmra.mxu0 %v859
  %v1433 = vpop.f32.mrf.mxu0
  %v1434 = vadd.f32 0.0, %v1433
  %v1435 = vpop.f32.mrf.mxu0
  %v1436 = vpop.f32.mrf.mxu0
  %v1437 = vadd.f32 0.0, %v1436
  %v1438 = vpop.f32.mrf.mxu0
  %1439 = vmatprep.mubr.bf16.mxu0 0
  %1440 = vmatmul.mubr.bf16.gmra.mxu0 %v862
  %v1441 = vpop.f32.mrf.mxu0
  %v1442 = vadd.f32 0.0, %v1441
  %v1443 = vpop.f32.mrf.mxu0
  %v1444 = vpop.f32.mrf.mxu0
  %v1445 = vadd.f32 0.0, %v1444
  %v1446 = vpop.f32.mrf.mxu0
  %1447 = vmatprep.mubr.bf16.mxu0 0
  %1448 = vmatmul.mubr.bf16.gmra.mxu0 %v865
  %v1449 = vpop.f32.mrf.mxu0
  %v1450 = vadd.f32 0.0, %v1449
  %v1451 = vpop.f32.mrf.mxu0
  %v1452 = vpop.f32.mrf.mxu0
  %v1453 = vadd.f32 0.0, %v1452
  %v1454 = vpop.f32.mrf.mxu0
  %1455 = vmatprep.mubr.bf16.mxu0 0
  %1456 = vmatmul.mubr.bf16.gmra.mxu0 %v868
  %v1457 = vpop.f32.mrf.mxu0
  %v1458 = vadd.f32 0.0, %v1457
  %v1459 = vpop.f32.mrf.mxu0
  %v1460 = vpop.f32.mrf.mxu0
  %v1461 = vadd.f32 0.0, %v1460
  %v1462 = vpop.f32.mrf.mxu0
  %1463 = vmatprep.mubr.bf16.mxu0 0
  %1464 = vmatmul.mubr.bf16.gmra.mxu0 %v871
  %v1465 = vpop.f32.mrf.mxu0
  %v1466 = vadd.f32 0.0, %v1465
  %v1467 = vpop.f32.mrf.mxu0
  %v1468 = vpop.f32.mrf.mxu0
  %v1469 = vadd.f32 0.0, %v1468
  %v1470 = vpop.f32.mrf.mxu0
  %1471 = vmatprep.mubr.bf16.mxu0 0
  %1472 = vmatmul.mubr.bf16.gmra.mxu0 %v874
  %v1473 = vpop.f32.mrf.mxu0
  %v1474 = vadd.f32 0.0, %v1473
  %v1475 = vpop.f32.mrf.mxu0
  %v1476 = vpop.f32.mrf.mxu0
  %v1477 = vadd.f32 0.0, %v1476
  %v1478 = vpop.f32.mrf.mxu0
  %1479 = vmatprep.mubr.bf16.mxu0 0
  %1480 = vmatmul.mubr.bf16.gmra.mxu0 %v877
  %v1481 = vpop.f32.mrf.mxu0
  %v1482 = vadd.f32 0.0, %v1481
  %v1483 = vpop.f32.mrf.mxu0
  %v1484 = vpop.f32.mrf.mxu0
  %v1485 = vadd.f32 0.0, %v1484
  %v1486 = vpop.f32.mrf.mxu0
  %1487 = vmatprep.mubr.bf16.mxu0 0
  %1488 = vmatmul.mubr.bf16.gmra.mxu0 %v880
  %v1489 = vpop.f32.mrf.mxu0
  %v1490 = vadd.f32 0.0, %v1489
  %v1491 = vpop.f32.mrf.mxu0
  %v1492 = vpop.f32.mrf.mxu0
  %v1493 = vadd.f32 0.0, %v1492
  %v1494 = vpop.f32.mrf.mxu0
  %1495 = vmatprep.mubr.bf16.mxu0 0
  %1496 = vmatmul.mubr.bf16.gmra.mxu0 %v883
  %v1497 = vpop.f32.mrf.mxu0
  %v1498 = vadd.f32 0.0, %v1497
  %v1499 = vpop.f32.mrf.mxu0
  %v1500 = vpop.f32.mrf.mxu0
  %v1501 = vadd.f32 0.0, %v1500
  %v1502 = vpop.f32.mrf.mxu0
  %1503 = vmatprep.mubr.bf16.mxu0 0
  %1504 = vmatmul.mubr.bf16.gmra.mxu0 %v886
  %v1505 = vpop.f32.mrf.mxu0
  %v1506 = vadd.f32 0.0, %v1505
  %v1507 = vpop.f32.mrf.mxu0
  %v1508 = vpop.f32.mrf.mxu0
  %v1509 = vadd.f32 0.0, %v1508
  %v1510 = vpop.f32.mrf.mxu0
  %1511 = vmatprep.mubr.bf16.mxu0 0
  %1512 = vmatmul.mubr.bf16.gmra.mxu0 %v889
  %v1513 = vpop.f32.mrf.mxu0
  %v1514 = vadd.f32 0.0, %v1513
  %v1515 = vpop.f32.mrf.mxu0
  %v1516 = vpop.f32.mrf.mxu0
  %v1517 = vadd.f32 0.0, %v1516
  %v1518 = vpop.f32.mrf.mxu0
  %1519 = vmatprep.mubr.bf16.mxu0 0
  %1520 = vmatmul.mubr.bf16.gmra.mxu0 %v892
  %v1521 = vpop.f32.mrf.mxu0
  %v1522 = vadd.f32 0.0, %v1521
  %v1523 = vpop.f32.mrf.mxu0
  %v1524 = vpop.f32.mrf.mxu0
  %v1525 = vadd.f32 0.0, %v1524
  %v1526 = vpop.f32.mrf.mxu0
  %1527 = vmatprep.mubr.bf16.mxu0 0
  %1528 = vmatmul.mubr.bf16.gmra.mxu0 %v895
  %v1529 = vpop.f32.mrf.mxu0
  %v1530 = vadd.f32 0.0, %v1529
  %v1531 = vpop.f32.mrf.mxu0
  %v1532 = vpop.f32.mrf.mxu0
  %v1533 = vadd.f32 0.0, %v1532
  %v1534 = vpop.f32.mrf.mxu0
  %1535 = vmatprep.mubr.bf16.mxu0 0
  %1536 = vmatmul.mubr.bf16.gmra.mxu0 %v898
  %v1537 = vpop.f32.mrf.mxu0
  %v1538 = vadd.f32 0.0, %v1537
  %v1539 = vpop.f32.mrf.mxu0
  %v1540 = vpop.f32.mrf.mxu0
  %v1541 = vadd.f32 0.0, %v1540
  %v1542 = vpop.f32.mrf.mxu0
  %1543 = vmatprep.mubr.bf16.mxu0 0
  %1544 = vmatmul.mubr.bf16.gmra.mxu0 %v901
  %v1545 = vpop.f32.mrf.mxu0
  %v1546 = vadd.f32 0.0, %v1545
  %v1547 = vpop.f32.mrf.mxu0
  %v1548 = vpop.f32.mrf.mxu0
  %v1549 = vadd.f32 0.0, %v1548
  %v1550 = vpop.f32.mrf.mxu0
  %1551 = vmatprep.mubr.bf16.mxu0 0
  %1552 = vmatmul.mubr.bf16.gmra.mxu0 %v904
  %v1553 = vpop.f32.mrf.mxu0
  %v1554 = vadd.f32 0.0, %v1553
  %v1555 = vpop.f32.mrf.mxu0
  %v1556 = vpop.f32.mrf.mxu0
  %v1557 = vadd.f32 0.0, %v1556
  %v1558 = vpop.f32.mrf.mxu0
  %1559 = vmatprep.mubr.bf16.mxu0 0
  %1560 = vmatmul.mubr.bf16.gmra.mxu0 %v907
  %v1561 = vpop.f32.mrf.mxu0
  %v1562 = vadd.f32 0.0, %v1561
  %v1563 = vpop.f32.mrf.mxu0
  %v1564 = vpop.f32.mrf.mxu0
  %v1565 = vadd.f32 0.0, %v1564
  %v1566 = vpop.f32.mrf.mxu0
  %1567 = vmatprep.mubr.bf16.mxu0 0
  %1568 = vmatmul.mubr.bf16.gmra.mxu0 %v910
  %v1569 = vpop.f32.mrf.mxu0
  %v1570 = vadd.f32 0.0, %v1569
  %v1571 = vpop.f32.mrf.mxu0
  %v1572 = vpop.f32.mrf.mxu0
  %v1573 = vadd.f32 0.0, %v1572
  %v1574 = vpop.f32.mrf.mxu0
  %1575 = vmatprep.mubr.bf16.mxu0 0
  %1576 = vmatmul.mubr.bf16.gmra.mxu0 %v913
  %v1577 = vpop.f32.mrf.mxu0
  %v1578 = vadd.f32 0.0, %v1577
  %v1579 = vpop.f32.mrf.mxu0
  %v1580 = vpop.f32.mrf.mxu0
  %v1581 = vadd.f32 0.0, %v1580
  %v1582 = vpop.f32.mrf.mxu0
  %1583 = vmatprep.mubr.bf16.mxu0 0
  %1584 = vmatmul.mubr.bf16.gmra.mxu0 %v916
  %v1585 = vpop.f32.mrf.mxu0
  %v1586 = vadd.f32 0.0, %v1585
  %v1587 = vpop.f32.mrf.mxu0
  %v1588 = vpop.f32.mrf.mxu0
  %v1589 = vadd.f32 0.0, %v1588
  %v1590 = vpop.f32.mrf.mxu0
  %1591 = vmatprep.mubr.bf16.mxu0 0
  %1592 = vmatmul.mubr.bf16.gmra.mxu0 %v919
  %v1593 = vpop.f32.mrf.mxu0
  %v1594 = vadd.f32 0.0, %v1593
  %v1595 = vpop.f32.mrf.mxu0
  %v1596 = vpop.f32.mrf.mxu0
  %v1597 = vadd.f32 0.0, %v1596
  %v1598 = vpop.f32.mrf.mxu0
  %1599 = vmatprep.mubr.bf16.mxu0 0
  %1600 = vmatmul.mubr.bf16.gmra.mxu0 %v922
  %v1601 = vpop.f32.mrf.mxu0
  %v1602 = vadd.f32 0.0, %v1601
  %v1603 = vpop.f32.mrf.mxu0
  %v1604 = vpop.f32.mrf.mxu0
  %v1605 = vadd.f32 0.0, %v1604
  %v1606 = vpop.f32.mrf.mxu0
  %1607 = vmatprep.mubr.bf16.mxu0 0
  %1608 = vmatmul.mubr.bf16.gmra.mxu0 %v925
  %v1609 = vpop.f32.mrf.mxu0
  %v1610 = vadd.f32 0.0, %v1609
  %v1611 = vpop.f32.mrf.mxu0
  %v1612 = vpop.f32.mrf.mxu0
  %v1613 = vadd.f32 0.0, %v1612
  %v1614 = vpop.f32.mrf.mxu0
  %1615 = vmatprep.mubr.bf16.mxu0 0
  %1616 = vmatmul.mubr.bf16.gmra.mxu0 %v928
  %v1617 = vpop.f32.mrf.mxu0
  %v1618 = vadd.f32 0.0, %v1617
  %v1619 = vpop.f32.mrf.mxu0
  %v1620 = vpop.f32.mrf.mxu0
  %v1621 = vadd.f32 0.0, %v1620
  %v1622 = vpop.f32.mrf.mxu0
  %1623 = vmatprep.mubr.bf16.mxu0 0
  %1624 = vmatmul.mubr.bf16.gmra.mxu0 %v931
  %v1625 = vpop.f32.mrf.mxu0
  %v1626 = vadd.f32 0.0, %v1625
  %v1627 = vpop.f32.mrf.mxu0
  %v1628 = vpop.f32.mrf.mxu0
  %v1629 = vadd.f32 0.0, %v1628
  %v1630 = vpop.f32.mrf.mxu0
  %1631 = vmatprep.mubr.bf16.mxu0 0
  %1632 = vmatmul.mubr.bf16.gmra.mxu0 %v934
  %v1633 = vpop.f32.mrf.mxu0
  %v1634 = vadd.f32 0.0, %v1633
  %v1635 = vpop.f32.mrf.mxu0
  %v1636 = vpop.f32.mrf.mxu0
  %v1637 = vadd.f32 0.0, %v1636
  %v1638 = vpop.f32.mrf.mxu0
  %1639 = vmatprep.mubr.bf16.mxu0 0
  %1640 = vmatmul.mubr.bf16.gmra.mxu0 %v937
  %v1641 = vpop.f32.mrf.mxu0
  %v1642 = vadd.f32 0.0, %v1641
  %v1643 = vpop.f32.mrf.mxu0
  %v1644 = vpop.f32.mrf.mxu0
  %v1645 = vadd.f32 0.0, %v1644
  %v1646 = vpop.f32.mrf.mxu0
  %1647 = vmatprep.mubr.bf16.mxu0 0
  %1648 = vmatmul.mubr.bf16.gmra.mxu0 %v940
  %v1649 = vpop.f32.mrf.mxu0
  %v1650 = vadd.f32 0.0, %v1649
  %v1651 = vpop.f32.mrf.mxu0
  %v1652 = vpop.f32.mrf.mxu0
  %v1653 = vadd.f32 0.0, %v1652
  %v1654 = vpop.f32.mrf.mxu0
  %1655 = vmatprep.mubr.bf16.mxu0 0
  %1656 = vmatmul.mubr.bf16.gmra.mxu0 %v943
  %v1657 = vpop.f32.mrf.mxu0
  %v1658 = vadd.f32 0.0, %v1657
  %v1659 = vpop.f32.mrf.mxu0
  %v1660 = vpop.f32.mrf.mxu0
  %v1661 = vadd.f32 0.0, %v1660
  %v1662 = vpop.f32.mrf.mxu0
  %1663 = vmatprep.mubr.bf16.mxu0 0
  %1664 = vmatmul.mubr.bf16.gmra.mxu0 %v946
  %v1665 = vpop.f32.mrf.mxu0
  %v1666 = vadd.f32 0.0, %v1665
  %v1667 = vpop.f32.mrf.mxu0
  %v1668 = vpop.f32.mrf.mxu0
  %v1669 = vadd.f32 0.0, %v1668
  %v1670 = vpop.f32.mrf.mxu0
  %1671 = vmatprep.mubr.bf16.mxu0 0
  %1672 = vmatmul.mubr.bf16.gmra.mxu0 %v949
  %v1673 = vpop.f32.mrf.mxu0
  %v1674 = vadd.f32 0.0, %v1673
  %v1675 = vpop.f32.mrf.mxu0
  %v1676 = vpop.f32.mrf.mxu0
  %v1677 = vadd.f32 0.0, %v1676
  %v1678 = vpop.f32.mrf.mxu0
  %1679 = vmatprep.mubr.bf16.mxu0 0
  %1680 = vmatmul.mubr.bf16.gmra.mxu0 %v952
  %v1681 = vpop.f32.mrf.mxu0
  %v1682 = vadd.f32 0.0, %v1681
  %v1683 = vpop.f32.mrf.mxu0
  %v1684 = vpop.f32.mrf.mxu0
  %v1685 = vadd.f32 0.0, %v1684
  %v1686 = vpop.f32.mrf.mxu0
  %1687 = vmatprep.mubr.bf16.mxu0 0
  %1688 = vmatmul.mubr.bf16.gmra.mxu0 %v955
  %v1689 = vpop.f32.mrf.mxu0
  %v1690 = vadd.f32 0.0, %v1689
  %v1691 = vpop.f32.mrf.mxu0
  %v1692 = vpop.f32.mrf.mxu0
  %v1693 = vadd.f32 0.0, %v1692
  %v1694 = vpop.f32.mrf.mxu0
  %1695 = vmatprep.mubr.bf16.mxu0 0
  %1696 = vmatmul.mubr.bf16.gmra.mxu0 %v958
  %v1697 = vpop.f32.mrf.mxu0
  %v1698 = vadd.f32 0.0, %v1697
  %v1699 = vpop.f32.mrf.mxu0
  %v1700 = vpop.f32.mrf.mxu0
  %v1701 = vadd.f32 0.0, %v1700
  %v1702 = vpop.f32.mrf.mxu0
  %1703 = vmatprep.mubr.bf16.mxu0 0
  %1704 = vmatmul.mubr.bf16.gmra.mxu0 %v961
  %v1705 = vpop.f32.mrf.mxu0
  %v1706 = vadd.f32 0.0, %v1705
  %v1707 = vpop.f32.mrf.mxu0
  %v1708 = vpop.f32.mrf.mxu0
  %v1709 = vadd.f32 0.0, %v1708
  %v1710 = vpop.f32.mrf.mxu0
  %1711 = vmatprep.mubr.bf16.mxu0 0
  %1712 = vmatmul.mubr.bf16.gmra.mxu0 %v964
  %v1713 = vpop.f32.mrf.mxu0
  %v1714 = vadd.f32 0.0, %v1713
  %v1715 = vpop.f32.mrf.mxu0
  %v1716 = vpop.f32.mrf.mxu0
  %v1717 = vadd.f32 0.0, %v1716
  %v1718 = vpop.f32.mrf.mxu0
  %1719 = vmatprep.mubr.bf16.mxu0 0
  %1720 = vmatmul.mubr.bf16.gmra.mxu0 %v967
  %v1721 = vpop.f32.mrf.mxu0
  %v1722 = vadd.f32 0.0, %v1721
  %v1723 = vpop.f32.mrf.mxu0
  %v1724 = vpop.f32.mrf.mxu0
  %v1725 = vadd.f32 0.0, %v1724
  %v1726 = vpop.f32.mrf.mxu0
  %1727 = vmatprep.mubr.bf16.mxu0 0
  %1728 = vmatmul.mubr.bf16.gmra.mxu0 %v970
  %v1729 = vpop.f32.mrf.mxu0
  %v1730 = vadd.f32 0.0, %v1729
  %v1731 = vpop.f32.mrf.mxu0
  %v1732 = vpop.f32.mrf.mxu0
  %v1733 = vadd.f32 0.0, %v1732
  %v1734 = vpop.f32.mrf.mxu0
  %1735 = vmatprep.mubr.bf16.mxu0 0
  %1736 = vmatmul.mubr.bf16.gmra.mxu0 %v973
  %v1737 = vpop.f32.mrf.mxu0
  %v1738 = vadd.f32 0.0, %v1737
  %v1739 = vpop.f32.mrf.mxu0
  %v1740 = vpop.f32.mrf.mxu0
  %v1741 = vadd.f32 0.0, %v1740
  %v1742 = vpop.f32.mrf.mxu0
  %1743 = vmatprep.mubr.bf16.mxu0 0
  %1744 = vmatmul.mubr.bf16.gmra.mxu0 %v976
  %v1745 = vpop.f32.mrf.mxu0
  %v1746 = vadd.f32 0.0, %v1745
  %v1747 = vpop.f32.mrf.mxu0
  %v1748 = vpop.f32.mrf.mxu0
  %v1749 = vadd.f32 0.0, %v1748
  %v1750 = vpop.f32.mrf.mxu0
  %1751 = vmatprep.mubr.bf16.mxu0 0
  %1752 = vmatmul.mubr.bf16.gmra.mxu0 %v979
  %v1753 = vpop.f32.mrf.mxu0
  %v1754 = vadd.f32 0.0, %v1753
  %v1755 = vpop.f32.mrf.mxu0
  %v1756 = vpop.f32.mrf.mxu0
  %v1757 = vadd.f32 0.0, %v1756
  %v1758 = vpop.f32.mrf.mxu0
  %1759 = vmatprep.mubr.bf16.mxu0 0
  %1760 = vmatmul.mubr.bf16.gmra.mxu0 %v982
  %v1761 = vpop.f32.mrf.mxu0
  %v1762 = vadd.f32 0.0, %v1761
  %v1763 = vpop.f32.mrf.mxu0
  %v1764 = vpop.f32.mrf.mxu0
  %v1765 = vadd.f32 0.0, %v1764
  %v1766 = vpop.f32.mrf.mxu0
  %1767 = vmatprep.mubr.bf16.mxu0 0
  %1768 = vmatmul.mubr.bf16.gmra.mxu0 %v985
  %v1769 = vpop.f32.mrf.mxu0
  %v1770 = vadd.f32 0.0, %v1769
  %v1771 = vpop.f32.mrf.mxu0
  %v1772 = vpop.f32.mrf.mxu0
  %v1773 = vadd.f32 0.0, %v1772
  %v1774 = vpop.f32.mrf.mxu0
  %1775 = vmatprep.mubr.bf16.mxu0 0
  %1776 = vmatmul.mubr.bf16.gmra.mxu0 %v988
  %v1777 = vpop.f32.mrf.mxu0
  %v1778 = vadd.f32 0.0, %v1777
  %v1779 = vpop.f32.mrf.mxu0
  %v1780 = vpop.f32.mrf.mxu0
  %v1781 = vadd.f32 0.0, %v1780
  %v1782 = vpop.f32.mrf.mxu0
  %1783 = vmatprep.mubr.bf16.mxu0 0
  %1784 = vmatmul.mubr.bf16.gmra.mxu0 %v991
  %v1785 = vpop.f32.mrf.mxu0
  %v1786 = vadd.f32 0.0, %v1785
  %v1787 = vpop.f32.mrf.mxu0
  %v1788 = vpop.f32.mrf.mxu0
  %v1789 = vadd.f32 0.0, %v1788
  %v1790 = vpop.f32.mrf.mxu0
  %1791 = vmatprep.mubr.bf16.mxu0 0
  %1792 = vmatmul.mubr.bf16.gmra.mxu0 %v994
  %v1793 = vpop.f32.mrf.mxu0
  %v1794 = vadd.f32 0.0, %v1793
  %v1795 = vpop.f32.mrf.mxu0
  %v1796 = vpop.f32.mrf.mxu0
  %v1797 = vadd.f32 0.0, %v1796
  %v1798 = vpop.f32.mrf.mxu0
  %1799 = vmatprep.mubr.bf16.mxu0 0
  %1800 = vmatmul.mubr.bf16.gmra.mxu0 %v997
  %v1801 = vpop.f32.mrf.mxu0
  %v1802 = vadd.f32 0.0, %v1801
  %v1803 = vpop.f32.mrf.mxu0
  %v1804 = vpop.f32.mrf.mxu0
  %v1805 = vadd.f32 0.0, %v1804
  %v1806 = vpop.f32.mrf.mxu0
  %1807 = vmatprep.mubr.bf16.mxu0 0
  %1808 = vmatmul.mubr.bf16.gmra.mxu0 %v1000
  %v1809 = vpop.f32.mrf.mxu0
  %v1810 = vadd.f32 0.0, %v1809
  %v1811 = vpop.f32.mrf.mxu0
  %v1812 = vpop.f32.mrf.mxu0
  %v1813 = vadd.f32 0.0, %v1812
  %v1814 = vpop.f32.mrf.mxu0
  %1815 = vmatprep.mubr.bf16.mxu0 0
  %1816 = vmatmul.mubr.bf16.gmra.mxu0 %v1003
  %v1817 = vpop.f32.mrf.mxu0
  %v1818 = vadd.f32 0.0, %v1817
  %v1819 = vpop.f32.mrf.mxu0
  %v1820 = vpop.f32.mrf.mxu0
  %v1821 = vadd.f32 0.0, %v1820
  %v1822 = vpop.f32.mrf.mxu0
  %1823 = vmatprep.mubr.bf16.mxu0 0
  %1824 = vmatmul.mubr.bf16.gmra.mxu0 %v1006
  %v1825 = vpop.f32.mrf.mxu0
  %v1826 = vadd.f32 0.0, %v1825
  %v1827 = vpop.f32.mrf.mxu0
  %v1828 = vpop.f32.mrf.mxu0
  %v1829 = vadd.f32 0.0, %v1828
  %v1830 = vpop.f32.mrf.mxu0
  %1831 = vdwg.mxu0
  %vm1832 = vcmask 162816
  %v1833 = vsel %vm1832, %v1050, 0.0
  %v1834 = vsel %vm1832, %v1053, 0.0
  %v1835 = vadd.f32 %v1833, %v1834
  %v1836 = vsel %vm1832, %v1058, 0.0
  %v1837 = vadd.f32 %v1835, %v1836
  %v1838 = vsel %vm1832, %v1061, 0.0
  %v1839 = vadd.f32 %v1837, %v1838
  %v1840 = vsel %vm1832, %v1066, 0.0
  %v1841 = vadd.f32 %v1839, %v1840
  %v1842 = vsel %vm1832, %v1069, 0.0
  %v1843 = vadd.f32 %v1841, %v1842
  %v1844 = vsel %vm1832, %v1074, 0.0
  %v1845 = vadd.f32 %v1843, %v1844
  %v1846 = vsel %vm1832, %v1077, 0.0
  %v1847 = vadd.f32 %v1845, %v1846
  %v1848 = vsel %vm1832, %v1082, 0.0
  %v1849 = vadd.f32 %v1847, %v1848
  %v1850 = vsel %vm1832, %v1085, 0.0
  %v1851 = vadd.f32 %v1849, %v1850
  %v1852 = vsel %vm1832, %v1090, 0.0
  %v1853 = vadd.f32 %v1851, %v1852
  %v1854 = vsel %vm1832, %v1093, 0.0
  %v1855 = vadd.f32 %v1853, %v1854
  %v1856 = vsel %vm1832, %v1098, 0.0
  %v1857 = vadd.f32 %v1855, %v1856
  %v1858 = vsel %vm1832, %v1101, 0.0
  %v1859 = vadd.f32 %v1857, %v1858
  %v1860 = vsel %vm1832, %v1106, 0.0
  %v1861 = vadd.f32 %v1859, %v1860
  %v1862 = vsel %vm1832, %v1109, 0.0
  %v1863 = vadd.f32 %v1861, %v1862
  %v1864 = vsel %vm1832, %v1114, 0.0
  %v1865 = vadd.f32 %v1863, %v1864
  %v1866 = vsel %vm1832, %v1117, 0.0
  %v1867 = vadd.f32 %v1865, %v1866
  %v1868 = vsel %vm1832, %v1122, 0.0
  %v1869 = vadd.f32 %v1867, %v1868
  %v1870 = vsel %vm1832, %v1125, 0.0
  %v1871 = vadd.f32 %v1869, %v1870
  %v1872 = vsel %vm1832, %v1130, 0.0
  %v1873 = vadd.f32 %v1871, %v1872
  %v1874 = vsel %vm1832, %v1133, 0.0
  %v1875 = vadd.f32 %v1873, %v1874
  %v1876 = vsel %vm1832, %v1138, 0.0
  %v1877 = vadd.f32 %v1875, %v1876
  %v1878 = vsel %vm1832, %v1141, 0.0
  %v1879 = vadd.f32 %v1877, %v1878
  %v1880 = vsel %vm1832, %v1146, 0.0
  %v1881 = vadd.f32 %v1879, %v1880
  %v1882 = vsel %vm1832, %v1149, 0.0
  %v1883 = vadd.f32 %v1881, %v1882
  %v1884 = vsel %vm1832, %v1154, 0.0
  %v1885 = vadd.f32 %v1883, %v1884
  %v1886 = vsel %vm1832, %v1157, 0.0
  %v1887 = vadd.f32 %v1885, %v1886
  %v1888 = vsel %vm1832, %v1162, 0.0
  %v1889 = vadd.f32 %v1887, %v1888
  %v1890 = vsel %vm1832, %v1165, 0.0
  %v1891 = vadd.f32 %v1889, %v1890
  %v1892 = vsel %vm1832, %v1170, 0.0
  %v1893 = vadd.f32 %v1891, %v1892
  %v1894 = vsel %vm1832, %v1173, 0.0
  %v1895 = vadd.f32 %v1893, %v1894
  %v1896 = vsel %vm1832, %v1178, 0.0
  %v1897 = vadd.f32 %v1895, %v1896
  %v1898 = vsel %vm1832, %v1181, 0.0
  %v1899 = vadd.f32 %v1897, %v1898
  %v1900 = vsel %vm1832, %v1186, 0.0
  %v1901 = vadd.f32 %v1899, %v1900
  %v1902 = vsel %vm1832, %v1189, 0.0
  %v1903 = vadd.f32 %v1901, %v1902
  %v1904 = vsel %vm1832, %v1194, 0.0
  %v1905 = vadd.f32 %v1903, %v1904
  %v1906 = vsel %vm1832, %v1197, 0.0
  %v1907 = vadd.f32 %v1905, %v1906
  %v1908 = vsel %vm1832, %v1202, 0.0
  %v1909 = vadd.f32 %v1907, %v1908
  %v1910 = vsel %vm1832, %v1205, 0.0
  %v1911 = vadd.f32 %v1909, %v1910
  %v1912 = vsel %vm1832, %v1210, 0.0
  %v1913 = vadd.f32 %v1911, %v1912
  %v1914 = vsel %vm1832, %v1213, 0.0
  %v1915 = vadd.f32 %v1913, %v1914
  %v1916 = vsel %vm1832, %v1218, 0.0
  %v1917 = vadd.f32 %v1915, %v1916
  %v1918 = vsel %vm1832, %v1221, 0.0
  %v1919 = vadd.f32 %v1917, %v1918
  %v1920 = vsel %vm1832, %v1226, 0.0
  %v1921 = vadd.f32 %v1919, %v1920
  %v1922 = vsel %vm1832, %v1229, 0.0
  %v1923 = vadd.f32 %v1921, %v1922
  %v1924 = vsel %vm1832, %v1234, 0.0
  %v1925 = vadd.f32 %v1923, %v1924
  %v1926 = vsel %vm1832, %v1237, 0.0
  %v1927 = vadd.f32 %v1925, %v1926
  %v1928 = vsel %vm1832, %v1242, 0.0
  %v1929 = vadd.f32 %v1927, %v1928
  %v1930 = vsel %vm1832, %v1245, 0.0
  %v1931 = vadd.f32 %v1929, %v1930
  %v1932 = vsel %vm1832, %v1250, 0.0
  %v1933 = vadd.f32 %v1931, %v1932
  %v1934 = vsel %vm1832, %v1253, 0.0
  %v1935 = vadd.f32 %v1933, %v1934
  %v1936 = vsel %vm1832, %v1258, 0.0
  %v1937 = vadd.f32 %v1935, %v1936
  %v1938 = vsel %vm1832, %v1261, 0.0
  %v1939 = vadd.f32 %v1937, %v1938
  %v1940 = vsel %vm1832, %v1266, 0.0
  %v1941 = vadd.f32 %v1939, %v1940
  %v1942 = vsel %vm1832, %v1269, 0.0
  %v1943 = vadd.f32 %v1941, %v1942
  %v1944 = vsel %vm1832, %v1274, 0.0
  %v1945 = vadd.f32 %v1943, %v1944
  %v1946 = vsel %vm1832, %v1277, 0.0
  %v1947 = vadd.f32 %v1945, %v1946
  %v1948 = vsel %vm1832, %v1282, 0.0
  %v1949 = vadd.f32 %v1947, %v1948
  %v1950 = vsel %vm1832, %v1285, 0.0
  %v1951 = vadd.f32 %v1949, %v1950
  %v1952 = vsel %vm1832, %v1290, 0.0
  %v1953 = vadd.f32 %v1951, %v1952
  %v1954 = vsel %vm1832, %v1293, 0.0
  %v1955 = vadd.f32 %v1953, %v1954
  %v1956 = vsel %vm1832, %v1298, 0.0
  %v1957 = vadd.f32 %v1955, %v1956
  %v1958 = vsel %vm1832, %v1301, 0.0
  %v1959 = vadd.f32 %v1957, %v1958
  %v1960 = vsel %vm1832, %v1306, 0.0
  %v1961 = vadd.f32 %v1959, %v1960
  %v1962 = vsel %vm1832, %v1309, 0.0
  %v1963 = vadd.f32 %v1961, %v1962
  %v1964 = vsel %vm1832, %v1314, 0.0
  %v1965 = vadd.f32 %v1963, %v1964
  %v1966 = vsel %vm1832, %v1317, 0.0
  %v1967 = vadd.f32 %v1965, %v1966
  %v1968 = vsel %vm1832, %v1322, 0.0
  %v1969 = vadd.f32 %v1967, %v1968
  %v1970 = vsel %vm1832, %v1325, 0.0
  %v1971 = vadd.f32 %v1969, %v1970
  %v1972 = vsel %vm1832, %v1330, 0.0
  %v1973 = vadd.f32 %v1971, %v1972
  %v1974 = vsel %vm1832, %v1333, 0.0
  %v1975 = vadd.f32 %v1973, %v1974
  %v1976 = vsel %vm1832, %v1338, 0.0
  %v1977 = vadd.f32 %v1975, %v1976
  %v1978 = vsel %vm1832, %v1341, 0.0
  %v1979 = vadd.f32 %v1977, %v1978
  %v1980 = vsel %vm1832, %v1346, 0.0
  %v1981 = vadd.f32 %v1979, %v1980
  %v1982 = vsel %vm1832, %v1349, 0.0
  %v1983 = vadd.f32 %v1981, %v1982
  %v1984 = vsel %vm1832, %v1354, 0.0
  %v1985 = vadd.f32 %v1983, %v1984
  %v1986 = vsel %vm1832, %v1357, 0.0
  %v1987 = vadd.f32 %v1985, %v1986
  %v1988 = vsel %vm1832, %v1362, 0.0
  %v1989 = vadd.f32 %v1987, %v1988
  %v1990 = vsel %vm1832, %v1365, 0.0
  %v1991 = vadd.f32 %v1989, %v1990
  %v1992 = vsel %vm1832, %v1370, 0.0
  %v1993 = vadd.f32 %v1991, %v1992
  %v1994 = vsel %vm1832, %v1373, 0.0
  %v1995 = vadd.f32 %v1993, %v1994
  %v1996 = vsel %vm1832, %v1378, 0.0
  %v1997 = vadd.f32 %v1995, %v1996
  %v1998 = vsel %vm1832, %v1381, 0.0
  %v1999 = vadd.f32 %v1997, %v1998
  %v2000 = vsel %vm1832, %v1386, 0.0
  %v2001 = vadd.f32 %v1999, %v2000
  %v2002 = vsel %vm1832, %v1389, 0.0
  %v2003 = vadd.f32 %v2001, %v2002
  %v2004 = vsel %vm1832, %v1394, 0.0
  %v2005 = vadd.f32 %v2003, %v2004
  %v2006 = vsel %vm1832, %v1397, 0.0
  %v2007 = vadd.f32 %v2005, %v2006
  %v2008 = vsel %vm1832, %v1402, 0.0
  %v2009 = vadd.f32 %v2007, %v2008
  %v2010 = vsel %vm1832, %v1405, 0.0
  %v2011 = vadd.f32 %v2009, %v2010
  %v2012 = vsel %vm1832, %v1410, 0.0
  %v2013 = vadd.f32 %v2011, %v2012
  %v2014 = vsel %vm1832, %v1413, 0.0
  %v2015 = vadd.f32 %v2013, %v2014
  %v2016 = vsel %vm1832, %v1418, 0.0
  %v2017 = vadd.f32 %v2015, %v2016
  %v2018 = vsel %vm1832, %v1421, 0.0
  %v2019 = vadd.f32 %v2017, %v2018
  %v2020 = vsel %vm1832, %v1426, 0.0
  %v2021 = vadd.f32 %v2019, %v2020
  %v2022 = vsel %vm1832, %v1429, 0.0
  %v2023 = vadd.f32 %v2021, %v2022
  %v2024 = vsel %vm1832, %v1434, 0.0
  %v2025 = vadd.f32 %v2023, %v2024
  %v2026 = vsel %vm1832, %v1437, 0.0
  %v2027 = vadd.f32 %v2025, %v2026
  %v2028 = vsel %vm1832, %v1442, 0.0
  %v2029 = vadd.f32 %v2027, %v2028
  %v2030 = vsel %vm1832, %v1445, 0.0
  %v2031 = vadd.f32 %v2029, %v2030
  %v2032 = vsel %vm1832, %v1450, 0.0
  %v2033 = vadd.f32 %v2031, %v2032
  %v2034 = vsel %vm1832, %v1453, 0.0
  %v2035 = vadd.f32 %v2033, %v2034
  %v2036 = vsel %vm1832, %v1458, 0.0
  %v2037 = vadd.f32 %v2035, %v2036
  %v2038 = vsel %vm1832, %v1461, 0.0
  %v2039 = vadd.f32 %v2037, %v2038
  %v2040 = vsel %vm1832, %v1466, 0.0
  %v2041 = vadd.f32 %v2039, %v2040
  %v2042 = vsel %vm1832, %v1469, 0.0
  %v2043 = vadd.f32 %v2041, %v2042
  %v2044 = vsel %vm1832, %v1474, 0.0
  %v2045 = vadd.f32 %v2043, %v2044
  %v2046 = vsel %vm1832, %v1477, 0.0
  %v2047 = vadd.f32 %v2045, %v2046
  %v2048 = vsel %vm1832, %v1482, 0.0
  %v2049 = vadd.f32 %v2047, %v2048
  %v2050 = vsel %vm1832, %v1485, 0.0
  %v2051 = vadd.f32 %v2049, %v2050
  %v2052 = vsel %vm1832, %v1490, 0.0
  %v2053 = vadd.f32 %v2051, %v2052
  %v2054 = vsel %vm1832, %v1493, 0.0
  %v2055 = vadd.f32 %v2053, %v2054
  %v2056 = vsel %vm1832, %v1498, 0.0
  %v2057 = vadd.f32 %v2055, %v2056
  %v2058 = vsel %vm1832, %v1501, 0.0
  %v2059 = vadd.f32 %v2057, %v2058
  %v2060 = vsel %vm1832, %v1506, 0.0
  %v2061 = vadd.f32 %v2059, %v2060
  %v2062 = vsel %vm1832, %v1509, 0.0
  %v2063 = vadd.f32 %v2061, %v2062
  %v2064 = vsel %vm1832, %v1514, 0.0
  %v2065 = vadd.f32 %v2063, %v2064
  %v2066 = vsel %vm1832, %v1517, 0.0
  %v2067 = vadd.f32 %v2065, %v2066
  %v2068 = vsel %vm1832, %v1522, 0.0
  %v2069 = vadd.f32 %v2067, %v2068
  %v2070 = vsel %vm1832, %v1525, 0.0
  %v2071 = vadd.f32 %v2069, %v2070
  %v2072 = vsel %vm1832, %v1530, 0.0
  %v2073 = vadd.f32 %v2071, %v2072
  %v2074 = vsel %vm1832, %v1533, 0.0
  %v2075 = vadd.f32 %v2073, %v2074
  %v2076 = vsel %vm1832, %v1538, 0.0
  %v2077 = vadd.f32 %v2075, %v2076
  %v2078 = vsel %vm1832, %v1541, 0.0
  %v2079 = vadd.f32 %v2077, %v2078
  %v2080 = vsel %vm1832, %v1546, 0.0
  %v2081 = vadd.f32 %v2079, %v2080
  %v2082 = vsel %vm1832, %v1549, 0.0
  %v2083 = vadd.f32 %v2081, %v2082
  %v2084 = vsel %vm1832, %v1554, 0.0
  %v2085 = vadd.f32 %v2083, %v2084
  %v2086 = vsel %vm1832, %v1557, 0.0
  %v2087 = vadd.f32 %v2085, %v2086
  %v2088 = vsel %vm1832, %v1562, 0.0
  %v2089 = vadd.f32 %v2087, %v2088
  %v2090 = vsel %vm1832, %v1565, 0.0
  %v2091 = vadd.f32 %v2089, %v2090
  %v2092 = vsel %vm1832, %v1570, 0.0
  %v2093 = vadd.f32 %v2091, %v2092
  %v2094 = vsel %vm1832, %v1573, 0.0
  %v2095 = vadd.f32 %v2093, %v2094
  %v2096 = vsel %vm1832, %v1578, 0.0
  %v2097 = vadd.f32 %v2095, %v2096
  %v2098 = vsel %vm1832, %v1581, 0.0
  %v2099 = vadd.f32 %v2097, %v2098
  %v2100 = vsel %vm1832, %v1586, 0.0
  %v2101 = vadd.f32 %v2099, %v2100
  %v2102 = vsel %vm1832, %v1589, 0.0
  %v2103 = vadd.f32 %v2101, %v2102
  %v2104 = vsel %vm1832, %v1594, 0.0
  %v2105 = vadd.f32 %v2103, %v2104
  %v2106 = vsel %vm1832, %v1597, 0.0
  %v2107 = vadd.f32 %v2105, %v2106
  %v2108 = vsel %vm1832, %v1602, 0.0
  %v2109 = vadd.f32 %v2107, %v2108
  %v2110 = vsel %vm1832, %v1605, 0.0
  %v2111 = vadd.f32 %v2109, %v2110
  %v2112 = vsel %vm1832, %v1610, 0.0
  %v2113 = vadd.f32 %v2111, %v2112
  %v2114 = vsel %vm1832, %v1613, 0.0
  %v2115 = vadd.f32 %v2113, %v2114
  %v2116 = vsel %vm1832, %v1618, 0.0
  %v2117 = vadd.f32 %v2115, %v2116
  %v2118 = vsel %vm1832, %v1621, 0.0
  %v2119 = vadd.f32 %v2117, %v2118
  %v2120 = vsel %vm1832, %v1626, 0.0
  %v2121 = vadd.f32 %v2119, %v2120
  %v2122 = vsel %vm1832, %v1629, 0.0
  %v2123 = vadd.f32 %v2121, %v2122
  %v2124 = vsel %vm1832, %v1634, 0.0
  %v2125 = vadd.f32 %v2123, %v2124
  %v2126 = vsel %vm1832, %v1637, 0.0
  %v2127 = vadd.f32 %v2125, %v2126
  %v2128 = vsel %vm1832, %v1642, 0.0
  %v2129 = vadd.f32 %v2127, %v2128
  %v2130 = vsel %vm1832, %v1645, 0.0
  %v2131 = vadd.f32 %v2129, %v2130
  %v2132 = vsel %vm1832, %v1650, 0.0
  %v2133 = vadd.f32 %v2131, %v2132
  %v2134 = vsel %vm1832, %v1653, 0.0
  %v2135 = vadd.f32 %v2133, %v2134
  %v2136 = vsel %vm1832, %v1658, 0.0
  %v2137 = vadd.f32 %v2135, %v2136
  %v2138 = vsel %vm1832, %v1661, 0.0
  %v2139 = vadd.f32 %v2137, %v2138
  %v2140 = vsel %vm1832, %v1666, 0.0
  %v2141 = vadd.f32 %v2139, %v2140
  %v2142 = vsel %vm1832, %v1669, 0.0
  %v2143 = vadd.f32 %v2141, %v2142
  %v2144 = vsel %vm1832, %v1674, 0.0
  %v2145 = vadd.f32 %v2143, %v2144
  %v2146 = vsel %vm1832, %v1677, 0.0
  %v2147 = vadd.f32 %v2145, %v2146
  %v2148 = vsel %vm1832, %v1682, 0.0
  %v2149 = vadd.f32 %v2147, %v2148
  %v2150 = vsel %vm1832, %v1685, 0.0
  %v2151 = vadd.f32 %v2149, %v2150
  %v2152 = vsel %vm1832, %v1690, 0.0
  %v2153 = vadd.f32 %v2151, %v2152
  %v2154 = vsel %vm1832, %v1693, 0.0
  %v2155 = vadd.f32 %v2153, %v2154
  %v2156 = vsel %vm1832, %v1698, 0.0
  %v2157 = vadd.f32 %v2155, %v2156
  %v2158 = vsel %vm1832, %v1701, 0.0
  %v2159 = vadd.f32 %v2157, %v2158
  %v2160 = vsel %vm1832, %v1706, 0.0
  %v2161 = vadd.f32 %v2159, %v2160
  %v2162 = vsel %vm1832, %v1709, 0.0
  %v2163 = vadd.f32 %v2161, %v2162
  %v2164 = vsel %vm1832, %v1714, 0.0
  %v2165 = vadd.f32 %v2163, %v2164
  %v2166 = vsel %vm1832, %v1717, 0.0
  %v2167 = vadd.f32 %v2165, %v2166
  %v2168 = vsel %vm1832, %v1722, 0.0
  %v2169 = vadd.f32 %v2167, %v2168
  %v2170 = vsel %vm1832, %v1725, 0.0
  %v2171 = vadd.f32 %v2169, %v2170
  %v2172 = vsel %vm1832, %v1730, 0.0
  %v2173 = vadd.f32 %v2171, %v2172
  %v2174 = vsel %vm1832, %v1733, 0.0
  %v2175 = vadd.f32 %v2173, %v2174
  %v2176 = vsel %vm1832, %v1738, 0.0
  %v2177 = vadd.f32 %v2175, %v2176
  %v2178 = vsel %vm1832, %v1741, 0.0
  %v2179 = vadd.f32 %v2177, %v2178
  %v2180 = vsel %vm1832, %v1746, 0.0
  %v2181 = vadd.f32 %v2179, %v2180
  %v2182 = vsel %vm1832, %v1749, 0.0
  %v2183 = vadd.f32 %v2181, %v2182
  %v2184 = vsel %vm1832, %v1754, 0.0
  %v2185 = vadd.f32 %v2183, %v2184
  %v2186 = vsel %vm1832, %v1757, 0.0
  %v2187 = vadd.f32 %v2185, %v2186
  %v2188 = vsel %vm1832, %v1762, 0.0
  %v2189 = vadd.f32 %v2187, %v2188
  %v2190 = vsel %vm1832, %v1765, 0.0
  %v2191 = vadd.f32 %v2189, %v2190
  %v2192 = vsel %vm1832, %v1770, 0.0
  %v2193 = vadd.f32 %v2191, %v2192
  %v2194 = vsel %vm1832, %v1773, 0.0
  %v2195 = vadd.f32 %v2193, %v2194
  %v2196 = vsel %vm1832, %v1778, 0.0
  %v2197 = vadd.f32 %v2195, %v2196
  %v2198 = vsel %vm1832, %v1781, 0.0
  %v2199 = vadd.f32 %v2197, %v2198
  %v2200 = vsel %vm1832, %v1786, 0.0
  %v2201 = vadd.f32 %v2199, %v2200
  %v2202 = vsel %vm1832, %v1789, 0.0
  %v2203 = vadd.f32 %v2201, %v2202
  %v2204 = vsel %vm1832, %v1794, 0.0
  %v2205 = vadd.f32 %v2203, %v2204
  %v2206 = vsel %vm1832, %v1797, 0.0
  %v2207 = vadd.f32 %v2205, %v2206
  %v2208 = vsel %vm1832, %v1802, 0.0
  %v2209 = vadd.f32 %v2207, %v2208
  %v2210 = vsel %vm1832, %v1805, 0.0
  %v2211 = vadd.f32 %v2209, %v2210
  %v2212 = vsel %vm1832, %v1810, 0.0
  %v2213 = vadd.f32 %v2211, %v2212
  %v2214 = vsel %vm1832, %v1813, 0.0
  %v2215 = vadd.f32 %v2213, %v2214
  %v2216 = vsel %vm1832, %v1818, 0.0
  %v2217 = vadd.f32 %v2215, %v2216
  %v2218 = vsel %vm1832, %v1821, 0.0
  %v2219 = vadd.f32 %v2217, %v2218
  %v2220 = vsel %vm1832, %v1826, 0.0
  %v2221 = vadd.f32 %v2219, %v2220
  %v2222 = vsel %vm1832, %v1829, 0.0
  %v2223 = vadd.f32 %v2221, %v2222
  %v2224 = vrot.slane %v2223, 4
  %v2225 = vadd.f32 %v2223, %v2224
  %v2226 = vrot.slane %v2225, 2
  %v2227 = vadd.f32 %v2225, %v2226
  %v2228 = vrot.slane %v2227, 1
  %v2229 = vadd.f32 %v2227, %v2228
  %v2230 = vmul.f32 %v2229, 0.0006377551
  %v2231 = vmul.f32 %v1050, %v1050
  %v2232 = vmul.f32 %v1053, %v1053
  %v2233 = vmul.f32 %v1058, %v1058
  %v2234 = vmul.f32 %v1061, %v1061
  %v2235 = vmul.f32 %v1066, %v1066
  %v2236 = vmul.f32 %v1069, %v1069
  %v2237 = vmul.f32 %v1074, %v1074
  %v2238 = vmul.f32 %v1077, %v1077
  %v2239 = vmul.f32 %v1082, %v1082
  %v2240 = vmul.f32 %v1085, %v1085
  %v2241 = vmul.f32 %v1090, %v1090
  %v2242 = vmul.f32 %v1093, %v1093
  %v2243 = vmul.f32 %v1098, %v1098
  %v2244 = vmul.f32 %v1101, %v1101
  %v2245 = vmul.f32 %v1106, %v1106
  %v2246 = vmul.f32 %v1109, %v1109
  %v2247 = vmul.f32 %v1114, %v1114
  %v2248 = vmul.f32 %v1117, %v1117
  %v2249 = vmul.f32 %v1122, %v1122
  %v2250 = vmul.f32 %v1125, %v1125
  %v2251 = vmul.f32 %v1130, %v1130
  %v2252 = vmul.f32 %v1133, %v1133
  %v2253 = vmul.f32 %v1138, %v1138
  %v2254 = vmul.f32 %v1141, %v1141
  %v2255 = vmul.f32 %v1146, %v1146
  %v2256 = vmul.f32 %v1149, %v1149
  %v2257 = vmul.f32 %v1154, %v1154
  %v2258 = vmul.f32 %v1157, %v1157
  %v2259 = vmul.f32 %v1162, %v1162
  %v2260 = vmul.f32 %v1165, %v1165
  %v2261 = vmul.f32 %v1170, %v1170
  %v2262 = vmul.f32 %v1173, %v1173
  %v2263 = vmul.f32 %v1178, %v1178
  %v2264 = vmul.f32 %v1181, %v1181
  %v2265 = vmul.f32 %v1186, %v1186
  %v2266 = vmul.f32 %v1189, %v1189
  %v2267 = vmul.f32 %v1194, %v1194
  %v2268 = vmul.f32 %v1197, %v1197
  %v2269 = vmul.f32 %v1202, %v1202
  %v2270 = vmul.f32 %v1205, %v1205
  %v2271 = vmul.f32 %v1210, %v1210
  %v2272 = vmul.f32 %v1213, %v1213
  %v2273 = vmul.f32 %v1218, %v1218
  %v2274 = vmul.f32 %v1221, %v1221
  %v2275 = vmul.f32 %v1226, %v1226
  %v2276 = vmul.f32 %v1229, %v1229
  %v2277 = vmul.f32 %v1234, %v1234
  %v2278 = vmul.f32 %v1237, %v1237
  %v2279 = vmul.f32 %v1242, %v1242
  %v2280 = vmul.f32 %v1245, %v1245
  %v2281 = vmul.f32 %v1250, %v1250
  %v2282 = vmul.f32 %v1253, %v1253
  %v2283 = vmul.f32 %v1258, %v1258
  %v2284 = vmul.f32 %v1261, %v1261
  %v2285 = vmul.f32 %v1266, %v1266
  %v2286 = vmul.f32 %v1269, %v1269
  %v2287 = vmul.f32 %v1274, %v1274
  %v2288 = vmul.f32 %v1277, %v1277
  %v2289 = vmul.f32 %v1282, %v1282
  %v2290 = vmul.f32 %v1285, %v1285
  %v2291 = vmul.f32 %v1290, %v1290
  %v2292 = vmul.f32 %v1293, %v1293
  %v2293 = vmul.f32 %v1298, %v1298
  %v2294 = vmul.f32 %v1301, %v1301
  %v2295 = vmul.f32 %v1306, %v1306
  %v2296 = vmul.f32 %v1309, %v1309
  %v2297 = vmul.f32 %v1314, %v1314
  %v2298 = vmul.f32 %v1317, %v1317
  %v2299 = vmul.f32 %v1322, %v1322
  %v2300 = vmul.f32 %v1325, %v1325
  %v2301 = vmul.f32 %v1330, %v1330
  %v2302 = vmul.f32 %v1333, %v1333
  %v2303 = vmul.f32 %v1338, %v1338
  %v2304 = vmul.f32 %v1341, %v1341
  %v2305 = vmul.f32 %v1346, %v1346
  %v2306 = vmul.f32 %v1349, %v1349
  %v2307 = vmul.f32 %v1354, %v1354
  %v2308 = vmul.f32 %v1357, %v1357
  %v2309 = vmul.f32 %v1362, %v1362
  %v2310 = vmul.f32 %v1365, %v1365
  %v2311 = vmul.f32 %v1370, %v1370
  %v2312 = vmul.f32 %v1373, %v1373
  %v2313 = vmul.f32 %v1378, %v1378
  %v2314 = vmul.f32 %v1381, %v1381
  %v2315 = vmul.f32 %v1386, %v1386
  %v2316 = vmul.f32 %v1389, %v1389
  %v2317 = vmul.f32 %v1394, %v1394
  %v2318 = vmul.f32 %v1397, %v1397
  %v2319 = vmul.f32 %v1402, %v1402
  %v2320 = vmul.f32 %v1405, %v1405
  %v2321 = vmul.f32 %v1410, %v1410
  %v2322 = vmul.f32 %v1413, %v1413
  %v2323 = vmul.f32 %v1418, %v1418
  %v2324 = vmul.f32 %v1421, %v1421
  %v2325 = vmul.f32 %v1426, %v1426
  %v2326 = vmul.f32 %v1429, %v1429
  %v2327 = vmul.f32 %v1434, %v1434
  %v2328 = vmul.f32 %v1437, %v1437
  %v2329 = vmul.f32 %v1442, %v1442
  %v2330 = vmul.f32 %v1445, %v1445
  %v2331 = vmul.f32 %v1450, %v1450
  %v2332 = vmul.f32 %v1453, %v1453
  %v2333 = vmul.f32 %v1458, %v1458
  %v2334 = vmul.f32 %v1461, %v1461
  %v2335 = vmul.f32 %v1466, %v1466
  %v2336 = vmul.f32 %v1469, %v1469
  %v2337 = vmul.f32 %v1474, %v1474
  %v2338 = vmul.f32 %v1477, %v1477
  %v2339 = vmul.f32 %v1482, %v1482
  %v2340 = vmul.f32 %v1485, %v1485
  %v2341 = vmul.f32 %v1490, %v1490
  %v2342 = vmul.f32 %v1493, %v1493
  %v2343 = vmul.f32 %v1498, %v1498
  %v2344 = vmul.f32 %v1501, %v1501
  %v2345 = vmul.f32 %v1506, %v1506
  %v2346 = vmul.f32 %v1509, %v1509
  %v2347 = vmul.f32 %v1514, %v1514
  %v2348 = vmul.f32 %v1517, %v1517
  %v2349 = vmul.f32 %v1522, %v1522
  %v2350 = vmul.f32 %v1525, %v1525
  %v2351 = vmul.f32 %v1530, %v1530
  %v2352 = vmul.f32 %v1533, %v1533
  %v2353 = vmul.f32 %v1538, %v1538
  %v2354 = vmul.f32 %v1541, %v1541
  %v2355 = vmul.f32 %v1546, %v1546
  %v2356 = vmul.f32 %v1549, %v1549
  %v2357 = vmul.f32 %v1554, %v1554
  %v2358 = vmul.f32 %v1557, %v1557
  %v2359 = vmul.f32 %v1562, %v1562
  %v2360 = vmul.f32 %v1565, %v1565
  %v2361 = vmul.f32 %v1570, %v1570
  %v2362 = vmul.f32 %v1573, %v1573
  %v2363 = vmul.f32 %v1578, %v1578
  %v2364 = vmul.f32 %v1581, %v1581
  %v2365 = vmul.f32 %v1586, %v1586
  %v2366 = vmul.f32 %v1589, %v1589
  %v2367 = vmul.f32 %v1594, %v1594
  %v2368 = vmul.f32 %v1597, %v1597
  %v2369 = vmul.f32 %v1602, %v1602
  %v2370 = vmul.f32 %v1605, %v1605
  %v2371 = vmul.f32 %v1610, %v1610
  %v2372 = vmul.f32 %v1613, %v1613
  %v2373 = vmul.f32 %v1618, %v1618
  %v2374 = vmul.f32 %v1621, %v1621
  %v2375 = vmul.f32 %v1626, %v1626
  %v2376 = vmul.f32 %v1629, %v1629
  %v2377 = vmul.f32 %v1634, %v1634
  %v2378 = vmul.f32 %v1637, %v1637
  %v2379 = vmul.f32 %v1642, %v1642
  %v2380 = vmul.f32 %v1645, %v1645
  %v2381 = vmul.f32 %v1650, %v1650
  %v2382 = vmul.f32 %v1653, %v1653
  %v2383 = vmul.f32 %v1658, %v1658
  %v2384 = vmul.f32 %v1661, %v1661
  %v2385 = vmul.f32 %v1666, %v1666
  %v2386 = vmul.f32 %v1669, %v1669
  %v2387 = vmul.f32 %v1674, %v1674
  %v2388 = vmul.f32 %v1677, %v1677
  %v2389 = vmul.f32 %v1682, %v1682
  %v2390 = vmul.f32 %v1685, %v1685
  %v2391 = vmul.f32 %v1690, %v1690
  %v2392 = vmul.f32 %v1693, %v1693
  %v2393 = vmul.f32 %v1698, %v1698
  %v2394 = vmul.f32 %v1701, %v1701
  %v2395 = vmul.f32 %v1706, %v1706
  %v2396 = vmul.f32 %v1709, %v1709
  %v2397 = vmul.f32 %v1714, %v1714
  %v2398 = vmul.f32 %v1717, %v1717
  %v2399 = vmul.f32 %v1722, %v1722
  %v2400 = vmul.f32 %v1725, %v1725
  %v2401 = vmul.f32 %v1730, %v1730
  %v2402 = vmul.f32 %v1733, %v1733
  %v2403 = vmul.f32 %v1738, %v1738
  %v2404 = vmul.f32 %v1741, %v1741
  %v2405 = vmul.f32 %v1746, %v1746
  %v2406 = vmul.f32 %v1749, %v1749
  %v2407 = vmul.f32 %v1754, %v1754
  %v2408 = vmul.f32 %v1757, %v1757
  %v2409 = vmul.f32 %v1762, %v1762
  %v2410 = vmul.f32 %v1765, %v1765
  %v2411 = vmul.f32 %v1770, %v1770
  %v2412 = vmul.f32 %v1773, %v1773
  %v2413 = vmul.f32 %v1778, %v1778
  %v2414 = vmul.f32 %v1781, %v1781
  %v2415 = vmul.f32 %v1786, %v1786
  %v2416 = vmul.f32 %v1789, %v1789
  %v2417 = vmul.f32 %v1794, %v1794
  %v2418 = vmul.f32 %v1797, %v1797
  %v2419 = vmul.f32 %v1802, %v1802
  %v2420 = vmul.f32 %v1805, %v1805
  %v2421 = vmul.f32 %v1810, %v1810
  %v2422 = vmul.f32 %v1813, %v1813
  %v2423 = vmul.f32 %v1818, %v1818
  %v2424 = vmul.f32 %v1821, %v1821
  %v2425 = vmul.f32 %v1826, %v1826
  %v2426 = vmul.f32 %v1829, %v1829
  %v2427 = vsel %vm1832, %v2231, 0.0
  %v2428 = vsel %vm1832, %v2232, 0.0
  %v2429 = vadd.f32 %v2427, %v2428
  %v2430 = vsel %vm1832, %v2233, 0.0
  %v2431 = vadd.f32 %v2429, %v2430
  %v2432 = vsel %vm1832, %v2234, 0.0
  %v2433 = vadd.f32 %v2431, %v2432
  %v2434 = vsel %vm1832, %v2235, 0.0
  %v2435 = vadd.f32 %v2433, %v2434
  %v2436 = vsel %vm1832, %v2236, 0.0
  %v2437 = vadd.f32 %v2435, %v2436
  %v2438 = vsel %vm1832, %v2237, 0.0
  %v2439 = vadd.f32 %v2437, %v2438
  %v2440 = vsel %vm1832, %v2238, 0.0
  %v2441 = vadd.f32 %v2439, %v2440
  %v2442 = vsel %vm1832, %v2239, 0.0
  %v2443 = vadd.f32 %v2441, %v2442
  %v2444 = vsel %vm1832, %v2240, 0.0
  %v2445 = vadd.f32 %v2443, %v2444
  %v2446 = vsel %vm1832, %v2241, 0.0
  %v2447 = vadd.f32 %v2445, %v2446
  %v2448 = vsel %vm1832, %v2242, 0.0
  %v2449 = vadd.f32 %v2447, %v2448
  %v2450 = vsel %vm1832, %v2243, 0.0
  %v2451 = vadd.f32 %v2449, %v2450
  %v2452 = vsel %vm1832, %v2244, 0.0
  %v2453 = vadd.f32 %v2451, %v2452
  %v2454 = vsel %vm1832, %v2245, 0.0
  %v2455 = vadd.f32 %v2453, %v2454
  %v2456 = vsel %vm1832, %v2246, 0.0
  %v2457 = vadd.f32 %v2455, %v2456
  %v2458 = vsel %vm1832, %v2247, 0.0
  %v2459 = vadd.f32 %v2457, %v2458
  %v2460 = vsel %vm1832, %v2248, 0.0
  %v2461 = vadd.f32 %v2459, %v2460
  %v2462 = vsel %vm1832, %v2249, 0.0
  %v2463 = vadd.f32 %v2461, %v2462
  %v2464 = vsel %vm1832, %v2250, 0.0
  %v2465 = vadd.f32 %v2463, %v2464
  %v2466 = vsel %vm1832, %v2251, 0.0
  %v2467 = vadd.f32 %v2465, %v2466
  %v2468 = vsel %vm1832, %v2252, 0.0
  %v2469 = vadd.f32 %v2467, %v2468
  %v2470 = vsel %vm1832, %v2253, 0.0
  %v2471 = vadd.f32 %v2469, %v2470
  %v2472 = vsel %vm1832, %v2254, 0.0
  %v2473 = vadd.f32 %v2471, %v2472
  %v2474 = vsel %vm1832, %v2255, 0.0
  %v2475 = vadd.f32 %v2473, %v2474
  %v2476 = vsel %vm1832, %v2256, 0.0
  %v2477 = vadd.f32 %v2475, %v2476
  %v2478 = vsel %vm1832, %v2257, 0.0
  %v2479 = vadd.f32 %v2477, %v2478
  %v2480 = vsel %vm1832, %v2258, 0.0
  %v2481 = vadd.f32 %v2479, %v2480
  %v2482 = vsel %vm1832, %v2259, 0.0
  %v2483 = vadd.f32 %v2481, %v2482
  %v2484 = vsel %vm1832, %v2260, 0.0
  %v2485 = vadd.f32 %v2483, %v2484
  %v2486 = vsel %vm1832, %v2261, 0.0
  %v2487 = vadd.f32 %v2485, %v2486
  %v2488 = vsel %vm1832, %v2262, 0.0
  %v2489 = vadd.f32 %v2487, %v2488
  %v2490 = vsel %vm1832, %v2263, 0.0
  %v2491 = vadd.f32 %v2489, %v2490
  %v2492 = vsel %vm1832, %v2264, 0.0
  %v2493 = vadd.f32 %v2491, %v2492
  %v2494 = vsel %vm1832, %v2265, 0.0
  %v2495 = vadd.f32 %v2493, %v2494
  %v2496 = vsel %vm1832, %v2266, 0.0
  %v2497 = vadd.f32 %v2495, %v2496
  %v2498 = vsel %vm1832, %v2267, 0.0
  %v2499 = vadd.f32 %v2497, %v2498
  %v2500 = vsel %vm1832, %v2268, 0.0
  %v2501 = vadd.f32 %v2499, %v2500
  %v2502 = vsel %vm1832, %v2269, 0.0
  %v2503 = vadd.f32 %v2501, %v2502
  %v2504 = vsel %vm1832, %v2270, 0.0
  %v2505 = vadd.f32 %v2503, %v2504
  %v2506 = vsel %vm1832, %v2271, 0.0
  %v2507 = vadd.f32 %v2505, %v2506
  %v2508 = vsel %vm1832, %v2272, 0.0
  %v2509 = vadd.f32 %v2507, %v2508
  %v2510 = vsel %vm1832, %v2273, 0.0
  %v2511 = vadd.f32 %v2509, %v2510
  %v2512 = vsel %vm1832, %v2274, 0.0
  %v2513 = vadd.f32 %v2511, %v2512
  %v2514 = vsel %vm1832, %v2275, 0.0
  %v2515 = vadd.f32 %v2513, %v2514
  %v2516 = vsel %vm1832, %v2276, 0.0
  %v2517 = vadd.f32 %v2515, %v2516
  %v2518 = vsel %vm1832, %v2277, 0.0
  %v2519 = vadd.f32 %v2517, %v2518
  %v2520 = vsel %vm1832, %v2278, 0.0
  %v2521 = vadd.f32 %v2519, %v2520
  %v2522 = vsel %vm1832, %v2279, 0.0
  %v2523 = vadd.f32 %v2521, %v2522
  %v2524 = vsel %vm1832, %v2280, 0.0
  %v2525 = vadd.f32 %v2523, %v2524
  %v2526 = vsel %vm1832, %v2281, 0.0
  %v2527 = vadd.f32 %v2525, %v2526
  %v2528 = vsel %vm1832, %v2282, 0.0
  %v2529 = vadd.f32 %v2527, %v2528
  %v2530 = vsel %vm1832, %v2283, 0.0
  %v2531 = vadd.f32 %v2529, %v2530
  %v2532 = vsel %vm1832, %v2284, 0.0
  %v2533 = vadd.f32 %v2531, %v2532
  %v2534 = vsel %vm1832, %v2285, 0.0
  %v2535 = vadd.f32 %v2533, %v2534
  %v2536 = vsel %vm1832, %v2286, 0.0
  %v2537 = vadd.f32 %v2535, %v2536
  %v2538 = vsel %vm1832, %v2287, 0.0
  %v2539 = vadd.f32 %v2537, %v2538
  %v2540 = vsel %vm1832, %v2288, 0.0
  %v2541 = vadd.f32 %v2539, %v2540
  %v2542 = vsel %vm1832, %v2289, 0.0
  %v2543 = vadd.f32 %v2541, %v2542
  %v2544 = vsel %vm1832, %v2290, 0.0
  %v2545 = vadd.f32 %v2543, %v2544
  %v2546 = vsel %vm1832, %v2291, 0.0
  %v2547 = vadd.f32 %v2545, %v2546
  %v2548 = vsel %vm1832, %v2292, 0.0
  %v2549 = vadd.f32 %v2547, %v2548
  %v2550 = vsel %vm1832, %v2293, 0.0
  %v2551 = vadd.f32 %v2549, %v2550
  %v2552 = vsel %vm1832, %v2294, 0.0
  %v2553 = vadd.f32 %v2551, %v2552
  %v2554 = vsel %vm1832, %v2295, 0.0
  %v2555 = vadd.f32 %v2553, %v2554
  %v2556 = vsel %vm1832, %v2296, 0.0
  %v2557 = vadd.f32 %v2555, %v2556
  %v2558 = vsel %vm1832, %v2297, 0.0
  %v2559 = vadd.f32 %v2557, %v2558
  %v2560 = vsel %vm1832, %v2298, 0.0
  %v2561 = vadd.f32 %v2559, %v2560
  %v2562 = vsel %vm1832, %v2299, 0.0
  %v2563 = vadd.f32 %v2561, %v2562
  %v2564 = vsel %vm1832, %v2300, 0.0
  %v2565 = vadd.f32 %v2563, %v2564
  %v2566 = vsel %vm1832, %v2301, 0.0
  %v2567 = vadd.f32 %v2565, %v2566
  %v2568 = vsel %vm1832, %v2302, 0.0
  %v2569 = vadd.f32 %v2567, %v2568
  %v2570 = vsel %vm1832, %v2303, 0.0
  %v2571 = vadd.f32 %v2569, %v2570
  %v2572 = vsel %vm1832, %v2304, 0.0
  %v2573 = vadd.f32 %v2571, %v2572
  %v2574 = vsel %vm1832, %v2305, 0.0
  %v2575 = vadd.f32 %v2573, %v2574
  %v2576 = vsel %vm1832, %v2306, 0.0
  %v2577 = vadd.f32 %v2575, %v2576
  %v2578 = vsel %vm1832, %v2307, 0.0
  %v2579 = vadd.f32 %v2577, %v2578
  %v2580 = vsel %vm1832, %v2308, 0.0
  %v2581 = vadd.f32 %v2579, %v2580
  %v2582 = vsel %vm1832, %v2309, 0.0
  %v2583 = vadd.f32 %v2581, %v2582
  %v2584 = vsel %vm1832, %v2310, 0.0
  %v2585 = vadd.f32 %v2583, %v2584
  %v2586 = vsel %vm1832, %v2311, 0.0
  %v2587 = vadd.f32 %v2585, %v2586
  %v2588 = vsel %vm1832, %v2312, 0.0
  %v2589 = vadd.f32 %v2587, %v2588
  %v2590 = vsel %vm1832, %v2313, 0.0
  %v2591 = vadd.f32 %v2589, %v2590
  %v2592 = vsel %vm1832, %v2314, 0.0
  %v2593 = vadd.f32 %v2591, %v2592
  %v2594 = vsel %vm1832, %v2315, 0.0
  %v2595 = vadd.f32 %v2593, %v2594
  %v2596 = vsel %vm1832, %v2316, 0.0
  %v2597 = vadd.f32 %v2595, %v2596
  %v2598 = vsel %vm1832, %v2317, 0.0
  %v2599 = vadd.f32 %v2597, %v2598
  %v2600 = vsel %vm1832, %v2318, 0.0
  %v2601 = vadd.f32 %v2599, %v2600
  %v2602 = vsel %vm1832, %v2319, 0.0
  %v2603 = vadd.f32 %v2601, %v2602
  %v2604 = vsel %vm1832, %v2320, 0.0
  %v2605 = vadd.f32 %v2603, %v2604
  %v2606 = vsel %vm1832, %v2321, 0.0
  %v2607 = vadd.f32 %v2605, %v2606
  %v2608 = vsel %vm1832, %v2322, 0.0
  %v2609 = vadd.f32 %v2607, %v2608
  %v2610 = vsel %vm1832, %v2323, 0.0
  %v2611 = vadd.f32 %v2609, %v2610
  %v2612 = vsel %vm1832, %v2324, 0.0
  %v2613 = vadd.f32 %v2611, %v2612
  %v2614 = vsel %vm1832, %v2325, 0.0
  %v2615 = vadd.f32 %v2613, %v2614
  %v2616 = vsel %vm1832, %v2326, 0.0
  %v2617 = vadd.f32 %v2615, %v2616
  %v2618 = vsel %vm1832, %v2327, 0.0
  %v2619 = vadd.f32 %v2617, %v2618
  %v2620 = vsel %vm1832, %v2328, 0.0
  %v2621 = vadd.f32 %v2619, %v2620
  %v2622 = vsel %vm1832, %v2329, 0.0
  %v2623 = vadd.f32 %v2621, %v2622
  %v2624 = vsel %vm1832, %v2330, 0.0
  %v2625 = vadd.f32 %v2623, %v2624
  %v2626 = vsel %vm1832, %v2331, 0.0
  %v2627 = vadd.f32 %v2625, %v2626
  %v2628 = vsel %vm1832, %v2332, 0.0
  %v2629 = vadd.f32 %v2627, %v2628
  %v2630 = vsel %vm1832, %v2333, 0.0
  %v2631 = vadd.f32 %v2629, %v2630
  %v2632 = vsel %vm1832, %v2334, 0.0
  %v2633 = vadd.f32 %v2631, %v2632
  %v2634 = vsel %vm1832, %v2335, 0.0
  %v2635 = vadd.f32 %v2633, %v2634
  %v2636 = vsel %vm1832, %v2336, 0.0
  %v2637 = vadd.f32 %v2635, %v2636
  %v2638 = vsel %vm1832, %v2337, 0.0
  %v2639 = vadd.f32 %v2637, %v2638
  %v2640 = vsel %vm1832, %v2338, 0.0
  %v2641 = vadd.f32 %v2639, %v2640
  %v2642 = vsel %vm1832, %v2339, 0.0
  %v2643 = vadd.f32 %v2641, %v2642
  %v2644 = vsel %vm1832, %v2340, 0.0
  %v2645 = vadd.f32 %v2643, %v2644
  %v2646 = vsel %vm1832, %v2341, 0.0
  %v2647 = vadd.f32 %v2645, %v2646
  %v2648 = vsel %vm1832, %v2342, 0.0
  %v2649 = vadd.f32 %v2647, %v2648
  %v2650 = vsel %vm1832, %v2343, 0.0
  %v2651 = vadd.f32 %v2649, %v2650
  %v2652 = vsel %vm1832, %v2344, 0.0
  %v2653 = vadd.f32 %v2651, %v2652
  %v2654 = vsel %vm1832, %v2345, 0.0
  %v2655 = vadd.f32 %v2653, %v2654
  %v2656 = vsel %vm1832, %v2346, 0.0
  %v2657 = vadd.f32 %v2655, %v2656
  %v2658 = vsel %vm1832, %v2347, 0.0
  %v2659 = vadd.f32 %v2657, %v2658
  %v2660 = vsel %vm1832, %v2348, 0.0
  %v2661 = vadd.f32 %v2659, %v2660
  %v2662 = vsel %vm1832, %v2349, 0.0
  %v2663 = vadd.f32 %v2661, %v2662
  %v2664 = vsel %vm1832, %v2350, 0.0
  %v2665 = vadd.f32 %v2663, %v2664
  %v2666 = vsel %vm1832, %v2351, 0.0
  %v2667 = vadd.f32 %v2665, %v2666
  %v2668 = vsel %vm1832, %v2352, 0.0
  %v2669 = vadd.f32 %v2667, %v2668
  %v2670 = vsel %vm1832, %v2353, 0.0
  %v2671 = vadd.f32 %v2669, %v2670
  %v2672 = vsel %vm1832, %v2354, 0.0
  %v2673 = vadd.f32 %v2671, %v2672
  %v2674 = vsel %vm1832, %v2355, 0.0
  %v2675 = vadd.f32 %v2673, %v2674
  %v2676 = vsel %vm1832, %v2356, 0.0
  %v2677 = vadd.f32 %v2675, %v2676
  %v2678 = vsel %vm1832, %v2357, 0.0
  %v2679 = vadd.f32 %v2677, %v2678
  %v2680 = vsel %vm1832, %v2358, 0.0
  %v2681 = vadd.f32 %v2679, %v2680
  %v2682 = vsel %vm1832, %v2359, 0.0
  %v2683 = vadd.f32 %v2681, %v2682
  %v2684 = vsel %vm1832, %v2360, 0.0
  %v2685 = vadd.f32 %v2683, %v2684
  %v2686 = vsel %vm1832, %v2361, 0.0
  %v2687 = vadd.f32 %v2685, %v2686
  %v2688 = vsel %vm1832, %v2362, 0.0
  %v2689 = vadd.f32 %v2687, %v2688
  %v2690 = vsel %vm1832, %v2363, 0.0
  %v2691 = vadd.f32 %v2689, %v2690
  %v2692 = vsel %vm1832, %v2364, 0.0
  %v2693 = vadd.f32 %v2691, %v2692
  %v2694 = vsel %vm1832, %v2365, 0.0
  %v2695 = vadd.f32 %v2693, %v2694
  %v2696 = vsel %vm1832, %v2366, 0.0
  %v2697 = vadd.f32 %v2695, %v2696
  %v2698 = vsel %vm1832, %v2367, 0.0
  %v2699 = vadd.f32 %v2697, %v2698
  %v2700 = vsel %vm1832, %v2368, 0.0
  %v2701 = vadd.f32 %v2699, %v2700
  %v2702 = vsel %vm1832, %v2369, 0.0
  %v2703 = vadd.f32 %v2701, %v2702
  %v2704 = vsel %vm1832, %v2370, 0.0
  %v2705 = vadd.f32 %v2703, %v2704
  %v2706 = vsel %vm1832, %v2371, 0.0
  %v2707 = vadd.f32 %v2705, %v2706
  %v2708 = vsel %vm1832, %v2372, 0.0
  %v2709 = vadd.f32 %v2707, %v2708
  %v2710 = vsel %vm1832, %v2373, 0.0
  %v2711 = vadd.f32 %v2709, %v2710
  %v2712 = vsel %vm1832, %v2374, 0.0
  %v2713 = vadd.f32 %v2711, %v2712
  %v2714 = vsel %vm1832, %v2375, 0.0
  %v2715 = vadd.f32 %v2713, %v2714
  %v2716 = vsel %vm1832, %v2376, 0.0
  %v2717 = vadd.f32 %v2715, %v2716
  %v2718 = vsel %vm1832, %v2377, 0.0
  %v2719 = vadd.f32 %v2717, %v2718
  %v2720 = vsel %vm1832, %v2378, 0.0
  %v2721 = vadd.f32 %v2719, %v2720
  %v2722 = vsel %vm1832, %v2379, 0.0
  %v2723 = vadd.f32 %v2721, %v2722
  %v2724 = vsel %vm1832, %v2380, 0.0
  %v2725 = vadd.f32 %v2723, %v2724
  %v2726 = vsel %vm1832, %v2381, 0.0
  %v2727 = vadd.f32 %v2725, %v2726
  %v2728 = vsel %vm1832, %v2382, 0.0
  %v2729 = vadd.f32 %v2727, %v2728
  %v2730 = vsel %vm1832, %v2383, 0.0
  %v2731 = vadd.f32 %v2729, %v2730
  %v2732 = vsel %vm1832, %v2384, 0.0
  %v2733 = vadd.f32 %v2731, %v2732
  %v2734 = vsel %vm1832, %v2385, 0.0
  %v2735 = vadd.f32 %v2733, %v2734
  %v2736 = vsel %vm1832, %v2386, 0.0
  %v2737 = vadd.f32 %v2735, %v2736
  %v2738 = vsel %vm1832, %v2387, 0.0
  %v2739 = vadd.f32 %v2737, %v2738
  %v2740 = vsel %vm1832, %v2388, 0.0
  %v2741 = vadd.f32 %v2739, %v2740
  %v2742 = vsel %vm1832, %v2389, 0.0
  %v2743 = vadd.f32 %v2741, %v2742
  %v2744 = vsel %vm1832, %v2390, 0.0
  %v2745 = vadd.f32 %v2743, %v2744
  %v2746 = vsel %vm1832, %v2391, 0.0
  %v2747 = vadd.f32 %v2745, %v2746
  %v2748 = vsel %vm1832, %v2392, 0.0
  %v2749 = vadd.f32 %v2747, %v2748
  %v2750 = vsel %vm1832, %v2393, 0.0
  %v2751 = vadd.f32 %v2749, %v2750
  %v2752 = vsel %vm1832, %v2394, 0.0
  %v2753 = vadd.f32 %v2751, %v2752
  %v2754 = vsel %vm1832, %v2395, 0.0
  %v2755 = vadd.f32 %v2753, %v2754
  %v2756 = vsel %vm1832, %v2396, 0.0
  %v2757 = vadd.f32 %v2755, %v2756
  %v2758 = vsel %vm1832, %v2397, 0.0
  %v2759 = vadd.f32 %v2757, %v2758
  %v2760 = vsel %vm1832, %v2398, 0.0
  %v2761 = vadd.f32 %v2759, %v2760
  %v2762 = vsel %vm1832, %v2399, 0.0
  %v2763 = vadd.f32 %v2761, %v2762
  %v2764 = vsel %vm1832, %v2400, 0.0
  %v2765 = vadd.f32 %v2763, %v2764
  %v2766 = vsel %vm1832, %v2401, 0.0
  %v2767 = vadd.f32 %v2765, %v2766
  %v2768 = vsel %vm1832, %v2402, 0.0
  %v2769 = vadd.f32 %v2767, %v2768
  %v2770 = vsel %vm1832, %v2403, 0.0
  %v2771 = vadd.f32 %v2769, %v2770
  %v2772 = vsel %vm1832, %v2404, 0.0
  %v2773 = vadd.f32 %v2771, %v2772
  %v2774 = vsel %vm1832, %v2405, 0.0
  %v2775 = vadd.f32 %v2773, %v2774
  %v2776 = vsel %vm1832, %v2406, 0.0
  %v2777 = vadd.f32 %v2775, %v2776
  %v2778 = vsel %vm1832, %v2407, 0.0
  %v2779 = vadd.f32 %v2777, %v2778
  %v2780 = vsel %vm1832, %v2408, 0.0
  %v2781 = vadd.f32 %v2779, %v2780
  %v2782 = vsel %vm1832, %v2409, 0.0
  %v2783 = vadd.f32 %v2781, %v2782
  %v2784 = vsel %vm1832, %v2410, 0.0
  %v2785 = vadd.f32 %v2783, %v2784
  %v2786 = vsel %vm1832, %v2411, 0.0
  %v2787 = vadd.f32 %v2785, %v2786
  %v2788 = vsel %vm1832, %v2412, 0.0
  %v2789 = vadd.f32 %v2787, %v2788
  %v2790 = vsel %vm1832, %v2413, 0.0
  %v2791 = vadd.f32 %v2789, %v2790
  %v2792 = vsel %vm1832, %v2414, 0.0
  %v2793 = vadd.f32 %v2791, %v2792
  %v2794 = vsel %vm1832, %v2415, 0.0
  %v2795 = vadd.f32 %v2793, %v2794
  %v2796 = vsel %vm1832, %v2416, 0.0
  %v2797 = vadd.f32 %v2795, %v2796
  %v2798 = vsel %vm1832, %v2417, 0.0
  %v2799 = vadd.f32 %v2797, %v2798
  %v2800 = vsel %vm1832, %v2418, 0.0
  %v2801 = vadd.f32 %v2799, %v2800
  %v2802 = vsel %vm1832, %v2419, 0.0
  %v2803 = vadd.f32 %v2801, %v2802
  %v2804 = vsel %vm1832, %v2420, 0.0
  %v2805 = vadd.f32 %v2803, %v2804
  %v2806 = vsel %vm1832, %v2421, 0.0
  %v2807 = vadd.f32 %v2805, %v2806
  %v2808 = vsel %vm1832, %v2422, 0.0
  %v2809 = vadd.f32 %v2807, %v2808
  %v2810 = vsel %vm1832, %v2423, 0.0
  %v2811 = vadd.f32 %v2809, %v2810
  %v2812 = vsel %vm1832, %v2424, 0.0
  %v2813 = vadd.f32 %v2811, %v2812
  %v2814 = vsel %vm1832, %v2425, 0.0
  %v2815 = vadd.f32 %v2813, %v2814
  %v2816 = vsel %vm1832, %v2426, 0.0
  %v2817 = vadd.f32 %v2815, %v2816
  %v2818 = vrot.slane %v2817, 4
  %v2819 = vadd.f32 %v2817, %v2818
  %v2820 = vrot.slane %v2819, 2
  %v2821 = vadd.f32 %v2819, %v2820
  %v2822 = vrot.slane %v2821, 1
  %v2823 = vadd.f32 %v2821, %v2822
  %v2824 = vmul.f32 %v2823, 0.0006377551
  %v2825 = vmul.f32 %v2230, %v2230
  %v2826 = vsub.f32 %v2824, %v2825
  %v2827 = vmax.f32 %v2826, 0.0
  %v2828 = vadd.f32 %v2827, 1e-05
  %v2829 = vrsqrt.pop %v2828
  %2830 = vst.msk [vmem:[#allocation2] sm:$0xff] %vm1832, %v1050
  %2831 = vst.msk [vmem:[#allocation2 + $0x8] sm:$0xff] %vm1832, %v1053
  %2832 = vst.msk [vmem:[#allocation2 + $0x10] sm:$0xff] %vm1832, %v1058
  %2833 = vst.msk [vmem:[#allocation2 + $0x18] sm:$0xff] %vm1832, %v1061
  %2834 = vst.msk [vmem:[#allocation2 + $0x20] sm:$0xff] %vm1832, %v1066
  %2835 = vst.msk [vmem:[#allocation2 + $0x28] sm:$0xff] %vm1832, %v1069
  %2836 = vst.msk [vmem:[#allocation2 + $0x30] sm:$0xff] %vm1832, %v1074
  %2837 = vst.msk [vmem:[#allocation2 + $0x38] sm:$0xff] %vm1832, %v1077
  %2838 = vst.msk [vmem:[#allocation2 + $0x40] sm:$0xff] %vm1832, %v1082
  %2839 = vst.msk [vmem:[#allocation2 + $0x48] sm:$0xff] %vm1832, %v1085
  %2840 = vst.msk [vmem:[#allocation2 + $0x50] sm:$0xff] %vm1832, %v1090
  %2841 = vst.msk [vmem:[#allocation2 + $0x58] sm:$0xff] %vm1832, %v1093
  %2842 = vst.msk [vmem:[#allocation2 + $0x60] sm:$0xff] %vm1832, %v1098
  %2843 = vst.msk [vmem:[#allocation2 + $0x68] sm:$0xff] %vm1832, %v1101
  %2844 = vst.msk [vmem:[#allocation2 + $0x70] sm:$0xff] %vm1832, %v1106
  %2845 = vst.msk [vmem:[#allocation2 + $0x78] sm:$0xff] %vm1832, %v1109
  %2846 = vst.msk [vmem:[#allocation2 + $0x80] sm:$0xff] %vm1832, %v1114
  %2847 = vst.msk [vmem:[#allocation2 + $0x88] sm:$0xff] %vm1832, %v1117
  %2848 = vst.msk [vmem:[#allocation2 + $0x90] sm:$0xff] %vm1832, %v1122
  %2849 = vst.msk [vmem:[#allocation2 + $0x98] sm:$0xff] %vm1832, %v1125
  %2850 = vst.msk [vmem:[#allocation2 + $0xa0] sm:$0xff] %vm1832, %v1130
  %2851 = vst.msk [vmem:[#allocation2 + $0xa8] sm:$0xff] %vm1832, %v1133
  %2852 = vst.msk [vmem:[#allocation2 + $0xb0] sm:$0xff] %vm1832, %v1138
  %2853 = vst.msk [vmem:[#allocation2 + $0xb8] sm:$0xff] %vm1832, %v1141
  %2854 = vst.msk [vmem:[#allocation2 + $0xc0] sm:$0xff] %vm1832, %v1146
  %2855 = vst.msk [vmem:[#allocation2 + $0xc8] sm:$0xff] %vm1832, %v1149
  %2856 = vst.msk [vmem:[#allocation2 + $0xd0] sm:$0xff] %vm1832, %v1154
  %2857 = vst.msk [vmem:[#allocation2 + $0xd8] sm:$0xff] %vm1832, %v1157
  %2858 = vst.msk [vmem:[#allocation2 + $0xe0] sm:$0xff] %vm1832, %v1162
  %2859 = vst.msk [vmem:[#allocation2 + $0xe8] sm:$0xff] %vm1832, %v1165
  %2860 = vst.msk [vmem:[#allocation2 + $0xf0] sm:$0xff] %vm1832, %v1170
  %2861 = vst.msk [vmem:[#allocation2 + $0xf8] sm:$0xff] %vm1832, %v1173
  %2862 = vst.msk [vmem:[#allocation2 + $0x100] sm:$0xff] %vm1832, %v1178
  %2863 = vst.msk [vmem:[#allocation2 + $0x108] sm:$0xff] %vm1832, %v1181
  %2864 = vst.msk [vmem:[#allocation2 + $0x110] sm:$0xff] %vm1832, %v1186
  %2865 = vst.msk [vmem:[#allocation2 + $0x118] sm:$0xff] %vm1832, %v1189
  %2866 = vst.msk [vmem:[#allocation2 + $0x120] sm:$0xff] %vm1832, %v1194
  %2867 = vst.msk [vmem:[#allocation2 + $0x128] sm:$0xff] %vm1832, %v1197
  %2868 = vst.msk [vmem:[#allocation2 + $0x130] sm:$0xff] %vm1832, %v1202
  %2869 = vst.msk [vmem:[#allocation2 + $0x138] sm:$0xff] %vm1832, %v1205
  %2870 = vst.msk [vmem:[#allocation2 + $0x140] sm:$0xff] %vm1832, %v1210
  %2871 = vst.msk [vmem:[#allocation2 + $0x148] sm:$0xff] %vm1832, %v1213
  %2872 = vst.msk [vmem:[#allocation2 + $0x150] sm:$0xff] %vm1832, %v1218
  %2873 = vst.msk [vmem:[#allocation2 + $0x158] sm:$0xff] %vm1832, %v1221
  %2874 = vst.msk [vmem:[#allocation2 + $0x160] sm:$0xff] %vm1832, %v1226
  %2875 = vst.msk [vmem:[#allocation2 + $0x168] sm:$0xff] %vm1832, %v1229
  %2876 = vst.msk [vmem:[#allocation2 + $0x170] sm:$0xff] %vm1832, %v1234
  %2877 = vst.msk [vmem:[#allocation2 + $0x178] sm:$0xff] %vm1832, %v1237
  %2878 = vst.msk [vmem:[#allocation2 + $0x180] sm:$0xff] %vm1832, %v1242
  %2879 = vst.msk [vmem:[#allocation2 + $0x188] sm:$0xff] %vm1832, %v1245
  %2880 = vst.msk [vmem:[#allocation2 + $0x190] sm:$0xff] %vm1832, %v1250
  %2881 = vst.msk [vmem:[#allocation2 + $0x198] sm:$0xff] %vm1832, %v1253
  %2882 = vst.msk [vmem:[#allocation2 + $0x1a0] sm:$0xff] %vm1832, %v1258
  %2883 = vst.msk [vmem:[#allocation2 + $0x1a8] sm:$0xff] %vm1832, %v1261
  %2884 = vst.msk [vmem:[#allocation2 + $0x1b0] sm:$0xff] %vm1832, %v1266
  %2885 = vst.msk [vmem:[#allocation2 + $0x1b8] sm:$0xff] %vm1832, %v1269
  %2886 = vst.msk [vmem:[#allocation2 + $0x1c0] sm:$0xff] %vm1832, %v1274
  %2887 = vst.msk [vmem:[#allocation2 + $0x1c8] sm:$0xff] %vm1832, %v1277
  %2888 = vst.msk [vmem:[#allocation2 + $0x1d0] sm:$0xff] %vm1832, %v1282
  %2889 = vst.msk [vmem:[#allocation2 + $0x1d8] sm:$0xff] %vm1832, %v1285
  %2890 = vst.msk [vmem:[#allocation2 + $0x1e0] sm:$0xff] %vm1832, %v1290
  %2891 = vst.msk [vmem:[#allocation2 + $0x1e8] sm:$0xff] %vm1832, %v1293
  %2892 = vst.msk [vmem:[#allocation2 + $0x1f0] sm:$0xff] %vm1832, %v1298
  %2893 = vst.msk [vmem:[#allocation2 + $0x1f8] sm:$0xff] %vm1832, %v1301
  %2894 = vst.msk [vmem:[#allocation2 + $0x200] sm:$0xff] %vm1832, %v1306
  %2895 = vst.msk [vmem:[#allocation2 + $0x208] sm:$0xff] %vm1832, %v1309
  %2896 = vst.msk [vmem:[#allocation2 + $0x210] sm:$0xff] %vm1832, %v1314
  %2897 = vst.msk [vmem:[#allocation2 + $0x218] sm:$0xff] %vm1832, %v1317
  %2898 = vst.msk [vmem:[#allocation2 + $0x220] sm:$0xff] %vm1832, %v1322
  %2899 = vst.msk [vmem:[#allocation2 + $0x228] sm:$0xff] %vm1832, %v1325
  %2900 = vst.msk [vmem:[#allocation2 + $0x230] sm:$0xff] %vm1832, %v1330
  %2901 = vst.msk [vmem:[#allocation2 + $0x238] sm:$0xff] %vm1832, %v1333
  %2902 = vst.msk [vmem:[#allocation2 + $0x240] sm:$0xff] %vm1832, %v1338
  %2903 = vst.msk [vmem:[#allocation2 + $0x248] sm:$0xff] %vm1832, %v1341
  %2904 = vst.msk [vmem:[#allocation2 + $0x250] sm:$0xff] %vm1832, %v1346
  %2905 = vst.msk [vmem:[#allocation2 + $0x258] sm:$0xff] %vm1832, %v1349
  %2906 = vst.msk [vmem:[#allocation2 + $0x260] sm:$0xff] %vm1832, %v1354
  %2907 = vst.msk [vmem:[#allocation2 + $0x268] sm:$0xff] %vm1832, %v1357
  %2908 = vst.msk [vmem:[#allocation2 + $0x270] sm:$0xff] %vm1832, %v1362
  %2909 = vst.msk [vmem:[#allocation2 + $0x278] sm:$0xff] %vm1832, %v1365
  %2910 = vst.msk [vmem:[#allocation2 + $0x280] sm:$0xff] %vm1832, %v1370
  %2911 = vst.msk [vmem:[#allocation2 + $0x288] sm:$0xff] %vm1832, %v1373
  %2912 = vst.msk [vmem:[#allocation2 + $0x290] sm:$0xff] %vm1832, %v1378
  %2913 = vst.msk [vmem:[#allocation2 + $0x298] sm:$0xff] %vm1832, %v1381
  %2914 = vst.msk [vmem:[#allocation2 + $0x2a0] sm:$0xff] %vm1832, %v1386
  %2915 = vst.msk [vmem:[#allocation2 + $0x2a8] sm:$0xff] %vm1832, %v1389
  %2916 = vst.msk [vmem:[#allocation2 + $0x2b0] sm:$0xff] %vm1832, %v1394
  %2917 = vst.msk [vmem:[#allocation2 + $0x2b8] sm:$0xff] %vm1832, %v1397
  %2918 = vst.msk [vmem:[#allocation2 + $0x2c0] sm:$0xff] %vm1832, %v1402
  %2919 = vst.msk [vmem:[#allocation2 + $0x2c8] sm:$0xff] %vm1832, %v1405
  %2920 = vst.msk [vmem:[#allocation2 + $0x2d0] sm:$0xff] %vm1832, %v1410
  %2921 = vst.msk [vmem:[#allocation2 + $0x2d8] sm:$0xff] %vm1832, %v1413
  %2922 = vst.msk [vmem:[#allocation2 + $0x2e0] sm:$0xff] %vm1832, %v1418
  %2923 = vst.msk [vmem:[#allocation2 + $0x2e8] sm:$0xff] %vm1832, %v1421
  %2924 = vst.msk [vmem:[#allocation2 + $0x2f0] sm:$0xff] %vm1832, %v1426
  %2925 = vst.msk [vmem:[#allocation2 + $0x2f8] sm:$0xff] %vm1832, %v1429
  %2926 = vst.msk [vmem:[#allocation2 + $0x300] sm:$0xff] %vm1832, %v1434
  %2927 = vst.msk [vmem:[#allocation2 + $0x308] sm:$0xff] %vm1832, %v1437
  %2928 = vst.msk [vmem:[#allocation2 + $0x310] sm:$0xff] %vm1832, %v1442
  %2929 = vst.msk [vmem:[#allocation2 + $0x318] sm:$0xff] %vm1832, %v1445
  %2930 = vst.msk [vmem:[#allocation2 + $0x320] sm:$0xff] %vm1832, %v1450
  %2931 = vst.msk [vmem:[#allocation2 + $0x328] sm:$0xff] %vm1832, %v1453
  %2932 = vst.msk [vmem:[#allocation2 + $0x330] sm:$0xff] %vm1832, %v1458
  %2933 = vst.msk [vmem:[#allocation2 + $0x338] sm:$0xff] %vm1832, %v1461
  %2934 = vst.msk [vmem:[#allocation2 + $0x340] sm:$0xff] %vm1832, %v1466
  %2935 = vst.msk [vmem:[#allocation2 + $0x348] sm:$0xff] %vm1832, %v1469
  %2936 = vst.msk [vmem:[#allocation2 + $0x350] sm:$0xff] %vm1832, %v1474
  %2937 = vst.msk [vmem:[#allocation2 + $0x358] sm:$0xff] %vm1832, %v1477
  %2938 = vst.msk [vmem:[#allocation2 + $0x360] sm:$0xff] %vm1832, %v1482
  %2939 = vst.msk [vmem:[#allocation2 + $0x368] sm:$0xff] %vm1832, %v1485
  %2940 = vst.msk [vmem:[#allocation2 + $0x370] sm:$0xff] %vm1832, %v1490
  %2941 = vst.msk [vmem:[#allocation2 + $0x378] sm:$0xff] %vm1832, %v1493
  %2942 = vst.msk [vmem:[#allocation2 + $0x380] sm:$0xff] %vm1832, %v1498
  %2943 = vst.msk [vmem:[#allocation2 + $0x388] sm:$0xff] %vm1832, %v1501
  %2944 = vst.msk [vmem:[#allocation2 + $0x390] sm:$0xff] %vm1832, %v1506
  %2945 = vst.msk [vmem:[#allocation2 + $0x398] sm:$0xff] %vm1832, %v1509
  %2946 = vst.msk [vmem:[#allocation2 + $0x3a0] sm:$0xff] %vm1832, %v1514
  %2947 = vst.msk [vmem:[#allocation2 + $0x3a8] sm:$0xff] %vm1832, %v1517
  %2948 = vst.msk [vmem:[#allocation2 + $0x3b0] sm:$0xff] %vm1832, %v1522
  %2949 = vst.msk [vmem:[#allocation2 + $0x3b8] sm:$0xff] %vm1832, %v1525
  %2950 = vst.msk [vmem:[#allocation2 + $0x3c0] sm:$0xff] %vm1832, %v1530
  %2951 = vst.msk [vmem:[#allocation2 + $0x3c8] sm:$0xff] %vm1832, %v1533
  %2952 = vst.msk [vmem:[#allocation2 + $0x3d0] sm:$0xff] %vm1832, %v1538
  %2953 = vst.msk [vmem:[#allocation2 + $0x3d8] sm:$0xff] %vm1832, %v1541
  %2954 = vst.msk [vmem:[#allocation2 + $0x3e0] sm:$0xff] %vm1832, %v1546
  %2955 = vst.msk [vmem:[#allocation2 + $0x3e8] sm:$0xff] %vm1832, %v1549
  %2956 = vst.msk [vmem:[#allocation2 + $0x3f0] sm:$0xff] %vm1832, %v1554
  %2957 = vst.msk [vmem:[#allocation2 + $0x3f8] sm:$0xff] %vm1832, %v1557
  %2958 = vst.msk [vmem:[#allocation2 + $0x400] sm:$0xff] %vm1832, %v1562
  %2959 = vst.msk [vmem:[#allocation2 + $0x408] sm:$0xff] %vm1832, %v1565
  %2960 = vst.msk [vmem:[#allocation2 + $0x410] sm:$0xff] %vm1832, %v1570
  %2961 = vst.msk [vmem:[#allocation2 + $0x418] sm:$0xff] %vm1832, %v1573
  %2962 = vst.msk [vmem:[#allocation2 + $0x420] sm:$0xff] %vm1832, %v1578
  %2963 = vst.msk [vmem:[#allocation2 + $0x428] sm:$0xff] %vm1832, %v1581
  %2964 = vst.msk [vmem:[#allocation2 + $0x430] sm:$0xff] %vm1832, %v1586
  %2965 = vst.msk [vmem:[#allocation2 + $0x438] sm:$0xff] %vm1832, %v1589
  %2966 = vst.msk [vmem:[#allocation2 + $0x440] sm:$0xff] %vm1832, %v1594
  %2967 = vst.msk [vmem:[#allocation2 + $0x448] sm:$0xff] %vm1832, %v1597
  %2968 = vst.msk [vmem:[#allocation2 + $0x450] sm:$0xff] %vm1832, %v1602
  %2969 = vst.msk [vmem:[#allocation2 + $0x458] sm:$0xff] %vm1832, %v1605
  %2970 = vst.msk [vmem:[#allocation2 + $0x460] sm:$0xff] %vm1832, %v1610
  %2971 = vst.msk [vmem:[#allocation2 + $0x468] sm:$0xff] %vm1832, %v1613
  %2972 = vst.msk [vmem:[#allocation2 + $0x470] sm:$0xff] %vm1832, %v1618
  %2973 = vst.msk [vmem:[#allocation2 + $0x478] sm:$0xff] %vm1832, %v1621
  %2974 = vst.msk [vmem:[#allocation2 + $0x480] sm:$0xff] %vm1832, %v1626
  %2975 = vst.msk [vmem:[#allocation2 + $0x488] sm:$0xff] %vm1832, %v1629
  %2976 = vst.msk [vmem:[#allocation2 + $0x490] sm:$0xff] %vm1832, %v1634
  %2977 = vst.msk [vmem:[#allocation2 + $0x498] sm:$0xff] %vm1832, %v1637
  %2978 = vst.msk [vmem:[#allocation2 + $0x4a0] sm:$0xff] %vm1832, %v1642
  %2979 = vst.msk [vmem:[#allocation2 + $0x4a8] sm:$0xff] %vm1832, %v1645
  %2980 = vst.msk [vmem:[#allocation2 + $0x4b0] sm:$0xff] %vm1832, %v1650
  %2981 = vst.msk [vmem:[#allocation2 + $0x4b8] sm:$0xff] %vm1832, %v1653
  %2982 = vst.msk [vmem:[#allocation2 + $0x4c0] sm:$0xff] %vm1832, %v1658
  %2983 = vst.msk [vmem:[#allocation2 + $0x4c8] sm:$0xff] %vm1832, %v1661
  %2984 = vst.msk [vmem:[#allocation2 + $0x4d0] sm:$0xff] %vm1832, %v1666
  %2985 = vst.msk [vmem:[#allocation2 + $0x4d8] sm:$0xff] %vm1832, %v1669
  %2986 = vst.msk [vmem:[#allocation2 + $0x4e0] sm:$0xff] %vm1832, %v1674
  %2987 = vst.msk [vmem:[#allocation2 + $0x4e8] sm:$0xff] %vm1832, %v1677
  %2988 = vst.msk [vmem:[#allocation2 + $0x4f0] sm:$0xff] %vm1832, %v1682
  %2989 = vst.msk [vmem:[#allocation2 + $0x4f8] sm:$0xff] %vm1832, %v1685
  %2990 = vst.msk [vmem:[#allocation2 + $0x500] sm:$0xff] %vm1832, %v1690
  %2991 = vst.msk [vmem:[#allocation2 + $0x508] sm:$0xff] %vm1832, %v1693
  %2992 = vst.msk [vmem:[#allocation2 + $0x510] sm:$0xff] %vm1832, %v1698
  %2993 = vst.msk [vmem:[#allocation2 + $0x518] sm:$0xff] %vm1832, %v1701
  %2994 = vst.msk [vmem:[#allocation2 + $0x520] sm:$0xff] %vm1832, %v1706
  %2995 = vst.msk [vmem:[#allocation2 + $0x528] sm:$0xff] %vm1832, %v1709
  %2996 = vst.msk [vmem:[#allocation2 + $0x530] sm:$0xff] %vm1832, %v1714
  %2997 = vst.msk [vmem:[#allocation2 + $0x538] sm:$0xff] %vm1832, %v1717
  %2998 = vst.msk [vmem:[#allocation2 + $0x540] sm:$0xff] %vm1832, %v1722
  %2999 = vst.msk [vmem:[#allocation2 + $0x548] sm:$0xff] %vm1832, %v1725
  %3000 = vst.msk [vmem:[#allocation2 + $0x550] sm:$0xff] %vm1832, %v1730
  %3001 = vst.msk [vmem:[#allocation2 + $0x558] sm:$0xff] %vm1832, %v1733
  %3002 = vst.msk [vmem:[#allocation2 + $0x560] sm:$0xff] %vm1832, %v1738
  %3003 = vst.msk [vmem:[#allocation2 + $0x568] sm:$0xff] %vm1832, %v1741
  %3004 = vst.msk [vmem:[#allocation2 + $0x570] sm:$0xff] %vm1832, %v1746
  %3005 = vst.msk [vmem:[#allocation2 + $0x578] sm:$0xff] %vm1832, %v1749
  %3006 = vst.msk [vmem:[#allocation2 + $0x580] sm:$0xff] %vm1832, %v1754
  %3007 = vst.msk [vmem:[#allocation2 + $0x588] sm:$0xff] %vm1832, %v1757
  %3008 = vst.msk [vmem:[#allocation2 + $0x590] sm:$0xff] %vm1832, %v1762
  %3009 = vst.msk [vmem:[#allocation2 + $0x598] sm:$0xff] %vm1832, %v1765
  %3010 = vst.msk [vmem:[#allocation2 + $0x5a0] sm:$0xff] %vm1832, %v1770
  %3011 = vst.msk [vmem:[#allocation2 + $0x5a8] sm:$0xff] %vm1832, %v1773
  %3012 = vst.msk [vmem:[#allocation2 + $0x5b0] sm:$0xff] %vm1832, %v1778
  %3013 = vst.msk [vmem:[#allocation2 + $0x5b8] sm:$0xff] %vm1832, %v1781
  %3014 = vst.msk [vmem:[#allocation2 + $0x5c0] sm:$0xff] %vm1832, %v1786
  %3015 = vst.msk [vmem:[#allocation2 + $0x5c8] sm:$0xff] %vm1832, %v1789
  %3016 = vst.msk [vmem:[#allocation2 + $0x5d0] sm:$0xff] %vm1832, %v1794
  %3017 = vst.msk [vmem:[#allocation2 + $0x5d8] sm:$0xff] %vm1832, %v1797
  %3018 = vst.msk [vmem:[#allocation2 + $0x5e0] sm:$0xff] %vm1832, %v1802
  %3019 = vst.msk [vmem:[#allocation2 + $0x5e8] sm:$0xff] %vm1832, %v1805
  %3020 = vst.msk [vmem:[#allocation2 + $0x5f0] sm:$0xff] %vm1832, %v1810
  %3021 = vst.msk [vmem:[#allocation2 + $0x5f8] sm:$0xff] %vm1832, %v1813
  %3022 = vst.msk [vmem:[#allocation2 + $0x600] sm:$0xff] %vm1832, %v1818
  %3023 = vst.msk [vmem:[#allocation2 + $0x608] sm:$0xff] %vm1832, %v1821
  %3024 = vst.msk [vmem:[#allocation2 + $0x610] sm:$0xff] %vm1832, %v1826
  %3025 = vst.msk [vmem:[#allocation2 + $0x618] sm:$0xff] %vm1832, %v1829
  %v3026 = vld [vmem:[#allocation2] sm:$0xff]
  %v3027 = vld [vmem:[#allocation2 + $0x8] sm:$0xff]
  %v3028 = vld [vmem:[#allocation2 + $0x10] sm:$0xff]
  %v3029 = vld [vmem:[#allocation2 + $0x18] sm:$0xff]
  %v3030 = vld [vmem:[#allocation2 + $0x20] sm:$0xff]
  %v3031 = vld [vmem:[#allocation2 + $0x28] sm:$0xff]
  %v3032 = vld [vmem:[#allocation2 + $0x30] sm:$0xff]
  %v3033 = vld [vmem:[#allocation2 + $0x38] sm:$0xff]
  %v3034 = vld [vmem:[#allocation2 + $0x40] sm:$0xff]
  %v3035 = vld [vmem:[#allocation2 + $0x48] sm:$0xff]
  %v3036 = vld [vmem:[#allocation2 + $0x50] sm:$0xff]
  %v3037 = vld [vmem:[#allocation2 + $0x58] sm:$0xff]
  %v3038 = vld [vmem:[#allocation2 + $0x60] sm:$0xff]
  %v3039 = vld [vmem:[#allocation2 + $0x68] sm:$0xff]
  %v3040 = vld [vmem:[#allocation2 + $0x70] sm:$0xff]
  %v3041 = vld [vmem:[#allocation2 + $0x78] sm:$0xff]
  %v3042 = vld [vmem:[#allocation2 + $0x80] sm:$0xff]
  %v3043 = vld [vmem:[#allocation2 + $0x88] sm:$0xff]
  %v3044 = vld [vmem:[#allocation2 + $0x90] sm:$0xff]
  %v3045 = vld [vmem:[#allocation2 + $0x98] sm:$0xff]
  %v3046 = vld [vmem:[#allocation2 + $0xa0] sm:$0xff]
  %v3047 = vld [vmem:[#allocation2 + $0xa8] sm:$0xff]
  %v3048 = vld [vmem:[#allocation2 + $0xb0] sm:$0xff]
  %v3049 = vld [vmem:[#allocation2 + $0xb8] sm:$0xff]
  %v3050 = vld [vmem:[#allocation2 + $0xc0] sm:$0xff]
  %v3051 = vld [vmem:[#allocation2 + $0xc8] sm:$0xff]
  %v3052 = vld [vmem:[#allocation2 + $0xd0] sm:$0xff]
  %v3053 = vld [vmem:[#allocation2 + $0xd8] sm:$0xff]
  %v3054 = vld [vmem:[#allocation2 + $0xe0] sm:$0xff]
  %v3055 = vld [vmem:[#allocation2 + $0xe8] sm:$0xff]
  %v3056 = vld [vmem:[#allocation2 + $0xf0] sm:$0xff]
  %v3057 = vld [vmem:[#allocation2 + $0xf8] sm:$0xff]
  %v3058 = vld [vmem:[#allocation2 + $0x100] sm:$0xff]
  %v3059 = vld [vmem:[#allocation2 + $0x108] sm:$0xff]
  %v3060 = vld [vmem:[#allocation2 + $0x110] sm:$0xff]
  %v3061 = vld [vmem:[#allocation2 + $0x118] sm:$0xff]
  %v3062 = vld [vmem:[#allocation2 + $0x120] sm:$0xff]
  %v3063 = vld [vmem:[#allocation2 + $0x128] sm:$0xff]
  %v3064 = vld [vmem:[#allocation2 + $0x130] sm:$0xff]
  %v3065 = vld [vmem:[#allocation2 + $0x138] sm:$0xff]
  %v3066 = vld [vmem:[#allocation2 + $0x140] sm:$0xff]
  %v3067 = vld [vmem:[#allocation2 + $0x148] sm:$0xff]
  %v3068 = vld [vmem:[#allocation2 + $0x150] sm:$0xff]
  %v3069 = vld [vmem:[#allocation2 + $0x158] sm:$0xff]
  %v3070 = vld [vmem:[#allocation2 + $0x160] sm:$0xff]
  %v3071 = vld [vmem:[#allocation2 + $0x168] sm:$0xff]
  %v3072 = vld [vmem:[#allocation2 + $0x170] sm:$0xff]
  %v3073 = vld [vmem:[#allocation2 + $0x178] sm:$0xff]
  %v3074 = vld [vmem:[#allocation2 + $0x180] sm:$0xff]
  %v3075 = vld [vmem:[#allocation2 + $0x188] sm:$0xff]
  %v3076 = vld [vmem:[#allocation2 + $0x190] sm:$0xff]
  %v3077 = vld [vmem:[#allocation2 + $0x198] sm:$0xff]
  %v3078 = vld [vmem:[#allocation2 + $0x1a0] sm:$0xff]
  %v3079 = vld [vmem:[#allocation2 + $0x1a8] sm:$0xff]
  %v3080 = vld [vmem:[#allocation2 + $0x1b0] sm:$0xff]
  %v3081 = vld [vmem:[#allocation2 + $0x1b8] sm:$0xff]
  %v3082 = vld [vmem:[#allocation2 + $0x1c0] sm:$0xff]
  %v3083 = vld [vmem:[#allocation2 + $0x1c8] sm:$0xff]
  %v3084 = vld [vmem:[#allocation2 + $0x1d0] sm:$0xff]
  %v3085 = vld [vmem:[#allocation2 + $0x1d8] sm:$0xff]
  %v3086 = vld [vmem:[#allocation2 + $0x1e0] sm:$0xff]
  %v3087 = vld [vmem:[#allocation2 + $0x1e8] sm:$0xff]
  %v3088 = vld [vmem:[#allocation2 + $0x1f0] sm:$0xff]
  %v3089 = vld [vmem:[#allocation2 + $0x1f8] sm:$0xff]
  %v3090 = vld [vmem:[#allocation2 + $0x200] sm:$0xff]
  %v3091 = vld [vmem:[#allocation2 + $0x208] sm:$0xff]
  %v3092 = vld [vmem:[#allocation2 + $0x210] sm:$0xff]
  %v3093 = vld [vmem:[#allocation2 + $0x218] sm:$0xff]
  %v3094 = vld [vmem:[#allocation2 + $0x220] sm:$0xff]
  %v3095 = vld [vmem:[#allocation2 + $0x228] sm:$0xff]
  %v3096 = vld [vmem:[#allocation2 + $0x230] sm:$0xff]
  %v3097 = vld [vmem:[#allocation2 + $0x238] sm:$0xff]
  %v3098 = vld [vmem:[#allocation2 + $0x240] sm:$0xff]
  %v3099 = vld [vmem:[#allocation2 + $0x248] sm:$0xff]
  %v3100 = vld [vmem:[#allocation2 + $0x250] sm:$0xff]
  %v3101 = vld [vmem:[#allocation2 + $0x258] sm:$0xff]
  %v3102 = vld [vmem:[#allocation2 + $0x260] sm:$0xff]
  %v3103 = vld [vmem:[#allocation2 + $0x268] sm:$0xff]
  %v3104 = vld [vmem:[#allocation2 + $0x270] sm:$0xff]
  %v3105 = vld [vmem:[#allocation2 + $0x278] sm:$0xff]
  %v3106 = vld [vmem:[#allocation2 + $0x280] sm:$0xff]
  %v3107 = vld [vmem:[#allocation2 + $0x288] sm:$0xff]
  %v3108 = vld [vmem:[#allocation2 + $0x290] sm:$0xff]
  %v3109 = vld [vmem:[#allocation2 + $0x298] sm:$0xff]
  %v3110 = vld [vmem:[#allocation2 + $0x2a0] sm:$0xff]
  %v3111 = vld [vmem:[#allocation2 + $0x2a8] sm:$0xff]
  %v3112 = vld [vmem:[#allocation2 + $0x2b0] sm:$0xff]
  %v3113 = vld [vmem:[#allocation2 + $0x2b8] sm:$0xff]
  %v3114 = vld [vmem:[#allocation2 + $0x2c0] sm:$0xff]
  %v3115 = vld [vmem:[#allocation2 + $0x2c8] sm:$0xff]
  %v3116 = vld [vmem:[#allocation2 + $0x2d0] sm:$0xff]
  %v3117 = vld [vmem:[#allocation2 + $0x2d8] sm:$0xff]
  %v3118 = vld [vmem:[#allocation2 + $0x2e0] sm:$0xff]
  %v3119 = vld [vmem:[#allocation2 + $0x2e8] sm:$0xff]
  %v3120 = vld [vmem:[#allocation2 + $0x2f0] sm:$0xff]
  %v3121 = vld [vmem:[#allocation2 + $0x2f8] sm:$0xff]
  %v3122 = vld [vmem:[#allocation2 + $0x300] sm:$0xff]
  %v3123 = vld [vmem:[#allocation2 + $0x308] sm:$0xff]
  %v3124 = vmax.f32 %v3026, %v3075
  %v3125 = vmax.f32 %v3027, %v3076
  %v3126 = vmax.f32 %v3028, %v3077
  %v3127 = vmax.f32 %v3029, %v3078
  %v3128 = vmax.f32 %v3030, %v3079
  %v3129 = vmax.f32 %v3031, %v3080
  %v3130 = vmax.f32 %v3032, %v3081
  %v3131 = vmax.f32 %v3033, %v3082
  %v3132 = vmax.f32 %v3034, %v3083
  %v3133 = vmax.f32 %v3035, %v3084
  %v3134 = vmax.f32 %v3036, %v3085
  %v3135 = vmax.f32 %v3037, %v3086
  %v3136 = vmax.f32 %v3038, %v3087
  %v3137 = vmax.f32 %v3039, %v3088
  %v3138 = vmax.f32 %v3040, %v3089
  %v3139 = vmax.f32 %v3041, %v3090
  %v3140 = vmax.f32 %v3042, %v3091
  %v3141 = vmax.f32 %v3043, %v3092
  %v3142 = vmax.f32 %v3044, %v3093
  %v3143 = vmax.f32 %v3045, %v3094
  %v3144 = vmax.f32 %v3046, %v3095
  %v3145 = vmax.f32 %v3047, %v3096
  %v3146 = vmax.f32 %v3048, %v3097
  %v3147 = vmax.f32 %v3049, %v3098
  %v3148 = vmax.f32 %v3050, %v3099
  %v3149 = vmax.f32 %v3051, %v3100
  %v3150 = vmax.f32 %v3052, %v3101
  %v3151 = vmax.f32 %v3053, %v3102
  %v3152 = vmax.f32 %v3054, %v3103
  %v3153 = vmax.f32 %v3055, %v3104
  %v3154 = vmax.f32 %v3056, %v3105
  %v3155 = vmax.f32 %v3057, %v3106
  %v3156 = vmax.f32 %v3058, %v3107
  %v3157 = vmax.f32 %v3059, %v3108
  %v3158 = vmax.f32 %v3060, %v3109
  %v3159 = vmax.f32 %v3061, %v3110
  %v3160 = vmax.f32 %v3062, %v3111
  %v3161 = vmax.f32 %v3063, %v3112
  %v3162 = vmax.f32 %v3064, %v3113
  %v3163 = vmax.f32 %v3065, %v3114
  %v3164 = vmax.f32 %v3066, %v3115
  %v3165 = vmax.f32 %v3067, %v3116
  %v3166 = vmax.f32 %v3068, %v3117
  %v3167 = vmax.f32 %v3069, %v3118
  %v3168 = vmax.f32 %v3070, %v3119
  %v3169 = vmax.f32 %v3071, %v3120
  %v3170 = vmax.f32 %v3072, %v3121
  %v3171 = vmax.f32 %v3073, %v3122
  %v3172 = vmax.f32 %v3074, %v3123
  %v3173 = vld [vmem:[#allocation2 + $0x310] sm:$0xff]
  %v3174 = vld [vmem:[#allocation2 + $0x318] sm:$0xff]
  %v3175 = vld [vmem:[#allocation2 + $0x320] sm:$0xff]
  %v3176 = vld [vmem:[#allocation2 + $0x328] sm:$0xff]
  %v3177 = vld [vmem:[#allocation2 + $0x330] sm:$0xff]
  %v3178 = vld [vmem:[#allocation2 + $0x338] sm:$0xff]
  %v3179 = vld [vmem:[#allocation2 + $0x340] sm:$0xff]
  %v3180 = vld [vmem:[#allocation2 + $0x348] sm:$0xff]
  %v3181 = vld [vmem:[#allocation2 + $0x350] sm:$0xff]
  %v3182 = vld [vmem:[#allocation2 + $0x358] sm:$0xff]
  %v3183 = vld [vmem:[#allocation2 + $0x360] sm:$0xff]
  %v3184 = vld [vmem:[#allocation2 + $0x368] sm:$0xff]
  %v3185 = vld [vmem:[#allocation2 + $0x370] sm:$0xff]
  %v3186 = vld [vmem:[#allocation2 + $0x378] sm:$0xff]
  %v3187 = vld [vmem:[#allocation2 + $0x380] sm:$0xff]
  %v3188 = vld [vmem:[#allocation2 + $0x388] sm:$0xff]
  %v3189 = vld [vmem:[#allocation2 + $0x390] sm:$0xff]
  %v3190 = vld [vmem:[#allocation2 + $0x398] sm:$0xff]
  %v3191 = vld [vmem:[#allocation2 + $0x3a0] sm:$0xff]
  %v3192 = vld [vmem:[#allocation2 + $0x3a8] sm:$0xff]
  %v3193 = vld [vmem:[#allocation2 + $0x3b0] sm:$0xff]
  %v3194 = vld [vmem:[#allocation2 + $0x3b8] sm:$0xff]
  %v3195 = vld [vmem:[#allocation2 + $0x3c0] sm:$0xff]
  %v3196 = vld [vmem:[#allocation2 + $0x3c8] sm:$0xff]
  %v3197 = vld [vmem:[#allocation2 + $0x3d0] sm:$0xff]
  %v3198 = vld [vmem:[#allocation2 + $0x3d8] sm:$0xff]
  %v3199 = vld [vmem:[#allocation2 + $0x3e0] sm:$0xff]
  %v3200 = vld [vmem:[#allocation2 + $0x3e8] sm:$0xff]
  %v3201 = vld [vmem:[#allocation2 + $0x3f0] sm:$0xff]
  %v3202 = vld [vmem:[#allocation2 + $0x3f8] sm:$0xff]
  %v3203 = vld [vmem:[#allocation2 + $0x400] sm:$0xff]
  %v3204 = vld [vmem:[#allocation2 + $0x408] sm:$0xff]
  %v3205 = vld [vmem:[#allocation2 + $0x410] sm:$0xff]
  %v3206 = vld [vmem:[#allocation2 + $0x418] sm:$0xff]
  %v3207 = vld [vmem:[#allocation2 + $0x420] sm:$0xff]
  %v3208 = vld [vmem:[#allocation2 + $0x428] sm:$0xff]
  %v3209 = vld [vmem:[#allocation2 + $0x430] sm:$0xff]
  %v3210 = vld [vmem:[#allocation2 + $0x438] sm:$0xff]
  %v3211 = vld [vmem:[#allocation2 + $0x440] sm:$0xff]
  %v3212 = vld [vmem:[#allocation2 + $0x448] sm:$0xff]
  %v3213 = vld [vmem:[#allocation2 + $0x450] sm:$0xff]
  %v3214 = vld [vmem:[#allocation2 + $0x458] sm:$0xff]
  %v3215 = vld [vmem:[#allocation2 + $0x460] sm:$0xff]
  %v3216 = vld [vmem:[#allocation2 + $0x468] sm:$0xff]
  %v3217 = vld [vmem:[#allocation2 + $0x470] sm:$0xff]
  %v3218 = vld [vmem:[#allocation2 + $0x478] sm:$0xff]
  %v3219 = vld [vmem:[#allocation2 + $0x480] sm:$0xff]
  %v3220 = vld [vmem:[#allocation2 + $0x488] sm:$0xff]
  %v3221 = vld [vmem:[#allocation2 + $0x490] sm:$0xff]
  %v3222 = vld [vmem:[#allocation2 + $0x498] sm:$0xff]
  %v3223 = vld [vmem:[#allocation2 + $0x4a0] sm:$0xff]
  %v3224 = vld [vmem:[#allocation2 + $0x4a8] sm:$0xff]
  %v3225 = vld [vmem:[#allocation2 + $0x4b0] sm:$0xff]
  %v3226 = vld [vmem:[#allocation2 + $0x4b8] sm:$0xff]
  %v3227 = vld [vmem:[#allocation2 + $0x4c0] sm:$0xff]
  %v3228 = vld [vmem:[#allocation2 + $0x4c8] sm:$0xff]
  %v3229 = vld [vmem:[#allocation2 + $0x4d0] sm:$0xff]
  %v3230 = vld [vmem:[#allocation2 + $0x4d8] sm:$0xff]
  %v3231 = vld [vmem:[#allocation2 + $0x4e0] sm:$0xff]
  %v3232 = vld [vmem:[#allocation2 + $0x4e8] sm:$0xff]
  %v3233 = vld [vmem:[#allocation2 + $0x4f0] sm:$0xff]
  %v3234 = vld [vmem:[#allocation2 + $0x4f8] sm:$0xff]
  %v3235 = vld [vmem:[#allocation2 + $0x500] sm:$0xff]
  %v3236 = vld [vmem:[#allocation2 + $0x508] sm:$0xff]
  %v3237 = vld [vmem:[#allocation2 + $0x510] sm:$0xff]
  %v3238 = vld [vmem:[#allocation2 + $0x518] sm:$0xff]
  %v3239 = vld [vmem:[#allocation2 + $0x520] sm:$0xff]
  %v3240 = vld [vmem:[#allocation2 + $0x528] sm:$0xff]
  %v3241 = vld [vmem:[#allocation2 + $0x530] sm:$0xff]
  %v3242 = vld [vmem:[#allocation2 + $0x538] sm:$0xff]
  %v3243 = vld [vmem:[#allocation2 + $0x540] sm:$0xff]
  %v3244 = vld [vmem:[#allocation2 + $0x548] sm:$0xff]
  %v3245 = vld [vmem:[#allocation2 + $0x550] sm:$0xff]
  %v3246 = vld [vmem:[#allocation2 + $0x558] sm:$0xff]
  %v3247 = vld [vmem:[#allocation2 + $0x560] sm:$0xff]
  %v3248 = vld [vmem:[#allocation2 + $0x568] sm:$0xff]
  %v3249 = vld [vmem:[#allocation2 + $0x570] sm:$0xff]
  %v3250 = vld [vmem:[#allocation2 + $0x578] sm:$0xff]
  %v3251 = vld [vmem:[#allocation2 + $0x580] sm:$0xff]
  %v3252 = vld [vmem:[#allocation2 + $0x588] sm:$0xff]
  %v3253 = vld [vmem:[#allocation2 + $0x590] sm:$0xff]
  %v3254 = vld [vmem:[#allocation2 + $0x598] sm:$0xff]
  %v3255 = vld [vmem:[#allocation2 + $0x5a0] sm:$0xff]
  %v3256 = vld [vmem:[#allocation2 + $0x5a8] sm:$0xff]
  %v3257 = vld [vmem:[#allocation2 + $0x5b0] sm:$0xff]
  %v3258 = vld [vmem:[#allocation2 + $0x5b8] sm:$0xff]
  %v3259 = vld [vmem:[#allocation2 + $0x5c0] sm:$0xff]
  %v3260 = vld [vmem:[#allocation2 + $0x5c8] sm:$0xff]
  %v3261 = vld [vmem:[#allocation2 + $0x5d0] sm:$0xff]
  %v3262 = vld [vmem:[#allocation2 + $0x5d8] sm:$0xff]
  %v3263 = vld [vmem:[#allocation2 + $0x5e0] sm:$0xff]
  %v3264 = vld [vmem:[#allocation2 + $0x5e8] sm:$0xff]
  %v3265 = vld [vmem:[#allocation2 + $0x5f0] sm:$0xff]
  %v3266 = vld [vmem:[#allocation2 + $0x5f8] sm:$0xff]
  %v3267 = vld [vmem:[#allocation2 + $0x600] sm:$0xff]
  %v3268 = vld [vmem:[#allocation2 + $0x608] sm:$0xff]
  %v3269 = vld [vmem:[#allocation2 + $0x610] sm:$0xff]
  %v3270 = vld [vmem:[#allocation2 + $0x618] sm:$0xff]
  %v3271 = vmax.f32 %v3173, %v3222
  %v3272 = vmax.f32 %v3174, %v3223
  %v3273 = vmax.f32 %v3175, %v3224
  %v3274 = vmax.f32 %v3176, %v3225
  %v3275 = vmax.f32 %v3177, %v3226
  %v3276 = vmax.f32 %v3178, %v3227
  %v3277 = vmax.f32 %v3179, %v3228
  %v3278 = vmax.f32 %v3180, %v3229
  %v3279 = vmax.f32 %v3181, %v3230
  %v3280 = vmax.f32 %v3182, %v3231
  %v3281 = vmax.f32 %v3183, %v3232
  %v3282 = vmax.f32 %v3184, %v3233
  %v3283 = vmax.f32 %v3185, %v3234
  %v3284 = vmax.f32 %v3186, %v3235
  %v3285 = vmax.f32 %v3187, %v3236
  %v3286 = vmax.f32 %v3188, %v3237
  %v3287 = vmax.f32 %v3189, %v3238
  %v3288 = vmax.f32 %v3190, %v3239
  %v3289 = vmax.f32 %v3191, %v3240
  %v3290 = vmax.f32 %v3192, %v3241
  %v3291 = vmax.f32 %v3193, %v3242
  %v3292 = vmax.f32 %v3194, %v3243
  %v3293 = vmax.f32 %v3195, %v3244
  %v3294 = vmax.f32 %v3196, %v3245
  %v3295 = vmax.f32 %v3197, %v3246
  %v3296 = vmax.f32 %v3198, %v3247
  %v3297 = vmax.f32 %v3199, %v3248
  %v3298 = vmax.f32 %v3200, %v3249
  %v3299 = vmax.f32 %v3201, %v3250
  %v3300 = vmax.f32 %v3202, %v3251
  %v3301 = vmax.f32 %v3203, %v3252
  %v3302 = vmax.f32 %v3204, %v3253
  %v3303 = vmax.f32 %v3205, %v3254
  %v3304 = vmax.f32 %v3206, %v3255
  %v3305 = vmax.f32 %v3207, %v3256
  %v3306 = vmax.f32 %v3208, %v3257
  %v3307 = vmax.f32 %v3209, %v3258
  %v3308 = vmax.f32 %v3210, %v3259
  %v3309 = vmax.f32 %v3211, %v3260
  %v3310 = vmax.f32 %v3212, %v3261
  %v3311 = vmax.f32 %v3213, %v3262
  %v3312 = vmax.f32 %v3214, %v3263
  %v3313 = vmax.f32 %v3215, %v3264
  %v3314 = vmax.f32 %v3216, %v3265
  %v3315 = vmax.f32 %v3217, %v3266
  %v3316 = vmax.f32 %v3218, %v3267
  %v3317 = vmax.f32 %v3219, %v3268
  %v3318 = vmax.f32 %v3220, %v3269
  %v3319 = vmax.f32 %v3221, %v3270
  %v3320 = vmax.f32 %v3124, %v3271
  %v3321 = vmax.f32 %v3125, %v3272
  %v3322 = vmax.f32 %v3126, %v3273
  %v3323 = vmax.f32 %v3127, %v3274
  %v3324 = vmax.f32 %v3128, %v3275
  %v3325 = vmax.f32 %v3129, %v3276
  %v3326 = vmax.f32 %v3130, %v3277
  %v3327 = vmax.f32 %v3131, %v3278
  %v3328 = vmax.f32 %v3132, %v3279
  %v3329 = vmax.f32 %v3133, %v3280
  %v3330 = vmax.f32 %v3134, %v3281
  %v3331 = vmax.f32 %v3135, %v3282
  %v3332 = vmax.f32 %v3136, %v3283
  %v3333 = vmax.f32 %v3137, %v3284
  %v3334 = vmax.f32 %v3138, %v3285
  %v3335 = vmax.f32 %v3139, %v3286
  %v3336 = vmax.f32 %v3140, %v3287
  %v3337 = vmax.f32 %v3141, %v3288
  %v3338 = vmax.f32 %v3142, %v3289
  %v3339 = vmax.f32 %v3143, %v3290
  %v3340 = vmax.f32 %v3144, %v3291
  %v3341 = vmax.f32 %v3145, %v3292
  %v3342 = vmax.f32 %v3146, %v3293
  %v3343 = vmax.f32 %v3147, %v3294
  %v3344 = vmax.f32 %v3148, %v3295
  %v3345 = vmax.f32 %v3149, %v3296
  %v3346 = vmax.f32 %v3150, %v3297
  %v3347 = vmax.f32 %v3151, %v3298
  %v3348 = vmax.f32 %v3152, %v3299
  %v3349 = vmax.f32 %v3153, %v3300
  %v3350 = vmax.f32 %v3154, %v3301
  %v3351 = vmax.f32 %v3155, %v3302
  %v3352 = vmax.f32 %v3156, %v3303
  %v3353 = vmax.f32 %v3157, %v3304
  %v3354 = vmax.f32 %v3158, %v3305
  %v3355 = vmax.f32 %v3159, %v3306
  %v3356 = vmax.f32 %v3160, %v3307
  %v3357 = vmax.f32 %v3161, %v3308
  %v3358 = vmax.f32 %v3162, %v3309
  %v3359 = vmax.f32 %v3163, %v3310
  %v3360 = vmax.f32 %v3164, %v3311
  %v3361 = vmax.f32 %v3165, %v3312
  %v3362 = vmax.f32 %v3166, %v3313
  %v3363 = vmax.f32 %v3167, %v3314
  %v3364 = vmax.f32 %v3168, %v3315
  %v3365 = vmax.f32 %v3169, %v3316
  %v3366 = vmax.f32 %v3170, %v3317
  %v3367 = vmax.f32 %v3171, %v3318
  %v3368 = vmax.f32 %v3172, %v3319
  %v3369 = vsub.f32 %v3320, %v2230
  %v3370 = vsub.f32 %v3321, %v2230
  %v3371 = vsub.f32 %v3322, %v2230
  %v3372 = vsub.f32 %v3323, %v2230
  %v3373 = vsub.f32 %v3324, %v2230
  %v3374 = vsub.f32 %v3325, %v2230
  %v3375 = vsub.f32 %v3326, %v2230
  %v3376 = vsub.f32 %v3327, %v2230
  %v3377 = vsub.f32 %v3328, %v2230
  %v3378 = vsub.f32 %v3329, %v2230
  %v3379 = vsub.f32 %v3330, %v2230
  %v3380 = vsub.f32 %v3331, %v2230
  %v3381 = vsub.f32 %v3332, %v2230
  %v3382 = vsub.f32 %v3333, %v2230
  %v3383 = vsub.f32 %v3334, %v2230
  %v3384 = vsub.f32 %v3335, %v2230
  %v3385 = vsub.f32 %v3336, %v2230
  %v3386 = vsub.f32 %v3337, %v2230
  %v3387 = vsub.f32 %v3338, %v2230
  %v3388 = vsub.f32 %v3339, %v2230
  %v3389 = vsub.f32 %v3340, %v2230
  %v3390 = vsub.f32 %v3341, %v2230
  %v3391 = vsub.f32 %v3342, %v2230
  %v3392 = vsub.f32 %v3343, %v2230
  %v3393 = vsub.f32 %v3344, %v2230
  %v3394 = vsub.f32 %v3345, %v2230
  %v3395 = vsub.f32 %v3346, %v2230
  %v3396 = vsub.f32 %v3347, %v2230
  %v3397 = vsub.f32 %v3348, %v2230
  %v3398 = vsub.f32 %v3349, %v2230
  %v3399 = vsub.f32 %v3350, %v2230
  %v3400 = vsub.f32 %v3351, %v2230
  %v3401 = vsub.f32 %v3352, %v2230
  %v3402 = vsub.f32 %v3353, %v2230
  %v3403 = vsub.f32 %v3354, %v2230
  %v3404 = vsub.f32 %v3355, %v2230
  %v3405 = vsub.f32 %v3356, %v2230
  %v3406 = vsub.f32 %v3357, %v2230
  %v3407 = vsub.f32 %v3358, %v2230
  %v3408 = vsub.f32 %v3359, %v2230
  %v3409 = vsub.f32 %v3360, %v2230
  %v3410 = vsub.f32 %v3361, %v2230
  %v3411 = vsub.f32 %v3362, %v2230
  %v3412 = vsub.f32 %v3363, %v2230
  %v3413 = vsub.f32 %v3364, %v2230
  %v3414 = vsub.f32 %v3365, %v2230
  %v3415 = vsub.f32 %v3366, %v2230
  %v3416 = vsub.f32 %v3367, %v2230
  %v3417 = vsub.f32 %v3368, %v2230
  %v3418 = vmul.f32 %v3369, %v2829
  %v3419 = vmul.f32 %v3370, %v2829
  %v3420 = vmul.f32 %v3371, %v2829
  %v3421 = vmul.f32 %v3372, %v2829
  %v3422 = vmul.f32 %v3373, %v2829
  %v3423 = vmul.f32 %v3374, %v2829
  %v3424 = vmul.f32 %v3375, %v2829
  %v3425 = vmul.f32 %v3376, %v2829
  %v3426 = vmul.f32 %v3377, %v2829
  %v3427 = vmul.f32 %v3378, %v2829
  %v3428 = vmul.f32 %v3379, %v2829
  %v3429 = vmul.f32 %v3380, %v2829
  %v3430 = vmul.f32 %v3381, %v2829
  %v3431 = vmul.f32 %v3382, %v2829
  %v3432 = vmul.f32 %v3383, %v2829
  %v3433 = vmul.f32 %v3384, %v2829
  %v3434 = vmul.f32 %v3385, %v2829
  %v3435 = vmul.f32 %v3386, %v2829
  %v3436 = vmul.f32 %v3387, %v2829
  %v3437 = vmul.f32 %v3388, %v2829
  %v3438 = vmul.f32 %v3389, %v2829
  %v3439 = vmul.f32 %v3390, %v2829
  %v3440 = vmul.f32 %v3391, %v2829
  %v3441 = vmul.f32 %v3392, %v2829
  %v3442 = vmul.f32 %v3393, %v2829
  %v3443 = vmul.f32 %v3394, %v2829
  %v3444 = vmul.f32 %v3395, %v2829
  %v3445 = vmul.f32 %v3396, %v2829
  %v3446 = vmul.f32 %v3397, %v2829
  %v3447 = vmul.f32 %v3398, %v2829
  %v3448 = vmul.f32 %v3399, %v2829
  %v3449 = vmul.f32 %v3400, %v2829
  %v3450 = vmul.f32 %v3401, %v2829
  %v3451 = vmul.f32 %v3402, %v2829
  %v3452 = vmul.f32 %v3403, %v2829
  %v3453 = vmul.f32 %v3404, %v2829
  %v3454 = vmul.f32 %v3405, %v2829
  %v3455 = vmul.f32 %v3406, %v2829
  %v3456 = vmul.f32 %v3407, %v2829
  %v3457 = vmul.f32 %v3408, %v2829
  %v3458 = vmul.f32 %v3409, %v2829
  %v3459 = vmul.f32 %v3410, %v2829
  %v3460 = vmul.f32 %v3411, %v2829
  %v3461 = vmul.f32 %v3412, %v2829
  %v3462 = vmul.f32 %v3413, %v2829
  %v3463 = vmul.f32 %v3414, %v2829
  %v3464 = vmul.f32 %v3415, %v2829
  %v3465 = vmul.f32 %v3416, %v2829
  %v3466 = vmul.f32 %v3417, %v2829
  %v3467 = vmax.f32 %v3418, 0.0
  %v3468 = vmax.f32 %v3419, 0.0
  %v3469 = vmax.f32 %v3420, 0.0
  %v3470 = vmax.f32 %v3421, 0.0
  %v3471 = vmax.f32 %v3422, 0.0
  %v3472 = vmax.f32 %v3423, 0.0
  %v3473 = vmax.f32 %v3424, 0.0
  %v3474 = vmax.f32 %v3425, 0.0
  %v3475 = vmax.f32 %v3426, 0.0
  %v3476 = vmax.f32 %v3427, 0.0
  %v3477 = vmax.f32 %v3428, 0.0
  %v3478 = vmax.f32 %v3429, 0.0
  %v3479 = vmax.f32 %v3430, 0.0
  %v3480 = vmax.f32 %v3431, 0.0
  %v3481 = vmax.f32 %v3432, 0.0
  %v3482 = vmax.f32 %v3433, 0.0
  %v3483 = vmax.f32 %v3434, 0.0
  %v3484 = vmax.f32 %v3435, 0.0
  %v3485 = vmax.f32 %v3436, 0.0
  %v3486 = vmax.f32 %v3437, 0.0
  %v3487 = vmax.f32 %v3438, 0.0
  %v3488 = vmax.f32 %v3439, 0.0
  %v3489 = vmax.f32 %v3440, 0.0
  %v3490 = vmax.f32 %v3441, 0.0
  %v3491 = vmax.f32 %v3442, 0.0
  %v3492 = vmax.f32 %v3443, 0.0
  %v3493 = vmax.f32 %v3444, 0.0
  %v3494 = vmax.f32 %v3445, 0.0
  %v3495 = vmax.f32 %v3446, 0.0
  %v3496 = vmax.f32 %v3447, 0.0
  %v3497 = vmax.f32 %v3448, 0.0
  %v3498 = vmax.f32 %v3449, 0.0
  %v3499 = vmax.f32 %v3450, 0.0
  %v3500 = vmax.f32 %v3451, 0.0
  %v3501 = vmax.f32 %v3452, 0.0
  %v3502 = vmax.f32 %v3453, 0.0
  %v3503 = vmax.f32 %v3454, 0.0
  %v3504 = vmax.f32 %v3455, 0.0
  %v3505 = vmax.f32 %v3456, 0.0
  %v3506 = vmax.f32 %v3457, 0.0
  %v3507 = vmax.f32 %v3458, 0.0
  %v3508 = vmax.f32 %v3459, 0.0
  %v3509 = vmax.f32 %v3460, 0.0
  %v3510 = vmax.f32 %v3461, 0.0
  %v3511 = vmax.f32 %v3462, 0.0
  %v3512 = vmax.f32 %v3463, 0.0
  %v3513 = vmax.f32 %v3464, 0.0
  %v3514 = vmax.f32 %v3465, 0.0
  %v3515 = vmax.f32 %v3466, 0.0
  %v3516 = vpack.c.bf16 %v3468, %v3467
  %v3517 = vpack.c.bf16 %v3470, %v3469
  %v3518 = vpack.c.bf16 %v3472, %v3471
  %v3519 = vpack.c.bf16 %v3474, %v3473
  %v3520 = vpack.c.bf16 %v3476, %v3475
  %v3521 = vpack.c.bf16 %v3478, %v3477
  %v3522 = vpack.c.bf16 %v3480, %v3479
  %v3523 = vpack.c.bf16 %v3482, %v3481
  %v3524 = vpack.c.bf16 %v3484, %v3483
  %v3525 = vpack.c.bf16 %v3486, %v3485
  %v3526 = vpack.c.bf16 %v3488, %v3487
  %v3527 = vpack.c.bf16 %v3490, %v3489
  %v3528 = vpack.c.bf16 %v3492, %v3491
  %v3529 = vpack.c.bf16 %v3494, %v3493
  %v3530 = vpack.c.bf16 %v3496, %v3495
  %v3531 = vpack.c.bf16 %v3498, %v3497
  %v3532 = vpack.c.bf16 %v3500, %v3499
  %v3533 = vpack.c.bf16 %v3502, %v3501
  %v3534 = vpack.c.bf16 %v3504, %v3503
  %v3535 = vpack.c.bf16 %v3506, %v3505
  %v3536 = vpack.c.bf16 %v3508, %v3507
  %v3537 = vpack.c.bf16 %v3510, %v3509
  %v3538 = vpack.c.bf16 %v3512, %v3511
  %v3539 = vpack.c.bf16 %v3514, %v3513
  %v3540 = vpack.c.bf16 %v3515, %v3515
  %v3566 = vunpack.c.l.b16 %v3516
  %v3567 = vunpack.c.h.b16 %v3516
  %v3568 = vunpack.c.l.b16 %v3517
  %v3569 = vunpack.c.h.b16 %v3517
  %v3570 = vunpack.c.l.b16 %v3518
  %v3571 = vunpack.c.h.b16 %v3518
  %v3572 = vunpack.c.l.b16 %v3519
  %v3573 = vunpack.c.h.b16 %v3519
  %v3574 = vunpack.c.l.b16 %v3520
  %v3575 = vunpack.c.h.b16 %v3520
  %v3576 = vunpack.c.l.b16 %v3521
  %v3577 = vunpack.c.h.b16 %v3521
  %v3578 = vunpack.c.l.b16 %v3522
  %v3579 = vunpack.c.h.b16 %v3522
  %v3580 = vunpack.c.l.b16 %v3523
  %v3581 = vunpack.c.h.b16 %v3523
  %v3582 = vunpack.c.l.b16 %v3524
  %v3583 = vunpack.c.h.b16 %v3524
  %v3584 = vunpack.c.l.b16 %v3525
  %v3585 = vunpack.c.h.b16 %v3525
  %v3586 = vunpack.c.l.b16 %v3526
  %v3587 = vunpack.c.h.b16 %v3526
  %v3588 = vunpack.c.l.b16 %v3527
  %v3589 = vunpack.c.h.b16 %v3527
  %v3590 = vunpack.c.l.b16 %v3528
  %v3591 = vunpack.c.h.b16 %v3528
  %v3592 = vunpack.c.l.b16 %v3529
  %v3593 = vunpack.c.h.b16 %v3529
  %v3594 = vunpack.c.l.b16 %v3530
  %v3595 = vunpack.c.h.b16 %v3530
  %v3596 = vunpack.c.l.b16 %v3531
  %v3597 = vunpack.c.h.b16 %v3531
  %v3598 = vunpack.c.l.b16 %v3532
  %v3599 = vunpack.c.h.b16 %v3532
  %v3600 = vunpack.c.l.b16 %v3533
  %v3601 = vunpack.c.h.b16 %v3533
  %v3602 = vunpack.c.l.b16 %v3534
  %v3603 = vunpack.c.h.b16 %v3534
  %v3604 = vunpack.c.l.b16 %v3535
  %v3605 = vunpack.c.h.b16 %v3535
  %v3606 = vunpack.c.l.b16 %v3536
  %v3607 = vunpack.c.h.b16 %v3536
  %v3608 = vunpack.c.l.b16 %v3537
  %v3609 = vunpack.c.h.b16 %v3537
  %v3610 = vunpack.c.l.b16 %v3538
  %v3611 = vunpack.c.h.b16 %v3538
  %v3612 = vunpack.c.l.b16 %v3539
  %v3613 = vunpack.c.h.b16 %v3539
  %v3614 = vunpack.c.l.b16 %v3540
  %v3615 = vpack.c.b16 %v3566, %v3566
  %v3616 = vpack.c.b16 %v3567, %v3567
  %v3617 = vpack.c.b16 %v3568, %v3568
  %v3618 = vpack.c.b16 %v3569, %v3569
  %v3619 = vpack.c.b16 %v3570, %v3570
  %v3620 = vpack.c.b16 %v3571, %v3571
  %v3621 = vpack.c.b16 %v3572, %v3572
  %v3622 = vpack.c.b16 %v3573, %v3573
  %v3623 = vpack.c.b16 %v3574, %v3574
  %v3624 = vpack.c.b16 %v3575, %v3575
  %v3625 = vpack.c.b16 %v3576, %v3576
  %v3626 = vpack.c.b16 %v3577, %v3577
  %v3627 = vpack.c.b16 %v3578, %v3578
  %v3628 = vpack.c.b16 %v3579, %v3579
  %v3629 = vpack.c.b16 %v3580, %v3580
  %v3630 = vpack.c.b16 %v3581, %v3581
  %v3631 = vpack.c.b16 %v3582, %v3582
  %v3632 = vpack.c.b16 %v3583, %v3583
  %v3633 = vpack.c.b16 %v3584, %v3584
  %v3634 = vpack.c.b16 %v3585, %v3585
  %v3635 = vpack.c.b16 %v3586, %v3586
  %v3636 = vpack.c.b16 %v3587, %v3587
  %v3637 = vpack.c.b16 %v3588, %v3588
  %v3638 = vpack.c.b16 %v3589, %v3589
  %v3639 = vpack.c.b16 %v3590, %v3590
  %v3640 = vpack.c.b16 %v3591, %v3591
  %v3641 = vpack.c.b16 %v3592, %v3592
  %v3642 = vpack.c.b16 %v3593, %v3593
  %v3643 = vpack.c.b16 %v3594, %v3594
  %v3644 = vpack.c.b16 %v3595, %v3595
  %v3645 = vpack.c.b16 %v3596, %v3596
  %v3646 = vpack.c.b16 %v3597, %v3597
  %v3647 = vpack.c.b16 %v3598, %v3598
  %v3648 = vpack.c.b16 %v3599, %v3599
  %v3649 = vpack.c.b16 %v3600, %v3600
  %v3650 = vpack.c.b16 %v3601, %v3601
  %v3651 = vpack.c.b16 %v3602, %v3602
  %v3652 = vpack.c.b16 %v3603, %v3603
  %v3653 = vpack.c.b16 %v3604, %v3604
  %v3654 = vpack.c.b16 %v3605, %v3605
  %v3655 = vpack.c.b16 %v3606, %v3606
  %v3656 = vpack.c.b16 %v3607, %v3607
  %v3657 = vpack.c.b16 %v3608, %v3608
  %v3658 = vpack.c.b16 %v3609, %v3609
  %v3659 = vpack.c.b16 %v3610, %v3610
  %v3660 = vpack.c.b16 %v3611, %v3611
  %v3661 = vpack.c.b16 %v3612, %v3612
  %v3662 = vpack.c.b16 %v3613, %v3613
  %v3663 = vpack.c.b16 %v3614, %v3614
  %vm3713 = vcmask 158720
  %3714 = vst.msk [vmem:[%s2] sm:$0xf] %vm3713, %v3615
  %3715 = vst.msk [vmem:[%s2 + $0x4] sm:$0xf] %vm3713, %v3616
  %3716 = vst.msk [vmem:[%s2 + $0x8] sm:$0xf] %vm3713, %v3617
  %3717 = vst.msk [vmem:[%s2 + $0xc] sm:$0xf] %vm3713, %v3618
  %3718 = vst.msk [vmem:[%s2 + $0x10] sm:$0xf] %vm3713, %v3619
  %3719 = vst.msk [vmem:[%s2 + $0x14] sm:$0xf] %vm3713, %v3620
  %3720 = vst.msk [vmem:[%s2 + $0x18] sm:$0xf] %vm3713, %v3621
  %3721 = vst.msk [vmem:[%s2 + $0x1c] sm:$0xf] %vm3713, %v3622
  %3722 = vst.msk [vmem:[%s2 + $0x20] sm:$0xf] %vm3713, %v3623
  %3723 = vst.msk [vmem:[%s2 + $0x24] sm:$0xf] %vm3713, %v3624
  %3724 = vst.msk [vmem:[%s2 + $0x28] sm:$0xf] %vm3713, %v3625
  %3725 = vst.msk [vmem:[%s2 + $0x2c] sm:$0xf] %vm3713, %v3626
  %3726 = vst.msk [vmem:[%s2 + $0x30] sm:$0xf] %vm3713, %v3627
  %3727 = vst.msk [vmem:[%s2 + $0x34] sm:$0xf] %vm3713, %v3628
  %3728 = vst.msk [vmem:[%s2 + $0x38] sm:$0xf] %vm3713, %v3629
  %3729 = vst.msk [vmem:[%s2 + $0x3c] sm:$0xf] %vm3713, %v3630
  %3730 = vst.msk [vmem:[%s2 + $0x40] sm:$0xf] %vm3713, %v3631
  %3731 = vst.msk [vmem:[%s2 + $0x44] sm:$0xf] %vm3713, %v3632
  %3732 = vst.msk [vmem:[%s2 + $0x48] sm:$0xf] %vm3713, %v3633
  %3733 = vst.msk [vmem:[%s2 + $0x4c] sm:$0xf] %vm3713, %v3634
  %3734 = vst.msk [vmem:[%s2 + $0x50] sm:$0xf] %vm3713, %v3635
  %3735 = vst.msk [vmem:[%s2 + $0x54] sm:$0xf] %vm3713, %v3636
  %3736 = vst.msk [vmem:[%s2 + $0x58] sm:$0xf] %vm3713, %v3637
  %3737 = vst.msk [vmem:[%s2 + $0x5c] sm:$0xf] %vm3713, %v3638
  %3738 = vst.msk [vmem:[%s2 + $0x60] sm:$0xf] %vm3713, %v3639
  %3739 = vst.msk [vmem:[%s2 + $0x64] sm:$0xf] %vm3713, %v3640
  %3740 = vst.msk [vmem:[%s2 + $0x68] sm:$0xf] %vm3713, %v3641
  %3741 = vst.msk [vmem:[%s2 + $0x6c] sm:$0xf] %vm3713, %v3642
  %3742 = vst.msk [vmem:[%s2 + $0x70] sm:$0xf] %vm3713, %v3643
  %3743 = vst.msk [vmem:[%s2 + $0x74] sm:$0xf] %vm3713, %v3644
  %3744 = vst.msk [vmem:[%s2 + $0x78] sm:$0xf] %vm3713, %v3645
  %3745 = vst.msk [vmem:[%s2 + $0x7c] sm:$0xf] %vm3713, %v3646
  %3746 = vst.msk [vmem:[%s2 + $0x80] sm:$0xf] %vm3713, %v3647
  %3747 = vst.msk [vmem:[%s2 + $0x84] sm:$0xf] %vm3713, %v3648
  %3748 = vst.msk [vmem:[%s2 + $0x88] sm:$0xf] %vm3713, %v3649
  %3749 = vst.msk [vmem:[%s2 + $0x8c] sm:$0xf] %vm3713, %v3650
  %3750 = vst.msk [vmem:[%s2 + $0x90] sm:$0xf] %vm3713, %v3651
  %3751 = vst.msk [vmem:[%s2 + $0x94] sm:$0xf] %vm3713, %v3652
  %3752 = vst.msk [vmem:[%s2 + $0x98] sm:$0xf] %vm3713, %v3653
  %3753 = vst.msk [vmem:[%s2 + $0x9c] sm:$0xf] %vm3713, %v3654
  %3754 = vst.msk [vmem:[%s2 + $0xa0] sm:$0xf] %vm3713, %v3655
  %3755 = vst.msk [vmem:[%s2 + $0xa4] sm:$0xf] %vm3713, %v3656
  %3756 = vst.msk [vmem:[%s2 + $0xa8] sm:$0xf] %vm3713, %v3657
  %3757 = vst.msk [vmem:[%s2 + $0xac] sm:$0xf] %vm3713, %v3658
  %3758 = vst.msk [vmem:[%s2 + $0xb0] sm:$0xf] %vm3713, %v3659
  %3759 = vst.msk [vmem:[%s2 + $0xb4] sm:$0xf] %vm3713, %v3660
  %3760 = vst.msk [vmem:[%s2 + $0xb8] sm:$0xf] %vm3713, %v3661
  %3761 = vst.msk [vmem:[%s2 + $0xbc] sm:$0xf] %vm3713, %v3662
  %3762 = vst.msk [vmem:[%s2 + $0xc0] sm:$0xf] %vm3713, %v3663
  // Predicated region
  $region10: #{lenet5_fc_variance_unif_forward.2} parent=0 // pred_check
    _
  $region11: #{lenet5_fc_variance_unif_forward.2} parent=0 // pred_check_branch
    %3764 = sbr.rel (0) target = $region13
  $region12: #{lenet5_fc_variance_unif_forward.2} parent=0 // pred_region
    _
  $region13: #{lenet5_fc_variance_unif_forward.2} parent=0 // pred_fallthru
    _
  // Predicated region
  $region14: #{lenet5_fc_variance_unif_forward.2} parent=0 // pred_check
    _
  $region15: #{lenet5_fc_variance_unif_forward.2} parent=0 // pred_check_branch
    %3766 = sbr.rel (0) target = $region17
  $region16: #{lenet5_fc_variance_unif_forward.2} parent=0 // pred_region
    _
  $region17: #{lenet5_fc_variance_unif_forward.2} parent=0 // pred_fallthru
    _

// kernel: lenet5_fc_variance_unif_forward.3
$region0: #{lenet5_fc_variance_unif_forward.3}
  #allocation0 [shape = 'u32[]', space=smem, size = 0x4, offset = 0x4, fixed_abs, tag = 'smem constant byte address 0x4 - core index']
  #allocation1 [shape = 'u32[144,128]{1,0:T(1,128)}', space=vmem, size = 0x12000, scoped, tag = 'internal scratch']
  #allocation2 [shape = 'f32[200,50]{1,0:T(8,128)}', space=vmem, size = 0x19000, scoped, tag = 'scratch operand']
  #allocation3 [shape = 'bf16[50,50]{1,0:T(8,128)(2,1)}', space=vmem, size = 0x3800, scoped, tag = 'scratch operand']
  %s0 = inlined_call_operand.vmem [shape: bf16[200,500], index: 0, kind: input, shape index: {}]
  %s1 = inlined_call_operand.vmem [shape: bf16[500,50], index: 1, kind: input, shape index: {}]
  %s2 = inlined_call_operand.vmem [shape: bf16[25,50,500], index: 2, kind: input, shape index: {}]
  %s3 = inlined_call_operand.vmem [shape: bf16[500,10], index: 3, kind: input, shape index: {}]
  %s4 = inlined_call_operand.vmem [shape: f32[1,10], index: 4, kind: input, shape index: {}]
  %s5 = inlined_call_operand.hbm [shape: f32[2,10], index: 5, kind: output, shape index: {}]
  %s6 = sld [smem:[#allocation0]]
  $region30: #{lenet5_fc_variance_unif_forward.3} parent=0
    _
  %s8 = ssub.s32 1, %s6
  %s9 = scalar_select 0, %s8, %s6
  $region1: #{lenet5_fc_variance_unif_forward.3} parent=0
    #allocation4 [shape = 'u8[1024]{0}', space=vmem, size = 0x400, scoped, tag = 'output window, operand 0, single buffered']
    #allocation5 [shape = 's32[1]{0}', space=sflag, size = 0x4, scoped, tag = 'scoped memory for lenet5_fc_variance_unif_forward.3']
    %10 = vsyncpa [#allocation5], 0
    // Predicated region
    $region2: #{lenet5_fc_variance_unif_forward.3} parent=1 // pred_check
      _
    $region3: #{lenet5_fc_variance_unif_forward.3} parent=1 // pred_check_branch
      %12 = sbr.rel (0) target = $region5
    $region4: #{lenet5_fc_variance_unif_forward.3} parent=1 // pred_region
      _
    $region5: #{lenet5_fc_variance_unif_forward.3} parent=1 // pred_fallthru
      _
    // Predicated region
    $region6: #{lenet5_fc_variance_unif_forward.3} parent=1 // pred_check
      _
    $region7: #{lenet5_fc_variance_unif_forward.3} parent=1 // pred_check_branch
      %14 = sbr.rel (0) target = $region9
    $region8: #{lenet5_fc_variance_unif_forward.3} parent=1 // pred_region
      _
    $region9: #{lenet5_fc_variance_unif_forward.3} parent=1 // pred_fallthru
      _
    // Predicated region
    $region10: #{lenet5_fc_variance_unif_forward.3} parent=1 // pred_check
      _
    $region11: #{lenet5_fc_variance_unif_forward.3} parent=1 // pred_check_branch
      %16 = sbr.rel (0) target = $region13
    $region12: #{lenet5_fc_variance_unif_forward.3} parent=1 // pred_region
      _
    $region13: #{lenet5_fc_variance_unif_forward.3} parent=1 // pred_fallthru
      _
    // Predicated region
    $region14: #{lenet5_fc_variance_unif_forward.3} parent=1 // pred_check
      _
    $region15: #{lenet5_fc_variance_unif_forward.3} parent=1 // pred_check_branch
      %18 = sbr.rel (0) target = $region17
    $region16: #{lenet5_fc_variance_unif_forward.3} parent=1 // pred_region
      _
    $region17: #{lenet5_fc_variance_unif_forward.3} parent=1 // pred_fallthru
      _
    // Predicated region
    $region18: #{lenet5_fc_variance_unif_forward.3} parent=1 // pred_check
      _
    $region19: #{lenet5_fc_variance_unif_forward.3} parent=1 // pred_check_branch
      %20 = sbr.rel (0) target = $region21
    $region20: #{lenet5_fc_variance_unif_forward.3} parent=1 // pred_region
      _
    $region21: #{lenet5_fc_variance_unif_forward.3} parent=1 // pred_fallthru
      _
    %v22 = vld [vmem:[%s0] sm:$0xff]
    %v23 = vld [vmem:[%s0 + $0x8] sm:$0xff]
    %v24 = vld [vmem:[%s0 + $0x10] sm:$0xff]
    %v25 = vld [vmem:[%s0 + $0x18] sm:$0xff]
    %v26 = vld [vmem:[%s0 + $0x20] sm:$0xff]
    %v27 = vld [vmem:[%s0 + $0x28] sm:$0xff]
    %v28 = vld [vmem:[%s0 + $0x30] sm:$0xff]
    %v29 = vld [vmem:[%s0 + $0x38] sm:$0xff]
    %v30 = vld [vmem:[%s0 + $0x40] sm:$0xff]
    %v31 = vld [vmem:[%s0 + $0x48] sm:$0xff]
    %v32 = vld [vmem:[%s0 + $0x50] sm:$0xff]
    %v33 = vld [vmem:[%s0 + $0x58] sm:$0xff]
    %v34 = vld [vmem:[%s0 + $0x60] sm:$0xff]
    %v35 = vld [vmem:[%s0 + $0x68] sm:$0xff]
    %v36 = vld [vmem:[%s0 + $0x70] sm:$0xff]
    %v37 = vld [vmem:[%s0 + $0x78] sm:$0xff]
    %v38 = vld [vmem:[%s0 + $0x80] sm:$0xff]
    %v39 = vld [vmem:[%s0 + $0x88] sm:$0xff]
    %v40 = vld [vmem:[%s0 + $0x90] sm:$0xff]
    %v41 = vld [vmem:[%s0 + $0x98] sm:$0xff]
    %v42 = vld [vmem:[%s0 + $0xa0] sm:$0xff]
    %v43 = vld [vmem:[%s0 + $0xa8] sm:$0xff]
    %v44 = vld [vmem:[%s0 + $0xb0] sm:$0xff]
    %v45 = vld [vmem:[%s0 + $0xb8] sm:$0xff]
    %v46 = vld [vmem:[%s0 + $0xc0] sm:$0xff]
    %v47 = vld [vmem:[%s0 + $0xc8] sm:$0xff]
    %v48 = vld [vmem:[%s0 + $0xd0] sm:$0xff]
    %v49 = vld [vmem:[%s0 + $0xd8] sm:$0xff]
    %v50 = vld [vmem:[%s0 + $0xe0] sm:$0xff]
    %v51 = vld [vmem:[%s0 + $0xe8] sm:$0xff]
    %v52 = vld [vmem:[%s0 + $0xf0] sm:$0xff]
    %v53 = vld [vmem:[%s0 + $0xf8] sm:$0xff]
    %v54 = vld [vmem:[%s0 + $0x100] sm:$0xff]
    %v55 = vld [vmem:[%s0 + $0x108] sm:$0xff]
    %v56 = vld [vmem:[%s0 + $0x110] sm:$0xff]
    %v57 = vld [vmem:[%s0 + $0x118] sm:$0xff]
    %v58 = vld [vmem:[%s0 + $0x120] sm:$0xff]
    %v59 = vld [vmem:[%s0 + $0x128] sm:$0xff]
    %v60 = vld [vmem:[%s0 + $0x130] sm:$0xff]
    %v61 = vld [vmem:[%s0 + $0x138] sm:$0xff]
    %v62 = vld [vmem:[%s0 + $0x140] sm:$0xff]
    %v63 = vld [vmem:[%s0 + $0x148] sm:$0xff]
    %v64 = vld [vmem:[%s0 + $0x150] sm:$0xff]
    %v65 = vld [vmem:[%s0 + $0x158] sm:$0xff]
    %v66 = vld [vmem:[%s0 + $0x160] sm:$0xff]
    %v67 = vld [vmem:[%s0 + $0x168] sm:$0xff]
    %v68 = vld [vmem:[%s0 + $0x170] sm:$0xff]
    %v69 = vld [vmem:[%s0 + $0x178] sm:$0xff]
    %v70 = vld [vmem:[%s0 + $0x180] sm:$0xff]
    %v71 = vld [vmem:[%s0 + $0x188] sm:$0xff]
    %v72 = vld [vmem:[%s1] sm:$0xf]
    %v73 = vld [vmem:[%s1 + $0x4] sm:$0xf]
    %v74 = vld [vmem:[%s1 + $0x8] sm:$0xf]
    %v75 = vld [vmem:[%s1 + $0xc] sm:$0xf]
    %v76 = vld [vmem:[%s1 + $0x10] sm:$0xf]
    %v77 = vld [vmem:[%s1 + $0x14] sm:$0xf]
    %v78 = vld [vmem:[%s1 + $0x18] sm:$0xf]
    %v79 = vld [vmem:[%s1 + $0x1c] sm:$0xf]
    %v80 = vld [vmem:[%s1 + $0x20] sm:$0xf]
    %v81 = vld [vmem:[%s1 + $0x24] sm:$0xf]
    %v82 = vld [vmem:[%s1 + $0x28] sm:$0xf]
    %v83 = vld [vmem:[%s1 + $0x2c] sm:$0xf]
    %v84 = vld [vmem:[%s1 + $0x30] sm:$0xf]
    %v85 = vld [vmem:[%s1 + $0x34] sm:$0xf]
    %v86 = vld [vmem:[%s1 + $0x38] sm:$0xf]
    %v87 = vld [vmem:[%s1 + $0x3c] sm:$0xf]
    %v88 = vld [vmem:[%s1 + $0x40] sm:$0xf]
    %v89 = vld [vmem:[%s1 + $0x44] sm:$0xf]
    %v90 = vld [vmem:[%s1 + $0x48] sm:$0xf]
    %v91 = vld [vmem:[%s1 + $0x4c] sm:$0xf]
    %v92 = vld [vmem:[%s1 + $0x50] sm:$0xf]
    %v93 = vld [vmem:[%s1 + $0x54] sm:$0xf]
    %v94 = vld [vmem:[%s1 + $0x58] sm:$0xf]
    %v95 = vld [vmem:[%s1 + $0x5c] sm:$0xf]
    %v96 = vld [vmem:[%s1 + $0x60] sm:$0xf]
    %v97 = vld [vmem:[%s1 + $0x64] sm:$0xf]
    %v98 = vld [vmem:[%s1 + $0x68] sm:$0xf]
    %v99 = vld [vmem:[%s1 + $0x6c] sm:$0xf]
    %v100 = vld [vmem:[%s1 + $0x70] sm:$0xf]
    %v101 = vld [vmem:[%s1 + $0x74] sm:$0xf]
    %v102 = vld [vmem:[%s1 + $0x78] sm:$0xf]
    %v103 = vld [vmem:[%s1 + $0x7c] sm:$0xf]
    %v104 = vld [vmem:[%s1 + $0x80] sm:$0xf]
    %v105 = vld [vmem:[%s1 + $0x84] sm:$0xf]
    %v106 = vld [vmem:[%s1 + $0x88] sm:$0xf]
    %v107 = vld [vmem:[%s1 + $0x8c] sm:$0xf]
    %v108 = vld [vmem:[%s1 + $0x90] sm:$0xf]
    %v109 = vld [vmem:[%s1 + $0x94] sm:$0xf]
    %v110 = vld [vmem:[%s1 + $0x98] sm:$0xf]
    %v111 = vld [vmem:[%s1 + $0x9c] sm:$0xf]
    %v112 = vld [vmem:[%s1 + $0xa0] sm:$0xf]
    %v113 = vld [vmem:[%s1 + $0xa4] sm:$0xf]
    %v114 = vld [vmem:[%s1 + $0xa8] sm:$0xf]
    %v115 = vld [vmem:[%s1 + $0xac] sm:$0xf]
    %v116 = vld [vmem:[%s1 + $0xb0] sm:$0xf]
    %v117 = vld [vmem:[%s1 + $0xb4] sm:$0xf]
    %v118 = vld [vmem:[%s1 + $0xb8] sm:$0xf]
    %v119 = vld [vmem:[%s1 + $0xbc] sm:$0xf]
    %v120 = vld [vmem:[%s1 + $0xc0] sm:$0xf]
    %v121 = vld [vmem:[%s1 + $0xc4] sm:$0xf]
    %v122 = vld [vmem:[%s1 + $0xc8] sm:$0xf]
    %v123 = vld [vmem:[%s1 + $0xcc] sm:$0xf]
    %v124 = vld [vmem:[%s1 + $0xd0] sm:$0xf]
    %v125 = vld [vmem:[%s1 + $0xd4] sm:$0xf]
    %v126 = vld [vmem:[%s1 + $0xd8] sm:$0xf]
    %v127 = vld [vmem:[%s1 + $0xdc] sm:$0xf]
    %v128 = vld [vmem:[%s1 + $0xe0] sm:$0xf]
    %v129 = vld [vmem:[%s1 + $0xe4] sm:$0xf]
    %v130 = vld [vmem:[%s1 + $0xe8] sm:$0xf]
    %v131 = vld [vmem:[%s1 + $0xec] sm:$0xf]
    %v132 = vld [vmem:[%s1 + $0xf0] sm:$0xf]
    %v133 = vld [vmem:[%s1 + $0xf4] sm:$0xf]
    %v134 = vld [vmem:[%s1 + $0xf8] sm:$0x3]
    %v185 = vunpack.c.l.b16 %v22
    %v186 = vunpack.c.h.b16 %v22
    %v187 = vunpack.c.l.b16 %v23
    %v188 = vunpack.c.h.b16 %v23
    %v189 = vunpack.c.l.b16 %v24
    %v190 = vunpack.c.h.b16 %v24
    %v191 = vunpack.c.l.b16 %v25
    %v192 = vunpack.c.h.b16 %v25
    %v193 = vunpack.c.l.b16 %v26
    %v194 = vunpack.c.h.b16 %v26
    %v195 = vunpack.c.l.b16 %v27
    %v196 = vunpack.c.h.b16 %v27
    %v197 = vunpack.c.l.b16 %v28
    %v198 = vunpack.c.h.b16 %v28
    %v199 = vunpack.c.l.b16 %v29
    %v200 = vunpack.c.h.b16 %v29
    %v201 = vunpack.c.l.b16 %v30
    %v202 = vunpack.c.h.b16 %v30
    %v203 = vunpack.c.l.b16 %v31
    %v204 = vunpack.c.h.b16 %v31
    %v205 = vunpack.c.l.b16 %v32
    %v206 = vunpack.c.h.b16 %v32
    %v207 = vunpack.c.l.b16 %v33
    %v208 = vunpack.c.h.b16 %v33
    %v209 = vunpack.c.l.b16 %v34
    %v210 = vunpack.c.h.b16 %v34
    %v211 = vunpack.c.l.b16 %v35
    %v212 = vunpack.c.h.b16 %v35
    %v213 = vunpack.c.l.b16 %v36
    %v214 = vunpack.c.h.b16 %v36
    %v215 = vunpack.c.l.b16 %v37
    %v216 = vunpack.c.h.b16 %v37
    %v217 = vunpack.c.l.b16 %v38
    %v218 = vunpack.c.h.b16 %v38
    %v219 = vunpack.c.l.b16 %v39
    %v220 = vunpack.c.h.b16 %v39
    %v221 = vunpack.c.l.b16 %v40
    %v222 = vunpack.c.h.b16 %v40
    %v223 = vunpack.c.l.b16 %v41
    %v224 = vunpack.c.h.b16 %v41
    %v225 = vunpack.c.l.b16 %v42
    %v226 = vunpack.c.h.b16 %v42
    %v227 = vunpack.c.l.b16 %v43
    %v228 = vunpack.c.h.b16 %v43
    %v229 = vunpack.c.l.b16 %v44
    %v230 = vunpack.c.h.b16 %v44
    %v231 = vunpack.c.l.b16 %v45
    %v232 = vunpack.c.h.b16 %v45
    %v233 = vunpack.c.l.b16 %v46
    %v234 = vunpack.c.h.b16 %v46
    %v235 = vunpack.c.l.b16 %v47
    %v236 = vunpack.c.h.b16 %v47
    %v237 = vunpack.c.l.b16 %v48
    %v238 = vunpack.c.h.b16 %v48
    %v239 = vunpack.c.l.b16 %v49
    %v240 = vunpack.c.h.b16 %v49
    %v241 = vunpack.c.l.b16 %v50
    %v242 = vunpack.c.h.b16 %v50
    %v243 = vunpack.c.l.b16 %v51
    %v244 = vunpack.c.h.b16 %v51
    %v245 = vunpack.c.l.b16 %v52
    %v246 = vunpack.c.h.b16 %v52
    %v247 = vunpack.c.l.b16 %v53
    %v248 = vunpack.c.h.b16 %v53
    %v249 = vunpack.c.l.b16 %v54
    %v250 = vunpack.c.h.b16 %v54
    %v251 = vunpack.c.l.b16 %v55
    %v252 = vunpack.c.h.b16 %v55
    %v253 = vunpack.c.l.b16 %v56
    %v254 = vunpack.c.h.b16 %v56
    %v255 = vunpack.c.l.b16 %v57
    %v256 = vunpack.c.h.b16 %v57
    %v257 = vunpack.c.l.b16 %v58
    %v258 = vunpack.c.h.b16 %v58
    %v259 = vunpack.c.l.b16 %v59
    %v260 = vunpack.c.h.b16 %v59
    %v261 = vunpack.c.l.b16 %v60
    %v262 = vunpack.c.h.b16 %v60
    %v263 = vunpack.c.l.b16 %v61
    %v264 = vunpack.c.h.b16 %v61
    %v265 = vunpack.c.l.b16 %v62
    %v266 = vunpack.c.h.b16 %v62
    %v267 = vunpack.c.l.b16 %v63
    %v268 = vunpack.c.h.b16 %v63
    %v269 = vunpack.c.l.b16 %v64
    %v270 = vunpack.c.h.b16 %v64
    %v271 = vunpack.c.l.b16 %v65
    %v272 = vunpack.c.h.b16 %v65
    %v273 = vunpack.c.l.b16 %v66
    %v274 = vunpack.c.h.b16 %v66
    %v275 = vunpack.c.l.b16 %v67
    %v276 = vunpack.c.h.b16 %v67
    %v277 = vunpack.c.l.b16 %v68
    %v278 = vunpack.c.h.b16 %v68
    %v279 = vunpack.c.l.b16 %v69
    %v280 = vunpack.c.h.b16 %v69
    %v281 = vunpack.c.l.b16 %v70
    %v282 = vunpack.c.h.b16 %v70
    %v283 = vunpack.c.l.b16 %v71
    %v284 = vunpack.c.h.b16 %v71
    %v285 = vpack.c.b16 %v189, %v185
    %v286 = vpack.c.b16 %v190, %v186
    %v287 = vpack.c.b16 %v191, %v187
    %v288 = vpack.c.b16 %v192, %v188
    %v289 = vpack.c.b16 %v197, %v193
    %v290 = vpack.c.b16 %v198, %v194
    %v291 = vpack.c.b16 %v199, %v195
    %v292 = vpack.c.b16 %v200, %v196
    %v293 = vpack.c.b16 %v205, %v201
    %v294 = vpack.c.b16 %v206, %v202
    %v295 = vpack.c.b16 %v207, %v203
    %v296 = vpack.c.b16 %v208, %v204
    %v297 = vpack.c.b16 %v213, %v209
    %v298 = vpack.c.b16 %v214, %v210
    %v299 = vpack.c.b16 %v215, %v211
    %v300 = vpack.c.b16 %v216, %v212
    %v301 = vpack.c.b16 %v221, %v217
    %v302 = vpack.c.b16 %v222, %v218
    %v303 = vpack.c.b16 %v223, %v219
    %v304 = vpack.c.b16 %v224, %v220
    %v305 = vpack.c.b16 %v229, %v225
    %v306 = vpack.c.b16 %v230, %v226
    %v307 = vpack.c.b16 %v231, %v227
    %v308 = vpack.c.b16 %v232, %v228
    %v309 = vpack.c.b16 %v237, %v233
    %v310 = vpack.c.b16 %v238, %v234
    %v311 = vpack.c.b16 %v239, %v235
    %v312 = vpack.c.b16 %v240, %v236
    %v313 = vpack.c.b16 %v245, %v241
    %v314 = vpack.c.b16 %v246, %v242
    %v315 = vpack.c.b16 %v247, %v243
    %v316 = vpack.c.b16 %v248, %v244
    %v317 = vpack.c.b16 %v253, %v249
    %v318 = vpack.c.b16 %v254, %v250
    %v319 = vpack.c.b16 %v255, %v251
    %v320 = vpack.c.b16 %v256, %v252
    %v321 = vpack.c.b16 %v261, %v257
    %v322 = vpack.c.b16 %v262, %v258
    %v323 = vpack.c.b16 %v263, %v259
    %v324 = vpack.c.b16 %v264, %v260
    %v325 = vpack.c.b16 %v269, %v265
    %v326 = vpack.c.b16 %v270, %v266
    %v327 = vpack.c.b16 %v271, %v267
    %v328 = vpack.c.b16 %v272, %v268
    %v329 = vpack.c.b16 %v277, %v273
    %v330 = vpack.c.b16 %v278, %v274
    %v331 = vpack.c.b16 %v279, %v275
    %v332 = vpack.c.b16 %v280, %v276
    %v333 = vpack.c.b16 %v281, %v281
    %v334 = vpack.c.b16 %v282, %v282
    %v335 = vpack.c.b16 %v283, %v283
    %v336 = vpack.c.b16 %v284, %v284
    %v439 = vunpack.c.l.b16 %v72
    %v440 = vunpack.c.l.b16 %v73
    %v441 = vunpack.c.l.b16 %v74
    %v442 = vunpack.c.l.b16 %v75
    %v443 = vunpack.c.l.b16 %v76
    %v444 = vunpack.c.l.b16 %v77
    %v445 = vunpack.c.l.b16 %v78
    %v446 = vunpack.c.l.b16 %v79
    %v447 = vunpack.c.l.b16 %v80
    %v448 = vunpack.c.l.b16 %v81
    %v449 = vunpack.c.l.b16 %v82
    %v450 = vunpack.c.l.b16 %v83
    %v451 = vunpack.c.l.b16 %v84
    %v452 = vunpack.c.l.b16 %v85
    %v453 = vunpack.c.l.b16 %v86
    %v454 = vunpack.c.l.b16 %v87
    %v455 = vunpack.c.l.b16 %v88
    %v456 = vunpack.c.l.b16 %v89
    %v457 = vunpack.c.l.b16 %v90
    %v458 = vunpack.c.l.b16 %v91
    %v459 = vunpack.c.l.b16 %v92
    %v460 = vunpack.c.l.b16 %v93
    %v461 = vunpack.c.l.b16 %v94
    %v462 = vunpack.c.l.b16 %v95
    %v463 = vunpack.c.l.b16 %v96
    %v464 = vunpack.c.l.b16 %v97
    %v465 = vunpack.c.l.b16 %v98
    %v466 = vunpack.c.l.b16 %v99
    %v467 = vunpack.c.l.b16 %v100
    %v468 = vunpack.c.l.b16 %v101
    %v469 = vunpack.c.l.b16 %v102
    %v470 = vunpack.c.l.b16 %v103
    %v471 = vunpack.c.l.b16 %v104
    %v472 = vunpack.c.l.b16 %v105
    %v473 = vunpack.c.l.b16 %v106
    %v474 = vunpack.c.l.b16 %v107
    %v475 = vunpack.c.l.b16 %v108
    %v476 = vunpack.c.l.b16 %v109
    %v477 = vunpack.c.l.b16 %v110
    %v478 = vunpack.c.l.b16 %v111
    %v479 = vunpack.c.l.b16 %v112
    %v480 = vunpack.c.l.b16 %v113
    %v481 = vunpack.c.l.b16 %v114
    %v482 = vunpack.c.l.b16 %v115
    %v483 = vunpack.c.l.b16 %v116
    %v484 = vunpack.c.l.b16 %v117
    %v485 = vunpack.c.l.b16 %v118
    %v486 = vunpack.c.l.b16 %v119
    %v487 = vunpack.c.l.b16 %v120
    %v488 = vunpack.c.l.b16 %v121
    %v489 = vunpack.c.l.b16 %v122
    %v490 = vunpack.c.l.b16 %v123
    %v491 = vunpack.c.l.b16 %v124
    %v492 = vunpack.c.l.b16 %v125
    %v493 = vunpack.c.l.b16 %v126
    %v494 = vunpack.c.l.b16 %v127
    %v495 = vunpack.c.l.b16 %v128
    %v496 = vunpack.c.l.b16 %v129
    %v497 = vunpack.c.l.b16 %v130
    %v498 = vunpack.c.l.b16 %v131
    %v499 = vunpack.c.l.b16 %v132
    %v500 = vunpack.c.l.b16 %v133
    %v501 = vunpack.c.l.b16 %v134
    %v502 = vpack.c.b16 %v440, %v439
    %v503 = vpack.c.b16 %v442, %v441
    %v504 = vpack.c.b16 %v444, %v443
    %v505 = vpack.c.b16 %v446, %v445
    %v506 = vpack.c.b16 %v448, %v447
    %v507 = vpack.c.b16 %v450, %v449
    %v508 = vpack.c.b16 %v452, %v451
    %v509 = vpack.c.b16 %v454, %v453
    %v510 = vpack.c.b16 %v456, %v455
    %v511 = vpack.c.b16 %v458, %v457
    %v512 = vpack.c.b16 %v460, %v459
    %v513 = vpack.c.b16 %v462, %v461
    %v514 = vpack.c.b16 %v464, %v463
    %v515 = vpack.c.b16 %v466, %v465
    %v516 = vpack.c.b16 %v468, %v467
    %v517 = vpack.c.b16 %v470, %v469
    %v518 = vpack.c.b16 %v472, %v471
    %v519 = vpack.c.b16 %v474, %v473
    %v520 = vpack.c.b16 %v476, %v475
    %v521 = vpack.c.b16 %v478, %v477
    %v522 = vpack.c.b16 %v480, %v479
    %v523 = vpack.c.b16 %v482, %v481
    %v524 = vpack.c.b16 %v484, %v483
    %v525 = vpack.c.b16 %v486, %v485
    %v526 = vpack.c.b16 %v488, %v487
    %v527 = vpack.c.b16 %v490, %v489
    %v528 = vpack.c.b16 %v492, %v491
    %v529 = vpack.c.b16 %v494, %v493
    %v530 = vpack.c.b16 %v496, %v495
    %v531 = vpack.c.b16 %v498, %v497
    %v532 = vpack.c.b16 %v500, %v499
    %v533 = vpack.c.b16 %v501, %v501
    %vm565 = vcmask 949248
    %v567 = vsel %vm565, %v288, 0
    %v570 = vsel %vm565, %v292, 0
    %v573 = vsel %vm565, %v296, 0
    %v576 = vsel %vm565, %v300, 0
    %v579 = vsel %vm565, %v304, 0
    %v582 = vsel %vm565, %v308, 0
    %v585 = vsel %vm565, %v312, 0
    %v588 = vsel %vm565, %v316, 0
    %v591 = vsel %vm565, %v320, 0
    %v594 = vsel %vm565, %v324, 0
    %v597 = vsel %vm565, %v328, 0
    %v600 = vsel %vm565, %v332, 0
    %v603 = vsel %vm565, %v336, 0
    %vm605 = vcmask 1041408
    %v607 = vsel %vm605, %v533, 0
    %609 = vmatprep.subr.bf16.mxu0 0
    %610 = vmatpush1.bf16.msra.mxu0 %v509
    %611 = vmatprep.subr.bf16.mxu0 0
    %612 = vmatpush1.bf16.msra.mxu0 %v508
    %613 = vmatprep.subr.bf16.mxu0 0
    %614 = vmatpush1.bf16.msra.mxu0 %v507
    %615 = vmatprep.subr.bf16.mxu0 0
    %616 = vmatpush1.bf16.msra.mxu0 %v506
    %617 = vmatprep.subr.bf16.mxu0 0
    %618 = vmatpush1.bf16.msra.mxu0 %v505
    %619 = vmatprep.subr.bf16.mxu0 0
    %620 = vmatpush1.bf16.msra.mxu0 %v504
    %621 = vmatprep.subr.bf16.mxu0 0
    %622 = vmatpush1.bf16.msra.mxu0 %v503
    %623 = vmatprep.subr.bf16.mxu0 0
    %624 = vmatpush1.bf16.msra.mxu0 %v502
    %625 = vmatprep.subr.bf16.mxu0 0
    %626 = vmatpush2.bf16.msra.mxu0 %v517
    %627 = vmatprep.subr.bf16.mxu0 0
    %628 = vmatpush2.bf16.msra.mxu0 %v516
    %629 = vmatprep.subr.bf16.mxu0 0
    %630 = vmatpush2.bf16.msra.mxu0 %v515
    %631 = vmatprep.subr.bf16.mxu0 0
    %632 = vmatpush2.bf16.msra.mxu0 %v514
    %633 = vmatprep.subr.bf16.mxu0 0
    %634 = vmatpush2.bf16.msra.mxu0 %v513
    %635 = vmatprep.subr.bf16.mxu0 0
    %636 = vmatpush2.bf16.msra.mxu0 %v512
    %637 = vmatprep.subr.bf16.mxu0 0
    %638 = vmatpush2.bf16.msra.mxu0 %v511
    %639 = vmatprep.subr.bf16.mxu0 0
    %640 = vmatpush2.bf16.msra.mxu0 %v510
    %641 = vmatprep.mubr.bf16.mxu0 %v286
    %642 = vmatmul.mubr.bf16.gmra.mxu0 %v285
    %v643 = vpop.f32.mrf.mxu0
    %v644 = vadd.f32 0.0, %v643
    %v645 = vpop.f32.mrf.mxu0
    %v646 = vpop.f32.mrf.mxu0
    %v647 = vadd.f32 0.0, %v646
    %v648 = vpop.f32.mrf.mxu0
    %649 = vmatprep.mubr.bf16.mxu0 %v290
    %650 = vmatmul.mubr.bf16.gmra.mxu0 %v289
    %v651 = vpop.f32.mrf.mxu0
    %v652 = vadd.f32 0.0, %v651
    %v653 = vpop.f32.mrf.mxu0
    %v654 = vpop.f32.mrf.mxu0
    %v655 = vadd.f32 0.0, %v654
    %v656 = vpop.f32.mrf.mxu0
    %657 = vmatprep.mubr.bf16.mxu0 %v294
    %658 = vmatmul.mubr.bf16.gmra.mxu0 %v293
    %v659 = vpop.f32.mrf.mxu0
    %v660 = vadd.f32 0.0, %v659
    %v661 = vpop.f32.mrf.mxu0
    %v662 = vpop.f32.mrf.mxu0
    %v663 = vadd.f32 0.0, %v662
    %v664 = vpop.f32.mrf.mxu0
    %665 = vmatprep.mubr.bf16.mxu0 %v298
    %666 = vmatmul.mubr.bf16.gmra.mxu0 %v297
    %v667 = vpop.f32.mrf.mxu0
    %v668 = vadd.f32 0.0, %v667
    %v669 = vpop.f32.mrf.mxu0
    %v670 = vpop.f32.mrf.mxu0
    %v671 = vadd.f32 0.0, %v670
    %v672 = vpop.f32.mrf.mxu0
    %673 = vmatprep.mubr.bf16.mxu0 %v302
    %674 = vmatmul.mubr.bf16.gmra.mxu0 %v301
    %v675 = vpop.f32.mrf.mxu0
    %v676 = vadd.f32 0.0, %v675
    %v677 = vpop.f32.mrf.mxu0
    %v678 = vpop.f32.mrf.mxu0
    %v679 = vadd.f32 0.0, %v678
    %v680 = vpop.f32.mrf.mxu0
    %681 = vmatprep.mubr.bf16.mxu0 %v306
    %682 = vmatmul.mubr.bf16.gmra.mxu0 %v305
    %v683 = vpop.f32.mrf.mxu0
    %v684 = vadd.f32 0.0, %v683
    %v685 = vpop.f32.mrf.mxu0
    %v686 = vpop.f32.mrf.mxu0
    %v687 = vadd.f32 0.0, %v686
    %v688 = vpop.f32.mrf.mxu0
    %689 = vmatprep.mubr.bf16.mxu0 %v310
    %690 = vmatmul.mubr.bf16.gmra.mxu0 %v309
    %v691 = vpop.f32.mrf.mxu0
    %v692 = vadd.f32 0.0, %v691
    %v693 = vpop.f32.mrf.mxu0
    %v694 = vpop.f32.mrf.mxu0
    %v695 = vadd.f32 0.0, %v694
    %v696 = vpop.f32.mrf.mxu0
    %697 = vmatprep.mubr.bf16.mxu0 %v314
    %698 = vmatmul.mubr.bf16.gmra.mxu0 %v313
    %v699 = vpop.f32.mrf.mxu0
    %v700 = vadd.f32 0.0, %v699
    %v701 = vpop.f32.mrf.mxu0
    %v702 = vpop.f32.mrf.mxu0
    %v703 = vadd.f32 0.0, %v702
    %v704 = vpop.f32.mrf.mxu0
    %705 = vmatprep.mubr.bf16.mxu0 %v318
    %706 = vmatmul.mubr.bf16.gmra.mxu0 %v317
    %v707 = vpop.f32.mrf.mxu0
    %v708 = vadd.f32 0.0, %v707
    %v709 = vpop.f32.mrf.mxu0
    %v710 = vpop.f32.mrf.mxu0
    %v711 = vadd.f32 0.0, %v710
    %v712 = vpop.f32.mrf.mxu0
    %713 = vmatprep.mubr.bf16.mxu0 %v322
    %714 = vmatmul.mubr.bf16.gmra.mxu0 %v321
    %v715 = vpop.f32.mrf.mxu0
    %v716 = vadd.f32 0.0, %v715
    %v717 = vpop.f32.mrf.mxu0
    %v718 = vpop.f32.mrf.mxu0
    %v719 = vadd.f32 0.0, %v718
    %v720 = vpop.f32.mrf.mxu0
    %721 = vmatprep.mubr.bf16.mxu0 %v326
    %722 = vmatmul.mubr.bf16.gmra.mxu0 %v325
    %v723 = vpop.f32.mrf.mxu0
    %v724 = vadd.f32 0.0, %v723
    %v725 = vpop.f32.mrf.mxu0
    %v726 = vpop.f32.mrf.mxu0
    %v727 = vadd.f32 0.0, %v726
    %v728 = vpop.f32.mrf.mxu0
    %729 = vmatprep.mubr.bf16.mxu0 %v330
    %730 = vmatmul.mubr.bf16.gmra.mxu0 %v329
    %v731 = vpop.f32.mrf.mxu0
    %v732 = vadd.f32 0.0, %v731
    %v733 = vpop.f32.mrf.mxu0
    %v734 = vpop.f32.mrf.mxu0
    %v735 = vadd.f32 0.0, %v734
    %v736 = vpop.f32.mrf.mxu0
    %737 = vmatprep.mubr.bf16.mxu0 %v334
    %738 = vmatmul.mubr.bf16.gmra.mxu0 %v333
    %v739 = vpop.f32.mrf.mxu0
    %v740 = vadd.f32 0.0, %v739
    %v741 = vpop.f32.mrf.mxu0
    %v742 = vpop.f32.mrf.mxu0
    %v743 = vpop.f32.mrf.mxu0
    %744 = vdwg.mxu0
    %745 = vmatprep.subr.bf16.mxu0 0
    %746 = vmatpush1.bf16.msra.mxu0 %v525
    %747 = vmatprep.subr.bf16.mxu0 0
    %748 = vmatpush1.bf16.msra.mxu0 %v524
    %749 = vmatprep.subr.bf16.mxu0 0
    %750 = vmatpush1.bf16.msra.mxu0 %v523
    %751 = vmatprep.subr.bf16.mxu0 0
    %752 = vmatpush1.bf16.msra.mxu0 %v522
    %753 = vmatprep.subr.bf16.mxu0 0
    %754 = vmatpush1.bf16.msra.mxu0 %v521
    %755 = vmatprep.subr.bf16.mxu0 0
    %756 = vmatpush1.bf16.msra.mxu0 %v520
    %757 = vmatprep.subr.bf16.mxu0 0
    %758 = vmatpush1.bf16.msra.mxu0 %v519
    %759 = vmatprep.subr.bf16.mxu0 0
    %760 = vmatpush1.bf16.msra.mxu0 %v518
    %761 = vmatprep.subr.bf16.mxu0 0
    %762 = vmatpush2.bf16.msra.mxu0 %v607
    %763 = vmatprep.subr.bf16.mxu0 0
    %764 = vmatpush2.bf16.msra.mxu0 %v532
    %765 = vmatprep.subr.bf16.mxu0 0
    %766 = vmatpush2.bf16.msra.mxu0 %v531
    %767 = vmatprep.subr.bf16.mxu0 0
    %768 = vmatpush2.bf16.msra.mxu0 %v530
    %769 = vmatprep.subr.bf16.mxu0 0
    %770 = vmatpush2.bf16.msra.mxu0 %v529
    %771 = vmatprep.subr.bf16.mxu0 0
    %772 = vmatpush2.bf16.msra.mxu0 %v528
    %773 = vmatprep.subr.bf16.mxu0 0
    %774 = vmatpush2.bf16.msra.mxu0 %v527
    %775 = vmatprep.subr.bf16.mxu0 0
    %776 = vmatpush2.bf16.msra.mxu0 %v526
    %777 = vmatprep.mubr.bf16.mxu0 %v567
    %778 = vmatmul.mubr.bf16.gmra.mxu0 %v287
    %v779 = vpop.f32.mrf.mxu0
    %v780 = vadd.f32 %v644, %v779
    %v781 = vpop.f32.mrf.mxu0
    %v782 = vpop.f32.mrf.mxu0
    %v783 = vadd.f32 %v647, %v782
    %v784 = vpop.f32.mrf.mxu0
    %785 = vmatprep.mubr.bf16.mxu0 %v570
    %786 = vmatmul.mubr.bf16.gmra.mxu0 %v291
    %v787 = vpop.f32.mrf.mxu0
    %v788 = vadd.f32 %v652, %v787
    %v789 = vpop.f32.mrf.mxu0
    %v790 = vpop.f32.mrf.mxu0
    %v791 = vadd.f32 %v655, %v790
    %v792 = vpop.f32.mrf.mxu0
    %793 = vmatprep.mubr.bf16.mxu0 %v573
    %794 = vmatmul.mubr.bf16.gmra.mxu0 %v295
    %v795 = vpop.f32.mrf.mxu0
    %v796 = vadd.f32 %v660, %v795
    %v797 = vpop.f32.mrf.mxu0
    %v798 = vpop.f32.mrf.mxu0
    %v799 = vadd.f32 %v663, %v798
    %v800 = vpop.f32.mrf.mxu0
    %801 = vmatprep.mubr.bf16.mxu0 %v576
    %802 = vmatmul.mubr.bf16.gmra.mxu0 %v299
    %v803 = vpop.f32.mrf.mxu0
    %v804 = vadd.f32 %v668, %v803
    %v805 = vpop.f32.mrf.mxu0
    %v806 = vpop.f32.mrf.mxu0
    %v807 = vadd.f32 %v671, %v806
    %v808 = vpop.f32.mrf.mxu0
    %809 = vmatprep.mubr.bf16.mxu0 %v579
    %810 = vmatmul.mubr.bf16.gmra.mxu0 %v303
    %v811 = vpop.f32.mrf.mxu0
    %v812 = vadd.f32 %v676, %v811
    %v813 = vpop.f32.mrf.mxu0
    %v814 = vpop.f32.mrf.mxu0
    %v815 = vadd.f32 %v679, %v814
    %v816 = vpop.f32.mrf.mxu0
    %817 = vmatprep.mubr.bf16.mxu0 %v582
    %818 = vmatmul.mubr.bf16.gmra.mxu0 %v307
    %v819 = vpop.f32.mrf.mxu0
    %v820 = vadd.f32 %v684, %v819
    %v821 = vpop.f32.mrf.mxu0
    %v822 = vpop.f32.mrf.mxu0
    %v823 = vadd.f32 %v687, %v822
    %v824 = vpop.f32.mrf.mxu0
    %825 = vmatprep.mubr.bf16.mxu0 %v585
    %826 = vmatmul.mubr.bf16.gmra.mxu0 %v311
    %v827 = vpop.f32.mrf.mxu0
    %v828 = vadd.f32 %v692, %v827
    %v829 = vpop.f32.mrf.mxu0
    %v830 = vpop.f32.mrf.mxu0
    %v831 = vadd.f32 %v695, %v830
    %v832 = vpop.f32.mrf.mxu0
    %833 = vmatprep.mubr.bf16.mxu0 %v588
    %834 = vmatmul.mubr.bf16.gmra.mxu0 %v315
    %v835 = vpop.f32.mrf.mxu0
    %v836 = vadd.f32 %v700, %v835
    %v837 = vpop.f32.mrf.mxu0
    %v838 = vpop.f32.mrf.mxu0
    %v839 = vadd.f32 %v703, %v838
    %v840 = vpop.f32.mrf.mxu0
    %841 = vmatprep.mubr.bf16.mxu0 %v591
    %842 = vmatmul.mubr.bf16.gmra.mxu0 %v319
    %v843 = vpop.f32.mrf.mxu0
    %v844 = vadd.f32 %v708, %v843
    %v845 = vpop.f32.mrf.mxu0
    %v846 = vpop.f32.mrf.mxu0
    %v847 = vadd.f32 %v711, %v846
    %v848 = vpop.f32.mrf.mxu0
    %849 = vmatprep.mubr.bf16.mxu0 %v594
    %850 = vmatmul.mubr.bf16.gmra.mxu0 %v323
    %v851 = vpop.f32.mrf.mxu0
    %v852 = vadd.f32 %v716, %v851
    %v853 = vpop.f32.mrf.mxu0
    %v854 = vpop.f32.mrf.mxu0
    %v855 = vadd.f32 %v719, %v854
    %v856 = vpop.f32.mrf.mxu0
    %857 = vmatprep.mubr.bf16.mxu0 %v597
    %858 = vmatmul.mubr.bf16.gmra.mxu0 %v327
    %v859 = vpop.f32.mrf.mxu0
    %v860 = vadd.f32 %v724, %v859
    %v861 = vpop.f32.mrf.mxu0
    %v862 = vpop.f32.mrf.mxu0
    %v863 = vadd.f32 %v727, %v862
    %v864 = vpop.f32.mrf.mxu0
    %865 = vmatprep.mubr.bf16.mxu0 %v600
    %866 = vmatmul.mubr.bf16.gmra.mxu0 %v331
    %v867 = vpop.f32.mrf.mxu0
    %v868 = vadd.f32 %v732, %v867
    %v869 = vpop.f32.mrf.mxu0
    %v870 = vpop.f32.mrf.mxu0
    %v871 = vadd.f32 %v735, %v870
    %v872 = vpop.f32.mrf.mxu0
    %873 = vmatprep.mubr.bf16.mxu0 %v603
    %874 = vmatmul.mubr.bf16.gmra.mxu0 %v335
    %v875 = vpop.f32.mrf.mxu0
    %v876 = vadd.f32 %v740, %v875
    %v877 = vpop.f32.mrf.mxu0
    %v878 = vpop.f32.mrf.mxu0
    %v879 = vpop.f32.mrf.mxu0
    %880 = vdwg.mxu0
    %vm881 = vcmask 408576
    %v882 = vsel %vm881, %v780, 0.0
    %v883 = vsel %vm881, %v783, 0.0
    %v884 = vadd.f32 %v882, %v883
    %v885 = vsel %vm881, %v788, 0.0
    %v886 = vadd.f32 %v884, %v885
    %v887 = vsel %vm881, %v791, 0.0
    %v888 = vadd.f32 %v886, %v887
    %v889 = vsel %vm881, %v796, 0.0
    %v890 = vadd.f32 %v888, %v889
    %v891 = vsel %vm881, %v799, 0.0
    %v892 = vadd.f32 %v890, %v891
    %v893 = vsel %vm881, %v804, 0.0
    %v894 = vadd.f32 %v892, %v893
    %v895 = vsel %vm881, %v807, 0.0
    %v896 = vadd.f32 %v894, %v895
    %v897 = vsel %vm881, %v812, 0.0
    %v898 = vadd.f32 %v896, %v897
    %v899 = vsel %vm881, %v815, 0.0
    %v900 = vadd.f32 %v898, %v899
    %v901 = vsel %vm881, %v820, 0.0
    %v902 = vadd.f32 %v900, %v901
    %v903 = vsel %vm881, %v823, 0.0
    %v904 = vadd.f32 %v902, %v903
    %v905 = vsel %vm881, %v828, 0.0
    %v906 = vadd.f32 %v904, %v905
    %v907 = vsel %vm881, %v831, 0.0
    %v908 = vadd.f32 %v906, %v907
    %v909 = vsel %vm881, %v836, 0.0
    %v910 = vadd.f32 %v908, %v909
    %v911 = vsel %vm881, %v839, 0.0
    %v912 = vadd.f32 %v910, %v911
    %v913 = vsel %vm881, %v844, 0.0
    %v914 = vadd.f32 %v912, %v913
    %v915 = vsel %vm881, %v847, 0.0
    %v916 = vadd.f32 %v914, %v915
    %v917 = vsel %vm881, %v852, 0.0
    %v918 = vadd.f32 %v916, %v917
    %v919 = vsel %vm881, %v855, 0.0
    %v920 = vadd.f32 %v918, %v919
    %v921 = vsel %vm881, %v860, 0.0
    %v922 = vadd.f32 %v920, %v921
    %v923 = vsel %vm881, %v863, 0.0
    %v924 = vadd.f32 %v922, %v923
    %v925 = vsel %vm881, %v868, 0.0
    %v926 = vadd.f32 %v924, %v925
    %v927 = vsel %vm881, %v871, 0.0
    %v928 = vadd.f32 %v926, %v927
    %v929 = vsel %vm881, %v876, 0.0
    %v930 = vadd.f32 %v928, %v929
    %v931 = vrot.slane %v930, 4
    %v932 = vadd.f32 %v930, %v931
    %v933 = vrot.slane %v932, 2
    %v934 = vadd.f32 %v932, %v933
    %v935 = vrot.slane %v934, 1
    %v936 = vadd.f32 %v934, %v935
    %v937 = vmul.f32 %v936, 0.005
    %v938 = vmul.f32 %v780, %v780
    %v939 = vmul.f32 %v783, %v783
    %v940 = vmul.f32 %v788, %v788
    %v941 = vmul.f32 %v791, %v791
    %v942 = vmul.f32 %v796, %v796
    %v943 = vmul.f32 %v799, %v799
    %v944 = vmul.f32 %v804, %v804
    %v945 = vmul.f32 %v807, %v807
    %v946 = vmul.f32 %v812, %v812
    %v947 = vmul.f32 %v815, %v815
    %v948 = vmul.f32 %v820, %v820
    %v949 = vmul.f32 %v823, %v823
    %v950 = vmul.f32 %v828, %v828
    %v951 = vmul.f32 %v831, %v831
    %v952 = vmul.f32 %v836, %v836
    %v953 = vmul.f32 %v839, %v839
    %v954 = vmul.f32 %v844, %v844
    %v955 = vmul.f32 %v847, %v847
    %v956 = vmul.f32 %v852, %v852
    %v957 = vmul.f32 %v855, %v855
    %v958 = vmul.f32 %v860, %v860
    %v959 = vmul.f32 %v863, %v863
    %v960 = vmul.f32 %v868, %v868
    %v961 = vmul.f32 %v871, %v871
    %v962 = vmul.f32 %v876, %v876
    %v963 = vsel %vm881, %v938, 0.0
    %v964 = vsel %vm881, %v939, 0.0
    %v965 = vadd.f32 %v963, %v964
    %v966 = vsel %vm881, %v940, 0.0
    %v967 = vadd.f32 %v965, %v966
    %v968 = vsel %vm881, %v941, 0.0
    %v969 = vadd.f32 %v967, %v968
    %v970 = vsel %vm881, %v942, 0.0
    %v971 = vadd.f32 %v969, %v970
    %v972 = vsel %vm881, %v943, 0.0
    %v973 = vadd.f32 %v971, %v972
    %v974 = vsel %vm881, %v944, 0.0
    %v975 = vadd.f32 %v973, %v974
    %v976 = vsel %vm881, %v945, 0.0
    %v977 = vadd.f32 %v975, %v976
    %v978 = vsel %vm881, %v946, 0.0
    %v979 = vadd.f32 %v977, %v978
    %v980 = vsel %vm881, %v947, 0.0
    %v981 = vadd.f32 %v979, %v980
    %v982 = vsel %vm881, %v948, 0.0
    %v983 = vadd.f32 %v981, %v982
    %v984 = vsel %vm881, %v949, 0.0
    %v985 = vadd.f32 %v983, %v984
    %v986 = vsel %vm881, %v950, 0.0
    %v987 = vadd.f32 %v985, %v986
    %v988 = vsel %vm881, %v951, 0.0
    %v989 = vadd.f32 %v987, %v988
    %v990 = vsel %vm881, %v952, 0.0
    %v991 = vadd.f32 %v989, %v990
    %v992 = vsel %vm881, %v953, 0.0
    %v993 = vadd.f32 %v991, %v992
    %v994 = vsel %vm881, %v954, 0.0
    %v995 = vadd.f32 %v993, %v994
    %v996 = vsel %vm881, %v955, 0.0
    %v997 = vadd.f32 %v995, %v996
    %v998 = vsel %vm881, %v956, 0.0
    %v999 = vadd.f32 %v997, %v998
    %v1000 = vsel %vm881, %v957, 0.0
    %v1001 = vadd.f32 %v999, %v1000
    %v1002 = vsel %vm881, %v958, 0.0
    %v1003 = vadd.f32 %v1001, %v1002
    %v1004 = vsel %vm881, %v959, 0.0
    %v1005 = vadd.f32 %v1003, %v1004
    %v1006 = vsel %vm881, %v960, 0.0
    %v1007 = vadd.f32 %v1005, %v1006
    %v1008 = vsel %vm881, %v961, 0.0
    %v1009 = vadd.f32 %v1007, %v1008
    %v1010 = vsel %vm881, %v962, 0.0
    %v1011 = vadd.f32 %v1009, %v1010
    %v1012 = vrot.slane %v1011, 4
    %v1013 = vadd.f32 %v1011, %v1012
    %v1014 = vrot.slane %v1013, 2
    %v1015 = vadd.f32 %v1013, %v1014
    %v1016 = vrot.slane %v1015, 1
    %v1017 = vadd.f32 %v1015, %v1016
    %v1018 = vmul.f32 %v1017, 0.005
    %v1019 = vmul.f32 %v937, %v937
    %v1020 = vsub.f32 %v1018, %v1019
    %v1021 = vmax.f32 %v1020, 0.0
    %v1022 = vadd.f32 %v1021, 1e-05
    %v1023 = vrsqrt.pop %v1022
    %1024 = vst.msk [vmem:[#allocation2] sm:$0xff] %vm881, %v780
    %1025 = vst.msk [vmem:[#allocation2 + $0x8] sm:$0xff] %vm881, %v783
    %1026 = vst.msk [vmem:[#allocation2 + $0x10] sm:$0xff] %vm881, %v788
    %1027 = vst.msk [vmem:[#allocation2 + $0x18] sm:$0xff] %vm881, %v791
    %1028 = vst.msk [vmem:[#allocation2 + $0x20] sm:$0xff] %vm881, %v796
    %1029 = vst.msk [vmem:[#allocation2 + $0x28] sm:$0xff] %vm881, %v799
    %1030 = vst.msk [vmem:[#allocation2 + $0x30] sm:$0xff] %vm881, %v804
    %1031 = vst.msk [vmem:[#allocation2 + $0x38] sm:$0xff] %vm881, %v807
    %1032 = vst.msk [vmem:[#allocation2 + $0x40] sm:$0xff] %vm881, %v812
    %1033 = vst.msk [vmem:[#allocation2 + $0x48] sm:$0xff] %vm881, %v815
    %1034 = vst.msk [vmem:[#allocation2 + $0x50] sm:$0xff] %vm881, %v820
    %1035 = vst.msk [vmem:[#allocation2 + $0x58] sm:$0xff] %vm881, %v823
    %1036 = vst.msk [vmem:[#allocation2 + $0x60] sm:$0xff] %vm881, %v828
    %1037 = vst.msk [vmem:[#allocation2 + $0x68] sm:$0xff] %vm881, %v831
    %1038 = vst.msk [vmem:[#allocation2 + $0x70] sm:$0xff] %vm881, %v836
    %1039 = vst.msk [vmem:[#allocation2 + $0x78] sm:$0xff] %vm881, %v839
    %1040 = vst.msk [vmem:[#allocation2 + $0x80] sm:$0xff] %vm881, %v844
    %1041 = vst.msk [vmem:[#allocation2 + $0x88] sm:$0xff] %vm881, %v847
    %1042 = vst.msk [vmem:[#allocation2 + $0x90] sm:$0xff] %vm881, %v852
    %1043 = vst.msk [vmem:[#allocation2 + $0x98] sm:$0xff] %vm881, %v855
    %1044 = vst.msk [vmem:[#allocation2 + $0xa0] sm:$0xff] %vm881, %v860
    %1045 = vst.msk [vmem:[#allocation2 + $0xa8] sm:$0xff] %vm881, %v863
    %1046 = vst.msk [vmem:[#allocation2 + $0xb0] sm:$0xff] %vm881, %v868
    %1047 = vst.msk [vmem:[#allocation2 + $0xb8] sm:$0xff] %vm881, %v871
    %1048 = vst.msk [vmem:[#allocation2 + $0xc0] sm:$0xff] %vm881, %v876
    %v1049 = vld [vmem:[#allocation2] sm:$0xff]
    %v1050 = vld [vmem:[#allocation2 + $0x8] sm:$0xff]
    %v1051 = vld [vmem:[#allocation2 + $0x10] sm:$0xff]
    %v1052 = vld [vmem:[#allocation2 + $0x18] sm:$0xff]
    %v1053 = vld [vmem:[#allocation2 + $0x20] sm:$0xff]
    %v1054 = vld [vmem:[#allocation2 + $0x28] sm:$0xff]
    %v1055 = vld [vmem:[#allocation2 + $0x30] sm:$0x3]
    %v1056 = vld [vmem:[#allocation2 + $0x32] sm:$0xff]
    %v1057 = vld [vmem:[#allocation2 + $0x3a] sm:$0xff]
    %v1058 = vld [vmem:[#allocation2 + $0x42] sm:$0xff]
    %v1059 = vld [vmem:[#allocation2 + $0x4a] sm:$0xff]
    %v1060 = vld [vmem:[#allocation2 + $0x52] sm:$0xff]
    %v1061 = vld [vmem:[#allocation2 + $0x5a] sm:$0xff]
    %v1062 = vld [vmem:[#allocation2 + $0x62] sm:$0x3]
    %v1063 = vmax.f32 %v1049, %v1056
    %v1064 = vmax.f32 %v1050, %v1057
    %v1065 = vmax.f32 %v1051, %v1058
    %v1066 = vmax.f32 %v1052, %v1059
    %v1067 = vmax.f32 %v1053, %v1060
    %v1068 = vmax.f32 %v1054, %v1061
    %v1069 = vmax.f32 %v1055, %v1062
    %v1070 = vld [vmem:[#allocation2 + $0x64] sm:$0xff]
    %v1071 = vld [vmem:[#allocation2 + $0x6c] sm:$0xff]
    %v1072 = vld [vmem:[#allocation2 + $0x74] sm:$0xff]
    %v1073 = vld [vmem:[#allocation2 + $0x7c] sm:$0xff]
    %v1074 = vld [vmem:[#allocation2 + $0x84] sm:$0xff]
    %v1075 = vld [vmem:[#allocation2 + $0x8c] sm:$0xff]
    %v1076 = vld [vmem:[#allocation2 + $0x94] sm:$0x3]
    %v1077 = vld [vmem:[#allocation2 + $0x96] sm:$0xff]
    %v1078 = vld [vmem:[#allocation2 + $0x9e] sm:$0xff]
    %v1079 = vld [vmem:[#allocation2 + $0xa6] sm:$0xff]
    %v1080 = vld [vmem:[#allocation2 + $0xae] sm:$0xff]
    %v1081 = vld [vmem:[#allocation2 + $0xb6] sm:$0xff]
    %v1082 = vld [vmem:[#allocation2 + $0xbe] sm:$0xff]
    %v1083 = vld [vmem:[#allocation2 + $0xc6] sm:$0x3]
    %v1084 = vmax.f32 %v1070, %v1077
    %v1085 = vmax.f32 %v1071, %v1078
    %v1086 = vmax.f32 %v1072, %v1079
    %v1087 = vmax.f32 %v1073, %v1080
    %v1088 = vmax.f32 %v1074, %v1081
    %v1089 = vmax.f32 %v1075, %v1082
    %v1090 = vmax.f32 %v1076, %v1083
    %v1091 = vmax.f32 %v1063, %v1084
    %v1092 = vmax.f32 %v1064, %v1085
    %v1093 = vmax.f32 %v1065, %v1086
    %v1094 = vmax.f32 %v1066, %v1087
    %v1095 = vmax.f32 %v1067, %v1088
    %v1096 = vmax.f32 %v1068, %v1089
    %v1097 = vmax.f32 %v1069, %v1090
    %v1098 = vsub.f32 %v1091, %v937
    %v1099 = vsub.f32 %v1092, %v937
    %v1100 = vsub.f32 %v1093, %v937
    %v1101 = vsub.f32 %v1094, %v937
    %v1102 = vsub.f32 %v1095, %v937
    %v1103 = vsub.f32 %v1096, %v937
    %v1104 = vsub.f32 %v1097, %v937
    %v1105 = vmul.f32 %v1098, %v1023
    %v1106 = vmul.f32 %v1099, %v1023
    %v1107 = vmul.f32 %v1100, %v1023
    %v1108 = vmul.f32 %v1101, %v1023
    %v1109 = vmul.f32 %v1102, %v1023
    %v1110 = vmul.f32 %v1103, %v1023
    %v1111 = vmul.f32 %v1104, %v1023
    %v1112 = vmax.f32 %v1105, 0.0
    %v1113 = vmax.f32 %v1106, 0.0
    %v1114 = vmax.f32 %v1107, 0.0
    %v1115 = vmax.f32 %v1108, 0.0
    %v1116 = vmax.f32 %v1109, 0.0
    %v1117 = vmax.f32 %v1110, 0.0
    %v1118 = vmax.f32 %v1111, 0.0
    %v1119 = vpack.c.bf16 %v1113, %v1112
    %v1120 = vpack.c.bf16 %v1115, %v1114
    %v1121 = vpack.c.bf16 %v1117, %v1116
    %v1122 = vpack.c.bf16 %v1118, %v1118
    %v1127 = vunpack.c.l.b16 %v1119
    %v1128 = vunpack.c.h.b16 %v1119
    %v1129 = vunpack.c.l.b16 %v1120
    %v1130 = vunpack.c.h.b16 %v1120
    %v1131 = vunpack.c.l.b16 %v1121
    %v1132 = vunpack.c.h.b16 %v1121
    %v1133 = vunpack.c.l.b16 %v1122
    %v1134 = vpack.c.b16 %v1127, %v1127
    %v1135 = vpack.c.b16 %v1128, %v1128
    %v1136 = vpack.c.b16 %v1129, %v1129
    %v1137 = vpack.c.b16 %v1130, %v1130
    %v1138 = vpack.c.b16 %v1131, %v1131
    %v1139 = vpack.c.b16 %v1132, %v1132
    %v1140 = vpack.c.b16 %v1133, %v1133
    %vm1148 = vcmask 404480
    %1149 = vst.msk [vmem:[#allocation3] sm:$0xf] %vm1148, %v1134
    %1150 = vst.msk [vmem:[#allocation3 + $0x4] sm:$0xf] %vm1148, %v1135
    %1151 = vst.msk [vmem:[#allocation3 + $0x8] sm:$0xf] %vm1148, %v1136
    %1152 = vst.msk [vmem:[#allocation3 + $0xc] sm:$0xf] %vm1148, %v1137
    %1153 = vst.msk [vmem:[#allocation3 + $0x10] sm:$0xf] %vm1148, %v1138
    %1154 = vst.msk [vmem:[#allocation3 + $0x14] sm:$0xf] %vm1148, %v1139
    %vm1155 = vcmask 401408
    %1156 = vst.msk [vmem:[#allocation3 + $0x18] sm:$0x1] %vm1155, %v1140
    %v1157 = vld [vmem:[#allocation3] sm:$0x1]
    %v1158 = vld [vmem:[%s2] sm:$0xff]
    %v1159 = vld [vmem:[%s2 + $0x8] sm:$0xff]
    %v1160 = vld [vmem:[%s2 + $0x10] sm:$0xff]
    %v1161 = vld [vmem:[%s2 + $0x18] sm:$0xff]
    %v1162 = vld [vmem:[%s2 + $0x20] sm:$0xff]
    %v1163 = vld [vmem:[%s2 + $0x28] sm:$0xff]
    %v1164 = vld [vmem:[%s2 + $0x30] sm:$0xff]
    %v1165 = vld [vmem:[%s2 + $0x38] sm:$0xff]
    %v1166 = vld [vmem:[%s2 + $0x40] sm:$0xff]
    %v1167 = vld [vmem:[%s2 + $0x48] sm:$0xff]
    %v1168 = vld [vmem:[%s2 + $0x50] sm:$0xff]
    %v1169 = vld [vmem:[%s2 + $0x58] sm:$0xff]
    %v1170 = vld [vmem:[%s2 + $0x60] sm:$0x11]
    %v1171 = vld [vmem:[%s2 + $0x68] sm:$0x11]
    %v1172 = vld [vmem:[#allocation3] sm:$0x2]
    %s1173 = scalar_lea.vmem %s2, 112
    %v1174 = vld [vmem:[%s1173] sm:$0xff]
    %v1175 = vld [vmem:[%s1173 + $0x8] sm:$0xff]
    %v1176 = vld [vmem:[%s1173 + $0x10] sm:$0xff]
    %v1177 = vld [vmem:[%s1173 + $0x18] sm:$0xff]
    %v1178 = vld [vmem:[%s1173 + $0x20] sm:$0xff]
    %v1179 = vld [vmem:[%s1173 + $0x28] sm:$0xff]
    %v1180 = vld [vmem:[%s1173 + $0x30] sm:$0xff]
    %v1181 = vld [vmem:[%s1173 + $0x38] sm:$0xff]
    %v1182 = vld [vmem:[%s1173 + $0x40] sm:$0xff]
    %v1183 = vld [vmem:[%s1173 + $0x48] sm:$0xff]
    %v1184 = vld [vmem:[%s1173 + $0x50] sm:$0xff]
    %v1185 = vld [vmem:[%s1173 + $0x58] sm:$0xff]
    %v1186 = vld [vmem:[%s1173 + $0x60] sm:$0x11]
    %v1187 = vld [vmem:[%s1173 + $0x68] sm:$0x11]
    %v1189 = vunpack.c.l.b16 %v1172
    %v1190 = vpack.c.b16 %v1189, %v1189
    %v1191 = vrot.slane %v1190, 1
    %v1206 = vunpack.c.l.b16 %v1174
    %v1207 = vunpack.c.h.b16 %v1174
    %v1208 = vunpack.c.l.b16 %v1175
    %v1209 = vunpack.c.h.b16 %v1175
    %v1210 = vunpack.c.l.b16 %v1176
    %v1211 = vunpack.c.h.b16 %v1176
    %v1212 = vunpack.c.l.b16 %v1177
    %v1213 = vunpack.c.h.b16 %v1177
    %v1214 = vunpack.c.l.b16 %v1178
    %v1215 = vunpack.c.h.b16 %v1178
    %v1216 = vunpack.c.l.b16 %v1179
    %v1217 = vunpack.c.h.b16 %v1179
    %v1218 = vunpack.c.l.b16 %v1180
    %v1219 = vunpack.c.h.b16 %v1180
    %v1220 = vunpack.c.l.b16 %v1181
    %v1221 = vunpack.c.h.b16 %v1181
    %v1222 = vunpack.c.l.b16 %v1182
    %v1223 = vunpack.c.h.b16 %v1182
    %v1224 = vunpack.c.l.b16 %v1183
    %v1225 = vunpack.c.h.b16 %v1183
    %v1226 = vunpack.c.l.b16 %v1184
    %v1227 = vunpack.c.h.b16 %v1184
    %v1228 = vunpack.c.l.b16 %v1185
    %v1229 = vunpack.c.h.b16 %v1185
    %v1230 = vunpack.c.l.b16 %v1186
    %v1231 = vunpack.c.h.b16 %v1186
    %v1232 = vunpack.c.l.b16 %v1187
    %v1233 = vunpack.c.h.b16 %v1187
    %v1234 = vpack.c.b16 %v1210, %v1206
    %v1235 = vpack.c.b16 %v1211, %v1207
    %v1236 = vpack.c.b16 %v1212, %v1208
    %v1237 = vpack.c.b16 %v1213, %v1209
    %v1238 = vpack.c.b16 %v1218, %v1214
    %v1239 = vpack.c.b16 %v1219, %v1215
    %v1240 = vpack.c.b16 %v1220, %v1216
    %v1241 = vpack.c.b16 %v1221, %v1217
    %v1242 = vpack.c.b16 %v1226, %v1222
    %v1243 = vpack.c.b16 %v1227, %v1223
    %v1244 = vpack.c.b16 %v1228, %v1224
    %v1245 = vpack.c.b16 %v1229, %v1225
    %v1246 = vpack.c.b16 %v1230, %v1230
    %v1247 = vpack.c.b16 %v1231, %v1231
    %v1248 = vpack.c.b16 %v1232, %v1232
    %v1249 = vpack.c.b16 %v1233, %v1233
    %v1263 = vsel %vm881, %v1191, 0
    %vm1265 = vcmask 1040384
    %v1267 = vsel %vm1265, %v1246, 0
    %v1270 = vsel %vm1265, %v1247, 0
    %v1273 = vsel %vm1265, %v1248, 0
    %v1276 = vsel %vm1265, %v1249, 0
    %1278 = vmatprep.subr.bf16.mxu0 0
    %1279 = vmatpush1.bf16.msra.mxu0 0
    %1280 = vmatprep.subr.bf16.mxu0 0
    %1281 = vmatpush1.bf16.msra.mxu0 0
    %1282 = vmatprep.subr.bf16.mxu0 0
    %1283 = vmatpush1.bf16.msra.mxu0 0
    %1284 = vmatprep.subr.bf16.mxu0 0
    %1285 = vmatpush1.bf16.msra.mxu0 0
    %1286 = vmatprep.subr.bf16.mxu0 %v1270
    %1287 = vmatpush1.bf16.msra.mxu0 %v1267
    %1288 = vmatprep.subr.bf16.mxu0 %v1243
    %1289 = vmatpush1.bf16.msra.mxu0 %v1242
    %1290 = vmatprep.subr.bf16.mxu0 %v1239
    %1291 = vmatpush1.bf16.msra.mxu0 %v1238
    %1292 = vmatprep.subr.bf16.mxu0 %v1235
    %1293 = vmatpush1.bf16.msra.mxu0 %v1234
    %1294 = vmatprep.subr.bf16.mxu0 0
    %1295 = vmatpush2.bf16.msra.mxu0 0
    %1296 = vmatprep.subr.bf16.mxu0 0
    %1297 = vmatpush2.bf16.msra.mxu0 0
    %1298 = vmatprep.subr.bf16.mxu0 0
    %1299 = vmatpush2.bf16.msra.mxu0 0
    %1300 = vmatprep.subr.bf16.mxu0 0
    %1301 = vmatpush2.bf16.msra.mxu0 0
    %1302 = vmatprep.subr.bf16.mxu0 0
    %1303 = vmatpush2.bf16.msra.mxu0 0
    %1304 = vmatprep.subr.bf16.mxu0 0
    %1305 = vmatpush2.bf16.msra.mxu0 0
    %1306 = vmatprep.subr.bf16.mxu0 0
    %1307 = vmatpush2.bf16.msra.mxu0 0
    %1308 = vmatprep.subr.bf16.mxu0 0
    %1309 = vmatpush2.bf16.msra.mxu0 0
    %1310 = vmatprep.mubr.bf16.mxu0 0
    %1311 = vmatmul.mubr.bf16.gmra.mxu0 %v1263
    %v1312 = vpop.f32.mrf.mxu0
    %v1313 = vadd.f32 0.0, %v1312
    %v1314 = vpop.f32.mrf.mxu0
    %v1315 = vadd.f32 0.0, %v1314
    %v1316 = vpop.f32.mrf.mxu0
    %v1317 = vpop.f32.mrf.mxu0
    %1318 = vdwg.mxu0
    %1319 = vmatprep.subr.bf16.mxu0 0
    %1320 = vmatpush1.bf16.msra.mxu0 0
    %1321 = vmatprep.subr.bf16.mxu0 0
    %1322 = vmatpush1.bf16.msra.mxu0 0
    %1323 = vmatprep.subr.bf16.mxu0 0
    %1324 = vmatpush1.bf16.msra.mxu0 0
    %1325 = vmatprep.subr.bf16.mxu0 0
    %1326 = vmatpush1.bf16.msra.mxu0 0
    %1327 = vmatprep.subr.bf16.mxu0 %v1276
    %1328 = vmatpush1.bf16.msra.mxu0 %v1273
    %1329 = vmatprep.subr.bf16.mxu0 %v1245
    %1330 = vmatpush1.bf16.msra.mxu0 %v1244
    %1331 = vmatprep.subr.bf16.mxu0 %v1241
    %1332 = vmatpush1.bf16.msra.mxu0 %v1240
    %1333 = vmatprep.subr.bf16.mxu0 %v1237
    %1334 = vmatpush1.bf16.msra.mxu0 %v1236
    %1335 = vmatprep.subr.bf16.mxu0 0
    %1336 = vmatpush2.bf16.msra.mxu0 0
    %1337 = vmatprep.subr.bf16.mxu0 0
    %1338 = vmatpush2.bf16.msra.mxu0 0
    %1339 = vmatprep.subr.bf16.mxu0 0
    %1340 = vmatpush2.bf16.msra.mxu0 0
    %1341 = vmatprep.subr.bf16.mxu0 0
    %1342 = vmatpush2.bf16.msra.mxu0 0
    %1343 = vmatprep.subr.bf16.mxu0 0
    %1344 = vmatpush2.bf16.msra.mxu0 0
    %1345 = vmatprep.subr.bf16.mxu0 0
    %1346 = vmatpush2.bf16.msra.mxu0 0
    %1347 = vmatprep.subr.bf16.mxu0 0
    %1348 = vmatpush2.bf16.msra.mxu0 0
    %1349 = vmatprep.subr.bf16.mxu0 0
    %1350 = vmatpush2.bf16.msra.mxu0 0
    %1351 = vmatprep.mubr.bf16.mxu0 0
    %1352 = vmatmul.mubr.bf16.gmra.mxu0 %v1263
    %v1353 = vpop.f32.mrf.mxu0
    %v1354 = vadd.f32 0.0, %v1353
    %v1355 = vpop.f32.mrf.mxu0
    %v1356 = vadd.f32 0.0, %v1355
    %v1357 = vpop.f32.mrf.mxu0
    %v1358 = vpop.f32.mrf.mxu0
    %1359 = vdwg.mxu0
    %v1374 = vunpack.c.l.b16 %v1158
    %v1375 = vunpack.c.h.b16 %v1158
    %v1376 = vunpack.c.l.b16 %v1159
    %v1377 = vunpack.c.h.b16 %v1159
    %v1378 = vunpack.c.l.b16 %v1160
    %v1379 = vunpack.c.h.b16 %v1160
    %v1380 = vunpack.c.l.b16 %v1161
    %v1381 = vunpack.c.h.b16 %v1161
    %v1382 = vunpack.c.l.b16 %v1162
    %v1383 = vunpack.c.h.b16 %v1162
    %v1384 = vunpack.c.l.b16 %v1163
    %v1385 = vunpack.c.h.b16 %v1163
    %v1386 = vunpack.c.l.b16 %v1164
    %v1387 = vunpack.c.h.b16 %v1164
    %v1388 = vunpack.c.l.b16 %v1165
    %v1389 = vunpack.c.h.b16 %v1165
    %v1390 = vunpack.c.l.b16 %v1166
    %v1391 = vunpack.c.h.b16 %v1166
    %v1392 = vunpack.c.l.b16 %v1167
    %v1393 = vunpack.c.h.b16 %v1167
    %v1394 = vunpack.c.l.b16 %v1168
    %v1395 = vunpack.c.h.b16 %v1168
    %v1396 = vunpack.c.l.b16 %v1169
    %v1397 = vunpack.c.h.b16 %v1169
    %v1398 = vunpack.c.l.b16 %v1170
    %v1399 = vunpack.c.h.b16 %v1170
    %v1400 = vunpack.c.l.b16 %v1171
    %v1401 = vunpack.c.h.b16 %v1171
    %v1402 = vpack.c.b16 %v1378, %v1374
    %v1403 = vpack.c.b16 %v1379, %v1375
    %v1404 = vpack.c.b16 %v1380, %v1376
    %v1405 = vpack.c.b16 %v1381, %v1377
    %v1406 = vpack.c.b16 %v1386, %v1382
    %v1407 = vpack.c.b16 %v1387, %v1383
    %v1408 = vpack.c.b16 %v1388, %v1384
    %v1409 = vpack.c.b16 %v1389, %v1385
    %v1410 = vpack.c.b16 %v1394, %v1390
    %v1411 = vpack.c.b16 %v1395, %v1391
    %v1412 = vpack.c.b16 %v1396, %v1392
    %v1413 = vpack.c.b16 %v1397, %v1393
    %v1414 = vpack.c.b16 %v1398, %v1398
    %v1415 = vpack.c.b16 %v1399, %v1399
    %v1416 = vpack.c.b16 %v1400, %v1400
    %v1417 = vpack.c.b16 %v1401, %v1401
    %v1431 = vsel %vm881, %v1157, 0
    %v1434 = vsel %vm1265, %v1414, 0
    %v1437 = vsel %vm1265, %v1415, 0
    %v1440 = vsel %vm1265, %v1416, 0
    %v1443 = vsel %vm1265, %v1417, 0
    %1445 = vmatprep.subr.bf16.mxu0 0
    %1446 = vmatpush1.bf16.msra.mxu0 0
    %1447 = vmatprep.subr.bf16.mxu0 0
    %1448 = vmatpush1.bf16.msra.mxu0 0
    %1449 = vmatprep.subr.bf16.mxu0 0
    %1450 = vmatpush1.bf16.msra.mxu0 0
    %1451 = vmatprep.subr.bf16.mxu0 0
    %1452 = vmatpush1.bf16.msra.mxu0 0
    %1453 = vmatprep.subr.bf16.mxu0 %v1437
    %1454 = vmatpush1.bf16.msra.mxu0 %v1434
    %1455 = vmatprep.subr.bf16.mxu0 %v1411
    %1456 = vmatpush1.bf16.msra.mxu0 %v1410
    %1457 = vmatprep.subr.bf16.mxu0 %v1407
    %1458 = vmatpush1.bf16.msra.mxu0 %v1406
    %1459 = vmatprep.subr.bf16.mxu0 %v1403
    %1460 = vmatpush1.bf16.msra.mxu0 %v1402
    %1461 = vmatprep.subr.bf16.mxu0 0
    %1462 = vmatpush2.bf16.msra.mxu0 0
    %1463 = vmatprep.subr.bf16.mxu0 0
    %1464 = vmatpush2.bf16.msra.mxu0 0
    %1465 = vmatprep.subr.bf16.mxu0 0
    %1466 = vmatpush2.bf16.msra.mxu0 0
    %1467 = vmatprep.subr.bf16.mxu0 0
    %1468 = vmatpush2.bf16.msra.mxu0 0
    %1469 = vmatprep.subr.bf16.mxu0 0
    %1470 = vmatpush2.bf16.msra.mxu0 0
    %1471 = vmatprep.subr.bf16.mxu0 0
    %1472 = vmatpush2.bf16.msra.mxu0 0
    %1473 = vmatprep.subr.bf16.mxu0 0
    %1474 = vmatpush2.bf16.msra.mxu0 0
    %1475 = vmatprep.subr.bf16.mxu0 0
    %1476 = vmatpush2.bf16.msra.mxu0 0
    %1477 = vmatprep.mubr.bf16.mxu0 0
    %1478 = vmatmul.mubr.bf16.gmra.mxu0 %v1431
    %v1479 = vpop.f32.mrf.mxu0
    %v1480 = vadd.f32 %v1313, %v1479
    %v1481 = vpop.f32.mrf.mxu0
    %v1482 = vadd.f32 %v1315, %v1481
    %v1483 = vpop.f32.mrf.mxu0
    %v1484 = vpop.f32.mrf.mxu0
    %1485 = vdwg.mxu0
    %1486 = vmatprep.subr.bf16.mxu0 0
    %1487 = vmatpush1.bf16.msra.mxu0 0
    %1488 = vmatprep.subr.bf16.mxu0 0
    %1489 = vmatpush1.bf16.msra.mxu0 0
    %1490 = vmatprep.subr.bf16.mxu0 0
    %1491 = vmatpush1.bf16.msra.mxu0 0
    %1492 = vmatprep.subr.bf16.mxu0 0
    %1493 = vmatpush1.bf16.msra.mxu0 0
    %1494 = vmatprep.subr.bf16.mxu0 %v1443
    %1495 = vmatpush1.bf16.msra.mxu0 %v1440
    %1496 = vmatprep.subr.bf16.mxu0 %v1413
    %1497 = vmatpush1.bf16.msra.mxu0 %v1412
    %1498 = vmatprep.subr.bf16.mxu0 %v1409
    %1499 = vmatpush1.bf16.msra.mxu0 %v1408
    %1500 = vmatprep.subr.bf16.mxu0 %v1405
    %1501 = vmatpush1.bf16.msra.mxu0 %v1404
    %1502 = vmatprep.subr.bf16.mxu0 0
    %1503 = vmatpush2.bf16.msra.mxu0 0
    %1504 = vmatprep.subr.bf16.mxu0 0
    %1505 = vmatpush2.bf16.msra.mxu0 0
    %1506 = vmatprep.subr.bf16.mxu0 0
    %1507 = vmatpush2.bf16.msra.mxu0 0
    %1508 = vmatprep.subr.bf16.mxu0 0
    %1509 = vmatpush2.bf16.msra.mxu0 0
    %1510 = vmatprep.subr.bf16.mxu0 0
    %1511 = vmatpush2.bf16.msra.mxu0 0
    %1512 = vmatprep.subr.bf16.mxu0 0
    %1513 = vmatpush2.bf16.msra.mxu0 0
    %1514 = vmatprep.subr.bf16.mxu0 0
    %1515 = vmatpush2.bf16.msra.mxu0 0
    %1516 = vmatprep.subr.bf16.mxu0 0
    %1517 = vmatpush2.bf16.msra.mxu0 0
    %1518 = vmatprep.mubr.bf16.mxu0 0
    %1519 = vmatmul.mubr.bf16.gmra.mxu0 %v1431
    %v1520 = vpop.f32.mrf.mxu0
    %v1521 = vadd.f32 %v1354, %v1520
    %v1522 = vpop.f32.mrf.mxu0
    %v1523 = vadd.f32 %v1356, %v1522
    %v1524 = vpop.f32.mrf.mxu0
    %v1525 = vpop.f32.mrf.mxu0
    %1526 = vdwg.mxu0
    %v1527 = vld [vmem:[#allocation3] sm:$0x4]
    %s1528 = scalar_lea.vmem %s2, 224
    %v1529 = vld [vmem:[%s1528] sm:$0xff]
    %v1530 = vld [vmem:[%s1528 + $0x8] sm:$0xff]
    %v1531 = vld [vmem:[%s1528 + $0x10] sm:$0xff]
    %v1532 = vld [vmem:[%s1528 + $0x18] sm:$0xff]
    %v1533 = vld [vmem:[%s1528 + $0x20] sm:$0xff]
    %v1534 = vld [vmem:[%s1528 + $0x28] sm:$0xff]
    %v1535 = vld [vmem:[%s1528 + $0x30] sm:$0xff]
    %v1536 = vld [vmem:[%s1528 + $0x38] sm:$0xff]
    %v1537 = vld [vmem:[%s1528 + $0x40] sm:$0xff]
    %v1538 = vld [vmem:[%s1528 + $0x48] sm:$0xff]
    %v1539 = vld [vmem:[%s1528 + $0x50] sm:$0xff]
    %v1540 = vld [vmem:[%s1528 + $0x58] sm:$0xff]
    %v1541 = vld [vmem:[%s1528 + $0x60] sm:$0x11]
    %v1542 = vld [vmem:[%s1528 + $0x68] sm:$0x11]
    %v1544 = vunpack.c.l.b16 %v1527
    %v1545 = vpack.c.b16 %v1544, %v1544
    %v1546 = vrot.slane %v1545, 2
    %v1561 = vunpack.c.l.b16 %v1529
    %v1562 = vunpack.c.h.b16 %v1529
    %v1563 = vunpack.c.l.b16 %v1530
    %v1564 = vunpack.c.h.b16 %v1530
    %v1565 = vunpack.c.l.b16 %v1531
    %v1566 = vunpack.c.h.b16 %v1531
    %v1567 = vunpack.c.l.b16 %v1532
    %v1568 = vunpack.c.h.b16 %v1532
    %v1569 = vunpack.c.l.b16 %v1533
    %v1570 = vunpack.c.h.b16 %v1533
    %v1571 = vunpack.c.l.b16 %v1534
    %v1572 = vunpack.c.h.b16 %v1534
    %v1573 = vunpack.c.l.b16 %v1535
    %v1574 = vunpack.c.h.b16 %v1535
    %v1575 = vunpack.c.l.b16 %v1536
    %v1576 = vunpack.c.h.b16 %v1536
    %v1577 = vunpack.c.l.b16 %v1537
    %v1578 = vunpack.c.h.b16 %v1537
    %v1579 = vunpack.c.l.b16 %v1538
    %v1580 = vunpack.c.h.b16 %v1538
    %v1581 = vunpack.c.l.b16 %v1539
    %v1582 = vunpack.c.h.b16 %v1539
    %v1583 = vunpack.c.l.b16 %v1540
    %v1584 = vunpack.c.h.b16 %v1540
    %v1585 = vunpack.c.l.b16 %v1541
    %v1586 = vunpack.c.h.b16 %v1541
    %v1587 = vunpack.c.l.b16 %v1542
    %v1588 = vunpack.c.h.b16 %v1542
    %v1589 = vpack.c.b16 %v1565, %v1561
    %v1590 = vpack.c.b16 %v1566, %v1562
    %v1591 = vpack.c.b16 %v1567, %v1563
    %v1592 = vpack.c.b16 %v1568, %v1564
    %v1593 = vpack.c.b16 %v1573, %v1569
    %v1594 = vpack.c.b16 %v1574, %v1570
    %v1595 = vpack.c.b16 %v1575, %v1571
    %v1596 = vpack.c.b16 %v1576, %v1572
    %v1597 = vpack.c.b16 %v1581, %v1577
    %v1598 = vpack.c.b16 %v1582, %v1578
    %v1599 = vpack.c.b16 %v1583, %v1579
    %v1600 = vpack.c.b16 %v1584, %v1580
    %v1601 = vpack.c.b16 %v1585, %v1585
    %v1602 = vpack.c.b16 %v1586, %v1586
    %v1603 = vpack.c.b16 %v1587, %v1587
    %v1604 = vpack.c.b16 %v1588, %v1588
    %v1618 = vsel %vm881, %v1546, 0
    %v1621 = vsel %vm1265, %v1601, 0
    %v1624 = vsel %vm1265, %v1602, 0
    %v1627 = vsel %vm1265, %v1603, 0
    %v1630 = vsel %vm1265, %v1604, 0
    %1632 = vmatprep.subr.bf16.mxu0 0
    %1633 = vmatpush1.bf16.msra.mxu0 0
    %1634 = vmatprep.subr.bf16.mxu0 0
    %1635 = vmatpush1.bf16.msra.mxu0 0
    %1636 = vmatprep.subr.bf16.mxu0 0
    %1637 = vmatpush1.bf16.msra.mxu0 0
    %1638 = vmatprep.subr.bf16.mxu0 0
    %1639 = vmatpush1.bf16.msra.mxu0 0
    %1640 = vmatprep.subr.bf16.mxu0 %v1624
    %1641 = vmatpush1.bf16.msra.mxu0 %v1621
    %1642 = vmatprep.subr.bf16.mxu0 %v1598
    %1643 = vmatpush1.bf16.msra.mxu0 %v1597
    %1644 = vmatprep.subr.bf16.mxu0 %v1594
    %1645 = vmatpush1.bf16.msra.mxu0 %v1593
    %1646 = vmatprep.subr.bf16.mxu0 %v1590
    %1647 = vmatpush1.bf16.msra.mxu0 %v1589
    %1648 = vmatprep.subr.bf16.mxu0 0
    %1649 = vmatpush2.bf16.msra.mxu0 0
    %1650 = vmatprep.subr.bf16.mxu0 0
    %1651 = vmatpush2.bf16.msra.mxu0 0
    %1652 = vmatprep.subr.bf16.mxu0 0
    %1653 = vmatpush2.bf16.msra.mxu0 0
    %1654 = vmatprep.subr.bf16.mxu0 0
    %1655 = vmatpush2.bf16.msra.mxu0 0
    %1656 = vmatprep.subr.bf16.mxu0 0
    %1657 = vmatpush2.bf16.msra.mxu0 0
    %1658 = vmatprep.subr.bf16.mxu0 0
    %1659 = vmatpush2.bf16.msra.mxu0 0
    %1660 = vmatprep.subr.bf16.mxu0 0
    %1661 = vmatpush2.bf16.msra.mxu0 0
    %1662 = vmatprep.subr.bf16.mxu0 0
    %1663 = vmatpush2.bf16.msra.mxu0 0
    %1664 = vmatprep.mubr.bf16.mxu0 0
    %1665 = vmatmul.mubr.bf16.gmra.mxu0 %v1618
    %v1666 = vpop.f32.mrf.mxu0
    %v1667 = vadd.f32 0.0, %v1666
    %v1668 = vpop.f32.mrf.mxu0
    %v1669 = vadd.f32 0.0, %v1668
    %v1670 = vpop.f32.mrf.mxu0
    %v1671 = vpop.f32.mrf.mxu0
    %1672 = vdwg.mxu0
    %1673 = vmatprep.subr.bf16.mxu0 0
    %1674 = vmatpush1.bf16.msra.mxu0 0
    %1675 = vmatprep.subr.bf16.mxu0 0
    %1676 = vmatpush1.bf16.msra.mxu0 0
    %1677 = vmatprep.subr.bf16.mxu0 0
    %1678 = vmatpush1.bf16.msra.mxu0 0
    %1679 = vmatprep.subr.bf16.mxu0 0
    %1680 = vmatpush1.bf16.msra.mxu0 0
    %1681 = vmatprep.subr.bf16.mxu0 %v1630
    %1682 = vmatpush1.bf16.msra.mxu0 %v1627
    %1683 = vmatprep.subr.bf16.mxu0 %v1600
    %1684 = vmatpush1.bf16.msra.mxu0 %v1599
    %1685 = vmatprep.subr.bf16.mxu0 %v1596
    %1686 = vmatpush1.bf16.msra.mxu0 %v1595
    %1687 = vmatprep.subr.bf16.mxu0 %v1592
    %1688 = vmatpush1.bf16.msra.mxu0 %v1591
    %1689 = vmatprep.subr.bf16.mxu0 0
    %1690 = vmatpush2.bf16.msra.mxu0 0
    %1691 = vmatprep.subr.bf16.mxu0 0
    %1692 = vmatpush2.bf16.msra.mxu0 0
    %1693 = vmatprep.subr.bf16.mxu0 0
    %1694 = vmatpush2.bf16.msra.mxu0 0
    %1695 = vmatprep.subr.bf16.mxu0 0
    %1696 = vmatpush2.bf16.msra.mxu0 0
    %1697 = vmatprep.subr.bf16.mxu0 0
    %1698 = vmatpush2.bf16.msra.mxu0 0
    %1699 = vmatprep.subr.bf16.mxu0 0
    %1700 = vmatpush2.bf16.msra.mxu0 0
    %1701 = vmatprep.subr.bf16.mxu0 0
    %1702 = vmatpush2.bf16.msra.mxu0 0
    %1703 = vmatprep.subr.bf16.mxu0 0
    %1704 = vmatpush2.bf16.msra.mxu0 0
    %1705 = vmatprep.mubr.bf16.mxu0 0
    %1706 = vmatmul.mubr.bf16.gmra.mxu0 %v1618
    %v1707 = vpop.f32.mrf.mxu0
    %v1708 = vadd.f32 0.0, %v1707
    %v1709 = vpop.f32.mrf.mxu0
    %v1710 = vadd.f32 0.0, %v1709
    %v1711 = vpop.f32.mrf.mxu0
    %v1712 = vpop.f32.mrf.mxu0
    %1713 = vdwg.mxu0
    %v1714 = vadd.f32 %v1480, %v1667
    %v1715 = vadd.f32 %v1482, %v1669
    %v1716 = vadd.f32 %v1521, %v1708
    %v1717 = vadd.f32 %v1523, %v1710
    %v1718 = vld [vmem:[#allocation3] sm:$0x8]
    %s1719 = scalar_lea.vmem %s2, 336
    %v1720 = vld [vmem:[%s1719] sm:$0xff]
    %v1721 = vld [vmem:[%s1719 + $0x8] sm:$0xff]
    %v1722 = vld [vmem:[%s1719 + $0x10] sm:$0xff]
    %v1723 = vld [vmem:[%s1719 + $0x18] sm:$0xff]
    %v1724 = vld [vmem:[%s1719 + $0x20] sm:$0xff]
    %v1725 = vld [vmem:[%s1719 + $0x28] sm:$0xff]
    %v1726 = vld [vmem:[%s1719 + $0x30] sm:$0xff]
    %v1727 = vld [vmem:[%s1719 + $0x38] sm:$0xff]
    %v1728 = vld [vmem:[%s1719 + $0x40] sm:$0xff]
    %v1729 = vld [vmem:[%s1719 + $0x48] sm:$0xff]
    %v1730 = vld [vmem:[%s1719 + $0x50] sm:$0xff]
    %v1731 = vld [vmem:[%s1719 + $0x58] sm:$0xff]
    %v1732 = vld [vmem:[%s1719 + $0x60] sm:$0x11]
    %v1733 = vld [vmem:[%s1719 + $0x68] sm:$0x11]
    %v1735 = vunpack.c.l.b16 %v1718
    %v1736 = vpack.c.b16 %v1735, %v1735
    %v1737 = vrot.slane %v1736, 3
    %v1752 = vunpack.c.l.b16 %v1720
    %v1753 = vunpack.c.h.b16 %v1720
    %v1754 = vunpack.c.l.b16 %v1721
    %v1755 = vunpack.c.h.b16 %v1721
    %v1756 = vunpack.c.l.b16 %v1722
    %v1757 = vunpack.c.h.b16 %v1722
    %v1758 = vunpack.c.l.b16 %v1723
    %v1759 = vunpack.c.h.b16 %v1723
    %v1760 = vunpack.c.l.b16 %v1724
    %v1761 = vunpack.c.h.b16 %v1724
    %v1762 = vunpack.c.l.b16 %v1725
    %v1763 = vunpack.c.h.b16 %v1725
    %v1764 = vunpack.c.l.b16 %v1726
    %v1765 = vunpack.c.h.b16 %v1726
    %v1766 = vunpack.c.l.b16 %v1727
    %v1767 = vunpack.c.h.b16 %v1727
    %v1768 = vunpack.c.l.b16 %v1728
    %v1769 = vunpack.c.h.b16 %v1728
    %v1770 = vunpack.c.l.b16 %v1729
    %v1771 = vunpack.c.h.b16 %v1729
    %v1772 = vunpack.c.l.b16 %v1730
    %v1773 = vunpack.c.h.b16 %v1730
    %v1774 = vunpack.c.l.b16 %v1731
    %v1775 = vunpack.c.h.b16 %v1731
    %v1776 = vunpack.c.l.b16 %v1732
    %v1777 = vunpack.c.h.b16 %v1732
    %v1778 = vunpack.c.l.b16 %v1733
    %v1779 = vunpack.c.h.b16 %v1733
    %v1780 = vpack.c.b16 %v1756, %v1752
    %v1781 = vpack.c.b16 %v1757, %v1753
    %v1782 = vpack.c.b16 %v1758, %v1754
    %v1783 = vpack.c.b16 %v1759, %v1755
    %v1784 = vpack.c.b16 %v1764, %v1760
    %v1785 = vpack.c.b16 %v1765, %v1761
    %v1786 = vpack.c.b16 %v1766, %v1762
    %v1787 = vpack.c.b16 %v1767, %v1763
    %v1788 = vpack.c.b16 %v1772, %v1768
    %v1789 = vpack.c.b16 %v1773, %v1769
    %v1790 = vpack.c.b16 %v1774, %v1770
    %v1791 = vpack.c.b16 %v1775, %v1771
    %v1792 = vpack.c.b16 %v1776, %v1776
    %v1793 = vpack.c.b16 %v1777, %v1777
    %v1794 = vpack.c.b16 %v1778, %v1778
    %v1795 = vpack.c.b16 %v1779, %v1779
    %v1809 = vsel %vm881, %v1737, 0
    %v1812 = vsel %vm1265, %v1792, 0
    %v1815 = vsel %vm1265, %v1793, 0
    %v1818 = vsel %vm1265, %v1794, 0
    %v1821 = vsel %vm1265, %v1795, 0
    %1823 = vmatprep.subr.bf16.mxu0 0
    %1824 = vmatpush1.bf16.msra.mxu0 0
    %1825 = vmatprep.subr.bf16.mxu0 0
    %1826 = vmatpush1.bf16.msra.mxu0 0
    %1827 = vmatprep.subr.bf16.mxu0 0
    %1828 = vmatpush1.bf16.msra.mxu0 0
    %1829 = vmatprep.subr.bf16.mxu0 0
    %1830 = vmatpush1.bf16.msra.mxu0 0
    %1831 = vmatprep.subr.bf16.mxu0 %v1815
    %1832 = vmatpush1.bf16.msra.mxu0 %v1812
    %1833 = vmatprep.subr.bf16.mxu0 %v1789
    %1834 = vmatpush1.bf16.msra.mxu0 %v1788
    %1835 = vmatprep.subr.bf16.mxu0 %v1785
    %1836 = vmatpush1.bf16.msra.mxu0 %v1784
    %1837 = vmatprep.subr.bf16.mxu0 %v1781
    %1838 = vmatpush1.bf16.msra.mxu0 %v1780
    %1839 = vmatprep.subr.bf16.mxu0 0
    %1840 = vmatpush2.bf16.msra.mxu0 0
    %1841 = vmatprep.subr.bf16.mxu0 0
    %1842 = vmatpush2.bf16.msra.mxu0 0
    %1843 = vmatprep.subr.bf16.mxu0 0
    %1844 = vmatpush2.bf16.msra.mxu0 0
    %1845 = vmatprep.subr.bf16.mxu0 0
    %1846 = vmatpush2.bf16.msra.mxu0 0
    %1847 = vmatprep.subr.bf16.mxu0 0
    %1848 = vmatpush2.bf16.msra.mxu0 0
    %1849 = vmatprep.subr.bf16.mxu0 0
    %1850 = vmatpush2.bf16.msra.mxu0 0
    %1851 = vmatprep.subr.bf16.mxu0 0
    %1852 = vmatpush2.bf16.msra.mxu0 0
    %1853 = vmatprep.subr.bf16.mxu0 0
    %1854 = vmatpush2.bf16.msra.mxu0 0
    %1855 = vmatprep.mubr.bf16.mxu0 0
    %1856 = vmatmul.mubr.bf16.gmra.mxu0 %v1809
    %v1857 = vpop.f32.mrf.mxu0
    %v1858 = vadd.f32 0.0, %v1857
    %v1859 = vpop.f32.mrf.mxu0
    %v1860 = vadd.f32 0.0, %v1859
    %v1861 = vpop.f32.mrf.mxu0
    %v1862 = vpop.f32.mrf.mxu0
    %1863 = vdwg.mxu0
    %1864 = vmatprep.subr.bf16.mxu0 0
    %1865 = vmatpush1.bf16.msra.mxu0 0
    %1866 = vmatprep.subr.bf16.mxu0 0
    %1867 = vmatpush1.bf16.msra.mxu0 0
    %1868 = vmatprep.subr.bf16.mxu0 0
    %1869 = vmatpush1.bf16.msra.mxu0 0
    %1870 = vmatprep.subr.bf16.mxu0 0
    %1871 = vmatpush1.bf16.msra.mxu0 0
    %1872 = vmatprep.subr.bf16.mxu0 %v1821
    %1873 = vmatpush1.bf16.msra.mxu0 %v1818
    %1874 = vmatprep.subr.bf16.mxu0 %v1791
    %1875 = vmatpush1.bf16.msra.mxu0 %v1790
    %1876 = vmatprep.subr.bf16.mxu0 %v1787
    %1877 = vmatpush1.bf16.msra.mxu0 %v1786
    %1878 = vmatprep.subr.bf16.mxu0 %v1783
    %1879 = vmatpush1.bf16.msra.mxu0 %v1782
    %1880 = vmatprep.subr.bf16.mxu0 0
    %1881 = vmatpush2.bf16.msra.mxu0 0
    %1882 = vmatprep.subr.bf16.mxu0 0
    %1883 = vmatpush2.bf16.msra.mxu0 0
    %1884 = vmatprep.subr.bf16.mxu0 0
    %1885 = vmatpush2.bf16.msra.mxu0 0
    %1886 = vmatprep.subr.bf16.mxu0 0
    %1887 = vmatpush2.bf16.msra.mxu0 0
    %1888 = vmatprep.subr.bf16.mxu0 0
    %1889 = vmatpush2.bf16.msra.mxu0 0
    %1890 = vmatprep.subr.bf16.mxu0 0
    %1891 = vmatpush2.bf16.msra.mxu0 0
    %1892 = vmatprep.subr.bf16.mxu0 0
    %1893 = vmatpush2.bf16.msra.mxu0 0
    %1894 = vmatprep.subr.bf16.mxu0 0
    %1895 = vmatpush2.bf16.msra.mxu0 0
    %1896 = vmatprep.mubr.bf16.mxu0 0
    %1897 = vmatmul.mubr.bf16.gmra.mxu0 %v1809
    %v1898 = vpop.f32.mrf.mxu0
    %v1899 = vadd.f32 0.0, %v1898
    %v1900 = vpop.f32.mrf.mxu0
    %v1901 = vadd.f32 0.0, %v1900
    %v1902 = vpop.f32.mrf.mxu0
    %v1903 = vpop.f32.mrf.mxu0
    %1904 = vdwg.mxu0
    %v1905 = vadd.f32 %v1714, %v1858
    %v1906 = vadd.f32 %v1715, %v1860
    %v1907 = vadd.f32 %v1716, %v1899
    %v1908 = vadd.f32 %v1717, %v1901
    %v1909 = vld [vmem:[#allocation3 + $0x4] sm:$0x1]
    %s1910 = scalar_lea.vmem %s2, 448
    %v1911 = vld [vmem:[%s1910] sm:$0xff]
    %v1912 = vld [vmem:[%s1910 + $0x8] sm:$0xff]
    %v1913 = vld [vmem:[%s1910 + $0x10] sm:$0xff]
    %v1914 = vld [vmem:[%s1910 + $0x18] sm:$0xff]
    %v1915 = vld [vmem:[%s1910 + $0x20] sm:$0xff]
    %v1916 = vld [vmem:[%s1910 + $0x28] sm:$0xff]
    %v1917 = vld [vmem:[%s1910 + $0x30] sm:$0xff]
    %v1918 = vld [vmem:[%s1910 + $0x38] sm:$0xff]
    %v1919 = vld [vmem:[%s1910 + $0x40] sm:$0xff]
    %v1920 = vld [vmem:[%s1910 + $0x48] sm:$0xff]
    %v1921 = vld [vmem:[%s1910 + $0x50] sm:$0xff]
    %v1922 = vld [vmem:[%s1910 + $0x58] sm:$0xff]
    %v1923 = vld [vmem:[%s1910 + $0x60] sm:$0x11]
    %v1924 = vld [vmem:[%s1910 + $0x68] sm:$0x11]
    %v1939 = vunpack.c.l.b16 %v1911
    %v1940 = vunpack.c.h.b16 %v1911
    %v1941 = vunpack.c.l.b16 %v1912
    %v1942 = vunpack.c.h.b16 %v1912
    %v1943 = vunpack.c.l.b16 %v1913
    %v1944 = vunpack.c.h.b16 %v1913
    %v1945 = vunpack.c.l.b16 %v1914
    %v1946 = vunpack.c.h.b16 %v1914
    %v1947 = vunpack.c.l.b16 %v1915
    %v1948 = vunpack.c.h.b16 %v1915
    %v1949 = vunpack.c.l.b16 %v1916
    %v1950 = vunpack.c.h.b16 %v1916
    %v1951 = vunpack.c.l.b16 %v1917
    %v1952 = vunpack.c.h.b16 %v1917
    %v1953 = vunpack.c.l.b16 %v1918
    %v1954 = vunpack.c.h.b16 %v1918
    %v1955 = vunpack.c.l.b16 %v1919
    %v1956 = vunpack.c.h.b16 %v1919
    %v1957 = vunpack.c.l.b16 %v1920
    %v1958 = vunpack.c.h.b16 %v1920
    %v1959 = vunpack.c.l.b16 %v1921
    %v1960 = vunpack.c.h.b16 %v1921
    %v1961 = vunpack.c.l.b16 %v1922
    %v1962 = vunpack.c.h.b16 %v1922
    %v1963 = vunpack.c.l.b16 %v1923
    %v1964 = vunpack.c.h.b16 %v1923
    %v1965 = vunpack.c.l.b16 %v1924
    %v1966 = vunpack.c.h.b16 %v1924
    %v1967 = vpack.c.b16 %v1943, %v1939
    %v1968 = vpack.c.b16 %v1944, %v1940
    %v1969 = vpack.c.b16 %v1945, %v1941
    %v1970 = vpack.c.b16 %v1946, %v1942
    %v1971 = vpack.c.b16 %v1951, %v1947
    %v1972 = vpack.c.b16 %v1952, %v1948
    %v1973 = vpack.c.b16 %v1953, %v1949
    %v1974 = vpack.c.b16 %v1954, %v1950
    %v1975 = vpack.c.b16 %v1959, %v1955
    %v1976 = vpack.c.b16 %v1960, %v1956
    %v1977 = vpack.c.b16 %v1961, %v1957
    %v1978 = vpack.c.b16 %v1962, %v1958
    %v1979 = vpack.c.b16 %v1963, %v1963
    %v1980 = vpack.c.b16 %v1964, %v1964
    %v1981 = vpack.c.b16 %v1965, %v1965
    %v1982 = vpack.c.b16 %v1966, %v1966
    %v1996 = vsel %vm881, %v1909, 0
    %v1999 = vsel %vm1265, %v1979, 0
    %v2002 = vsel %vm1265, %v1980, 0
    %v2005 = vsel %vm1265, %v1981, 0
    %v2008 = vsel %vm1265, %v1982, 0
    %2010 = vmatprep.subr.bf16.mxu0 0
    %2011 = vmatpush1.bf16.msra.mxu0 0
    %2012 = vmatprep.subr.bf16.mxu0 0
    %2013 = vmatpush1.bf16.msra.mxu0 0
    %2014 = vmatprep.subr.bf16.mxu0 0
    %2015 = vmatpush1.bf16.msra.mxu0 0
    %2016 = vmatprep.subr.bf16.mxu0 0
    %2017 = vmatpush1.bf16.msra.mxu0 0
    %2018 = vmatprep.subr.bf16.mxu0 %v2002
    %2019 = vmatpush1.bf16.msra.mxu0 %v1999
    %2020 = vmatprep.subr.bf16.mxu0 %v1976
    %2021 = vmatpush1.bf16.msra.mxu0 %v1975
    %2022 = vmatprep.subr.bf16.mxu0 %v1972
    %2023 = vmatpush1.bf16.msra.mxu0 %v1971
    %2024 = vmatprep.subr.bf16.mxu0 %v1968
    %2025 = vmatpush1.bf16.msra.mxu0 %v1967
    %2026 = vmatprep.subr.bf16.mxu0 0
    %2027 = vmatpush2.bf16.msra.mxu0 0
    %2028 = vmatprep.subr.bf16.mxu0 0
    %2029 = vmatpush2.bf16.msra.mxu0 0
    %2030 = vmatprep.subr.bf16.mxu0 0
    %2031 = vmatpush2.bf16.msra.mxu0 0
    %2032 = vmatprep.subr.bf16.mxu0 0
    %2033 = vmatpush2.bf16.msra.mxu0 0
    %2034 = vmatprep.subr.bf16.mxu0 0
    %2035 = vmatpush2.bf16.msra.mxu0 0
    %2036 = vmatprep.subr.bf16.mxu0 0
    %2037 = vmatpush2.bf16.msra.mxu0 0
    %2038 = vmatprep.subr.bf16.mxu0 0
    %2039 = vmatpush2.bf16.msra.mxu0 0
    %2040 = vmatprep.subr.bf16.mxu0 0
    %2041 = vmatpush2.bf16.msra.mxu0 0
    %2042 = vmatprep.mubr.bf16.mxu0 0
    %2043 = vmatmul.mubr.bf16.gmra.mxu0 %v1996
    %v2044 = vpop.f32.mrf.mxu0
    %v2045 = vadd.f32 0.0, %v2044
    %v2046 = vpop.f32.mrf.mxu0
    %v2047 = vadd.f32 0.0, %v2046
    %v2048 = vpop.f32.mrf.mxu0
    %v2049 = vpop.f32.mrf.mxu0
    %2050 = vdwg.mxu0
    %2051 = vmatprep.subr.bf16.mxu0 0
    %2052 = vmatpush1.bf16.msra.mxu0 0
    %2053 = vmatprep.subr.bf16.mxu0 0
    %2054 = vmatpush1.bf16.msra.mxu0 0
    %2055 = vmatprep.subr.bf16.mxu0 0
    %2056 = vmatpush1.bf16.msra.mxu0 0
    %2057 = vmatprep.subr.bf16.mxu0 0
    %2058 = vmatpush1.bf16.msra.mxu0 0
    %2059 = vmatprep.subr.bf16.mxu0 %v2008
    %2060 = vmatpush1.bf16.msra.mxu0 %v2005
    %2061 = vmatprep.subr.bf16.mxu0 %v1978
    %2062 = vmatpush1.bf16.msra.mxu0 %v1977
    %2063 = vmatprep.subr.bf16.mxu0 %v1974
    %2064 = vmatpush1.bf16.msra.mxu0 %v1973
    %2065 = vmatprep.subr.bf16.mxu0 %v1970
    %2066 = vmatpush1.bf16.msra.mxu0 %v1969
    %2067 = vmatprep.subr.bf16.mxu0 0
    %2068 = vmatpush2.bf16.msra.mxu0 0
    %2069 = vmatprep.subr.bf16.mxu0 0
    %2070 = vmatpush2.bf16.msra.mxu0 0
    %2071 = vmatprep.subr.bf16.mxu0 0
    %2072 = vmatpush2.bf16.msra.mxu0 0
    %2073 = vmatprep.subr.bf16.mxu0 0
    %2074 = vmatpush2.bf16.msra.mxu0 0
    %2075 = vmatprep.subr.bf16.mxu0 0
    %2076 = vmatpush2.bf16.msra.mxu0 0
    %2077 = vmatprep.subr.bf16.mxu0 0
    %2078 = vmatpush2.bf16.msra.mxu0 0
    %2079 = vmatprep.subr.bf16.mxu0 0
    %2080 = vmatpush2.bf16.msra.mxu0 0
    %2081 = vmatprep.subr.bf16.mxu0 0
    %2082 = vmatpush2.bf16.msra.mxu0 0
    %2083 = vmatprep.mubr.bf16.mxu0 0
    %2084 = vmatmul.mubr.bf16.gmra.mxu0 %v1996
    %v2085 = vpop.f32.mrf.mxu0
    %v2086 = vadd.f32 0.0, %v2085
    %v2087 = vpop.f32.mrf.mxu0
    %v2088 = vadd.f32 0.0, %v2087
    %v2089 = vpop.f32.mrf.mxu0
    %v2090 = vpop.f32.mrf.mxu0
    %2091 = vdwg.mxu0
    %v2092 = vadd.f32 %v1905, %v2045
    %v2093 = vadd.f32 %v1906, %v2047
    %v2094 = vadd.f32 %v1907, %v2086
    %v2095 = vadd.f32 %v1908, %v2088
    %v2096 = vld [vmem:[#allocation3 + $0x4] sm:$0x2]
    %s2097 = scalar_lea.vmem %s2, 560
    %v2098 = vld [vmem:[%s2097] sm:$0xff]
    %v2099 = vld [vmem:[%s2097 + $0x8] sm:$0xff]
    %v2100 = vld [vmem:[%s2097 + $0x10] sm:$0xff]
    %v2101 = vld [vmem:[%s2097 + $0x18] sm:$0xff]
    %v2102 = vld [vmem:[%s2097 + $0x20] sm:$0xff]
    %v2103 = vld [vmem:[%s2097 + $0x28] sm:$0xff]
    %v2104 = vld [vmem:[%s2097 + $0x30] sm:$0xff]
    %v2105 = vld [vmem:[%s2097 + $0x38] sm:$0xff]
    %v2106 = vld [vmem:[%s2097 + $0x40] sm:$0xff]
    %v2107 = vld [vmem:[%s2097 + $0x48] sm:$0xff]
    %v2108 = vld [vmem:[%s2097 + $0x50] sm:$0xff]
    %v2109 = vld [vmem:[%s2097 + $0x58] sm:$0xff]
    %v2110 = vld [vmem:[%s2097 + $0x60] sm:$0x11]
    %v2111 = vld [vmem:[%s2097 + $0x68] sm:$0x11]
    %v2113 = vunpack.c.l.b16 %v2096
    %v2114 = vpack.c.b16 %v2113, %v2113
    %v2115 = vrot.slane %v2114, 1
    %v2130 = vunpack.c.l.b16 %v2098
    %v2131 = vunpack.c.h.b16 %v2098
    %v2132 = vunpack.c.l.b16 %v2099
    %v2133 = vunpack.c.h.b16 %v2099
    %v2134 = vunpack.c.l.b16 %v2100
    %v2135 = vunpack.c.h.b16 %v2100
    %v2136 = vunpack.c.l.b16 %v2101
    %v2137 = vunpack.c.h.b16 %v2101
    %v2138 = vunpack.c.l.b16 %v2102
    %v2139 = vunpack.c.h.b16 %v2102
    %v2140 = vunpack.c.l.b16 %v2103
    %v2141 = vunpack.c.h.b16 %v2103
    %v2142 = vunpack.c.l.b16 %v2104
    %v2143 = vunpack.c.h.b16 %v2104
    %v2144 = vunpack.c.l.b16 %v2105
    %v2145 = vunpack.c.h.b16 %v2105
    %v2146 = vunpack.c.l.b16 %v2106
    %v2147 = vunpack.c.h.b16 %v2106
    %v2148 = vunpack.c.l.b16 %v2107
    %v2149 = vunpack.c.h.b16 %v2107
    %v2150 = vunpack.c.l.b16 %v2108
    %v2151 = vunpack.c.h.b16 %v2108
    %v2152 = vunpack.c.l.b16 %v2109
    %v2153 = vunpack.c.h.b16 %v2109
    %v2154 = vunpack.c.l.b16 %v2110
    %v2155 = vunpack.c.h.b16 %v2110
    %v2156 = vunpack.c.l.b16 %v2111
    %v2157 = vunpack.c.h.b16 %v2111
    %v2158 = vpack.c.b16 %v2134, %v2130
    %v2159 = vpack.c.b16 %v2135, %v2131
    %v2160 = vpack.c.b16 %v2136, %v2132
    %v2161 = vpack.c.b16 %v2137, %v2133
    %v2162 = vpack.c.b16 %v2142, %v2138
    %v2163 = vpack.c.b16 %v2143, %v2139
    %v2164 = vpack.c.b16 %v2144, %v2140
    %v2165 = vpack.c.b16 %v2145, %v2141
    %v2166 = vpack.c.b16 %v2150, %v2146
    %v2167 = vpack.c.b16 %v2151, %v2147
    %v2168 = vpack.c.b16 %v2152, %v2148
    %v2169 = vpack.c.b16 %v2153, %v2149
    %v2170 = vpack.c.b16 %v2154, %v2154
    %v2171 = vpack.c.b16 %v2155, %v2155
    %v2172 = vpack.c.b16 %v2156, %v2156
    %v2173 = vpack.c.b16 %v2157, %v2157
    %v2187 = vsel %vm881, %v2115, 0
    %v2190 = vsel %vm1265, %v2170, 0
    %v2193 = vsel %vm1265, %v2171, 0
    %v2196 = vsel %vm1265, %v2172, 0
    %v2199 = vsel %vm1265, %v2173, 0
    %2201 = vmatprep.subr.bf16.mxu0 0
    %2202 = vmatpush1.bf16.msra.mxu0 0
    %2203 = vmatprep.subr.bf16.mxu0 0
    %2204 = vmatpush1.bf16.msra.mxu0 0
    %2205 = vmatprep.subr.bf16.mxu0 0
    %2206 = vmatpush1.bf16.msra.mxu0 0
    %2207 = vmatprep.subr.bf16.mxu0 0
    %2208 = vmatpush1.bf16.msra.mxu0 0
    %2209 = vmatprep.subr.bf16.mxu0 %v2193
    %2210 = vmatpush1.bf16.msra.mxu0 %v2190
    %2211 = vmatprep.subr.bf16.mxu0 %v2167
    %2212 = vmatpush1.bf16.msra.mxu0 %v2166
    %2213 = vmatprep.subr.bf16.mxu0 %v2163
    %2214 = vmatpush1.bf16.msra.mxu0 %v2162
    %2215 = vmatprep.subr.bf16.mxu0 %v2159
    %2216 = vmatpush1.bf16.msra.mxu0 %v2158
    %2217 = vmatprep.subr.bf16.mxu0 0
    %2218 = vmatpush2.bf16.msra.mxu0 0
    %2219 = vmatprep.subr.bf16.mxu0 0
    %2220 = vmatpush2.bf16.msra.mxu0 0
    %2221 = vmatprep.subr.bf16.mxu0 0
    %2222 = vmatpush2.bf16.msra.mxu0 0
    %2223 = vmatprep.subr.bf16.mxu0 0
    %2224 = vmatpush2.bf16.msra.mxu0 0
    %2225 = vmatprep.subr.bf16.mxu0 0
    %2226 = vmatpush2.bf16.msra.mxu0 0
    %2227 = vmatprep.subr.bf16.mxu0 0
    %2228 = vmatpush2.bf16.msra.mxu0 0
    %2229 = vmatprep.subr.bf16.mxu0 0
    %2230 = vmatpush2.bf16.msra.mxu0 0
    %2231 = vmatprep.subr.bf16.mxu0 0
    %2232 = vmatpush2.bf16.msra.mxu0 0
    %2233 = vmatprep.mubr.bf16.mxu0 0
    %2234 = vmatmul.mubr.bf16.gmra.mxu0 %v2187
    %v2235 = vpop.f32.mrf.mxu0
    %v2236 = vadd.f32 0.0, %v2235
    %v2237 = vpop.f32.mrf.mxu0
    %v2238 = vadd.f32 0.0, %v2237
    %v2239 = vpop.f32.mrf.mxu0
    %v2240 = vpop.f32.mrf.mxu0
    %2241 = vdwg.mxu0
    %2242 = vmatprep.subr.bf16.mxu0 0
    %2243 = vmatpush1.bf16.msra.mxu0 0
    %2244 = vmatprep.subr.bf16.mxu0 0
    %2245 = vmatpush1.bf16.msra.mxu0 0
    %2246 = vmatprep.subr.bf16.mxu0 0
    %2247 = vmatpush1.bf16.msra.mxu0 0
    %2248 = vmatprep.subr.bf16.mxu0 0
    %2249 = vmatpush1.bf16.msra.mxu0 0
    %2250 = vmatprep.subr.bf16.mxu0 %v2199
    %2251 = vmatpush1.bf16.msra.mxu0 %v2196
    %2252 = vmatprep.subr.bf16.mxu0 %v2169
    %2253 = vmatpush1.bf16.msra.mxu0 %v2168
    %2254 = vmatprep.subr.bf16.mxu0 %v2165
    %2255 = vmatpush1.bf16.msra.mxu0 %v2164
    %2256 = vmatprep.subr.bf16.mxu0 %v2161
    %2257 = vmatpush1.bf16.msra.mxu0 %v2160
    %2258 = vmatprep.subr.bf16.mxu0 0
    %2259 = vmatpush2.bf16.msra.mxu0 0
    %2260 = vmatprep.subr.bf16.mxu0 0
    %2261 = vmatpush2.bf16.msra.mxu0 0
    %2262 = vmatprep.subr.bf16.mxu0 0
    %2263 = vmatpush2.bf16.msra.mxu0 0
    %2264 = vmatprep.subr.bf16.mxu0 0
    %2265 = vmatpush2.bf16.msra.mxu0 0
    %2266 = vmatprep.subr.bf16.mxu0 0
    %2267 = vmatpush2.bf16.msra.mxu0 0
    %2268 = vmatprep.subr.bf16.mxu0 0
    %2269 = vmatpush2.bf16.msra.mxu0 0
    %2270 = vmatprep.subr.bf16.mxu0 0
    %2271 = vmatpush2.bf16.msra.mxu0 0
    %2272 = vmatprep.subr.bf16.mxu0 0
    %2273 = vmatpush2.bf16.msra.mxu0 0
    %2274 = vmatprep.mubr.bf16.mxu0 0
    %2275 = vmatmul.mubr.bf16.gmra.mxu0 %v2187
    %v2276 = vpop.f32.mrf.mxu0
    %v2277 = vadd.f32 0.0, %v2276
    %v2278 = vpop.f32.mrf.mxu0
    %v2279 = vadd.f32 0.0, %v2278
    %v2280 = vpop.f32.mrf.mxu0
    %v2281 = vpop.f32.mrf.mxu0
    %2282 = vdwg.mxu0
    %v2283 = vadd.f32 %v2092, %v2236
    %v2284 = vadd.f32 %v2093, %v2238
    %v2285 = vadd.f32 %v2094, %v2277
    %v2286 = vadd.f32 %v2095, %v2279
    %v2287 = vld [vmem:[#allocation3 + $0x4] sm:$0x4]
    %s2288 = scalar_lea.vmem %s2, 672
    %v2289 = vld [vmem:[%s2288] sm:$0xff]
    %v2290 = vld [vmem:[%s2288 + $0x8] sm:$0xff]
    %v2291 = vld [vmem:[%s2288 + $0x10] sm:$0xff]
    %v2292 = vld [vmem:[%s2288 + $0x18] sm:$0xff]
    %v2293 = vld [vmem:[%s2288 + $0x20] sm:$0xff]
    %v2294 = vld [vmem:[%s2288 + $0x28] sm:$0xff]
    %v2295 = vld [vmem:[%s2288 + $0x30] sm:$0xff]
    %v2296 = vld [vmem:[%s2288 + $0x38] sm:$0xff]
    %v2297 = vld [vmem:[%s2288 + $0x40] sm:$0xff]
    %v2298 = vld [vmem:[%s2288 + $0x48] sm:$0xff]
    %v2299 = vld [vmem:[%s2288 + $0x50] sm:$0xff]
    %v2300 = vld [vmem:[%s2288 + $0x58] sm:$0xff]
    %v2301 = vld [vmem:[%s2288 + $0x60] sm:$0x11]
    %v2302 = vld [vmem:[%s2288 + $0x68] sm:$0x11]
    %v2304 = vunpack.c.l.b16 %v2287
    %v2305 = vpack.c.b16 %v2304, %v2304
    %v2306 = vrot.slane %v2305, 2
    %v2321 = vunpack.c.l.b16 %v2289
    %v2322 = vunpack.c.h.b16 %v2289
    %v2323 = vunpack.c.l.b16 %v2290
    %v2324 = vunpack.c.h.b16 %v2290
    %v2325 = vunpack.c.l.b16 %v2291
    %v2326 = vunpack.c.h.b16 %v2291
    %v2327 = vunpack.c.l.b16 %v2292
    %v2328 = vunpack.c.h.b16 %v2292
    %v2329 = vunpack.c.l.b16 %v2293
    %v2330 = vunpack.c.h.b16 %v2293
    %v2331 = vunpack.c.l.b16 %v2294
    %v2332 = vunpack.c.h.b16 %v2294
    %v2333 = vunpack.c.l.b16 %v2295
    %v2334 = vunpack.c.h.b16 %v2295
    %v2335 = vunpack.c.l.b16 %v2296
    %v2336 = vunpack.c.h.b16 %v2296
    %v2337 = vunpack.c.l.b16 %v2297
    %v2338 = vunpack.c.h.b16 %v2297
    %v2339 = vunpack.c.l.b16 %v2298
    %v2340 = vunpack.c.h.b16 %v2298
    %v2341 = vunpack.c.l.b16 %v2299
    %v2342 = vunpack.c.h.b16 %v2299
    %v2343 = vunpack.c.l.b16 %v2300
    %v2344 = vunpack.c.h.b16 %v2300
    %v2345 = vunpack.c.l.b16 %v2301
    %v2346 = vunpack.c.h.b16 %v2301
    %v2347 = vunpack.c.l.b16 %v2302
    %v2348 = vunpack.c.h.b16 %v2302
    %v2349 = vpack.c.b16 %v2325, %v2321
    %v2350 = vpack.c.b16 %v2326, %v2322
    %v2351 = vpack.c.b16 %v2327, %v2323
    %v2352 = vpack.c.b16 %v2328, %v2324
    %v2353 = vpack.c.b16 %v2333, %v2329
    %v2354 = vpack.c.b16 %v2334, %v2330
    %v2355 = vpack.c.b16 %v2335, %v2331
    %v2356 = vpack.c.b16 %v2336, %v2332
    %v2357 = vpack.c.b16 %v2341, %v2337
    %v2358 = vpack.c.b16 %v2342, %v2338
    %v2359 = vpack.c.b16 %v2343, %v2339
    %v2360 = vpack.c.b16 %v2344, %v2340
    %v2361 = vpack.c.b16 %v2345, %v2345
    %v2362 = vpack.c.b16 %v2346, %v2346
    %v2363 = vpack.c.b16 %v2347, %v2347
    %v2364 = vpack.c.b16 %v2348, %v2348
    %v2378 = vsel %vm881, %v2306, 0
    %v2381 = vsel %vm1265, %v2361, 0
    %v2384 = vsel %vm1265, %v2362, 0
    %v2387 = vsel %vm1265, %v2363, 0
    %v2390 = vsel %vm1265, %v2364, 0
    %2392 = vmatprep.subr.bf16.mxu0 0
    %2393 = vmatpush1.bf16.msra.mxu0 0
    %2394 = vmatprep.subr.bf16.mxu0 0
    %2395 = vmatpush1.bf16.msra.mxu0 0
    %2396 = vmatprep.subr.bf16.mxu0 0
    %2397 = vmatpush1.bf16.msra.mxu0 0
    %2398 = vmatprep.subr.bf16.mxu0 0
    %2399 = vmatpush1.bf16.msra.mxu0 0
    %2400 = vmatprep.subr.bf16.mxu0 %v2384
    %2401 = vmatpush1.bf16.msra.mxu0 %v2381
    %2402 = vmatprep.subr.bf16.mxu0 %v2358
    %2403 = vmatpush1.bf16.msra.mxu0 %v2357
    %2404 = vmatprep.subr.bf16.mxu0 %v2354
    %2405 = vmatpush1.bf16.msra.mxu0 %v2353
    %2406 = vmatprep.subr.bf16.mxu0 %v2350
    %2407 = vmatpush1.bf16.msra.mxu0 %v2349
    %2408 = vmatprep.subr.bf16.mxu0 0
    %2409 = vmatpush2.bf16.msra.mxu0 0
    %2410 = vmatprep.subr.bf16.mxu0 0
    %2411 = vmatpush2.bf16.msra.mxu0 0
    %2412 = vmatprep.subr.bf16.mxu0 0
    %2413 = vmatpush2.bf16.msra.mxu0 0
    %2414 = vmatprep.subr.bf16.mxu0 0
    %2415 = vmatpush2.bf16.msra.mxu0 0
    %2416 = vmatprep.subr.bf16.mxu0 0
    %2417 = vmatpush2.bf16.msra.mxu0 0
    %2418 = vmatprep.subr.bf16.mxu0 0
    %2419 = vmatpush2.bf16.msra.mxu0 0
    %2420 = vmatprep.subr.bf16.mxu0 0
    %2421 = vmatpush2.bf16.msra.mxu0 0
    %2422 = vmatprep.subr.bf16.mxu0 0
    %2423 = vmatpush2.bf16.msra.mxu0 0
    %2424 = vmatprep.mubr.bf16.mxu0 0
    %2425 = vmatmul.mubr.bf16.gmra.mxu0 %v2378
    %v2426 = vpop.f32.mrf.mxu0
    %v2427 = vadd.f32 0.0, %v2426
    %v2428 = vpop.f32.mrf.mxu0
    %v2429 = vadd.f32 0.0, %v2428
    %v2430 = vpop.f32.mrf.mxu0
    %v2431 = vpop.f32.mrf.mxu0
    %2432 = vdwg.mxu0
    %2433 = vmatprep.subr.bf16.mxu0 0
    %2434 = vmatpush1.bf16.msra.mxu0 0
    %2435 = vmatprep.subr.bf16.mxu0 0
    %2436 = vmatpush1.bf16.msra.mxu0 0
    %2437 = vmatprep.subr.bf16.mxu0 0
    %2438 = vmatpush1.bf16.msra.mxu0 0
    %2439 = vmatprep.subr.bf16.mxu0 0
    %2440 = vmatpush1.bf16.msra.mxu0 0
    %2441 = vmatprep.subr.bf16.mxu0 %v2390
    %2442 = vmatpush1.bf16.msra.mxu0 %v2387
    %2443 = vmatprep.subr.bf16.mxu0 %v2360
    %2444 = vmatpush1.bf16.msra.mxu0 %v2359
    %2445 = vmatprep.subr.bf16.mxu0 %v2356
    %2446 = vmatpush1.bf16.msra.mxu0 %v2355
    %2447 = vmatprep.subr.bf16.mxu0 %v2352
    %2448 = vmatpush1.bf16.msra.mxu0 %v2351
    %2449 = vmatprep.subr.bf16.mxu0 0
    %2450 = vmatpush2.bf16.msra.mxu0 0
    %2451 = vmatprep.subr.bf16.mxu0 0
    %2452 = vmatpush2.bf16.msra.mxu0 0
    %2453 = vmatprep.subr.bf16.mxu0 0
    %2454 = vmatpush2.bf16.msra.mxu0 0
    %2455 = vmatprep.subr.bf16.mxu0 0
    %2456 = vmatpush2.bf16.msra.mxu0 0
    %2457 = vmatprep.subr.bf16.mxu0 0
    %2458 = vmatpush2.bf16.msra.mxu0 0
    %2459 = vmatprep.subr.bf16.mxu0 0
    %2460 = vmatpush2.bf16.msra.mxu0 0
    %2461 = vmatprep.subr.bf16.mxu0 0
    %2462 = vmatpush2.bf16.msra.mxu0 0
    %2463 = vmatprep.subr.bf16.mxu0 0
    %2464 = vmatpush2.bf16.msra.mxu0 0
    %2465 = vmatprep.mubr.bf16.mxu0 0
    %2466 = vmatmul.mubr.bf16.gmra.mxu0 %v2378
    %v2467 = vpop.f32.mrf.mxu0
    %v2468 = vadd.f32 0.0, %v2467
    %v2469 = vpop.f32.mrf.mxu0
    %v2470 = vadd.f32 0.0, %v2469
    %v2471 = vpop.f32.mrf.mxu0
    %v2472 = vpop.f32.mrf.mxu0
    %2473 = vdwg.mxu0
    %v2474 = vadd.f32 %v2283, %v2427
    %v2475 = vadd.f32 %v2284, %v2429
    %v2476 = vadd.f32 %v2285, %v2468
    %v2477 = vadd.f32 %v2286, %v2470
    %v2478 = vld [vmem:[#allocation3 + $0x4] sm:$0x8]
    %s2479 = scalar_lea.vmem %s2, 784
    %v2480 = vld [vmem:[%s2479] sm:$0xff]
    %v2481 = vld [vmem:[%s2479 + $0x8] sm:$0xff]
    %v2482 = vld [vmem:[%s2479 + $0x10] sm:$0xff]
    %v2483 = vld [vmem:[%s2479 + $0x18] sm:$0xff]
    %v2484 = vld [vmem:[%s2479 + $0x20] sm:$0xff]
    %v2485 = vld [vmem:[%s2479 + $0x28] sm:$0xff]
    %v2486 = vld [vmem:[%s2479 + $0x30] sm:$0xff]
    %v2487 = vld [vmem:[%s2479 + $0x38] sm:$0xff]
    %v2488 = vld [vmem:[%s2479 + $0x40] sm:$0xff]
    %v2489 = vld [vmem:[%s2479 + $0x48] sm:$0xff]
    %v2490 = vld [vmem:[%s2479 + $0x50] sm:$0xff]
    %v2491 = vld [vmem:[%s2479 + $0x58] sm:$0xff]
    %v2492 = vld [vmem:[%s2479 + $0x60] sm:$0x11]
    %v2493 = vld [vmem:[%s2479 + $0x68] sm:$0x11]
    %v2495 = vunpack.c.l.b16 %v2478
    %v2496 = vpack.c.b16 %v2495, %v2495
    %v2497 = vrot.slane %v2496, 3
    %v2512 = vunpack.c.l.b16 %v2480
    %v2513 = vunpack.c.h.b16 %v2480
    %v2514 = vunpack.c.l.b16 %v2481
    %v2515 = vunpack.c.h.b16 %v2481
    %v2516 = vunpack.c.l.b16 %v2482
    %v2517 = vunpack.c.h.b16 %v2482
    %v2518 = vunpack.c.l.b16 %v2483
    %v2519 = vunpack.c.h.b16 %v2483
    %v2520 = vunpack.c.l.b16 %v2484
    %v2521 = vunpack.c.h.b16 %v2484
    %v2522 = vunpack.c.l.b16 %v2485
    %v2523 = vunpack.c.h.b16 %v2485
    %v2524 = vunpack.c.l.b16 %v2486
    %v2525 = vunpack.c.h.b16 %v2486
    %v2526 = vunpack.c.l.b16 %v2487
    %v2527 = vunpack.c.h.b16 %v2487
    %v2528 = vunpack.c.l.b16 %v2488
    %v2529 = vunpack.c.h.b16 %v2488
    %v2530 = vunpack.c.l.b16 %v2489
    %v2531 = vunpack.c.h.b16 %v2489
    %v2532 = vunpack.c.l.b16 %v2490
    %v2533 = vunpack.c.h.b16 %v2490
    %v2534 = vunpack.c.l.b16 %v2491
    %v2535 = vunpack.c.h.b16 %v2491
    %v2536 = vunpack.c.l.b16 %v2492
    %v2537 = vunpack.c.h.b16 %v2492
    %v2538 = vunpack.c.l.b16 %v2493
    %v2539 = vunpack.c.h.b16 %v2493
    %v2540 = vpack.c.b16 %v2516, %v2512
    %v2541 = vpack.c.b16 %v2517, %v2513
    %v2542 = vpack.c.b16 %v2518, %v2514
    %v2543 = vpack.c.b16 %v2519, %v2515
    %v2544 = vpack.c.b16 %v2524, %v2520
    %v2545 = vpack.c.b16 %v2525, %v2521
    %v2546 = vpack.c.b16 %v2526, %v2522
    %v2547 = vpack.c.b16 %v2527, %v2523
    %v2548 = vpack.c.b16 %v2532, %v2528
    %v2549 = vpack.c.b16 %v2533, %v2529
    %v2550 = vpack.c.b16 %v2534, %v2530
    %v2551 = vpack.c.b16 %v2535, %v2531
    %v2552 = vpack.c.b16 %v2536, %v2536
    %v2553 = vpack.c.b16 %v2537, %v2537
    %v2554 = vpack.c.b16 %v2538, %v2538
    %v2555 = vpack.c.b16 %v2539, %v2539
    %v2569 = vsel %vm881, %v2497, 0
    %v2572 = vsel %vm1265, %v2552, 0
    %v2575 = vsel %vm1265, %v2553, 0
    %v2578 = vsel %vm1265, %v2554, 0
    %v2581 = vsel %vm1265, %v2555, 0
    %2583 = vmatprep.subr.bf16.mxu0 0
    %2584 = vmatpush1.bf16.msra.mxu0 0
    %2585 = vmatprep.subr.bf16.mxu0 0
    %2586 = vmatpush1.bf16.msra.mxu0 0
    %2587 = vmatprep.subr.bf16.mxu0 0
    %2588 = vmatpush1.bf16.msra.mxu0 0
    %2589 = vmatprep.subr.bf16.mxu0 0
    %2590 = vmatpush1.bf16.msra.mxu0 0
    %2591 = vmatprep.subr.bf16.mxu0 %v2575
    %2592 = vmatpush1.bf16.msra.mxu0 %v2572
    %2593 = vmatprep.subr.bf16.mxu0 %v2549
    %2594 = vmatpush1.bf16.msra.mxu0 %v2548
    %2595 = vmatprep.subr.bf16.mxu0 %v2545
    %2596 = vmatpush1.bf16.msra.mxu0 %v2544
    %2597 = vmatprep.subr.bf16.mxu0 %v2541
    %2598 = vmatpush1.bf16.msra.mxu0 %v2540
    %2599 = vmatprep.subr.bf16.mxu0 0
    %2600 = vmatpush2.bf16.msra.mxu0 0
    %2601 = vmatprep.subr.bf16.mxu0 0
    %2602 = vmatpush2.bf16.msra.mxu0 0
    %2603 = vmatprep.subr.bf16.mxu0 0
    %2604 = vmatpush2.bf16.msra.mxu0 0
    %2605 = vmatprep.subr.bf16.mxu0 0
    %2606 = vmatpush2.bf16.msra.mxu0 0
    %2607 = vmatprep.subr.bf16.mxu0 0
    %2608 = vmatpush2.bf16.msra.mxu0 0
    %2609 = vmatprep.subr.bf16.mxu0 0
    %2610 = vmatpush2.bf16.msra.mxu0 0
    %2611 = vmatprep.subr.bf16.mxu0 0
    %2612 = vmatpush2.bf16.msra.mxu0 0
    %2613 = vmatprep.subr.bf16.mxu0 0
    %2614 = vmatpush2.bf16.msra.mxu0 0
    %2615 = vmatprep.mubr.bf16.mxu0 0
    %2616 = vmatmul.mubr.bf16.gmra.mxu0 %v2569
    %v2617 = vpop.f32.mrf.mxu0
    %v2618 = vadd.f32 0.0, %v2617
    %v2619 = vpop.f32.mrf.mxu0
    %v2620 = vadd.f32 0.0, %v2619
    %v2621 = vpop.f32.mrf.mxu0
    %v2622 = vpop.f32.mrf.mxu0
    %2623 = vdwg.mxu0
    %2624 = vmatprep.subr.bf16.mxu0 0
    %2625 = vmatpush1.bf16.msra.mxu0 0
    %2626 = vmatprep.subr.bf16.mxu0 0
    %2627 = vmatpush1.bf16.msra.mxu0 0
    %2628 = vmatprep.subr.bf16.mxu0 0
    %2629 = vmatpush1.bf16.msra.mxu0 0
    %2630 = vmatprep.subr.bf16.mxu0 0
    %2631 = vmatpush1.bf16.msra.mxu0 0
    %2632 = vmatprep.subr.bf16.mxu0 %v2581
    %2633 = vmatpush1.bf16.msra.mxu0 %v2578
    %2634 = vmatprep.subr.bf16.mxu0 %v2551
    %2635 = vmatpush1.bf16.msra.mxu0 %v2550
    %2636 = vmatprep.subr.bf16.mxu0 %v2547
    %2637 = vmatpush1.bf16.msra.mxu0 %v2546
    %2638 = vmatprep.subr.bf16.mxu0 %v2543
    %2639 = vmatpush1.bf16.msra.mxu0 %v2542
    %2640 = vmatprep.subr.bf16.mxu0 0
    %2641 = vmatpush2.bf16.msra.mxu0 0
    %2642 = vmatprep.subr.bf16.mxu0 0
    %2643 = vmatpush2.bf16.msra.mxu0 0
    %2644 = vmatprep.subr.bf16.mxu0 0
    %2645 = vmatpush2.bf16.msra.mxu0 0
    %2646 = vmatprep.subr.bf16.mxu0 0
    %2647 = vmatpush2.bf16.msra.mxu0 0
    %2648 = vmatprep.subr.bf16.mxu0 0
    %2649 = vmatpush2.bf16.msra.mxu0 0
    %2650 = vmatprep.subr.bf16.mxu0 0
    %2651 = vmatpush2.bf16.msra.mxu0 0
    %2652 = vmatprep.subr.bf16.mxu0 0
    %2653 = vmatpush2.bf16.msra.mxu0 0
    %2654 = vmatprep.subr.bf16.mxu0 0
    %2655 = vmatpush2.bf16.msra.mxu0 0
    %2656 = vmatprep.mubr.bf16.mxu0 0
    %2657 = vmatmul.mubr.bf16.gmra.mxu0 %v2569
    %v2658 = vpop.f32.mrf.mxu0
    %v2659 = vadd.f32 0.0, %v2658
    %v2660 = vpop.f32.mrf.mxu0
    %v2661 = vadd.f32 0.0, %v2660
    %v2662 = vpop.f32.mrf.mxu0
    %v2663 = vpop.f32.mrf.mxu0
    %2664 = vdwg.mxu0
    %v2665 = vadd.f32 %v2474, %v2618
    %v2666 = vadd.f32 %v2475, %v2620
    %v2667 = vadd.f32 %v2476, %v2659
    %v2668 = vadd.f32 %v2477, %v2661
    %v2669 = vld [vmem:[#allocation3 + $0x8] sm:$0x1]
    %s2670 = scalar_lea.vmem %s2, 896
    %v2671 = vld [vmem:[%s2670] sm:$0xff]
    %v2672 = vld [vmem:[%s2670 + $0x8] sm:$0xff]
    %v2673 = vld [vmem:[%s2670 + $0x10] sm:$0xff]
    %v2674 = vld [vmem:[%s2670 + $0x18] sm:$0xff]
    %v2675 = vld [vmem:[%s2670 + $0x20] sm:$0xff]
    %v2676 = vld [vmem:[%s2670 + $0x28] sm:$0xff]
    %v2677 = vld [vmem:[%s2670 + $0x30] sm:$0xff]
    %v2678 = vld [vmem:[%s2670 + $0x38] sm:$0xff]
    %v2679 = vld [vmem:[%s2670 + $0x40] sm:$0xff]
    %v2680 = vld [vmem:[%s2670 + $0x48] sm:$0xff]
    %v2681 = vld [vmem:[%s2670 + $0x50] sm:$0xff]
    %v2682 = vld [vmem:[%s2670 + $0x58] sm:$0xff]
    %v2683 = vld [vmem:[%s2670 + $0x60] sm:$0x11]
    %v2684 = vld [vmem:[%s2670 + $0x68] sm:$0x11]
    %v2699 = vunpack.c.l.b16 %v2671
    %v2700 = vunpack.c.h.b16 %v2671
    %v2701 = vunpack.c.l.b16 %v2672
    %v2702 = vunpack.c.h.b16 %v2672
    %v2703 = vunpack.c.l.b16 %v2673
    %v2704 = vunpack.c.h.b16 %v2673
    %v2705 = vunpack.c.l.b16 %v2674
    %v2706 = vunpack.c.h.b16 %v2674
    %v2707 = vunpack.c.l.b16 %v2675
    %v2708 = vunpack.c.h.b16 %v2675
    %v2709 = vunpack.c.l.b16 %v2676
    %v2710 = vunpack.c.h.b16 %v2676
    %v2711 = vunpack.c.l.b16 %v2677
    %v2712 = vunpack.c.h.b16 %v2677
    %v2713 = vunpack.c.l.b16 %v2678
    %v2714 = vunpack.c.h.b16 %v2678
    %v2715 = vunpack.c.l.b16 %v2679
    %v2716 = vunpack.c.h.b16 %v2679
    %v2717 = vunpack.c.l.b16 %v2680
    %v2718 = vunpack.c.h.b16 %v2680
    %v2719 = vunpack.c.l.b16 %v2681
    %v2720 = vunpack.c.h.b16 %v2681
    %v2721 = vunpack.c.l.b16 %v2682
    %v2722 = vunpack.c.h.b16 %v2682
    %v2723 = vunpack.c.l.b16 %v2683
    %v2724 = vunpack.c.h.b16 %v2683
    %v2725 = vunpack.c.l.b16 %v2684
    %v2726 = vunpack.c.h.b16 %v2684
    %v2727 = vpack.c.b16 %v2703, %v2699
    %v2728 = vpack.c.b16 %v2704, %v2700
    %v2729 = vpack.c.b16 %v2705, %v2701
    %v2730 = vpack.c.b16 %v2706, %v2702
    %v2731 = vpack.c.b16 %v2711, %v2707
    %v2732 = vpack.c.b16 %v2712, %v2708
    %v2733 = vpack.c.b16 %v2713, %v2709
    %v2734 = vpack.c.b16 %v2714, %v2710
    %v2735 = vpack.c.b16 %v2719, %v2715
    %v2736 = vpack.c.b16 %v2720, %v2716
    %v2737 = vpack.c.b16 %v2721, %v2717
    %v2738 = vpack.c.b16 %v2722, %v2718
    %v2739 = vpack.c.b16 %v2723, %v2723
    %v2740 = vpack.c.b16 %v2724, %v2724
    %v2741 = vpack.c.b16 %v2725, %v2725
    %v2742 = vpack.c.b16 %v2726, %v2726
    %v2756 = vsel %vm881, %v2669, 0
    %v2759 = vsel %vm1265, %v2739, 0
    %v2762 = vsel %vm1265, %v2740, 0
    %v2765 = vsel %vm1265, %v2741, 0
    %v2768 = vsel %vm1265, %v2742, 0
    %2770 = vmatprep.subr.bf16.mxu0 0
    %2771 = vmatpush1.bf16.msra.mxu0 0
    %2772 = vmatprep.subr.bf16.mxu0 0
    %2773 = vmatpush1.bf16.msra.mxu0 0
    %2774 = vmatprep.subr.bf16.mxu0 0
    %2775 = vmatpush1.bf16.msra.mxu0 0
    %2776 = vmatprep.subr.bf16.mxu0 0
    %2777 = vmatpush1.bf16.msra.mxu0 0
    %2778 = vmatprep.subr.bf16.mxu0 %v2762
    %2779 = vmatpush1.bf16.msra.mxu0 %v2759
    %2780 = vmatprep.subr.bf16.mxu0 %v2736
    %2781 = vmatpush1.bf16.msra.mxu0 %v2735
    %2782 = vmatprep.subr.bf16.mxu0 %v2732
    %2783 = vmatpush1.bf16.msra.mxu0 %v2731
    %2784 = vmatprep.subr.bf16.mxu0 %v2728
    %2785 = vmatpush1.bf16.msra.mxu0 %v2727
    %2786 = vmatprep.subr.bf16.mxu0 0
    %2787 = vmatpush2.bf16.msra.mxu0 0
    %2788 = vmatprep.subr.bf16.mxu0 0
    %2789 = vmatpush2.bf16.msra.mxu0 0
    %2790 = vmatprep.subr.bf16.mxu0 0
    %2791 = vmatpush2.bf16.msra.mxu0 0
    %2792 = vmatprep.subr.bf16.mxu0 0
    %2793 = vmatpush2.bf16.msra.mxu0 0
    %2794 = vmatprep.subr.bf16.mxu0 0
    %2795 = vmatpush2.bf16.msra.mxu0 0
    %2796 = vmatprep.subr.bf16.mxu0 0
    %2797 = vmatpush2.bf16.msra.mxu0 0
    %2798 = vmatprep.subr.bf16.mxu0 0
    %2799 = vmatpush2.bf16.msra.mxu0 0
    %2800 = vmatprep.subr.bf16.mxu0 0
    %2801 = vmatpush2.bf16.msra.mxu0 0
    %2802 = vmatprep.mubr.bf16.mxu0 0
    %2803 = vmatmul.mubr.bf16.gmra.mxu0 %v2756
    %v2804 = vpop.f32.mrf.mxu0
    %v2805 = vadd.f32 0.0, %v2804
    %v2806 = vpop.f32.mrf.mxu0
    %v2807 = vadd.f32 0.0, %v2806
    %v2808 = vpop.f32.mrf.mxu0
    %v2809 = vpop.f32.mrf.mxu0
    %2810 = vdwg.mxu0
    %2811 = vmatprep.subr.bf16.mxu0 0
    %2812 = vmatpush1.bf16.msra.mxu0 0
    %2813 = vmatprep.subr.bf16.mxu0 0
    %2814 = vmatpush1.bf16.msra.mxu0 0
    %2815 = vmatprep.subr.bf16.mxu0 0
    %2816 = vmatpush1.bf16.msra.mxu0 0
    %2817 = vmatprep.subr.bf16.mxu0 0
    %2818 = vmatpush1.bf16.msra.mxu0 0
    %2819 = vmatprep.subr.bf16.mxu0 %v2768
    %2820 = vmatpush1.bf16.msra.mxu0 %v2765
    %2821 = vmatprep.subr.bf16.mxu0 %v2738
    %2822 = vmatpush1.bf16.msra.mxu0 %v2737
    %2823 = vmatprep.subr.bf16.mxu0 %v2734
    %2824 = vmatpush1.bf16.msra.mxu0 %v2733
    %2825 = vmatprep.subr.bf16.mxu0 %v2730
    %2826 = vmatpush1.bf16.msra.mxu0 %v2729
    %2827 = vmatprep.subr.bf16.mxu0 0
    %2828 = vmatpush2.bf16.msra.mxu0 0
    %2829 = vmatprep.subr.bf16.mxu0 0
    %2830 = vmatpush2.bf16.msra.mxu0 0
    %2831 = vmatprep.subr.bf16.mxu0 0
    %2832 = vmatpush2.bf16.msra.mxu0 0
    %2833 = vmatprep.subr.bf16.mxu0 0
    %2834 = vmatpush2.bf16.msra.mxu0 0
    %2835 = vmatprep.subr.bf16.mxu0 0
    %2836 = vmatpush2.bf16.msra.mxu0 0
    %2837 = vmatprep.subr.bf16.mxu0 0
    %2838 = vmatpush2.bf16.msra.mxu0 0
    %2839 = vmatprep.subr.bf16.mxu0 0
    %2840 = vmatpush2.bf16.msra.mxu0 0
    %2841 = vmatprep.subr.bf16.mxu0 0
    %2842 = vmatpush2.bf16.msra.mxu0 0
    %2843 = vmatprep.mubr.bf16.mxu0 0
    %2844 = vmatmul.mubr.bf16.gmra.mxu0 %v2756
    %v2845 = vpop.f32.mrf.mxu0
    %v2846 = vadd.f32 0.0, %v2845
    %v2847 = vpop.f32.mrf.mxu0
    %v2848 = vadd.f32 0.0, %v2847
    %v2849 = vpop.f32.mrf.mxu0
    %v2850 = vpop.f32.mrf.mxu0
    %2851 = vdwg.mxu0
    %v2852 = vadd.f32 %v2665, %v2805
    %v2853 = vadd.f32 %v2666, %v2807
    %v2854 = vadd.f32 %v2667, %v2846
    %v2855 = vadd.f32 %v2668, %v2848
    %v2856 = vld [vmem:[#allocation3 + $0x8] sm:$0x2]
    %s2857 = scalar_lea.vmem %s2, 1008
    %v2858 = vld [vmem:[%s2857] sm:$0xff]
    %v2859 = vld [vmem:[%s2857 + $0x8] sm:$0xff]
    %v2860 = vld [vmem:[%s2857 + $0x10] sm:$0xff]
    %v2861 = vld [vmem:[%s2857 + $0x18] sm:$0xff]
    %v2862 = vld [vmem:[%s2857 + $0x20] sm:$0xff]
    %v2863 = vld [vmem:[%s2857 + $0x28] sm:$0xff]
    %v2864 = vld [vmem:[%s2857 + $0x30] sm:$0xff]
    %v2865 = vld [vmem:[%s2857 + $0x38] sm:$0xff]
    %v2866 = vld [vmem:[%s2857 + $0x40] sm:$0xff]
    %v2867 = vld [vmem:[%s2857 + $0x48] sm:$0xff]
    %v2868 = vld [vmem:[%s2857 + $0x50] sm:$0xff]
    %v2869 = vld [vmem:[%s2857 + $0x58] sm:$0xff]
    %v2870 = vld [vmem:[%s2857 + $0x60] sm:$0x11]
    %v2871 = vld [vmem:[%s2857 + $0x68] sm:$0x11]
    %v2873 = vunpack.c.l.b16 %v2856
    %v2874 = vpack.c.b16 %v2873, %v2873
    %v2875 = vrot.slane %v2874, 1
    %v2890 = vunpack.c.l.b16 %v2858
    %v2891 = vunpack.c.h.b16 %v2858
    %v2892 = vunpack.c.l.b16 %v2859
    %v2893 = vunpack.c.h.b16 %v2859
    %v2894 = vunpack.c.l.b16 %v2860
    %v2895 = vunpack.c.h.b16 %v2860
    %v2896 = vunpack.c.l.b16 %v2861
    %v2897 = vunpack.c.h.b16 %v2861
    %v2898 = vunpack.c.l.b16 %v2862
    %v2899 = vunpack.c.h.b16 %v2862
    %v2900 = vunpack.c.l.b16 %v2863
    %v2901 = vunpack.c.h.b16 %v2863
    %v2902 = vunpack.c.l.b16 %v2864
    %v2903 = vunpack.c.h.b16 %v2864
    %v2904 = vunpack.c.l.b16 %v2865
    %v2905 = vunpack.c.h.b16 %v2865
    %v2906 = vunpack.c.l.b16 %v2866
    %v2907 = vunpack.c.h.b16 %v2866
    %v2908 = vunpack.c.l.b16 %v2867
    %v2909 = vunpack.c.h.b16 %v2867
    %v2910 = vunpack.c.l.b16 %v2868
    %v2911 = vunpack.c.h.b16 %v2868
    %v2912 = vunpack.c.l.b16 %v2869
    %v2913 = vunpack.c.h.b16 %v2869
    %v2914 = vunpack.c.l.b16 %v2870
    %v2915 = vunpack.c.h.b16 %v2870
    %v2916 = vunpack.c.l.b16 %v2871
    %v2917 = vunpack.c.h.b16 %v2871
    %v2918 = vpack.c.b16 %v2894, %v2890
    %v2919 = vpack.c.b16 %v2895, %v2891
    %v2920 = vpack.c.b16 %v2896, %v2892
    %v2921 = vpack.c.b16 %v2897, %v2893
    %v2922 = vpack.c.b16 %v2902, %v2898
    %v2923 = vpack.c.b16 %v2903, %v2899
    %v2924 = vpack.c.b16 %v2904, %v2900
    %v2925 = vpack.c.b16 %v2905, %v2901
    %v2926 = vpack.c.b16 %v2910, %v2906
    %v2927 = vpack.c.b16 %v2911, %v2907
    %v2928 = vpack.c.b16 %v2912, %v2908
    %v2929 = vpack.c.b16 %v2913, %v2909
    %v2930 = vpack.c.b16 %v2914, %v2914
    %v2931 = vpack.c.b16 %v2915, %v2915
    %v2932 = vpack.c.b16 %v2916, %v2916
    %v2933 = vpack.c.b16 %v2917, %v2917
    %v2947 = vsel %vm881, %v2875, 0
    %v2950 = vsel %vm1265, %v2930, 0
    %v2953 = vsel %vm1265, %v2931, 0
    %v2956 = vsel %vm1265, %v2932, 0
    %v2959 = vsel %vm1265, %v2933, 0
    %2961 = vmatprep.subr.bf16.mxu0 0
    %2962 = vmatpush1.bf16.msra.mxu0 0
    %2963 = vmatprep.subr.bf16.mxu0 0
    %2964 = vmatpush1.bf16.msra.mxu0 0
    %2965 = vmatprep.subr.bf16.mxu0 0
    %2966 = vmatpush1.bf16.msra.mxu0 0
    %2967 = vmatprep.subr.bf16.mxu0 0
    %2968 = vmatpush1.bf16.msra.mxu0 0
    %2969 = vmatprep.subr.bf16.mxu0 %v2953
    %2970 = vmatpush1.bf16.msra.mxu0 %v2950
    %2971 = vmatprep.subr.bf16.mxu0 %v2927
    %2972 = vmatpush1.bf16.msra.mxu0 %v2926
    %2973 = vmatprep.subr.bf16.mxu0 %v2923
    %2974 = vmatpush1.bf16.msra.mxu0 %v2922
    %2975 = vmatprep.subr.bf16.mxu0 %v2919
    %2976 = vmatpush1.bf16.msra.mxu0 %v2918
    %2977 = vmatprep.subr.bf16.mxu0 0
    %2978 = vmatpush2.bf16.msra.mxu0 0
    %2979 = vmatprep.subr.bf16.mxu0 0
    %2980 = vmatpush2.bf16.msra.mxu0 0
    %2981 = vmatprep.subr.bf16.mxu0 0
    %2982 = vmatpush2.bf16.msra.mxu0 0
    %2983 = vmatprep.subr.bf16.mxu0 0
    %2984 = vmatpush2.bf16.msra.mxu0 0
    %2985 = vmatprep.subr.bf16.mxu0 0
    %2986 = vmatpush2.bf16.msra.mxu0 0
    %2987 = vmatprep.subr.bf16.mxu0 0
    %2988 = vmatpush2.bf16.msra.mxu0 0
    %2989 = vmatprep.subr.bf16.mxu0 0
    %2990 = vmatpush2.bf16.msra.mxu0 0
    %2991 = vmatprep.subr.bf16.mxu0 0
    %2992 = vmatpush2.bf16.msra.mxu0 0
    %2993 = vmatprep.mubr.bf16.mxu0 0
    %2994 = vmatmul.mubr.bf16.gmra.mxu0 %v2947
    %v2995 = vpop.f32.mrf.mxu0
    %v2996 = vadd.f32 0.0, %v2995
    %v2997 = vpop.f32.mrf.mxu0
    %v2998 = vadd.f32 0.0, %v2997
    %v2999 = vpop.f32.mrf.mxu0
    %v3000 = vpop.f32.mrf.mxu0
    %3001 = vdwg.mxu0
    %3002 = vmatprep.subr.bf16.mxu0 0
    %3003 = vmatpush1.bf16.msra.mxu0 0
    %3004 = vmatprep.subr.bf16.mxu0 0
    %3005 = vmatpush1.bf16.msra.mxu0 0
    %3006 = vmatprep.subr.bf16.mxu0 0
    %3007 = vmatpush1.bf16.msra.mxu0 0
    %3008 = vmatprep.subr.bf16.mxu0 0
    %3009 = vmatpush1.bf16.msra.mxu0 0
    %3010 = vmatprep.subr.bf16.mxu0 %v2959
    %3011 = vmatpush1.bf16.msra.mxu0 %v2956
    %3012 = vmatprep.subr.bf16.mxu0 %v2929
    %3013 = vmatpush1.bf16.msra.mxu0 %v2928
    %3014 = vmatprep.subr.bf16.mxu0 %v2925
    %3015 = vmatpush1.bf16.msra.mxu0 %v2924
    %3016 = vmatprep.subr.bf16.mxu0 %v2921
    %3017 = vmatpush1.bf16.msra.mxu0 %v2920
    %3018 = vmatprep.subr.bf16.mxu0 0
    %3019 = vmatpush2.bf16.msra.mxu0 0
    %3020 = vmatprep.subr.bf16.mxu0 0
    %3021 = vmatpush2.bf16.msra.mxu0 0
    %3022 = vmatprep.subr.bf16.mxu0 0
    %3023 = vmatpush2.bf16.msra.mxu0 0
    %3024 = vmatprep.subr.bf16.mxu0 0
    %3025 = vmatpush2.bf16.msra.mxu0 0
    %3026 = vmatprep.subr.bf16.mxu0 0
    %3027 = vmatpush2.bf16.msra.mxu0 0
    %3028 = vmatprep.subr.bf16.mxu0 0
    %3029 = vmatpush2.bf16.msra.mxu0 0
    %3030 = vmatprep.subr.bf16.mxu0 0
    %3031 = vmatpush2.bf16.msra.mxu0 0
    %3032 = vmatprep.subr.bf16.mxu0 0
    %3033 = vmatpush2.bf16.msra.mxu0 0
    %3034 = vmatprep.mubr.bf16.mxu0 0
    %3035 = vmatmul.mubr.bf16.gmra.mxu0 %v2947
    %v3036 = vpop.f32.mrf.mxu0
    %v3037 = vadd.f32 0.0, %v3036
    %v3038 = vpop.f32.mrf.mxu0
    %v3039 = vadd.f32 0.0, %v3038
    %v3040 = vpop.f32.mrf.mxu0
    %v3041 = vpop.f32.mrf.mxu0
    %3042 = vdwg.mxu0
    %v3043 = vadd.f32 %v2852, %v2996
    %v3044 = vadd.f32 %v2853, %v2998
    %v3045 = vadd.f32 %v2854, %v3037
    %v3046 = vadd.f32 %v2855, %v3039
    %v3047 = vld [vmem:[#allocation3 + $0x8] sm:$0x4]
    %s3048 = scalar_lea.vmem %s2, 1120
    %v3049 = vld [vmem:[%s3048] sm:$0xff]
    %v3050 = vld [vmem:[%s3048 + $0x8] sm:$0xff]
    %v3051 = vld [vmem:[%s3048 + $0x10] sm:$0xff]
    %v3052 = vld [vmem:[%s3048 + $0x18] sm:$0xff]
    %v3053 = vld [vmem:[%s3048 + $0x20] sm:$0xff]
    %v3054 = vld [vmem:[%s3048 + $0x28] sm:$0xff]
    %v3055 = vld [vmem:[%s3048 + $0x30] sm:$0xff]
    %v3056 = vld [vmem:[%s3048 + $0x38] sm:$0xff]
    %v3057 = vld [vmem:[%s3048 + $0x40] sm:$0xff]
    %v3058 = vld [vmem:[%s3048 + $0x48] sm:$0xff]
    %v3059 = vld [vmem:[%s3048 + $0x50] sm:$0xff]
    %v3060 = vld [vmem:[%s3048 + $0x58] sm:$0xff]
    %v3061 = vld [vmem:[%s3048 + $0x60] sm:$0x11]
    %v3062 = vld [vmem:[%s3048 + $0x68] sm:$0x11]
    %v3064 = vunpack.c.l.b16 %v3047
    %v3065 = vpack.c.b16 %v3064, %v3064
    %v3066 = vrot.slane %v3065, 2
    %v3081 = vunpack.c.l.b16 %v3049
    %v3082 = vunpack.c.h.b16 %v3049
    %v3083 = vunpack.c.l.b16 %v3050
    %v3084 = vunpack.c.h.b16 %v3050
    %v3085 = vunpack.c.l.b16 %v3051
    %v3086 = vunpack.c.h.b16 %v3051
    %v3087 = vunpack.c.l.b16 %v3052
    %v3088 = vunpack.c.h.b16 %v3052
    %v3089 = vunpack.c.l.b16 %v3053
    %v3090 = vunpack.c.h.b16 %v3053
    %v3091 = vunpack.c.l.b16 %v3054
    %v3092 = vunpack.c.h.b16 %v3054
    %v3093 = vunpack.c.l.b16 %v3055
    %v3094 = vunpack.c.h.b16 %v3055
    %v3095 = vunpack.c.l.b16 %v3056
    %v3096 = vunpack.c.h.b16 %v3056
    %v3097 = vunpack.c.l.b16 %v3057
    %v3098 = vunpack.c.h.b16 %v3057
    %v3099 = vunpack.c.l.b16 %v3058
    %v3100 = vunpack.c.h.b16 %v3058
    %v3101 = vunpack.c.l.b16 %v3059
    %v3102 = vunpack.c.h.b16 %v3059
    %v3103 = vunpack.c.l.b16 %v3060
    %v3104 = vunpack.c.h.b16 %v3060
    %v3105 = vunpack.c.l.b16 %v3061
    %v3106 = vunpack.c.h.b16 %v3061
    %v3107 = vunpack.c.l.b16 %v3062
    %v3108 = vunpack.c.h.b16 %v3062
    %v3109 = vpack.c.b16 %v3085, %v3081
    %v3110 = vpack.c.b16 %v3086, %v3082
    %v3111 = vpack.c.b16 %v3087, %v3083
    %v3112 = vpack.c.b16 %v3088, %v3084
    %v3113 = vpack.c.b16 %v3093, %v3089
    %v3114 = vpack.c.b16 %v3094, %v3090
    %v3115 = vpack.c.b16 %v3095, %v3091
    %v3116 = vpack.c.b16 %v3096, %v3092
    %v3117 = vpack.c.b16 %v3101, %v3097
    %v3118 = vpack.c.b16 %v3102, %v3098
    %v3119 = vpack.c.b16 %v3103, %v3099
    %v3120 = vpack.c.b16 %v3104, %v3100
    %v3121 = vpack.c.b16 %v3105, %v3105
    %v3122 = vpack.c.b16 %v3106, %v3106
    %v3123 = vpack.c.b16 %v3107, %v3107
    %v3124 = vpack.c.b16 %v3108, %v3108
    %v3138 = vsel %vm881, %v3066, 0
    %v3141 = vsel %vm1265, %v3121, 0
    %v3144 = vsel %vm1265, %v3122, 0
    %v3147 = vsel %vm1265, %v3123, 0
    %v3150 = vsel %vm1265, %v3124, 0
    %3152 = vmatprep.subr.bf16.mxu0 0
    %3153 = vmatpush1.bf16.msra.mxu0 0
    %3154 = vmatprep.subr.bf16.mxu0 0
    %3155 = vmatpush1.bf16.msra.mxu0 0
    %3156 = vmatprep.subr.bf16.mxu0 0
    %3157 = vmatpush1.bf16.msra.mxu0 0
    %3158 = vmatprep.subr.bf16.mxu0 0
    %3159 = vmatpush1.bf16.msra.mxu0 0
    %3160 = vmatprep.subr.bf16.mxu0 %v3144
    %3161 = vmatpush1.bf16.msra.mxu0 %v3141
    %3162 = vmatprep.subr.bf16.mxu0 %v3118
    %3163 = vmatpush1.bf16.msra.mxu0 %v3117
    %3164 = vmatprep.subr.bf16.mxu0 %v3114
    %3165 = vmatpush1.bf16.msra.mxu0 %v3113
    %3166 = vmatprep.subr.bf16.mxu0 %v3110
    %3167 = vmatpush1.bf16.msra.mxu0 %v3109
    %3168 = vmatprep.subr.bf16.mxu0 0
    %3169 = vmatpush2.bf16.msra.mxu0 0
    %3170 = vmatprep.subr.bf16.mxu0 0
    %3171 = vmatpush2.bf16.msra.mxu0 0
    %3172 = vmatprep.subr.bf16.mxu0 0
    %3173 = vmatpush2.bf16.msra.mxu0 0
    %3174 = vmatprep.subr.bf16.mxu0 0
    %3175 = vmatpush2.bf16.msra.mxu0 0
    %3176 = vmatprep.subr.bf16.mxu0 0
    %3177 = vmatpush2.bf16.msra.mxu0 0
    %3178 = vmatprep.subr.bf16.mxu0 0
    %3179 = vmatpush2.bf16.msra.mxu0 0
    %3180 = vmatprep.subr.bf16.mxu0 0
    %3181 = vmatpush2.bf16.msra.mxu0 0
    %3182 = vmatprep.subr.bf16.mxu0 0
    %3183 = vmatpush2.bf16.msra.mxu0 0
    %3184 = vmatprep.mubr.bf16.mxu0 0
    %3185 = vmatmul.mubr.bf16.gmra.mxu0 %v3138
    %v3186 = vpop.f32.mrf.mxu0
    %v3187 = vadd.f32 0.0, %v3186
    %v3188 = vpop.f32.mrf.mxu0
    %v3189 = vadd.f32 0.0, %v3188
    %v3190 = vpop.f32.mrf.mxu0
    %v3191 = vpop.f32.mrf.mxu0
    %3192 = vdwg.mxu0
    %3193 = vmatprep.subr.bf16.mxu0 0
    %3194 = vmatpush1.bf16.msra.mxu0 0
    %3195 = vmatprep.subr.bf16.mxu0 0
    %3196 = vmatpush1.bf16.msra.mxu0 0
    %3197 = vmatprep.subr.bf16.mxu0 0
    %3198 = vmatpush1.bf16.msra.mxu0 0
    %3199 = vmatprep.subr.bf16.mxu0 0
    %3200 = vmatpush1.bf16.msra.mxu0 0
    %3201 = vmatprep.subr.bf16.mxu0 %v3150
    %3202 = vmatpush1.bf16.msra.mxu0 %v3147
    %3203 = vmatprep.subr.bf16.mxu0 %v3120
    %3204 = vmatpush1.bf16.msra.mxu0 %v3119
    %3205 = vmatprep.subr.bf16.mxu0 %v3116
    %3206 = vmatpush1.bf16.msra.mxu0 %v3115
    %3207 = vmatprep.subr.bf16.mxu0 %v3112
    %3208 = vmatpush1.bf16.msra.mxu0 %v3111
    %3209 = vmatprep.subr.bf16.mxu0 0
    %3210 = vmatpush2.bf16.msra.mxu0 0
    %3211 = vmatprep.subr.bf16.mxu0 0
    %3212 = vmatpush2.bf16.msra.mxu0 0
    %3213 = vmatprep.subr.bf16.mxu0 0
    %3214 = vmatpush2.bf16.msra.mxu0 0
    %3215 = vmatprep.subr.bf16.mxu0 0
    %3216 = vmatpush2.bf16.msra.mxu0 0
    %3217 = vmatprep.subr.bf16.mxu0 0
    %3218 = vmatpush2.bf16.msra.mxu0 0
    %3219 = vmatprep.subr.bf16.mxu0 0
    %3220 = vmatpush2.bf16.msra.mxu0 0
    %3221 = vmatprep.subr.bf16.mxu0 0
    %3222 = vmatpush2.bf16.msra.mxu0 0
    %3223 = vmatprep.subr.bf16.mxu0 0
    %3224 = vmatpush2.bf16.msra.mxu0 0
    %3225 = vmatprep.mubr.bf16.mxu0 0
    %3226 = vmatmul.mubr.bf16.gmra.mxu0 %v3138
    %v3227 = vpop.f32.mrf.mxu0
    %v3228 = vadd.f32 0.0, %v3227
    %v3229 = vpop.f32.mrf.mxu0
    %v3230 = vadd.f32 0.0, %v3229
    %v3231 = vpop.f32.mrf.mxu0
    %v3232 = vpop.f32.mrf.mxu0
    %3233 = vdwg.mxu0
    %v3234 = vadd.f32 %v3043, %v3187
    %v3235 = vadd.f32 %v3044, %v3189
    %v3236 = vadd.f32 %v3045, %v3228
    %v3237 = vadd.f32 %v3046, %v3230
    %v3238 = vld [vmem:[#allocation3 + $0x8] sm:$0x8]
    %s3239 = scalar_lea.vmem %s2, 1232
    %v3240 = vld [vmem:[%s3239] sm:$0xff]
    %v3241 = vld [vmem:[%s3239 + $0x8] sm:$0xff]
    %v3242 = vld [vmem:[%s3239 + $0x10] sm:$0xff]
    %v3243 = vld [vmem:[%s3239 + $0x18] sm:$0xff]
    %v3244 = vld [vmem:[%s3239 + $0x20] sm:$0xff]
    %v3245 = vld [vmem:[%s3239 + $0x28] sm:$0xff]
    %v3246 = vld [vmem:[%s3239 + $0x30] sm:$0xff]
    %v3247 = vld [vmem:[%s3239 + $0x38] sm:$0xff]
    %v3248 = vld [vmem:[%s3239 + $0x40] sm:$0xff]
    %v3249 = vld [vmem:[%s3239 + $0x48] sm:$0xff]
    %v3250 = vld [vmem:[%s3239 + $0x50] sm:$0xff]
    %v3251 = vld [vmem:[%s3239 + $0x58] sm:$0xff]
    %v3252 = vld [vmem:[%s3239 + $0x60] sm:$0x11]
    %v3253 = vld [vmem:[%s3239 + $0x68] sm:$0x11]
    %v3255 = vunpack.c.l.b16 %v3238
    %v3256 = vpack.c.b16 %v3255, %v3255
    %v3257 = vrot.slane %v3256, 3
    %v3272 = vunpack.c.l.b16 %v3240
    %v3273 = vunpack.c.h.b16 %v3240
    %v3274 = vunpack.c.l.b16 %v3241
    %v3275 = vunpack.c.h.b16 %v3241
    %v3276 = vunpack.c.l.b16 %v3242
    %v3277 = vunpack.c.h.b16 %v3242
    %v3278 = vunpack.c.l.b16 %v3243
    %v3279 = vunpack.c.h.b16 %v3243
    %v3280 = vunpack.c.l.b16 %v3244
    %v3281 = vunpack.c.h.b16 %v3244
    %v3282 = vunpack.c.l.b16 %v3245
    %v3283 = vunpack.c.h.b16 %v3245
    %v3284 = vunpack.c.l.b16 %v3246
    %v3285 = vunpack.c.h.b16 %v3246
    %v3286 = vunpack.c.l.b16 %v3247
    %v3287 = vunpack.c.h.b16 %v3247
    %v3288 = vunpack.c.l.b16 %v3248
    %v3289 = vunpack.c.h.b16 %v3248
    %v3290 = vunpack.c.l.b16 %v3249
    %v3291 = vunpack.c.h.b16 %v3249
    %v3292 = vunpack.c.l.b16 %v3250
    %v3293 = vunpack.c.h.b16 %v3250
    %v3294 = vunpack.c.l.b16 %v3251
    %v3295 = vunpack.c.h.b16 %v3251
    %v3296 = vunpack.c.l.b16 %v3252
    %v3297 = vunpack.c.h.b16 %v3252
    %v3298 = vunpack.c.l.b16 %v3253
    %v3299 = vunpack.c.h.b16 %v3253
    %v3300 = vpack.c.b16 %v3276, %v3272
    %v3301 = vpack.c.b16 %v3277, %v3273
    %v3302 = vpack.c.b16 %v3278, %v3274
    %v3303 = vpack.c.b16 %v3279, %v3275
    %v3304 = vpack.c.b16 %v3284, %v3280
    %v3305 = vpack.c.b16 %v3285, %v3281
    %v3306 = vpack.c.b16 %v3286, %v3282
    %v3307 = vpack.c.b16 %v3287, %v3283
    %v3308 = vpack.c.b16 %v3292, %v3288
    %v3309 = vpack.c.b16 %v3293, %v3289
    %v3310 = vpack.c.b16 %v3294, %v3290
    %v3311 = vpack.c.b16 %v3295, %v3291
    %v3312 = vpack.c.b16 %v3296, %v3296
    %v3313 = vpack.c.b16 %v3297, %v3297
    %v3314 = vpack.c.b16 %v3298, %v3298
    %v3315 = vpack.c.b16 %v3299, %v3299
    %v3329 = vsel %vm881, %v3257, 0
    %v3332 = vsel %vm1265, %v3312, 0
    %v3335 = vsel %vm1265, %v3313, 0
    %v3338 = vsel %vm1265, %v3314, 0
    %v3341 = vsel %vm1265, %v3315, 0
    %3343 = vmatprep.subr.bf16.mxu0 0
    %3344 = vmatpush1.bf16.msra.mxu0 0
    %3345 = vmatprep.subr.bf16.mxu0 0
    %3346 = vmatpush1.bf16.msra.mxu0 0
    %3347 = vmatprep.subr.bf16.mxu0 0
    %3348 = vmatpush1.bf16.msra.mxu0 0
    %3349 = vmatprep.subr.bf16.mxu0 0
    %3350 = vmatpush1.bf16.msra.mxu0 0
    %3351 = vmatprep.subr.bf16.mxu0 %v3335
    %3352 = vmatpush1.bf16.msra.mxu0 %v3332
    %3353 = vmatprep.subr.bf16.mxu0 %v3309
    %3354 = vmatpush1.bf16.msra.mxu0 %v3308
    %3355 = vmatprep.subr.bf16.mxu0 %v3305
    %3356 = vmatpush1.bf16.msra.mxu0 %v3304
    %3357 = vmatprep.subr.bf16.mxu0 %v3301
    %3358 = vmatpush1.bf16.msra.mxu0 %v3300
    %3359 = vmatprep.subr.bf16.mxu0 0
    %3360 = vmatpush2.bf16.msra.mxu0 0
    %3361 = vmatprep.subr.bf16.mxu0 0
    %3362 = vmatpush2.bf16.msra.mxu0 0
    %3363 = vmatprep.subr.bf16.mxu0 0
    %3364 = vmatpush2.bf16.msra.mxu0 0
    %3365 = vmatprep.subr.bf16.mxu0 0
    %3366 = vmatpush2.bf16.msra.mxu0 0
    %3367 = vmatprep.subr.bf16.mxu0 0
    %3368 = vmatpush2.bf16.msra.mxu0 0
    %3369 = vmatprep.subr.bf16.mxu0 0
    %3370 = vmatpush2.bf16.msra.mxu0 0
    %3371 = vmatprep.subr.bf16.mxu0 0
    %3372 = vmatpush2.bf16.msra.mxu0 0
    %3373 = vmatprep.subr.bf16.mxu0 0
    %3374 = vmatpush2.bf16.msra.mxu0 0
    %3375 = vmatprep.mubr.bf16.mxu0 0
    %3376 = vmatmul.mubr.bf16.gmra.mxu0 %v3329
    %v3377 = vpop.f32.mrf.mxu0
    %v3378 = vadd.f32 0.0, %v3377
    %v3379 = vpop.f32.mrf.mxu0
    %v3380 = vadd.f32 0.0, %v3379
    %v3381 = vpop.f32.mrf.mxu0
    %v3382 = vpop.f32.mrf.mxu0
    %3383 = vdwg.mxu0
    %3384 = vmatprep.subr.bf16.mxu0 0
    %3385 = vmatpush1.bf16.msra.mxu0 0
    %3386 = vmatprep.subr.bf16.mxu0 0
    %3387 = vmatpush1.bf16.msra.mxu0 0
    %3388 = vmatprep.subr.bf16.mxu0 0
    %3389 = vmatpush1.bf16.msra.mxu0 0
    %3390 = vmatprep.subr.bf16.mxu0 0
    %3391 = vmatpush1.bf16.msra.mxu0 0
    %3392 = vmatprep.subr.bf16.mxu0 %v3341
    %3393 = vmatpush1.bf16.msra.mxu0 %v3338
    %3394 = vmatprep.subr.bf16.mxu0 %v3311
    %3395 = vmatpush1.bf16.msra.mxu0 %v3310
    %3396 = vmatprep.subr.bf16.mxu0 %v3307
    %3397 = vmatpush1.bf16.msra.mxu0 %v3306
    %3398 = vmatprep.subr.bf16.mxu0 %v3303
    %3399 = vmatpush1.bf16.msra.mxu0 %v3302
    %3400 = vmatprep.subr.bf16.mxu0 0
    %3401 = vmatpush2.bf16.msra.mxu0 0
    %3402 = vmatprep.subr.bf16.mxu0 0
    %3403 = vmatpush2.bf16.msra.mxu0 0
    %3404 = vmatprep.subr.bf16.mxu0 0
    %3405 = vmatpush2.bf16.msra.mxu0 0
    %3406 = vmatprep.subr.bf16.mxu0 0
    %3407 = vmatpush2.bf16.msra.mxu0 0
    %3408 = vmatprep.subr.bf16.mxu0 0
    %3409 = vmatpush2.bf16.msra.mxu0 0
    %3410 = vmatprep.subr.bf16.mxu0 0
    %3411 = vmatpush2.bf16.msra.mxu0 0
    %3412 = vmatprep.subr.bf16.mxu0 0
    %3413 = vmatpush2.bf16.msra.mxu0 0
    %3414 = vmatprep.subr.bf16.mxu0 0
    %3415 = vmatpush2.bf16.msra.mxu0 0
    %3416 = vmatprep.mubr.bf16.mxu0 0
    %3417 = vmatmul.mubr.bf16.gmra.mxu0 %v3329
    %v3418 = vpop.f32.mrf.mxu0
    %v3419 = vadd.f32 0.0, %v3418
    %v3420 = vpop.f32.mrf.mxu0
    %v3421 = vadd.f32 0.0, %v3420
    %v3422 = vpop.f32.mrf.mxu0
    %v3423 = vpop.f32.mrf.mxu0
    %3424 = vdwg.mxu0
    %v3425 = vadd.f32 %v3234, %v3378
    %v3426 = vadd.f32 %v3235, %v3380
    %v3427 = vadd.f32 %v3236, %v3419
    %v3428 = vadd.f32 %v3237, %v3421
    %v3429 = vld [vmem:[#allocation3 + $0xc] sm:$0x1]
    %s3430 = scalar_lea.vmem %s2, 1344
    %v3431 = vld [vmem:[%s3430] sm:$0xff]
    %v3432 = vld [vmem:[%s3430 + $0x8] sm:$0xff]
    %v3433 = vld [vmem:[%s3430 + $0x10] sm:$0xff]
    %v3434 = vld [vmem:[%s3430 + $0x18] sm:$0xff]
    %v3435 = vld [vmem:[%s3430 + $0x20] sm:$0xff]
    %v3436 = vld [vmem:[%s3430 + $0x28] sm:$0xff]
    %v3437 = vld [vmem:[%s3430 + $0x30] sm:$0xff]
    %v3438 = vld [vmem:[%s3430 + $0x38] sm:$0xff]
    %v3439 = vld [vmem:[%s3430 + $0x40] sm:$0xff]
    %v3440 = vld [vmem:[%s3430 + $0x48] sm:$0xff]
    %v3441 = vld [vmem:[%s3430 + $0x50] sm:$0xff]
    %v3442 = vld [vmem:[%s3430 + $0x58] sm:$0xff]
    %v3443 = vld [vmem:[%s3430 + $0x60] sm:$0x11]
    %v3444 = vld [vmem:[%s3430 + $0x68] sm:$0x11]
    %v3459 = vunpack.c.l.b16 %v3431
    %v3460 = vunpack.c.h.b16 %v3431
    %v3461 = vunpack.c.l.b16 %v3432
    %v3462 = vunpack.c.h.b16 %v3432
    %v3463 = vunpack.c.l.b16 %v3433
    %v3464 = vunpack.c.h.b16 %v3433
    %v3465 = vunpack.c.l.b16 %v3434
    %v3466 = vunpack.c.h.b16 %v3434
    %v3467 = vunpack.c.l.b16 %v3435
    %v3468 = vunpack.c.h.b16 %v3435
    %v3469 = vunpack.c.l.b16 %v3436
    %v3470 = vunpack.c.h.b16 %v3436
    %v3471 = vunpack.c.l.b16 %v3437
    %v3472 = vunpack.c.h.b16 %v3437
    %v3473 = vunpack.c.l.b16 %v3438
    %v3474 = vunpack.c.h.b16 %v3438
    %v3475 = vunpack.c.l.b16 %v3439
    %v3476 = vunpack.c.h.b16 %v3439
    %v3477 = vunpack.c.l.b16 %v3440
    %v3478 = vunpack.c.h.b16 %v3440
    %v3479 = vunpack.c.l.b16 %v3441
    %v3480 = vunpack.c.h.b16 %v3441
    %v3481 = vunpack.c.l.b16 %v3442
    %v3482 = vunpack.c.h.b16 %v3442
    %v3483 = vunpack.c.l.b16 %v3443
    %v3484 = vunpack.c.h.b16 %v3443
    %v3485 = vunpack.c.l.b16 %v3444
    %v3486 = vunpack.c.h.b16 %v3444
    %v3487 = vpack.c.b16 %v3463, %v3459
    %v3488 = vpack.c.b16 %v3464, %v3460
    %v3489 = vpack.c.b16 %v3465, %v3461
    %v3490 = vpack.c.b16 %v3466, %v3462
    %v3491 = vpack.c.b16 %v3471, %v3467
    %v3492 = vpack.c.b16 %v3472, %v3468
    %v3493 = vpack.c.b16 %v3473, %v3469
    %v3494 = vpack.c.b16 %v3474, %v3470
    %v3495 = vpack.c.b16 %v3479, %v3475
    %v3496 = vpack.c.b16 %v3480, %v3476
    %v3497 = vpack.c.b16 %v3481, %v3477
    %v3498 = vpack.c.b16 %v3482, %v3478
    %v3499 = vpack.c.b16 %v3483, %v3483
    %v3500 = vpack.c.b16 %v3484, %v3484
    %v3501 = vpack.c.b16 %v3485, %v3485
    %v3502 = vpack.c.b16 %v3486, %v3486
    %v3516 = vsel %vm881, %v3429, 0
    %v3519 = vsel %vm1265, %v3499, 0
    %v3522 = vsel %vm1265, %v3500, 0
    %v3525 = vsel %vm1265, %v3501, 0
    %v3528 = vsel %vm1265, %v3502, 0
    %3530 = vmatprep.subr.bf16.mxu0 0
    %3531 = vmatpush1.bf16.msra.mxu0 0
    %3532 = vmatprep.subr.bf16.mxu0 0
    %3533 = vmatpush1.bf16.msra.mxu0 0
    %3534 = vmatprep.subr.bf16.mxu0 0
    %3535 = vmatpush1.bf16.msra.mxu0 0
    %3536 = vmatprep.subr.bf16.mxu0 0
    %3537 = vmatpush1.bf16.msra.mxu0 0
    %3538 = vmatprep.subr.bf16.mxu0 %v3522
    %3539 = vmatpush1.bf16.msra.mxu0 %v3519
    %3540 = vmatprep.subr.bf16.mxu0 %v3496
    %3541 = vmatpush1.bf16.msra.mxu0 %v3495
    %3542 = vmatprep.subr.bf16.mxu0 %v3492
    %3543 = vmatpush1.bf16.msra.mxu0 %v3491
    %3544 = vmatprep.subr.bf16.mxu0 %v3488
    %3545 = vmatpush1.bf16.msra.mxu0 %v3487
    %3546 = vmatprep.subr.bf16.mxu0 0
    %3547 = vmatpush2.bf16.msra.mxu0 0
    %3548 = vmatprep.subr.bf16.mxu0 0
    %3549 = vmatpush2.bf16.msra.mxu0 0
    %3550 = vmatprep.subr.bf16.mxu0 0
    %3551 = vmatpush2.bf16.msra.mxu0 0
    %3552 = vmatprep.subr.bf16.mxu0 0
    %3553 = vmatpush2.bf16.msra.mxu0 0
    %3554 = vmatprep.subr.bf16.mxu0 0
    %3555 = vmatpush2.bf16.msra.mxu0 0
    %3556 = vmatprep.subr.bf16.mxu0 0
    %3557 = vmatpush2.bf16.msra.mxu0 0
    %3558 = vmatprep.subr.bf16.mxu0 0
    %3559 = vmatpush2.bf16.msra.mxu0 0
    %3560 = vmatprep.subr.bf16.mxu0 0
    %3561 = vmatpush2.bf16.msra.mxu0 0
    %3562 = vmatprep.mubr.bf16.mxu0 0
    %3563 = vmatmul.mubr.bf16.gmra.mxu0 %v3516
    %v3564 = vpop.f32.mrf.mxu0
    %v3565 = vadd.f32 0.0, %v3564
    %v3566 = vpop.f32.mrf.mxu0
    %v3567 = vadd.f32 0.0, %v3566
    %v3568 = vpop.f32.mrf.mxu0
    %v3569 = vpop.f32.mrf.mxu0
    %3570 = vdwg.mxu0
    %3571 = vmatprep.subr.bf16.mxu0 0
    %3572 = vmatpush1.bf16.msra.mxu0 0
    %3573 = vmatprep.subr.bf16.mxu0 0
    %3574 = vmatpush1.bf16.msra.mxu0 0
    %3575 = vmatprep.subr.bf16.mxu0 0
    %3576 = vmatpush1.bf16.msra.mxu0 0
    %3577 = vmatprep.subr.bf16.mxu0 0
    %3578 = vmatpush1.bf16.msra.mxu0 0
    %3579 = vmatprep.subr.bf16.mxu0 %v3528
    %3580 = vmatpush1.bf16.msra.mxu0 %v3525
    %3581 = vmatprep.subr.bf16.mxu0 %v3498
    %3582 = vmatpush1.bf16.msra.mxu0 %v3497
    %3583 = vmatprep.subr.bf16.mxu0 %v3494
    %3584 = vmatpush1.bf16.msra.mxu0 %v3493
    %3585 = vmatprep.subr.bf16.mxu0 %v3490
    %3586 = vmatpush1.bf16.msra.mxu0 %v3489
    %3587 = vmatprep.subr.bf16.mxu0 0
    %3588 = vmatpush2.bf16.msra.mxu0 0
    %3589 = vmatprep.subr.bf16.mxu0 0
    %3590 = vmatpush2.bf16.msra.mxu0 0
    %3591 = vmatprep.subr.bf16.mxu0 0
    %3592 = vmatpush2.bf16.msra.mxu0 0
    %3593 = vmatprep.subr.bf16.mxu0 0
    %3594 = vmatpush2.bf16.msra.mxu0 0
    %3595 = vmatprep.subr.bf16.mxu0 0
    %3596 = vmatpush2.bf16.msra.mxu0 0
    %3597 = vmatprep.subr.bf16.mxu0 0
    %3598 = vmatpush2.bf16.msra.mxu0 0
    %3599 = vmatprep.subr.bf16.mxu0 0
    %3600 = vmatpush2.bf16.msra.mxu0 0
    %3601 = vmatprep.subr.bf16.mxu0 0
    %3602 = vmatpush2.bf16.msra.mxu0 0
    %3603 = vmatprep.mubr.bf16.mxu0 0
    %3604 = vmatmul.mubr.bf16.gmra.mxu0 %v3516
    %v3605 = vpop.f32.mrf.mxu0
    %v3606 = vadd.f32 0.0, %v3605
    %v3607 = vpop.f32.mrf.mxu0
    %v3608 = vadd.f32 0.0, %v3607
    %v3609 = vpop.f32.mrf.mxu0
    %v3610 = vpop.f32.mrf.mxu0
    %3611 = vdwg.mxu0
    %v3612 = vadd.f32 %v3425, %v3565
    %v3613 = vadd.f32 %v3426, %v3567
    %v3614 = vadd.f32 %v3427, %v3606
    %v3615 = vadd.f32 %v3428, %v3608
    %v3616 = vld [vmem:[#allocation3 + $0xc] sm:$0x2]
    %s3617 = scalar_lea.vmem %s2, 1456
    %v3618 = vld [vmem:[%s3617] sm:$0xff]
    %v3619 = vld [vmem:[%s3617 + $0x8] sm:$0xff]
    %v3620 = vld [vmem:[%s3617 + $0x10] sm:$0xff]
    %v3621 = vld [vmem:[%s3617 + $0x18] sm:$0xff]
    %v3622 = vld [vmem:[%s3617 + $0x20] sm:$0xff]
    %v3623 = vld [vmem:[%s3617 + $0x28] sm:$0xff]
    %v3624 = vld [vmem:[%s3617 + $0x30] sm:$0xff]
    %v3625 = vld [vmem:[%s3617 + $0x38] sm:$0xff]
    %v3626 = vld [vmem:[%s3617 + $0x40] sm:$0xff]
    %v3627 = vld [vmem:[%s3617 + $0x48] sm:$0xff]
    %v3628 = vld [vmem:[%s3617 + $0x50] sm:$0xff]
    %v3629 = vld [vmem:[%s3617 + $0x58] sm:$0xff]
    %v3630 = vld [vmem:[%s3617 + $0x60] sm:$0x11]
    %v3631 = vld [vmem:[%s3617 + $0x68] sm:$0x11]
    %v3633 = vunpack.c.l.b16 %v3616
    %v3634 = vpack.c.b16 %v3633, %v3633
    %v3635 = vrot.slane %v3634, 1
    %v3650 = vunpack.c.l.b16 %v3618
    %v3651 = vunpack.c.h.b16 %v3618
    %v3652 = vunpack.c.l.b16 %v3619
    %v3653 = vunpack.c.h.b16 %v3619
    %v3654 = vunpack.c.l.b16 %v3620
    %v3655 = vunpack.c.h.b16 %v3620
    %v3656 = vunpack.c.l.b16 %v3621
    %v3657 = vunpack.c.h.b16 %v3621
    %v3658 = vunpack.c.l.b16 %v3622
    %v3659 = vunpack.c.h.b16 %v3622
    %v3660 = vunpack.c.l.b16 %v3623
    %v3661 = vunpack.c.h.b16 %v3623
    %v3662 = vunpack.c.l.b16 %v3624
    %v3663 = vunpack.c.h.b16 %v3624
    %v3664 = vunpack.c.l.b16 %v3625
    %v3665 = vunpack.c.h.b16 %v3625
    %v3666 = vunpack.c.l.b16 %v3626
    %v3667 = vunpack.c.h.b16 %v3626
    %v3668 = vunpack.c.l.b16 %v3627
    %v3669 = vunpack.c.h.b16 %v3627
    %v3670 = vunpack.c.l.b16 %v3628
    %v3671 = vunpack.c.h.b16 %v3628
    %v3672 = vunpack.c.l.b16 %v3629
    %v3673 = vunpack.c.h.b16 %v3629
    %v3674 = vunpack.c.l.b16 %v3630
    %v3675 = vunpack.c.h.b16 %v3630
    %v3676 = vunpack.c.l.b16 %v3631
    %v3677 = vunpack.c.h.b16 %v3631
    %v3678 = vpack.c.b16 %v3654, %v3650
    %v3679 = vpack.c.b16 %v3655, %v3651
    %v3680 = vpack.c.b16 %v3656, %v3652
    %v3681 = vpack.c.b16 %v3657, %v3653
    %v3682 = vpack.c.b16 %v3662, %v3658
    %v3683 = vpack.c.b16 %v3663, %v3659
    %v3684 = vpack.c.b16 %v3664, %v3660
    %v3685 = vpack.c.b16 %v3665, %v3661
    %v3686 = vpack.c.b16 %v3670, %v3666
    %v3687 = vpack.c.b16 %v3671, %v3667
    %v3688 = vpack.c.b16 %v3672, %v3668
    %v3689 = vpack.c.b16 %v3673, %v3669
    %v3690 = vpack.c.b16 %v3674, %v3674
    %v3691 = vpack.c.b16 %v3675, %v3675
    %v3692 = vpack.c.b16 %v3676, %v3676
    %v3693 = vpack.c.b16 %v3677, %v3677
    %v3707 = vsel %vm881, %v3635, 0
    %v3710 = vsel %vm1265, %v3690, 0
    %v3713 = vsel %vm1265, %v3691, 0
    %v3716 = vsel %vm1265, %v3692, 0
    %v3719 = vsel %vm1265, %v3693, 0
    %3721 = vmatprep.subr.bf16.mxu0 0
    %3722 = vmatpush1.bf16.msra.mxu0 0
    %3723 = vmatprep.subr.bf16.mxu0 0
    %3724 = vmatpush1.bf16.msra.mxu0 0
    %3725 = vmatprep.subr.bf16.mxu0 0
    %3726 = vmatpush1.bf16.msra.mxu0 0
    %3727 = vmatprep.subr.bf16.mxu0 0
    %3728 = vmatpush1.bf16.msra.mxu0 0
    %3729 = vmatprep.subr.bf16.mxu0 %v3713
    %3730 = vmatpush1.bf16.msra.mxu0 %v3710
    %3731 = vmatprep.subr.bf16.mxu0 %v3687
    %3732 = vmatpush1.bf16.msra.mxu0 %v3686
    %3733 = vmatprep.subr.bf16.mxu0 %v3683
    %3734 = vmatpush1.bf16.msra.mxu0 %v3682
    %3735 = vmatprep.subr.bf16.mxu0 %v3679
    %3736 = vmatpush1.bf16.msra.mxu0 %v3678
    %3737 = vmatprep.subr.bf16.mxu0 0
    %3738 = vmatpush2.bf16.msra.mxu0 0
    %3739 = vmatprep.subr.bf16.mxu0 0
    %3740 = vmatpush2.bf16.msra.mxu0 0
    %3741 = vmatprep.subr.bf16.mxu0 0
    %3742 = vmatpush2.bf16.msra.mxu0 0
    %3743 = vmatprep.subr.bf16.mxu0 0
    %3744 = vmatpush2.bf16.msra.mxu0 0
    %3745 = vmatprep.subr.bf16.mxu0 0
    %3746 = vmatpush2.bf16.msra.mxu0 0
    %3747 = vmatprep.subr.bf16.mxu0 0
    %3748 = vmatpush2.bf16.msra.mxu0 0
    %3749 = vmatprep.subr.bf16.mxu0 0
    %3750 = vmatpush2.bf16.msra.mxu0 0
    %3751 = vmatprep.subr.bf16.mxu0 0
    %3752 = vmatpush2.bf16.msra.mxu0 0
    %3753 = vmatprep.mubr.bf16.mxu0 0
    %3754 = vmatmul.mubr.bf16.gmra.mxu0 %v3707
    %v3755 = vpop.f32.mrf.mxu0
    %v3756 = vadd.f32 0.0, %v3755
    %v3757 = vpop.f32.mrf.mxu0
    %v3758 = vadd.f32 0.0, %v3757
    %v3759 = vpop.f32.mrf.mxu0
    %v3760 = vpop.f32.mrf.mxu0
    %3761 = vdwg.mxu0
    %3762 = vmatprep.subr.bf16.mxu0 0
    %3763 = vmatpush1.bf16.msra.mxu0 0
    %3764 = vmatprep.subr.bf16.mxu0 0
    %3765 = vmatpush1.bf16.msra.mxu0 0
    %3766 = vmatprep.subr.bf16.mxu0 0
    %3767 = vmatpush1.bf16.msra.mxu0 0
    %3768 = vmatprep.subr.bf16.mxu0 0
    %3769 = vmatpush1.bf16.msra.mxu0 0
    %3770 = vmatprep.subr.bf16.mxu0 %v3719
    %3771 = vmatpush1.bf16.msra.mxu0 %v3716
    %3772 = vmatprep.subr.bf16.mxu0 %v3689
    %3773 = vmatpush1.bf16.msra.mxu0 %v3688
    %3774 = vmatprep.subr.bf16.mxu0 %v3685
    %3775 = vmatpush1.bf16.msra.mxu0 %v3684
    %3776 = vmatprep.subr.bf16.mxu0 %v3681
    %3777 = vmatpush1.bf16.msra.mxu0 %v3680
    %3778 = vmatprep.subr.bf16.mxu0 0
    %3779 = vmatpush2.bf16.msra.mxu0 0
    %3780 = vmatprep.subr.bf16.mxu0 0
    %3781 = vmatpush2.bf16.msra.mxu0 0
    %3782 = vmatprep.subr.bf16.mxu0 0
    %3783 = vmatpush2.bf16.msra.mxu0 0
    %3784 = vmatprep.subr.bf16.mxu0 0
    %3785 = vmatpush2.bf16.msra.mxu0 0
    %3786 = vmatprep.subr.bf16.mxu0 0
    %3787 = vmatpush2.bf16.msra.mxu0 0
    %3788 = vmatprep.subr.bf16.mxu0 0
    %3789 = vmatpush2.bf16.msra.mxu0 0
    %3790 = vmatprep.subr.bf16.mxu0 0
    %3791 = vmatpush2.bf16.msra.mxu0 0
    %3792 = vmatprep.subr.bf16.mxu0 0
    %3793 = vmatpush2.bf16.msra.mxu0 0
    %3794 = vmatprep.mubr.bf16.mxu0 0
    %3795 = vmatmul.mubr.bf16.gmra.mxu0 %v3707
    %v3796 = vpop.f32.mrf.mxu0
    %v3797 = vadd.f32 0.0, %v3796
    %v3798 = vpop.f32.mrf.mxu0
    %v3799 = vadd.f32 0.0, %v3798
    %v3800 = vpop.f32.mrf.mxu0
    %v3801 = vpop.f32.mrf.mxu0
    %3802 = vdwg.mxu0
    %v3803 = vadd.f32 %v3612, %v3756
    %v3804 = vadd.f32 %v3613, %v3758
    %v3805 = vadd.f32 %v3614, %v3797
    %v3806 = vadd.f32 %v3615, %v3799
    %v3807 = vld [vmem:[#allocation3 + $0xc] sm:$0x4]
    %s3808 = scalar_lea.vmem %s2, 1568
    %v3809 = vld [vmem:[%s3808] sm:$0xff]
    %v3810 = vld [vmem:[%s3808 + $0x8] sm:$0xff]
    %v3811 = vld [vmem:[%s3808 + $0x10] sm:$0xff]
    %v3812 = vld [vmem:[%s3808 + $0x18] sm:$0xff]
    %v3813 = vld [vmem:[%s3808 + $0x20] sm:$0xff]
    %v3814 = vld [vmem:[%s3808 + $0x28] sm:$0xff]
    %v3815 = vld [vmem:[%s3808 + $0x30] sm:$0xff]
    %v3816 = vld [vmem:[%s3808 + $0x38] sm:$0xff]
    %v3817 = vld [vmem:[%s3808 + $0x40] sm:$0xff]
    %v3818 = vld [vmem:[%s3808 + $0x48] sm:$0xff]
    %v3819 = vld [vmem:[%s3808 + $0x50] sm:$0xff]
    %v3820 = vld [vmem:[%s3808 + $0x58] sm:$0xff]
    %v3821 = vld [vmem:[%s3808 + $0x60] sm:$0x11]
    %v3822 = vld [vmem:[%s3808 + $0x68] sm:$0x11]
    %v3824 = vunpack.c.l.b16 %v3807
    %v3825 = vpack.c.b16 %v3824, %v3824
    %v3826 = vrot.slane %v3825, 2
    %v3841 = vunpack.c.l.b16 %v3809
    %v3842 = vunpack.c.h.b16 %v3809
    %v3843 = vunpack.c.l.b16 %v3810
    %v3844 = vunpack.c.h.b16 %v3810
    %v3845 = vunpack.c.l.b16 %v3811
    %v3846 = vunpack.c.h.b16 %v3811
    %v3847 = vunpack.c.l.b16 %v3812
    %v3848 = vunpack.c.h.b16 %v3812
    %v3849 = vunpack.c.l.b16 %v3813
    %v3850 = vunpack.c.h.b16 %v3813
    %v3851 = vunpack.c.l.b16 %v3814
    %v3852 = vunpack.c.h.b16 %v3814
    %v3853 = vunpack.c.l.b16 %v3815
    %v3854 = vunpack.c.h.b16 %v3815
    %v3855 = vunpack.c.l.b16 %v3816
    %v3856 = vunpack.c.h.b16 %v3816
    %v3857 = vunpack.c.l.b16 %v3817
    %v3858 = vunpack.c.h.b16 %v3817
    %v3859 = vunpack.c.l.b16 %v3818
    %v3860 = vunpack.c.h.b16 %v3818
    %v3861 = vunpack.c.l.b16 %v3819
    %v3862 = vunpack.c.h.b16 %v3819
    %v3863 = vunpack.c.l.b16 %v3820
    %v3864 = vunpack.c.h.b16 %v3820
    %v3865 = vunpack.c.l.b16 %v3821
    %v3866 = vunpack.c.h.b16 %v3821
    %v3867 = vunpack.c.l.b16 %v3822
    %v3868 = vunpack.c.h.b16 %v3822
    %v3869 = vpack.c.b16 %v3845, %v3841
    %v3870 = vpack.c.b16 %v3846, %v3842
    %v3871 = vpack.c.b16 %v3847, %v3843
    %v3872 = vpack.c.b16 %v3848, %v3844
    %v3873 = vpack.c.b16 %v3853, %v3849
    %v3874 = vpack.c.b16 %v3854, %v3850
    %v3875 = vpack.c.b16 %v3855, %v3851
    %v3876 = vpack.c.b16 %v3856, %v3852
    %v3877 = vpack.c.b16 %v3861, %v3857
    %v3878 = vpack.c.b16 %v3862, %v3858
    %v3879 = vpack.c.b16 %v3863, %v3859
    %v3880 = vpack.c.b16 %v3864, %v3860
    %v3881 = vpack.c.b16 %v3865, %v3865
    %v3882 = vpack.c.b16 %v3866, %v3866
    %v3883 = vpack.c.b16 %v3867, %v3867
    %v3884 = vpack.c.b16 %v3868, %v3868
    %v3898 = vsel %vm881, %v3826, 0
    %v3901 = vsel %vm1265, %v3881, 0
    %v3904 = vsel %vm1265, %v3882, 0
    %v3907 = vsel %vm1265, %v3883, 0
    %v3910 = vsel %vm1265, %v3884, 0
    %3912 = vmatprep.subr.bf16.mxu0 0
    %3913 = vmatpush1.bf16.msra.mxu0 0
    %3914 = vmatprep.subr.bf16.mxu0 0
    %3915 = vmatpush1.bf16.msra.mxu0 0
    %3916 = vmatprep.subr.bf16.mxu0 0
    %3917 = vmatpush1.bf16.msra.mxu0 0
    %3918 = vmatprep.subr.bf16.mxu0 0
    %3919 = vmatpush1.bf16.msra.mxu0 0
    %3920 = vmatprep.subr.bf16.mxu0 %v3904
    %3921 = vmatpush1.bf16.msra.mxu0 %v3901
    %3922 = vmatprep.subr.bf16.mxu0 %v3878
    %3923 = vmatpush1.bf16.msra.mxu0 %v3877
    %3924 = vmatprep.subr.bf16.mxu0 %v3874
    %3925 = vmatpush1.bf16.msra.mxu0 %v3873
    %3926 = vmatprep.subr.bf16.mxu0 %v3870
    %3927 = vmatpush1.bf16.msra.mxu0 %v3869
    %3928 = vmatprep.subr.bf16.mxu0 0
    %3929 = vmatpush2.bf16.msra.mxu0 0
    %3930 = vmatprep.subr.bf16.mxu0 0
    %3931 = vmatpush2.bf16.msra.mxu0 0
    %3932 = vmatprep.subr.bf16.mxu0 0
    %3933 = vmatpush2.bf16.msra.mxu0 0
    %3934 = vmatprep.subr.bf16.mxu0 0
    %3935 = vmatpush2.bf16.msra.mxu0 0
    %3936 = vmatprep.subr.bf16.mxu0 0
    %3937 = vmatpush2.bf16.msra.mxu0 0
    %3938 = vmatprep.subr.bf16.mxu0 0
    %3939 = vmatpush2.bf16.msra.mxu0 0
    %3940 = vmatprep.subr.bf16.mxu0 0
    %3941 = vmatpush2.bf16.msra.mxu0 0
    %3942 = vmatprep.subr.bf16.mxu0 0
    %3943 = vmatpush2.bf16.msra.mxu0 0
    %3944 = vmatprep.mubr.bf16.mxu0 0
    %3945 = vmatmul.mubr.bf16.gmra.mxu0 %v3898
    %v3946 = vpop.f32.mrf.mxu0
    %v3947 = vadd.f32 0.0, %v3946
    %v3948 = vpop.f32.mrf.mxu0
    %v3949 = vadd.f32 0.0, %v3948
    %v3950 = vpop.f32.mrf.mxu0
    %v3951 = vpop.f32.mrf.mxu0
    %3952 = vdwg.mxu0
    %3953 = vmatprep.subr.bf16.mxu0 0
    %3954 = vmatpush1.bf16.msra.mxu0 0
    %3955 = vmatprep.subr.bf16.mxu0 0
    %3956 = vmatpush1.bf16.msra.mxu0 0
    %3957 = vmatprep.subr.bf16.mxu0 0
    %3958 = vmatpush1.bf16.msra.mxu0 0
    %3959 = vmatprep.subr.bf16.mxu0 0
    %3960 = vmatpush1.bf16.msra.mxu0 0
    %3961 = vmatprep.subr.bf16.mxu0 %v3910
    %3962 = vmatpush1.bf16.msra.mxu0 %v3907
    %3963 = vmatprep.subr.bf16.mxu0 %v3880
    %3964 = vmatpush1.bf16.msra.mxu0 %v3879
    %3965 = vmatprep.subr.bf16.mxu0 %v3876
    %3966 = vmatpush1.bf16.msra.mxu0 %v3875
    %3967 = vmatprep.subr.bf16.mxu0 %v3872
    %3968 = vmatpush1.bf16.msra.mxu0 %v3871
    %3969 = vmatprep.subr.bf16.mxu0 0
    %3970 = vmatpush2.bf16.msra.mxu0 0
    %3971 = vmatprep.subr.bf16.mxu0 0
    %3972 = vmatpush2.bf16.msra.mxu0 0
    %3973 = vmatprep.subr.bf16.mxu0 0
    %3974 = vmatpush2.bf16.msra.mxu0 0
    %3975 = vmatprep.subr.bf16.mxu0 0
    %3976 = vmatpush2.bf16.msra.mxu0 0
    %3977 = vmatprep.subr.bf16.mxu0 0
    %3978 = vmatpush2.bf16.msra.mxu0 0
    %3979 = vmatprep.subr.bf16.mxu0 0
    %3980 = vmatpush2.bf16.msra.mxu0 0
    %3981 = vmatprep.subr.bf16.mxu0 0
    %3982 = vmatpush2.bf16.msra.mxu0 0
    %3983 = vmatprep.subr.bf16.mxu0 0
    %3984 = vmatpush2.bf16.msra.mxu0 0
    %3985 = vmatprep.mubr.bf16.mxu0 0
    %3986 = vmatmul.mubr.bf16.gmra.mxu0 %v3898
    %v3987 = vpop.f32.mrf.mxu0
    %v3988 = vadd.f32 0.0, %v3987
    %v3989 = vpop.f32.mrf.mxu0
    %v3990 = vadd.f32 0.0, %v3989
    %v3991 = vpop.f32.mrf.mxu0
    %v3992 = vpop.f32.mrf.mxu0
    %3993 = vdwg.mxu0
    %v3994 = vadd.f32 %v3803, %v3947
    %v3995 = vadd.f32 %v3804, %v3949
    %v3996 = vadd.f32 %v3805, %v3988
    %v3997 = vadd.f32 %v3806, %v3990
    %v3998 = vld [vmem:[#allocation3 + $0xc] sm:$0x8]
    %s3999 = scalar_lea.vmem %s2, 1680
    %v4000 = vld [vmem:[%s3999] sm:$0xff]
    %v4001 = vld [vmem:[%s3999 + $0x8] sm:$0xff]
    %v4002 = vld [vmem:[%s3999 + $0x10] sm:$0xff]
    %v4003 = vld [vmem:[%s3999 + $0x18] sm:$0xff]
    %v4004 = vld [vmem:[%s3999 + $0x20] sm:$0xff]
    %v4005 = vld [vmem:[%s3999 + $0x28] sm:$0xff]
    %v4006 = vld [vmem:[%s3999 + $0x30] sm:$0xff]
    %v4007 = vld [vmem:[%s3999 + $0x38] sm:$0xff]
    %v4008 = vld [vmem:[%s3999 + $0x40] sm:$0xff]
    %v4009 = vld [vmem:[%s3999 + $0x48] sm:$0xff]
    %v4010 = vld [vmem:[%s3999 + $0x50] sm:$0xff]
    %v4011 = vld [vmem:[%s3999 + $0x58] sm:$0xff]
    %v4012 = vld [vmem:[%s3999 + $0x60] sm:$0x11]
    %v4013 = vld [vmem:[%s3999 + $0x68] sm:$0x11]
    %v4015 = vunpack.c.l.b16 %v3998
    %v4016 = vpack.c.b16 %v4015, %v4015
    %v4017 = vrot.slane %v4016, 3
    %v4032 = vunpack.c.l.b16 %v4000
    %v4033 = vunpack.c.h.b16 %v4000
    %v4034 = vunpack.c.l.b16 %v4001
    %v4035 = vunpack.c.h.b16 %v4001
    %v4036 = vunpack.c.l.b16 %v4002
    %v4037 = vunpack.c.h.b16 %v4002
    %v4038 = vunpack.c.l.b16 %v4003
    %v4039 = vunpack.c.h.b16 %v4003
    %v4040 = vunpack.c.l.b16 %v4004
    %v4041 = vunpack.c.h.b16 %v4004
    %v4042 = vunpack.c.l.b16 %v4005
    %v4043 = vunpack.c.h.b16 %v4005
    %v4044 = vunpack.c.l.b16 %v4006
    %v4045 = vunpack.c.h.b16 %v4006
    %v4046 = vunpack.c.l.b16 %v4007
    %v4047 = vunpack.c.h.b16 %v4007
    %v4048 = vunpack.c.l.b16 %v4008
    %v4049 = vunpack.c.h.b16 %v4008
    %v4050 = vunpack.c.l.b16 %v4009
    %v4051 = vunpack.c.h.b16 %v4009
    %v4052 = vunpack.c.l.b16 %v4010
    %v4053 = vunpack.c.h.b16 %v4010
    %v4054 = vunpack.c.l.b16 %v4011
    %v4055 = vunpack.c.h.b16 %v4011
    %v4056 = vunpack.c.l.b16 %v4012
    %v4057 = vunpack.c.h.b16 %v4012
    %v4058 = vunpack.c.l.b16 %v4013
    %v4059 = vunpack.c.h.b16 %v4013
    %v4060 = vpack.c.b16 %v4036, %v4032
    %v4061 = vpack.c.b16 %v4037, %v4033
    %v4062 = vpack.c.b16 %v4038, %v4034
    %v4063 = vpack.c.b16 %v4039, %v4035
    %v4064 = vpack.c.b16 %v4044, %v4040
    %v4065 = vpack.c.b16 %v4045, %v4041
    %v4066 = vpack.c.b16 %v4046, %v4042
    %v4067 = vpack.c.b16 %v4047, %v4043
    %v4068 = vpack.c.b16 %v4052, %v4048
    %v4069 = vpack.c.b16 %v4053, %v4049
    %v4070 = vpack.c.b16 %v4054, %v4050
    %v4071 = vpack.c.b16 %v4055, %v4051
    %v4072 = vpack.c.b16 %v4056, %v4056
    %v4073 = vpack.c.b16 %v4057, %v4057
    %v4074 = vpack.c.b16 %v4058, %v4058
    %v4075 = vpack.c.b16 %v4059, %v4059
    %v4089 = vsel %vm881, %v4017, 0
    %v4092 = vsel %vm1265, %v4072, 0
    %v4095 = vsel %vm1265, %v4073, 0
    %v4098 = vsel %vm1265, %v4074, 0
    %v4101 = vsel %vm1265, %v4075, 0
    %4103 = vmatprep.subr.bf16.mxu0 0
    %4104 = vmatpush1.bf16.msra.mxu0 0
    %4105 = vmatprep.subr.bf16.mxu0 0
    %4106 = vmatpush1.bf16.msra.mxu0 0
    %4107 = vmatprep.subr.bf16.mxu0 0
    %4108 = vmatpush1.bf16.msra.mxu0 0
    %4109 = vmatprep.subr.bf16.mxu0 0
    %4110 = vmatpush1.bf16.msra.mxu0 0
    %4111 = vmatprep.subr.bf16.mxu0 %v4095
    %4112 = vmatpush1.bf16.msra.mxu0 %v4092
    %4113 = vmatprep.subr.bf16.mxu0 %v4069
    %4114 = vmatpush1.bf16.msra.mxu0 %v4068
    %4115 = vmatprep.subr.bf16.mxu0 %v4065
    %4116 = vmatpush1.bf16.msra.mxu0 %v4064
    %4117 = vmatprep.subr.bf16.mxu0 %v4061
    %4118 = vmatpush1.bf16.msra.mxu0 %v4060
    %4119 = vmatprep.subr.bf16.mxu0 0
    %4120 = vmatpush2.bf16.msra.mxu0 0
    %4121 = vmatprep.subr.bf16.mxu0 0
    %4122 = vmatpush2.bf16.msra.mxu0 0
    %4123 = vmatprep.subr.bf16.mxu0 0
    %4124 = vmatpush2.bf16.msra.mxu0 0
    %4125 = vmatprep.subr.bf16.mxu0 0
    %4126 = vmatpush2.bf16.msra.mxu0 0
    %4127 = vmatprep.subr.bf16.mxu0 0
    %4128 = vmatpush2.bf16.msra.mxu0 0
    %4129 = vmatprep.subr.bf16.mxu0 0
    %4130 = vmatpush2.bf16.msra.mxu0 0
    %4131 = vmatprep.subr.bf16.mxu0 0
    %4132 = vmatpush2.bf16.msra.mxu0 0
    %4133 = vmatprep.subr.bf16.mxu0 0
    %4134 = vmatpush2.bf16.msra.mxu0 0
    %4135 = vmatprep.mubr.bf16.mxu0 0
    %4136 = vmatmul.mubr.bf16.gmra.mxu0 %v4089
    %v4137 = vpop.f32.mrf.mxu0
    %v4138 = vadd.f32 0.0, %v4137
    %v4139 = vpop.f32.mrf.mxu0
    %v4140 = vadd.f32 0.0, %v4139
    %v4141 = vpop.f32.mrf.mxu0
    %v4142 = vpop.f32.mrf.mxu0
    %4143 = vdwg.mxu0
    %4144 = vmatprep.subr.bf16.mxu0 0
    %4145 = vmatpush1.bf16.msra.mxu0 0
    %4146 = vmatprep.subr.bf16.mxu0 0
    %4147 = vmatpush1.bf16.msra.mxu0 0
    %4148 = vmatprep.subr.bf16.mxu0 0
    %4149 = vmatpush1.bf16.msra.mxu0 0
    %4150 = vmatprep.subr.bf16.mxu0 0
    %4151 = vmatpush1.bf16.msra.mxu0 0
    %4152 = vmatprep.subr.bf16.mxu0 %v4101
    %4153 = vmatpush1.bf16.msra.mxu0 %v4098
    %4154 = vmatprep.subr.bf16.mxu0 %v4071
    %4155 = vmatpush1.bf16.msra.mxu0 %v4070
    %4156 = vmatprep.subr.bf16.mxu0 %v4067
    %4157 = vmatpush1.bf16.msra.mxu0 %v4066
    %4158 = vmatprep.subr.bf16.mxu0 %v4063
    %4159 = vmatpush1.bf16.msra.mxu0 %v4062
    %4160 = vmatprep.subr.bf16.mxu0 0
    %4161 = vmatpush2.bf16.msra.mxu0 0
    %4162 = vmatprep.subr.bf16.mxu0 0
    %4163 = vmatpush2.bf16.msra.mxu0 0
    %4164 = vmatprep.subr.bf16.mxu0 0
    %4165 = vmatpush2.bf16.msra.mxu0 0
    %4166 = vmatprep.subr.bf16.mxu0 0
    %4167 = vmatpush2.bf16.msra.mxu0 0
    %4168 = vmatprep.subr.bf16.mxu0 0
    %4169 = vmatpush2.bf16.msra.mxu0 0
    %4170 = vmatprep.subr.bf16.mxu0 0
    %4171 = vmatpush2.bf16.msra.mxu0 0
    %4172 = vmatprep.subr.bf16.mxu0 0
    %4173 = vmatpush2.bf16.msra.mxu0 0
    %4174 = vmatprep.subr.bf16.mxu0 0
    %4175 = vmatpush2.bf16.msra.mxu0 0
    %4176 = vmatprep.mubr.bf16.mxu0 0
    %4177 = vmatmul.mubr.bf16.gmra.mxu0 %v4089
    %v4178 = vpop.f32.mrf.mxu0
    %v4179 = vadd.f32 0.0, %v4178
    %v4180 = vpop.f32.mrf.mxu0
    %v4181 = vadd.f32 0.0, %v4180
    %v4182 = vpop.f32.mrf.mxu0
    %v4183 = vpop.f32.mrf.mxu0
    %4184 = vdwg.mxu0
    %v4185 = vadd.f32 %v3994, %v4138
    %v4186 = vadd.f32 %v3995, %v4140
    %v4187 = vadd.f32 %v3996, %v4179
    %v4188 = vadd.f32 %v3997, %v4181
    %v4189 = vld [vmem:[#allocation3 + $0x10] sm:$0x1]
    %s4190 = scalar_lea.vmem %s2, 1792
    %v4191 = vld [vmem:[%s4190] sm:$0xff]
    %v4192 = vld [vmem:[%s4190 + $0x8] sm:$0xff]
    %v4193 = vld [vmem:[%s4190 + $0x10] sm:$0xff]
    %v4194 = vld [vmem:[%s4190 + $0x18] sm:$0xff]
    %v4195 = vld [vmem:[%s4190 + $0x20] sm:$0xff]
    %v4196 = vld [vmem:[%s4190 + $0x28] sm:$0xff]
    %v4197 = vld [vmem:[%s4190 + $0x30] sm:$0xff]
    %v4198 = vld [vmem:[%s4190 + $0x38] sm:$0xff]
    %v4199 = vld [vmem:[%s4190 + $0x40] sm:$0xff]
    %v4200 = vld [vmem:[%s4190 + $0x48] sm:$0xff]
    %v4201 = vld [vmem:[%s4190 + $0x50] sm:$0xff]
    %v4202 = vld [vmem:[%s4190 + $0x58] sm:$0xff]
    %v4203 = vld [vmem:[%s4190 + $0x60] sm:$0x11]
    %v4204 = vld [vmem:[%s4190 + $0x68] sm:$0x11]
    %v4219 = vunpack.c.l.b16 %v4191
    %v4220 = vunpack.c.h.b16 %v4191
    %v4221 = vunpack.c.l.b16 %v4192
    %v4222 = vunpack.c.h.b16 %v4192
    %v4223 = vunpack.c.l.b16 %v4193
    %v4224 = vunpack.c.h.b16 %v4193
    %v4225 = vunpack.c.l.b16 %v4194
    %v4226 = vunpack.c.h.b16 %v4194
    %v4227 = vunpack.c.l.b16 %v4195
    %v4228 = vunpack.c.h.b16 %v4195
    %v4229 = vunpack.c.l.b16 %v4196
    %v4230 = vunpack.c.h.b16 %v4196
    %v4231 = vunpack.c.l.b16 %v4197
    %v4232 = vunpack.c.h.b16 %v4197
    %v4233 = vunpack.c.l.b16 %v4198
    %v4234 = vunpack.c.h.b16 %v4198
    %v4235 = vunpack.c.l.b16 %v4199
    %v4236 = vunpack.c.h.b16 %v4199
    %v4237 = vunpack.c.l.b16 %v4200
    %v4238 = vunpack.c.h.b16 %v4200
    %v4239 = vunpack.c.l.b16 %v4201
    %v4240 = vunpack.c.h.b16 %v4201
    %v4241 = vunpack.c.l.b16 %v4202
    %v4242 = vunpack.c.h.b16 %v4202
    %v4243 = vunpack.c.l.b16 %v4203
    %v4244 = vunpack.c.h.b16 %v4203
    %v4245 = vunpack.c.l.b16 %v4204
    %v4246 = vunpack.c.h.b16 %v4204
    %v4247 = vpack.c.b16 %v4223, %v4219
    %v4248 = vpack.c.b16 %v4224, %v4220
    %v4249 = vpack.c.b16 %v4225, %v4221
    %v4250 = vpack.c.b16 %v4226, %v4222
    %v4251 = vpack.c.b16 %v4231, %v4227
    %v4252 = vpack.c.b16 %v4232, %v4228
    %v4253 = vpack.c.b16 %v4233, %v4229
    %v4254 = vpack.c.b16 %v4234, %v4230
    %v4255 = vpack.c.b16 %v4239, %v4235
    %v4256 = vpack.c.b16 %v4240, %v4236
    %v4257 = vpack.c.b16 %v4241, %v4237
    %v4258 = vpack.c.b16 %v4242, %v4238
    %v4259 = vpack.c.b16 %v4243, %v4243
    %v4260 = vpack.c.b16 %v4244, %v4244
    %v4261 = vpack.c.b16 %v4245, %v4245
    %v4262 = vpack.c.b16 %v4246, %v4246
    %v4276 = vsel %vm881, %v4189, 0
    %v4279 = vsel %vm1265, %v4259, 0
    %v4282 = vsel %vm1265, %v4260, 0
    %v4285 = vsel %vm1265, %v4261, 0
    %v4288 = vsel %vm1265, %v4262, 0
    %4290 = vmatprep.subr.bf16.mxu0 0
    %4291 = vmatpush1.bf16.msra.mxu0 0
    %4292 = vmatprep.subr.bf16.mxu0 0
    %4293 = vmatpush1.bf16.msra.mxu0 0
    %4294 = vmatprep.subr.bf16.mxu0 0
    %4295 = vmatpush1.bf16.msra.mxu0 0
    %4296 = vmatprep.subr.bf16.mxu0 0
    %4297 = vmatpush1.bf16.msra.mxu0 0
    %4298 = vmatprep.subr.bf16.mxu0 %v4282
    %4299 = vmatpush1.bf16.msra.mxu0 %v4279
    %4300 = vmatprep.subr.bf16.mxu0 %v4256
    %4301 = vmatpush1.bf16.msra.mxu0 %v4255
    %4302 = vmatprep.subr.bf16.mxu0 %v4252
    %4303 = vmatpush1.bf16.msra.mxu0 %v4251
    %4304 = vmatprep.subr.bf16.mxu0 %v4248
    %4305 = vmatpush1.bf16.msra.mxu0 %v4247
    %4306 = vmatprep.subr.bf16.mxu0 0
    %4307 = vmatpush2.bf16.msra.mxu0 0
    %4308 = vmatprep.subr.bf16.mxu0 0
    %4309 = vmatpush2.bf16.msra.mxu0 0
    %4310 = vmatprep.subr.bf16.mxu0 0
    %4311 = vmatpush2.bf16.msra.mxu0 0
    %4312 = vmatprep.subr.bf16.mxu0 0
    %4313 = vmatpush2.bf16.msra.mxu0 0
    %4314 = vmatprep.subr.bf16.mxu0 0
    %4315 = vmatpush2.bf16.msra.mxu0 0
    %4316 = vmatprep.subr.bf16.mxu0 0
    %4317 = vmatpush2.bf16.msra.mxu0 0
    %4318 = vmatprep.subr.bf16.mxu0 0
    %4319 = vmatpush2.bf16.msra.mxu0 0
    %4320 = vmatprep.subr.bf16.mxu0 0
    %4321 = vmatpush2.bf16.msra.mxu0 0
    %4322 = vmatprep.mubr.bf16.mxu0 0
    %4323 = vmatmul.mubr.bf16.gmra.mxu0 %v4276
    %v4324 = vpop.f32.mrf.mxu0
    %v4325 = vadd.f32 0.0, %v4324
    %v4326 = vpop.f32.mrf.mxu0
    %v4327 = vadd.f32 0.0, %v4326
    %v4328 = vpop.f32.mrf.mxu0
    %v4329 = vpop.f32.mrf.mxu0
    %4330 = vdwg.mxu0
    %4331 = vmatprep.subr.bf16.mxu0 0
    %4332 = vmatpush1.bf16.msra.mxu0 0
    %4333 = vmatprep.subr.bf16.mxu0 0
    %4334 = vmatpush1.bf16.msra.mxu0 0
    %4335 = vmatprep.subr.bf16.mxu0 0
    %4336 = vmatpush1.bf16.msra.mxu0 0
    %4337 = vmatprep.subr.bf16.mxu0 0
    %4338 = vmatpush1.bf16.msra.mxu0 0
    %4339 = vmatprep.subr.bf16.mxu0 %v4288
    %4340 = vmatpush1.bf16.msra.mxu0 %v4285
    %4341 = vmatprep.subr.bf16.mxu0 %v4258
    %4342 = vmatpush1.bf16.msra.mxu0 %v4257
    %4343 = vmatprep.subr.bf16.mxu0 %v4254
    %4344 = vmatpush1.bf16.msra.mxu0 %v4253
    %4345 = vmatprep.subr.bf16.mxu0 %v4250
    %4346 = vmatpush1.bf16.msra.mxu0 %v4249
    %4347 = vmatprep.subr.bf16.mxu0 0
    %4348 = vmatpush2.bf16.msra.mxu0 0
    %4349 = vmatprep.subr.bf16.mxu0 0
    %4350 = vmatpush2.bf16.msra.mxu0 0
    %4351 = vmatprep.subr.bf16.mxu0 0
    %4352 = vmatpush2.bf16.msra.mxu0 0
    %4353 = vmatprep.subr.bf16.mxu0 0
    %4354 = vmatpush2.bf16.msra.mxu0 0
    %4355 = vmatprep.subr.bf16.mxu0 0
    %4356 = vmatpush2.bf16.msra.mxu0 0
    %4357 = vmatprep.subr.bf16.mxu0 0
    %4358 = vmatpush2.bf16.msra.mxu0 0
    %4359 = vmatprep.subr.bf16.mxu0 0
    %4360 = vmatpush2.bf16.msra.mxu0 0
    %4361 = vmatprep.subr.bf16.mxu0 0
    %4362 = vmatpush2.bf16.msra.mxu0 0
    %4363 = vmatprep.mubr.bf16.mxu0 0
    %4364 = vmatmul.mubr.bf16.gmra.mxu0 %v4276
    %v4365 = vpop.f32.mrf.mxu0
    %v4366 = vadd.f32 0.0, %v4365
    %v4367 = vpop.f32.mrf.mxu0
    %v4368 = vadd.f32 0.0, %v4367
    %v4369 = vpop.f32.mrf.mxu0
    %v4370 = vpop.f32.mrf.mxu0
    %4371 = vdwg.mxu0
    %v4372 = vadd.f32 %v4185, %v4325
    %v4373 = vadd.f32 %v4186, %v4327
    %v4374 = vadd.f32 %v4187, %v4366
    %v4375 = vadd.f32 %v4188, %v4368
    %v4376 = vld [vmem:[#allocation3 + $0x10] sm:$0x2]
    %s4377 = scalar_lea.vmem %s2, 1904
    %v4378 = vld [vmem:[%s4377] sm:$0xff]
    %v4379 = vld [vmem:[%s4377 + $0x8] sm:$0xff]
    %v4380 = vld [vmem:[%s4377 + $0x10] sm:$0xff]
    %v4381 = vld [vmem:[%s4377 + $0x18] sm:$0xff]
    %v4382 = vld [vmem:[%s4377 + $0x20] sm:$0xff]
    %v4383 = vld [vmem:[%s4377 + $0x28] sm:$0xff]
    %v4384 = vld [vmem:[%s4377 + $0x30] sm:$0xff]
    %v4385 = vld [vmem:[%s4377 + $0x38] sm:$0xff]
    %v4386 = vld [vmem:[%s4377 + $0x40] sm:$0xff]
    %v4387 = vld [vmem:[%s4377 + $0x48] sm:$0xff]
    %v4388 = vld [vmem:[%s4377 + $0x50] sm:$0xff]
    %v4389 = vld [vmem:[%s4377 + $0x58] sm:$0xff]
    %v4390 = vld [vmem:[%s4377 + $0x60] sm:$0x11]
    %v4391 = vld [vmem:[%s4377 + $0x68] sm:$0x11]
    %v4393 = vunpack.c.l.b16 %v4376
    %v4394 = vpack.c.b16 %v4393, %v4393
    %v4395 = vrot.slane %v4394, 1
    %v4410 = vunpack.c.l.b16 %v4378
    %v4411 = vunpack.c.h.b16 %v4378
    %v4412 = vunpack.c.l.b16 %v4379
    %v4413 = vunpack.c.h.b16 %v4379
    %v4414 = vunpack.c.l.b16 %v4380
    %v4415 = vunpack.c.h.b16 %v4380
    %v4416 = vunpack.c.l.b16 %v4381
    %v4417 = vunpack.c.h.b16 %v4381
    %v4418 = vunpack.c.l.b16 %v4382
    %v4419 = vunpack.c.h.b16 %v4382
    %v4420 = vunpack.c.l.b16 %v4383
    %v4421 = vunpack.c.h.b16 %v4383
    %v4422 = vunpack.c.l.b16 %v4384
    %v4423 = vunpack.c.h.b16 %v4384
    %v4424 = vunpack.c.l.b16 %v4385
    %v4425 = vunpack.c.h.b16 %v4385
    %v4426 = vunpack.c.l.b16 %v4386
    %v4427 = vunpack.c.h.b16 %v4386
    %v4428 = vunpack.c.l.b16 %v4387
    %v4429 = vunpack.c.h.b16 %v4387
    %v4430 = vunpack.c.l.b16 %v4388
    %v4431 = vunpack.c.h.b16 %v4388
    %v4432 = vunpack.c.l.b16 %v4389
    %v4433 = vunpack.c.h.b16 %v4389
    %v4434 = vunpack.c.l.b16 %v4390
    %v4435 = vunpack.c.h.b16 %v4390
    %v4436 = vunpack.c.l.b16 %v4391
    %v4437 = vunpack.c.h.b16 %v4391
    %v4438 = vpack.c.b16 %v4414, %v4410
    %v4439 = vpack.c.b16 %v4415, %v4411
    %v4440 = vpack.c.b16 %v4416, %v4412
    %v4441 = vpack.c.b16 %v4417, %v4413
    %v4442 = vpack.c.b16 %v4422, %v4418
    %v4443 = vpack.c.b16 %v4423, %v4419
    %v4444 = vpack.c.b16 %v4424, %v4420
    %v4445 = vpack.c.b16 %v4425, %v4421
    %v4446 = vpack.c.b16 %v4430, %v4426
    %v4447 = vpack.c.b16 %v4431, %v4427
    %v4448 = vpack.c.b16 %v4432, %v4428
    %v4449 = vpack.c.b16 %v4433, %v4429
    %v4450 = vpack.c.b16 %v4434, %v4434
    %v4451 = vpack.c.b16 %v4435, %v4435
    %v4452 = vpack.c.b16 %v4436, %v4436
    %v4453 = vpack.c.b16 %v4437, %v4437
    %v4467 = vsel %vm881, %v4395, 0
    %v4470 = vsel %vm1265, %v4450, 0
    %v4473 = vsel %vm1265, %v4451, 0
    %v4476 = vsel %vm1265, %v4452, 0
    %v4479 = vsel %vm1265, %v4453, 0
    %4481 = vmatprep.subr.bf16.mxu0 0
    %4482 = vmatpush1.bf16.msra.mxu0 0
    %4483 = vmatprep.subr.bf16.mxu0 0
    %4484 = vmatpush1.bf16.msra.mxu0 0
    %4485 = vmatprep.subr.bf16.mxu0 0
    %4486 = vmatpush1.bf16.msra.mxu0 0
    %4487 = vmatprep.subr.bf16.mxu0 0
    %4488 = vmatpush1.bf16.msra.mxu0 0
    %4489 = vmatprep.subr.bf16.mxu0 %v4473
    %4490 = vmatpush1.bf16.msra.mxu0 %v4470
    %4491 = vmatprep.subr.bf16.mxu0 %v4447
    %4492 = vmatpush1.bf16.msra.mxu0 %v4446
    %4493 = vmatprep.subr.bf16.mxu0 %v4443
    %4494 = vmatpush1.bf16.msra.mxu0 %v4442
    %4495 = vmatprep.subr.bf16.mxu0 %v4439
    %4496 = vmatpush1.bf16.msra.mxu0 %v4438
    %4497 = vmatprep.subr.bf16.mxu0 0
    %4498 = vmatpush2.bf16.msra.mxu0 0
    %4499 = vmatprep.subr.bf16.mxu0 0
    %4500 = vmatpush2.bf16.msra.mxu0 0
    %4501 = vmatprep.subr.bf16.mxu0 0
    %4502 = vmatpush2.bf16.msra.mxu0 0
    %4503 = vmatprep.subr.bf16.mxu0 0
    %4504 = vmatpush2.bf16.msra.mxu0 0
    %4505 = vmatprep.subr.bf16.mxu0 0
    %4506 = vmatpush2.bf16.msra.mxu0 0
    %4507 = vmatprep.subr.bf16.mxu0 0
    %4508 = vmatpush2.bf16.msra.mxu0 0
    %4509 = vmatprep.subr.bf16.mxu0 0
    %4510 = vmatpush2.bf16.msra.mxu0 0
    %4511 = vmatprep.subr.bf16.mxu0 0
    %4512 = vmatpush2.bf16.msra.mxu0 0
    %4513 = vmatprep.mubr.bf16.mxu0 0
    %4514 = vmatmul.mubr.bf16.gmra.mxu0 %v4467
    %v4515 = vpop.f32.mrf.mxu0
    %v4516 = vadd.f32 0.0, %v4515
    %v4517 = vpop.f32.mrf.mxu0
    %v4518 = vadd.f32 0.0, %v4517
    %v4519 = vpop.f32.mrf.mxu0
    %v4520 = vpop.f32.mrf.mxu0
    %4521 = vdwg.mxu0
    %4522 = vmatprep.subr.bf16.mxu0 0
    %4523 = vmatpush1.bf16.msra.mxu0 0
    %4524 = vmatprep.subr.bf16.mxu0 0
    %4525 = vmatpush1.bf16.msra.mxu0 0
    %4526 = vmatprep.subr.bf16.mxu0 0
    %4527 = vmatpush1.bf16.msra.mxu0 0
    %4528 = vmatprep.subr.bf16.mxu0 0
    %4529 = vmatpush1.bf16.msra.mxu0 0
    %4530 = vmatprep.subr.bf16.mxu0 %v4479
    %4531 = vmatpush1.bf16.msra.mxu0 %v4476
    %4532 = vmatprep.subr.bf16.mxu0 %v4449
    %4533 = vmatpush1.bf16.msra.mxu0 %v4448
    %4534 = vmatprep.subr.bf16.mxu0 %v4445
    %4535 = vmatpush1.bf16.msra.mxu0 %v4444
    %4536 = vmatprep.subr.bf16.mxu0 %v4441
    %4537 = vmatpush1.bf16.msra.mxu0 %v4440
    %4538 = vmatprep.subr.bf16.mxu0 0
    %4539 = vmatpush2.bf16.msra.mxu0 0
    %4540 = vmatprep.subr.bf16.mxu0 0
    %4541 = vmatpush2.bf16.msra.mxu0 0
    %4542 = vmatprep.subr.bf16.mxu0 0
    %4543 = vmatpush2.bf16.msra.mxu0 0
    %4544 = vmatprep.subr.bf16.mxu0 0
    %4545 = vmatpush2.bf16.msra.mxu0 0
    %4546 = vmatprep.subr.bf16.mxu0 0
    %4547 = vmatpush2.bf16.msra.mxu0 0
    %4548 = vmatprep.subr.bf16.mxu0 0
    %4549 = vmatpush2.bf16.msra.mxu0 0
    %4550 = vmatprep.subr.bf16.mxu0 0
    %4551 = vmatpush2.bf16.msra.mxu0 0
    %4552 = vmatprep.subr.bf16.mxu0 0
    %4553 = vmatpush2.bf16.msra.mxu0 0
    %4554 = vmatprep.mubr.bf16.mxu0 0
    %4555 = vmatmul.mubr.bf16.gmra.mxu0 %v4467
    %v4556 = vpop.f32.mrf.mxu0
    %v4557 = vadd.f32 0.0, %v4556
    %v4558 = vpop.f32.mrf.mxu0
    %v4559 = vadd.f32 0.0, %v4558
    %v4560 = vpop.f32.mrf.mxu0
    %v4561 = vpop.f32.mrf.mxu0
    %4562 = vdwg.mxu0
    %v4563 = vadd.f32 %v4372, %v4516
    %v4564 = vadd.f32 %v4373, %v4518
    %v4565 = vadd.f32 %v4374, %v4557
    %v4566 = vadd.f32 %v4375, %v4559
    %v4567 = vld [vmem:[#allocation3 + $0x10] sm:$0x4]
    %s4568 = scalar_lea.vmem %s2, 2016
    %v4569 = vld [vmem:[%s4568] sm:$0xff]
    %v4570 = vld [vmem:[%s4568 + $0x8] sm:$0xff]
    %v4571 = vld [vmem:[%s4568 + $0x10] sm:$0xff]
    %v4572 = vld [vmem:[%s4568 + $0x18] sm:$0xff]
    %v4573 = vld [vmem:[%s4568 + $0x20] sm:$0xff]
    %v4574 = vld [vmem:[%s4568 + $0x28] sm:$0xff]
    %v4575 = vld [vmem:[%s4568 + $0x30] sm:$0xff]
    %v4576 = vld [vmem:[%s4568 + $0x38] sm:$0xff]
    %v4577 = vld [vmem:[%s4568 + $0x40] sm:$0xff]
    %v4578 = vld [vmem:[%s4568 + $0x48] sm:$0xff]
    %v4579 = vld [vmem:[%s4568 + $0x50] sm:$0xff]
    %v4580 = vld [vmem:[%s4568 + $0x58] sm:$0xff]
    %v4581 = vld [vmem:[%s4568 + $0x60] sm:$0x11]
    %v4582 = vld [vmem:[%s4568 + $0x68] sm:$0x11]
    %v4584 = vunpack.c.l.b16 %v4567
    %v4585 = vpack.c.b16 %v4584, %v4584
    %v4586 = vrot.slane %v4585, 2
    %v4601 = vunpack.c.l.b16 %v4569
    %v4602 = vunpack.c.h.b16 %v4569
    %v4603 = vunpack.c.l.b16 %v4570
    %v4604 = vunpack.c.h.b16 %v4570
    %v4605 = vunpack.c.l.b16 %v4571
    %v4606 = vunpack.c.h.b16 %v4571
    %v4607 = vunpack.c.l.b16 %v4572
    %v4608 = vunpack.c.h.b16 %v4572
    %v4609 = vunpack.c.l.b16 %v4573
    %v4610 = vunpack.c.h.b16 %v4573
    %v4611 = vunpack.c.l.b16 %v4574
    %v4612 = vunpack.c.h.b16 %v4574
    %v4613 = vunpack.c.l.b16 %v4575
    %v4614 = vunpack.c.h.b16 %v4575
    %v4615 = vunpack.c.l.b16 %v4576
    %v4616 = vunpack.c.h.b16 %v4576
    %v4617 = vunpack.c.l.b16 %v4577
    %v4618 = vunpack.c.h.b16 %v4577
    %v4619 = vunpack.c.l.b16 %v4578
    %v4620 = vunpack.c.h.b16 %v4578
    %v4621 = vunpack.c.l.b16 %v4579
    %v4622 = vunpack.c.h.b16 %v4579
    %v4623 = vunpack.c.l.b16 %v4580
    %v4624 = vunpack.c.h.b16 %v4580
    %v4625 = vunpack.c.l.b16 %v4581
    %v4626 = vunpack.c.h.b16 %v4581
    %v4627 = vunpack.c.l.b16 %v4582
    %v4628 = vunpack.c.h.b16 %v4582
    %v4629 = vpack.c.b16 %v4605, %v4601
    %v4630 = vpack.c.b16 %v4606, %v4602
    %v4631 = vpack.c.b16 %v4607, %v4603
    %v4632 = vpack.c.b16 %v4608, %v4604
    %v4633 = vpack.c.b16 %v4613, %v4609
    %v4634 = vpack.c.b16 %v4614, %v4610
    %v4635 = vpack.c.b16 %v4615, %v4611
    %v4636 = vpack.c.b16 %v4616, %v4612
    %v4637 = vpack.c.b16 %v4621, %v4617
    %v4638 = vpack.c.b16 %v4622, %v4618
    %v4639 = vpack.c.b16 %v4623, %v4619
    %v4640 = vpack.c.b16 %v4624, %v4620
    %v4641 = vpack.c.b16 %v4625, %v4625
    %v4642 = vpack.c.b16 %v4626, %v4626
    %v4643 = vpack.c.b16 %v4627, %v4627
    %v4644 = vpack.c.b16 %v4628, %v4628
    %v4658 = vsel %vm881, %v4586, 0
    %v4661 = vsel %vm1265, %v4641, 0
    %v4664 = vsel %vm1265, %v4642, 0
    %v4667 = vsel %vm1265, %v4643, 0
    %v4670 = vsel %vm1265, %v4644, 0
    %4672 = vmatprep.subr.bf16.mxu0 0
    %4673 = vmatpush1.bf16.msra.mxu0 0
    %4674 = vmatprep.subr.bf16.mxu0 0
    %4675 = vmatpush1.bf16.msra.mxu0 0
    %4676 = vmatprep.subr.bf16.mxu0 0
    %4677 = vmatpush1.bf16.msra.mxu0 0
    %4678 = vmatprep.subr.bf16.mxu0 0
    %4679 = vmatpush1.bf16.msra.mxu0 0
    %4680 = vmatprep.subr.bf16.mxu0 %v4664
    %4681 = vmatpush1.bf16.msra.mxu0 %v4661
    %4682 = vmatprep.subr.bf16.mxu0 %v4638
    %4683 = vmatpush1.bf16.msra.mxu0 %v4637
    %4684 = vmatprep.subr.bf16.mxu0 %v4634
    %4685 = vmatpush1.bf16.msra.mxu0 %v4633
    %4686 = vmatprep.subr.bf16.mxu0 %v4630
    %4687 = vmatpush1.bf16.msra.mxu0 %v4629
    %4688 = vmatprep.subr.bf16.mxu0 0
    %4689 = vmatpush2.bf16.msra.mxu0 0
    %4690 = vmatprep.subr.bf16.mxu0 0
    %4691 = vmatpush2.bf16.msra.mxu0 0
    %4692 = vmatprep.subr.bf16.mxu0 0
    %4693 = vmatpush2.bf16.msra.mxu0 0
    %4694 = vmatprep.subr.bf16.mxu0 0
    %4695 = vmatpush2.bf16.msra.mxu0 0
    %4696 = vmatprep.subr.bf16.mxu0 0
    %4697 = vmatpush2.bf16.msra.mxu0 0
    %4698 = vmatprep.subr.bf16.mxu0 0
    %4699 = vmatpush2.bf16.msra.mxu0 0
    %4700 = vmatprep.subr.bf16.mxu0 0
    %4701 = vmatpush2.bf16.msra.mxu0 0
    %4702 = vmatprep.subr.bf16.mxu0 0
    %4703 = vmatpush2.bf16.msra.mxu0 0
    %4704 = vmatprep.mubr.bf16.mxu0 0
    %4705 = vmatmul.mubr.bf16.gmra.mxu0 %v4658
    %v4706 = vpop.f32.mrf.mxu0
    %v4707 = vadd.f32 0.0, %v4706
    %v4708 = vpop.f32.mrf.mxu0
    %v4709 = vadd.f32 0.0, %v4708
    %v4710 = vpop.f32.mrf.mxu0
    %v4711 = vpop.f32.mrf.mxu0
    %4712 = vdwg.mxu0
    %4713 = vmatprep.subr.bf16.mxu0 0
    %4714 = vmatpush1.bf16.msra.mxu0 0
    %4715 = vmatprep.subr.bf16.mxu0 0
    %4716 = vmatpush1.bf16.msra.mxu0 0
    %4717 = vmatprep.subr.bf16.mxu0 0
    %4718 = vmatpush1.bf16.msra.mxu0 0
    %4719 = vmatprep.subr.bf16.mxu0 0
    %4720 = vmatpush1.bf16.msra.mxu0 0
    %4721 = vmatprep.subr.bf16.mxu0 %v4670
    %4722 = vmatpush1.bf16.msra.mxu0 %v4667
    %4723 = vmatprep.subr.bf16.mxu0 %v4640
    %4724 = vmatpush1.bf16.msra.mxu0 %v4639
    %4725 = vmatprep.subr.bf16.mxu0 %v4636
    %4726 = vmatpush1.bf16.msra.mxu0 %v4635
    %4727 = vmatprep.subr.bf16.mxu0 %v4632
    %4728 = vmatpush1.bf16.msra.mxu0 %v4631
    %4729 = vmatprep.subr.bf16.mxu0 0
    %4730 = vmatpush2.bf16.msra.mxu0 0
    %4731 = vmatprep.subr.bf16.mxu0 0
    %4732 = vmatpush2.bf16.msra.mxu0 0
    %4733 = vmatprep.subr.bf16.mxu0 0
    %4734 = vmatpush2.bf16.msra.mxu0 0
    %4735 = vmatprep.subr.bf16.mxu0 0
    %4736 = vmatpush2.bf16.msra.mxu0 0
    %4737 = vmatprep.subr.bf16.mxu0 0
    %4738 = vmatpush2.bf16.msra.mxu0 0
    %4739 = vmatprep.subr.bf16.mxu0 0
    %4740 = vmatpush2.bf16.msra.mxu0 0
    %4741 = vmatprep.subr.bf16.mxu0 0
    %4742 = vmatpush2.bf16.msra.mxu0 0
    %4743 = vmatprep.subr.bf16.mxu0 0
    %4744 = vmatpush2.bf16.msra.mxu0 0
    %4745 = vmatprep.mubr.bf16.mxu0 0
    %4746 = vmatmul.mubr.bf16.gmra.mxu0 %v4658
    %v4747 = vpop.f32.mrf.mxu0
    %v4748 = vadd.f32 0.0, %v4747
    %v4749 = vpop.f32.mrf.mxu0
    %v4750 = vadd.f32 0.0, %v4749
    %v4751 = vpop.f32.mrf.mxu0
    %v4752 = vpop.f32.mrf.mxu0
    %4753 = vdwg.mxu0
    %v4754 = vadd.f32 %v4563, %v4707
    %v4755 = vadd.f32 %v4564, %v4709
    %v4756 = vadd.f32 %v4565, %v4748
    %v4757 = vadd.f32 %v4566, %v4750
    %v4758 = vld [vmem:[#allocation3 + $0x10] sm:$0x8]
    %s4759 = scalar_lea.vmem %s2, 2128
    %v4760 = vld [vmem:[%s4759] sm:$0xff]
    %v4761 = vld [vmem:[%s4759 + $0x8] sm:$0xff]
    %v4762 = vld [vmem:[%s4759 + $0x10] sm:$0xff]
    %v4763 = vld [vmem:[%s4759 + $0x18] sm:$0xff]
    %v4764 = vld [vmem:[%s4759 + $0x20] sm:$0xff]
    %v4765 = vld [vmem:[%s4759 + $0x28] sm:$0xff]
    %v4766 = vld [vmem:[%s4759 + $0x30] sm:$0xff]
    %v4767 = vld [vmem:[%s4759 + $0x38] sm:$0xff]
    %v4768 = vld [vmem:[%s4759 + $0x40] sm:$0xff]
    %v4769 = vld [vmem:[%s4759 + $0x48] sm:$0xff]
    %v4770 = vld [vmem:[%s4759 + $0x50] sm:$0xff]
    %v4771 = vld [vmem:[%s4759 + $0x58] sm:$0xff]
    %v4772 = vld [vmem:[%s4759 + $0x60] sm:$0x11]
    %v4773 = vld [vmem:[%s4759 + $0x68] sm:$0x11]
    %v4775 = vunpack.c.l.b16 %v4758
    %v4776 = vpack.c.b16 %v4775, %v4775
    %v4777 = vrot.slane %v4776, 3
    %v4792 = vunpack.c.l.b16 %v4760
    %v4793 = vunpack.c.h.b16 %v4760
    %v4794 = vunpack.c.l.b16 %v4761
    %v4795 = vunpack.c.h.b16 %v4761
    %v4796 = vunpack.c.l.b16 %v4762
    %v4797 = vunpack.c.h.b16 %v4762
    %v4798 = vunpack.c.l.b16 %v4763
    %v4799 = vunpack.c.h.b16 %v4763
    %v4800 = vunpack.c.l.b16 %v4764
    %v4801 = vunpack.c.h.b16 %v4764
    %v4802 = vunpack.c.l.b16 %v4765
    %v4803 = vunpack.c.h.b16 %v4765
    %v4804 = vunpack.c.l.b16 %v4766
    %v4805 = vunpack.c.h.b16 %v4766
    %v4806 = vunpack.c.l.b16 %v4767
    %v4807 = vunpack.c.h.b16 %v4767
    %v4808 = vunpack.c.l.b16 %v4768
    %v4809 = vunpack.c.h.b16 %v4768
    %v4810 = vunpack.c.l.b16 %v4769
    %v4811 = vunpack.c.h.b16 %v4769
    %v4812 = vunpack.c.l.b16 %v4770
    %v4813 = vunpack.c.h.b16 %v4770
    %v4814 = vunpack.c.l.b16 %v4771
    %v4815 = vunpack.c.h.b16 %v4771
    %v4816 = vunpack.c.l.b16 %v4772
    %v4817 = vunpack.c.h.b16 %v4772
    %v4818 = vunpack.c.l.b16 %v4773
    %v4819 = vunpack.c.h.b16 %v4773
    %v4820 = vpack.c.b16 %v4796, %v4792
    %v4821 = vpack.c.b16 %v4797, %v4793
    %v4822 = vpack.c.b16 %v4798, %v4794
    %v4823 = vpack.c.b16 %v4799, %v4795
    %v4824 = vpack.c.b16 %v4804, %v4800
    %v4825 = vpack.c.b16 %v4805, %v4801
    %v4826 = vpack.c.b16 %v4806, %v4802
    %v4827 = vpack.c.b16 %v4807, %v4803
    %v4828 = vpack.c.b16 %v4812, %v4808
    %v4829 = vpack.c.b16 %v4813, %v4809
    %v4830 = vpack.c.b16 %v4814, %v4810
    %v4831 = vpack.c.b16 %v4815, %v4811
    %v4832 = vpack.c.b16 %v4816, %v4816
    %v4833 = vpack.c.b16 %v4817, %v4817
    %v4834 = vpack.c.b16 %v4818, %v4818
    %v4835 = vpack.c.b16 %v4819, %v4819
    %v4849 = vsel %vm881, %v4777, 0
    %v4852 = vsel %vm1265, %v4832, 0
    %v4855 = vsel %vm1265, %v4833, 0
    %v4858 = vsel %vm1265, %v4834, 0
    %v4861 = vsel %vm1265, %v4835, 0
    %4863 = vmatprep.subr.bf16.mxu0 0
    %4864 = vmatpush1.bf16.msra.mxu0 0
    %4865 = vmatprep.subr.bf16.mxu0 0
    %4866 = vmatpush1.bf16.msra.mxu0 0
    %4867 = vmatprep.subr.bf16.mxu0 0
    %4868 = vmatpush1.bf16.msra.mxu0 0
    %4869 = vmatprep.subr.bf16.mxu0 0
    %4870 = vmatpush1.bf16.msra.mxu0 0
    %4871 = vmatprep.subr.bf16.mxu0 %v4855
    %4872 = vmatpush1.bf16.msra.mxu0 %v4852
    %4873 = vmatprep.subr.bf16.mxu0 %v4829
    %4874 = vmatpush1.bf16.msra.mxu0 %v4828
    %4875 = vmatprep.subr.bf16.mxu0 %v4825
    %4876 = vmatpush1.bf16.msra.mxu0 %v4824
    %4877 = vmatprep.subr.bf16.mxu0 %v4821
    %4878 = vmatpush1.bf16.msra.mxu0 %v4820
    %4879 = vmatprep.subr.bf16.mxu0 0
    %4880 = vmatpush2.bf16.msra.mxu0 0
    %4881 = vmatprep.subr.bf16.mxu0 0
    %4882 = vmatpush2.bf16.msra.mxu0 0
    %4883 = vmatprep.subr.bf16.mxu0 0
    %4884 = vmatpush2.bf16.msra.mxu0 0
    %4885 = vmatprep.subr.bf16.mxu0 0
    %4886 = vmatpush2.bf16.msra.mxu0 0
    %4887 = vmatprep.subr.bf16.mxu0 0
    %4888 = vmatpush2.bf16.msra.mxu0 0
    %4889 = vmatprep.subr.bf16.mxu0 0
    %4890 = vmatpush2.bf16.msra.mxu0 0
    %4891 = vmatprep.subr.bf16.mxu0 0
    %4892 = vmatpush2.bf16.msra.mxu0 0
    %4893 = vmatprep.subr.bf16.mxu0 0
    %4894 = vmatpush2.bf16.msra.mxu0 0
    %4895 = vmatprep.mubr.bf16.mxu0 0
    %4896 = vmatmul.mubr.bf16.gmra.mxu0 %v4849
    %v4897 = vpop.f32.mrf.mxu0
    %v4898 = vadd.f32 0.0, %v4897
    %v4899 = vpop.f32.mrf.mxu0
    %v4900 = vadd.f32 0.0, %v4899
    %v4901 = vpop.f32.mrf.mxu0
    %v4902 = vpop.f32.mrf.mxu0
    %4903 = vdwg.mxu0
    %4904 = vmatprep.subr.bf16.mxu0 0
    %4905 = vmatpush1.bf16.msra.mxu0 0
    %4906 = vmatprep.subr.bf16.mxu0 0
    %4907 = vmatpush1.bf16.msra.mxu0 0
    %4908 = vmatprep.subr.bf16.mxu0 0
    %4909 = vmatpush1.bf16.msra.mxu0 0
    %4910 = vmatprep.subr.bf16.mxu0 0
    %4911 = vmatpush1.bf16.msra.mxu0 0
    %4912 = vmatprep.subr.bf16.mxu0 %v4861
    %4913 = vmatpush1.bf16.msra.mxu0 %v4858
    %4914 = vmatprep.subr.bf16.mxu0 %v4831
    %4915 = vmatpush1.bf16.msra.mxu0 %v4830
    %4916 = vmatprep.subr.bf16.mxu0 %v4827
    %4917 = vmatpush1.bf16.msra.mxu0 %v4826
    %4918 = vmatprep.subr.bf16.mxu0 %v4823
    %4919 = vmatpush1.bf16.msra.mxu0 %v4822
    %4920 = vmatprep.subr.bf16.mxu0 0
    %4921 = vmatpush2.bf16.msra.mxu0 0
    %4922 = vmatprep.subr.bf16.mxu0 0
    %4923 = vmatpush2.bf16.msra.mxu0 0
    %4924 = vmatprep.subr.bf16.mxu0 0
    %4925 = vmatpush2.bf16.msra.mxu0 0
    %4926 = vmatprep.subr.bf16.mxu0 0
    %4927 = vmatpush2.bf16.msra.mxu0 0
    %4928 = vmatprep.subr.bf16.mxu0 0
    %4929 = vmatpush2.bf16.msra.mxu0 0
    %4930 = vmatprep.subr.bf16.mxu0 0
    %4931 = vmatpush2.bf16.msra.mxu0 0
    %4932 = vmatprep.subr.bf16.mxu0 0
    %4933 = vmatpush2.bf16.msra.mxu0 0
    %4934 = vmatprep.subr.bf16.mxu0 0
    %4935 = vmatpush2.bf16.msra.mxu0 0
    %4936 = vmatprep.mubr.bf16.mxu0 0
    %4937 = vmatmul.mubr.bf16.gmra.mxu0 %v4849
    %v4938 = vpop.f32.mrf.mxu0
    %v4939 = vadd.f32 0.0, %v4938
    %v4940 = vpop.f32.mrf.mxu0
    %v4941 = vadd.f32 0.0, %v4940
    %v4942 = vpop.f32.mrf.mxu0
    %v4943 = vpop.f32.mrf.mxu0
    %4944 = vdwg.mxu0
    %v4945 = vadd.f32 %v4754, %v4898
    %v4946 = vadd.f32 %v4755, %v4900
    %v4947 = vadd.f32 %v4756, %v4939
    %v4948 = vadd.f32 %v4757, %v4941
    %v4949 = vld [vmem:[#allocation3 + $0x14] sm:$0x1]
    %s4950 = scalar_lea.vmem %s2, 2240
    %v4951 = vld [vmem:[%s4950] sm:$0xff]
    %v4952 = vld [vmem:[%s4950 + $0x8] sm:$0xff]
    %v4953 = vld [vmem:[%s4950 + $0x10] sm:$0xff]
    %v4954 = vld [vmem:[%s4950 + $0x18] sm:$0xff]
    %v4955 = vld [vmem:[%s4950 + $0x20] sm:$0xff]
    %v4956 = vld [vmem:[%s4950 + $0x28] sm:$0xff]
    %v4957 = vld [vmem:[%s4950 + $0x30] sm:$0xff]
    %v4958 = vld [vmem:[%s4950 + $0x38] sm:$0xff]
    %v4959 = vld [vmem:[%s4950 + $0x40] sm:$0xff]
    %v4960 = vld [vmem:[%s4950 + $0x48] sm:$0xff]
    %v4961 = vld [vmem:[%s4950 + $0x50] sm:$0xff]
    %v4962 = vld [vmem:[%s4950 + $0x58] sm:$0xff]
    %v4963 = vld [vmem:[%s4950 + $0x60] sm:$0x11]
    %v4964 = vld [vmem:[%s4950 + $0x68] sm:$0x11]
    %v4979 = vunpack.c.l.b16 %v4951
    %v4980 = vunpack.c.h.b16 %v4951
    %v4981 = vunpack.c.l.b16 %v4952
    %v4982 = vunpack.c.h.b16 %v4952
    %v4983 = vunpack.c.l.b16 %v4953
    %v4984 = vunpack.c.h.b16 %v4953
    %v4985 = vunpack.c.l.b16 %v4954
    %v4986 = vunpack.c.h.b16 %v4954
    %v4987 = vunpack.c.l.b16 %v4955
    %v4988 = vunpack.c.h.b16 %v4955
    %v4989 = vunpack.c.l.b16 %v4956
    %v4990 = vunpack.c.h.b16 %v4956
    %v4991 = vunpack.c.l.b16 %v4957
    %v4992 = vunpack.c.h.b16 %v4957
    %v4993 = vunpack.c.l.b16 %v4958
    %v4994 = vunpack.c.h.b16 %v4958
    %v4995 = vunpack.c.l.b16 %v4959
    %v4996 = vunpack.c.h.b16 %v4959
    %v4997 = vunpack.c.l.b16 %v4960
    %v4998 = vunpack.c.h.b16 %v4960
    %v4999 = vunpack.c.l.b16 %v4961
    %v5000 = vunpack.c.h.b16 %v4961
    %v5001 = vunpack.c.l.b16 %v4962
    %v5002 = vunpack.c.h.b16 %v4962
    %v5003 = vunpack.c.l.b16 %v4963
    %v5004 = vunpack.c.h.b16 %v4963
    %v5005 = vunpack.c.l.b16 %v4964
    %v5006 = vunpack.c.h.b16 %v4964
    %v5007 = vpack.c.b16 %v4983, %v4979
    %v5008 = vpack.c.b16 %v4984, %v4980
    %v5009 = vpack.c.b16 %v4985, %v4981
    %v5010 = vpack.c.b16 %v4986, %v4982
    %v5011 = vpack.c.b16 %v4991, %v4987
    %v5012 = vpack.c.b16 %v4992, %v4988
    %v5013 = vpack.c.b16 %v4993, %v4989
    %v5014 = vpack.c.b16 %v4994, %v4990
    %v5015 = vpack.c.b16 %v4999, %v4995
    %v5016 = vpack.c.b16 %v5000, %v4996
    %v5017 = vpack.c.b16 %v5001, %v4997
    %v5018 = vpack.c.b16 %v5002, %v4998
    %v5019 = vpack.c.b16 %v5003, %v5003
    %v5020 = vpack.c.b16 %v5004, %v5004
    %v5021 = vpack.c.b16 %v5005, %v5005
    %v5022 = vpack.c.b16 %v5006, %v5006
    %v5036 = vsel %vm881, %v4949, 0
    %v5039 = vsel %vm1265, %v5019, 0
    %v5042 = vsel %vm1265, %v5020, 0
    %v5045 = vsel %vm1265, %v5021, 0
    %v5048 = vsel %vm1265, %v5022, 0
    %5050 = vmatprep.subr.bf16.mxu0 0
    %5051 = vmatpush1.bf16.msra.mxu0 0
    %5052 = vmatprep.subr.bf16.mxu0 0
    %5053 = vmatpush1.bf16.msra.mxu0 0
    %5054 = vmatprep.subr.bf16.mxu0 0
    %5055 = vmatpush1.bf16.msra.mxu0 0
    %5056 = vmatprep.subr.bf16.mxu0 0
    %5057 = vmatpush1.bf16.msra.mxu0 0
    %5058 = vmatprep.subr.bf16.mxu0 %v5042
    %5059 = vmatpush1.bf16.msra.mxu0 %v5039
    %5060 = vmatprep.subr.bf16.mxu0 %v5016
    %5061 = vmatpush1.bf16.msra.mxu0 %v5015
    %5062 = vmatprep.subr.bf16.mxu0 %v5012
    %5063 = vmatpush1.bf16.msra.mxu0 %v5011
    %5064 = vmatprep.subr.bf16.mxu0 %v5008
    %5065 = vmatpush1.bf16.msra.mxu0 %v5007
    %5066 = vmatprep.subr.bf16.mxu0 0
    %5067 = vmatpush2.bf16.msra.mxu0 0
    %5068 = vmatprep.subr.bf16.mxu0 0
    %5069 = vmatpush2.bf16.msra.mxu0 0
    %5070 = vmatprep.subr.bf16.mxu0 0
    %5071 = vmatpush2.bf16.msra.mxu0 0
    %5072 = vmatprep.subr.bf16.mxu0 0
    %5073 = vmatpush2.bf16.msra.mxu0 0
    %5074 = vmatprep.subr.bf16.mxu0 0
    %5075 = vmatpush2.bf16.msra.mxu0 0
    %5076 = vmatprep.subr.bf16.mxu0 0
    %5077 = vmatpush2.bf16.msra.mxu0 0
    %5078 = vmatprep.subr.bf16.mxu0 0
    %5079 = vmatpush2.bf16.msra.mxu0 0
    %5080 = vmatprep.subr.bf16.mxu0 0
    %5081 = vmatpush2.bf16.msra.mxu0 0
    %5082 = vmatprep.mubr.bf16.mxu0 0
    %5083 = vmatmul.mubr.bf16.gmra.mxu0 %v5036
    %v5084 = vpop.f32.mrf.mxu0
    %v5085 = vadd.f32 0.0, %v5084
    %v5086 = vpop.f32.mrf.mxu0
    %v5087 = vadd.f32 0.0, %v5086
    %v5088 = vpop.f32.mrf.mxu0
    %v5089 = vpop.f32.mrf.mxu0
    %5090 = vdwg.mxu0
    %5091 = vmatprep.subr.bf16.mxu0 0
    %5092 = vmatpush1.bf16.msra.mxu0 0
    %5093 = vmatprep.subr.bf16.mxu0 0
    %5094 = vmatpush1.bf16.msra.mxu0 0
    %5095 = vmatprep.subr.bf16.mxu0 0
    %5096 = vmatpush1.bf16.msra.mxu0 0
    %5097 = vmatprep.subr.bf16.mxu0 0
    %5098 = vmatpush1.bf16.msra.mxu0 0
    %5099 = vmatprep.subr.bf16.mxu0 %v5048
    %5100 = vmatpush1.bf16.msra.mxu0 %v5045
    %5101 = vmatprep.subr.bf16.mxu0 %v5018
    %5102 = vmatpush1.bf16.msra.mxu0 %v5017
    %5103 = vmatprep.subr.bf16.mxu0 %v5014
    %5104 = vmatpush1.bf16.msra.mxu0 %v5013
    %5105 = vmatprep.subr.bf16.mxu0 %v5010
    %5106 = vmatpush1.bf16.msra.mxu0 %v5009
    %5107 = vmatprep.subr.bf16.mxu0 0
    %5108 = vmatpush2.bf16.msra.mxu0 0
    %5109 = vmatprep.subr.bf16.mxu0 0
    %5110 = vmatpush2.bf16.msra.mxu0 0
    %5111 = vmatprep.subr.bf16.mxu0 0
    %5112 = vmatpush2.bf16.msra.mxu0 0
    %5113 = vmatprep.subr.bf16.mxu0 0
    %5114 = vmatpush2.bf16.msra.mxu0 0
    %5115 = vmatprep.subr.bf16.mxu0 0
    %5116 = vmatpush2.bf16.msra.mxu0 0
    %5117 = vmatprep.subr.bf16.mxu0 0
    %5118 = vmatpush2.bf16.msra.mxu0 0
    %5119 = vmatprep.subr.bf16.mxu0 0
    %5120 = vmatpush2.bf16.msra.mxu0 0
    %5121 = vmatprep.subr.bf16.mxu0 0
    %5122 = vmatpush2.bf16.msra.mxu0 0
    %5123 = vmatprep.mubr.bf16.mxu0 0
    %5124 = vmatmul.mubr.bf16.gmra.mxu0 %v5036
    %v5125 = vpop.f32.mrf.mxu0
    %v5126 = vadd.f32 0.0, %v5125
    %v5127 = vpop.f32.mrf.mxu0
    %v5128 = vadd.f32 0.0, %v5127
    %v5129 = vpop.f32.mrf.mxu0
    %v5130 = vpop.f32.mrf.mxu0
    %5131 = vdwg.mxu0
    %v5132 = vadd.f32 %v4945, %v5085
    %v5133 = vadd.f32 %v4946, %v5087
    %v5134 = vadd.f32 %v4947, %v5126
    %v5135 = vadd.f32 %v4948, %v5128
    %v5136 = vld [vmem:[#allocation3 + $0x14] sm:$0x2]
    %s5137 = scalar_lea.vmem %s2, 2352
    %v5138 = vld [vmem:[%s5137] sm:$0xff]
    %v5139 = vld [vmem:[%s5137 + $0x8] sm:$0xff]
    %v5140 = vld [vmem:[%s5137 + $0x10] sm:$0xff]
    %v5141 = vld [vmem:[%s5137 + $0x18] sm:$0xff]
    %v5142 = vld [vmem:[%s5137 + $0x20] sm:$0xff]
    %v5143 = vld [vmem:[%s5137 + $0x28] sm:$0xff]
    %v5144 = vld [vmem:[%s5137 + $0x30] sm:$0xff]
    %v5145 = vld [vmem:[%s5137 + $0x38] sm:$0xff]
    %v5146 = vld [vmem:[%s5137 + $0x40] sm:$0xff]
    %v5147 = vld [vmem:[%s5137 + $0x48] sm:$0xff]
    %v5148 = vld [vmem:[%s5137 + $0x50] sm:$0xff]
    %v5149 = vld [vmem:[%s5137 + $0x58] sm:$0xff]
    %v5150 = vld [vmem:[%s5137 + $0x60] sm:$0x11]
    %v5151 = vld [vmem:[%s5137 + $0x68] sm:$0x11]
    %v5153 = vunpack.c.l.b16 %v5136
    %v5154 = vpack.c.b16 %v5153, %v5153
    %v5155 = vrot.slane %v5154, 1
    %v5170 = vunpack.c.l.b16 %v5138
    %v5171 = vunpack.c.h.b16 %v5138
    %v5172 = vunpack.c.l.b16 %v5139
    %v5173 = vunpack.c.h.b16 %v5139
    %v5174 = vunpack.c.l.b16 %v5140
    %v5175 = vunpack.c.h.b16 %v5140
    %v5176 = vunpack.c.l.b16 %v5141
    %v5177 = vunpack.c.h.b16 %v5141
    %v5178 = vunpack.c.l.b16 %v5142
    %v5179 = vunpack.c.h.b16 %v5142
    %v5180 = vunpack.c.l.b16 %v5143
    %v5181 = vunpack.c.h.b16 %v5143
    %v5182 = vunpack.c.l.b16 %v5144
    %v5183 = vunpack.c.h.b16 %v5144
    %v5184 = vunpack.c.l.b16 %v5145
    %v5185 = vunpack.c.h.b16 %v5145
    %v5186 = vunpack.c.l.b16 %v5146
    %v5187 = vunpack.c.h.b16 %v5146
    %v5188 = vunpack.c.l.b16 %v5147
    %v5189 = vunpack.c.h.b16 %v5147
    %v5190 = vunpack.c.l.b16 %v5148
    %v5191 = vunpack.c.h.b16 %v5148
    %v5192 = vunpack.c.l.b16 %v5149
    %v5193 = vunpack.c.h.b16 %v5149
    %v5194 = vunpack.c.l.b16 %v5150
    %v5195 = vunpack.c.h.b16 %v5150
    %v5196 = vunpack.c.l.b16 %v5151
    %v5197 = vunpack.c.h.b16 %v5151
    %v5198 = vpack.c.b16 %v5174, %v5170
    %v5199 = vpack.c.b16 %v5175, %v5171
    %v5200 = vpack.c.b16 %v5176, %v5172
    %v5201 = vpack.c.b16 %v5177, %v5173
    %v5202 = vpack.c.b16 %v5182, %v5178
    %v5203 = vpack.c.b16 %v5183, %v5179
    %v5204 = vpack.c.b16 %v5184, %v5180
    %v5205 = vpack.c.b16 %v5185, %v5181
    %v5206 = vpack.c.b16 %v5190, %v5186
    %v5207 = vpack.c.b16 %v5191, %v5187
    %v5208 = vpack.c.b16 %v5192, %v5188
    %v5209 = vpack.c.b16 %v5193, %v5189
    %v5210 = vpack.c.b16 %v5194, %v5194
    %v5211 = vpack.c.b16 %v5195, %v5195
    %v5212 = vpack.c.b16 %v5196, %v5196
    %v5213 = vpack.c.b16 %v5197, %v5197
    %v5227 = vsel %vm881, %v5155, 0
    %v5230 = vsel %vm1265, %v5210, 0
    %v5233 = vsel %vm1265, %v5211, 0
    %v5236 = vsel %vm1265, %v5212, 0
    %v5239 = vsel %vm1265, %v5213, 0
    %5241 = vmatprep.subr.bf16.mxu0 0
    %5242 = vmatpush1.bf16.msra.mxu0 0
    %5243 = vmatprep.subr.bf16.mxu0 0
    %5244 = vmatpush1.bf16.msra.mxu0 0
    %5245 = vmatprep.subr.bf16.mxu0 0
    %5246 = vmatpush1.bf16.msra.mxu0 0
    %5247 = vmatprep.subr.bf16.mxu0 0
    %5248 = vmatpush1.bf16.msra.mxu0 0
    %5249 = vmatprep.subr.bf16.mxu0 %v5233
    %5250 = vmatpush1.bf16.msra.mxu0 %v5230
    %5251 = vmatprep.subr.bf16.mxu0 %v5207
    %5252 = vmatpush1.bf16.msra.mxu0 %v5206
    %5253 = vmatprep.subr.bf16.mxu0 %v5203
    %5254 = vmatpush1.bf16.msra.mxu0 %v5202
    %5255 = vmatprep.subr.bf16.mxu0 %v5199
    %5256 = vmatpush1.bf16.msra.mxu0 %v5198
    %5257 = vmatprep.subr.bf16.mxu0 0
    %5258 = vmatpush2.bf16.msra.mxu0 0
    %5259 = vmatprep.subr.bf16.mxu0 0
    %5260 = vmatpush2.bf16.msra.mxu0 0
    %5261 = vmatprep.subr.bf16.mxu0 0
    %5262 = vmatpush2.bf16.msra.mxu0 0
    %5263 = vmatprep.subr.bf16.mxu0 0
    %5264 = vmatpush2.bf16.msra.mxu0 0
    %5265 = vmatprep.subr.bf16.mxu0 0
    %5266 = vmatpush2.bf16.msra.mxu0 0
    %5267 = vmatprep.subr.bf16.mxu0 0
    %5268 = vmatpush2.bf16.msra.mxu0 0
    %5269 = vmatprep.subr.bf16.mxu0 0
    %5270 = vmatpush2.bf16.msra.mxu0 0
    %5271 = vmatprep.subr.bf16.mxu0 0
    %5272 = vmatpush2.bf16.msra.mxu0 0
    %5273 = vmatprep.mubr.bf16.mxu0 0
    %5274 = vmatmul.mubr.bf16.gmra.mxu0 %v5227
    %v5275 = vpop.f32.mrf.mxu0
    %v5276 = vadd.f32 0.0, %v5275
    %v5277 = vpop.f32.mrf.mxu0
    %v5278 = vadd.f32 0.0, %v5277
    %v5279 = vpop.f32.mrf.mxu0
    %v5280 = vpop.f32.mrf.mxu0
    %5281 = vdwg.mxu0
    %5282 = vmatprep.subr.bf16.mxu0 0
    %5283 = vmatpush1.bf16.msra.mxu0 0
    %5284 = vmatprep.subr.bf16.mxu0 0
    %5285 = vmatpush1.bf16.msra.mxu0 0
    %5286 = vmatprep.subr.bf16.mxu0 0
    %5287 = vmatpush1.bf16.msra.mxu0 0
    %5288 = vmatprep.subr.bf16.mxu0 0
    %5289 = vmatpush1.bf16.msra.mxu0 0
    %5290 = vmatprep.subr.bf16.mxu0 %v5239
    %5291 = vmatpush1.bf16.msra.mxu0 %v5236
    %5292 = vmatprep.subr.bf16.mxu0 %v5209
    %5293 = vmatpush1.bf16.msra.mxu0 %v5208
    %5294 = vmatprep.subr.bf16.mxu0 %v5205
    %5295 = vmatpush1.bf16.msra.mxu0 %v5204
    %5296 = vmatprep.subr.bf16.mxu0 %v5201
    %5297 = vmatpush1.bf16.msra.mxu0 %v5200
    %5298 = vmatprep.subr.bf16.mxu0 0
    %5299 = vmatpush2.bf16.msra.mxu0 0
    %5300 = vmatprep.subr.bf16.mxu0 0
    %5301 = vmatpush2.bf16.msra.mxu0 0
    %5302 = vmatprep.subr.bf16.mxu0 0
    %5303 = vmatpush2.bf16.msra.mxu0 0
    %5304 = vmatprep.subr.bf16.mxu0 0
    %5305 = vmatpush2.bf16.msra.mxu0 0
    %5306 = vmatprep.subr.bf16.mxu0 0
    %5307 = vmatpush2.bf16.msra.mxu0 0
    %5308 = vmatprep.subr.bf16.mxu0 0
    %5309 = vmatpush2.bf16.msra.mxu0 0
    %5310 = vmatprep.subr.bf16.mxu0 0
    %5311 = vmatpush2.bf16.msra.mxu0 0
    %5312 = vmatprep.subr.bf16.mxu0 0
    %5313 = vmatpush2.bf16.msra.mxu0 0
    %5314 = vmatprep.mubr.bf16.mxu0 0
    %5315 = vmatmul.mubr.bf16.gmra.mxu0 %v5227
    %v5316 = vpop.f32.mrf.mxu0
    %v5317 = vadd.f32 0.0, %v5316
    %v5318 = vpop.f32.mrf.mxu0
    %v5319 = vadd.f32 0.0, %v5318
    %v5320 = vpop.f32.mrf.mxu0
    %v5321 = vpop.f32.mrf.mxu0
    %5322 = vdwg.mxu0
    %v5323 = vadd.f32 %v5132, %v5276
    %v5324 = vadd.f32 %v5133, %v5278
    %v5325 = vadd.f32 %v5134, %v5317
    %v5326 = vadd.f32 %v5135, %v5319
    %v5327 = vld [vmem:[#allocation3 + $0x14] sm:$0x4]
    %s5328 = scalar_lea.vmem %s2, 2464
    %v5329 = vld [vmem:[%s5328] sm:$0xff]
    %v5330 = vld [vmem:[%s5328 + $0x8] sm:$0xff]
    %v5331 = vld [vmem:[%s5328 + $0x10] sm:$0xff]
    %v5332 = vld [vmem:[%s5328 + $0x18] sm:$0xff]
    %v5333 = vld [vmem:[%s5328 + $0x20] sm:$0xff]
    %v5334 = vld [vmem:[%s5328 + $0x28] sm:$0xff]
    %v5335 = vld [vmem:[%s5328 + $0x30] sm:$0xff]
    %v5336 = vld [vmem:[%s5328 + $0x38] sm:$0xff]
    %v5337 = vld [vmem:[%s5328 + $0x40] sm:$0xff]
    %v5338 = vld [vmem:[%s5328 + $0x48] sm:$0xff]
    %v5339 = vld [vmem:[%s5328 + $0x50] sm:$0xff]
    %v5340 = vld [vmem:[%s5328 + $0x58] sm:$0xff]
    %v5341 = vld [vmem:[%s5328 + $0x60] sm:$0x11]
    %v5342 = vld [vmem:[%s5328 + $0x68] sm:$0x11]
    %v5344 = vunpack.c.l.b16 %v5327
    %v5345 = vpack.c.b16 %v5344, %v5344
    %v5346 = vrot.slane %v5345, 2
    %v5361 = vunpack.c.l.b16 %v5329
    %v5362 = vunpack.c.h.b16 %v5329
    %v5363 = vunpack.c.l.b16 %v5330
    %v5364 = vunpack.c.h.b16 %v5330
    %v5365 = vunpack.c.l.b16 %v5331
    %v5366 = vunpack.c.h.b16 %v5331
    %v5367 = vunpack.c.l.b16 %v5332
    %v5368 = vunpack.c.h.b16 %v5332
    %v5369 = vunpack.c.l.b16 %v5333
    %v5370 = vunpack.c.h.b16 %v5333
    %v5371 = vunpack.c.l.b16 %v5334
    %v5372 = vunpack.c.h.b16 %v5334
    %v5373 = vunpack.c.l.b16 %v5335
    %v5374 = vunpack.c.h.b16 %v5335
    %v5375 = vunpack.c.l.b16 %v5336
    %v5376 = vunpack.c.h.b16 %v5336
    %v5377 = vunpack.c.l.b16 %v5337
    %v5378 = vunpack.c.h.b16 %v5337
    %v5379 = vunpack.c.l.b16 %v5338
    %v5380 = vunpack.c.h.b16 %v5338
    %v5381 = vunpack.c.l.b16 %v5339
    %v5382 = vunpack.c.h.b16 %v5339
    %v5383 = vunpack.c.l.b16 %v5340
    %v5384 = vunpack.c.h.b16 %v5340
    %v5385 = vunpack.c.l.b16 %v5341
    %v5386 = vunpack.c.h.b16 %v5341
    %v5387 = vunpack.c.l.b16 %v5342
    %v5388 = vunpack.c.h.b16 %v5342
    %v5389 = vpack.c.b16 %v5365, %v5361
    %v5390 = vpack.c.b16 %v5366, %v5362
    %v5391 = vpack.c.b16 %v5367, %v5363
    %v5392 = vpack.c.b16 %v5368, %v5364
    %v5393 = vpack.c.b16 %v5373, %v5369
    %v5394 = vpack.c.b16 %v5374, %v5370
    %v5395 = vpack.c.b16 %v5375, %v5371
    %v5396 = vpack.c.b16 %v5376, %v5372
    %v5397 = vpack.c.b16 %v5381, %v5377
    %v5398 = vpack.c.b16 %v5382, %v5378
    %v5399 = vpack.c.b16 %v5383, %v5379
    %v5400 = vpack.c.b16 %v5384, %v5380
    %v5401 = vpack.c.b16 %v5385, %v5385
    %v5402 = vpack.c.b16 %v5386, %v5386
    %v5403 = vpack.c.b16 %v5387, %v5387
    %v5404 = vpack.c.b16 %v5388, %v5388
    %v5418 = vsel %vm881, %v5346, 0
    %v5421 = vsel %vm1265, %v5401, 0
    %v5424 = vsel %vm1265, %v5402, 0
    %v5427 = vsel %vm1265, %v5403, 0
    %v5430 = vsel %vm1265, %v5404, 0
    %5432 = vmatprep.subr.bf16.mxu0 0
    %5433 = vmatpush1.bf16.msra.mxu0 0
    %5434 = vmatprep.subr.bf16.mxu0 0
    %5435 = vmatpush1.bf16.msra.mxu0 0
    %5436 = vmatprep.subr.bf16.mxu0 0
    %5437 = vmatpush1.bf16.msra.mxu0 0
    %5438 = vmatprep.subr.bf16.mxu0 0
    %5439 = vmatpush1.bf16.msra.mxu0 0
    %5440 = vmatprep.subr.bf16.mxu0 %v5424
    %5441 = vmatpush1.bf16.msra.mxu0 %v5421
    %5442 = vmatprep.subr.bf16.mxu0 %v5398
    %5443 = vmatpush1.bf16.msra.mxu0 %v5397
    %5444 = vmatprep.subr.bf16.mxu0 %v5394
    %5445 = vmatpush1.bf16.msra.mxu0 %v5393
    %5446 = vmatprep.subr.bf16.mxu0 %v5390
    %5447 = vmatpush1.bf16.msra.mxu0 %v5389
    %5448 = vmatprep.subr.bf16.mxu0 0
    %5449 = vmatpush2.bf16.msra.mxu0 0
    %5450 = vmatprep.subr.bf16.mxu0 0
    %5451 = vmatpush2.bf16.msra.mxu0 0
    %5452 = vmatprep.subr.bf16.mxu0 0
    %5453 = vmatpush2.bf16.msra.mxu0 0
    %5454 = vmatprep.subr.bf16.mxu0 0
    %5455 = vmatpush2.bf16.msra.mxu0 0
    %5456 = vmatprep.subr.bf16.mxu0 0
    %5457 = vmatpush2.bf16.msra.mxu0 0
    %5458 = vmatprep.subr.bf16.mxu0 0
    %5459 = vmatpush2.bf16.msra.mxu0 0
    %5460 = vmatprep.subr.bf16.mxu0 0
    %5461 = vmatpush2.bf16.msra.mxu0 0
    %5462 = vmatprep.subr.bf16.mxu0 0
    %5463 = vmatpush2.bf16.msra.mxu0 0
    %5464 = vmatprep.mubr.bf16.mxu0 0
    %5465 = vmatmul.mubr.bf16.gmra.mxu0 %v5418
    %v5466 = vpop.f32.mrf.mxu0
    %v5467 = vadd.f32 0.0, %v5466
    %v5468 = vpop.f32.mrf.mxu0
    %v5469 = vadd.f32 0.0, %v5468
    %v5470 = vpop.f32.mrf.mxu0
    %v5471 = vpop.f32.mrf.mxu0
    %5472 = vdwg.mxu0
    %5473 = vmatprep.subr.bf16.mxu0 0
    %5474 = vmatpush1.bf16.msra.mxu0 0
    %5475 = vmatprep.subr.bf16.mxu0 0
    %5476 = vmatpush1.bf16.msra.mxu0 0
    %5477 = vmatprep.subr.bf16.mxu0 0
    %5478 = vmatpush1.bf16.msra.mxu0 0
    %5479 = vmatprep.subr.bf16.mxu0 0
    %5480 = vmatpush1.bf16.msra.mxu0 0
    %5481 = vmatprep.subr.bf16.mxu0 %v5430
    %5482 = vmatpush1.bf16.msra.mxu0 %v5427
    %5483 = vmatprep.subr.bf16.mxu0 %v5400
    %5484 = vmatpush1.bf16.msra.mxu0 %v5399
    %5485 = vmatprep.subr.bf16.mxu0 %v5396
    %5486 = vmatpush1.bf16.msra.mxu0 %v5395
    %5487 = vmatprep.subr.bf16.mxu0 %v5392
    %5488 = vmatpush1.bf16.msra.mxu0 %v5391
    %5489 = vmatprep.subr.bf16.mxu0 0
    %5490 = vmatpush2.bf16.msra.mxu0 0
    %5491 = vmatprep.subr.bf16.mxu0 0
    %5492 = vmatpush2.bf16.msra.mxu0 0
    %5493 = vmatprep.subr.bf16.mxu0 0
    %5494 = vmatpush2.bf16.msra.mxu0 0
    %5495 = vmatprep.subr.bf16.mxu0 0
    %5496 = vmatpush2.bf16.msra.mxu0 0
    %5497 = vmatprep.subr.bf16.mxu0 0
    %5498 = vmatpush2.bf16.msra.mxu0 0
    %5499 = vmatprep.subr.bf16.mxu0 0
    %5500 = vmatpush2.bf16.msra.mxu0 0
    %5501 = vmatprep.subr.bf16.mxu0 0
    %5502 = vmatpush2.bf16.msra.mxu0 0
    %5503 = vmatprep.subr.bf16.mxu0 0
    %5504 = vmatpush2.bf16.msra.mxu0 0
    %5505 = vmatprep.mubr.bf16.mxu0 0
    %5506 = vmatmul.mubr.bf16.gmra.mxu0 %v5418
    %v5507 = vpop.f32.mrf.mxu0
    %v5508 = vadd.f32 0.0, %v5507
    %v5509 = vpop.f32.mrf.mxu0
    %v5510 = vadd.f32 0.0, %v5509
    %v5511 = vpop.f32.mrf.mxu0
    %v5512 = vpop.f32.mrf.mxu0
    %5513 = vdwg.mxu0
    %v5514 = vadd.f32 %v5323, %v5467
    %v5515 = vadd.f32 %v5324, %v5469
    %v5516 = vadd.f32 %v5325, %v5508
    %v5517 = vadd.f32 %v5326, %v5510
    %v5518 = vld [vmem:[#allocation3 + $0x14] sm:$0x8]
    %s5519 = scalar_lea.vmem %s2, 2576
    %v5520 = vld [vmem:[%s5519] sm:$0xff]
    %v5521 = vld [vmem:[%s5519 + $0x8] sm:$0xff]
    %v5522 = vld [vmem:[%s5519 + $0x10] sm:$0xff]
    %v5523 = vld [vmem:[%s5519 + $0x18] sm:$0xff]
    %v5524 = vld [vmem:[%s5519 + $0x20] sm:$0xff]
    %v5525 = vld [vmem:[%s5519 + $0x28] sm:$0xff]
    %v5526 = vld [vmem:[%s5519 + $0x30] sm:$0xff]
    %v5527 = vld [vmem:[%s5519 + $0x38] sm:$0xff]
    %v5528 = vld [vmem:[%s5519 + $0x40] sm:$0xff]
    %v5529 = vld [vmem:[%s5519 + $0x48] sm:$0xff]
    %v5530 = vld [vmem:[%s5519 + $0x50] sm:$0xff]
    %v5531 = vld [vmem:[%s5519 + $0x58] sm:$0xff]
    %v5532 = vld [vmem:[%s5519 + $0x60] sm:$0x11]
    %v5533 = vld [vmem:[%s5519 + $0x68] sm:$0x11]
    %v5535 = vunpack.c.l.b16 %v5518
    %v5536 = vpack.c.b16 %v5535, %v5535
    %v5537 = vrot.slane %v5536, 3
    %v5552 = vunpack.c.l.b16 %v5520
    %v5553 = vunpack.c.h.b16 %v5520
    %v5554 = vunpack.c.l.b16 %v5521
    %v5555 = vunpack.c.h.b16 %v5521
    %v5556 = vunpack.c.l.b16 %v5522
    %v5557 = vunpack.c.h.b16 %v5522
    %v5558 = vunpack.c.l.b16 %v5523
    %v5559 = vunpack.c.h.b16 %v5523
    %v5560 = vunpack.c.l.b16 %v5524
    %v5561 = vunpack.c.h.b16 %v5524
    %v5562 = vunpack.c.l.b16 %v5525
    %v5563 = vunpack.c.h.b16 %v5525
    %v5564 = vunpack.c.l.b16 %v5526
    %v5565 = vunpack.c.h.b16 %v5526
    %v5566 = vunpack.c.l.b16 %v5527
    %v5567 = vunpack.c.h.b16 %v5527
    %v5568 = vunpack.c.l.b16 %v5528
    %v5569 = vunpack.c.h.b16 %v5528
    %v5570 = vunpack.c.l.b16 %v5529
    %v5571 = vunpack.c.h.b16 %v5529
    %v5572 = vunpack.c.l.b16 %v5530
    %v5573 = vunpack.c.h.b16 %v5530
    %v5574 = vunpack.c.l.b16 %v5531
    %v5575 = vunpack.c.h.b16 %v5531
    %v5576 = vunpack.c.l.b16 %v5532
    %v5577 = vunpack.c.h.b16 %v5532
    %v5578 = vunpack.c.l.b16 %v5533
    %v5579 = vunpack.c.h.b16 %v5533
    %v5580 = vpack.c.b16 %v5556, %v5552
    %v5581 = vpack.c.b16 %v5557, %v5553
    %v5582 = vpack.c.b16 %v5558, %v5554
    %v5583 = vpack.c.b16 %v5559, %v5555
    %v5584 = vpack.c.b16 %v5564, %v5560
    %v5585 = vpack.c.b16 %v5565, %v5561
    %v5586 = vpack.c.b16 %v5566, %v5562
    %v5587 = vpack.c.b16 %v5567, %v5563
    %v5588 = vpack.c.b16 %v5572, %v5568
    %v5589 = vpack.c.b16 %v5573, %v5569
    %v5590 = vpack.c.b16 %v5574, %v5570
    %v5591 = vpack.c.b16 %v5575, %v5571
    %v5592 = vpack.c.b16 %v5576, %v5576
    %v5593 = vpack.c.b16 %v5577, %v5577
    %v5594 = vpack.c.b16 %v5578, %v5578
    %v5595 = vpack.c.b16 %v5579, %v5579
    %v5609 = vsel %vm881, %v5537, 0
    %v5612 = vsel %vm1265, %v5592, 0
    %v5615 = vsel %vm1265, %v5593, 0
    %v5618 = vsel %vm1265, %v5594, 0
    %v5621 = vsel %vm1265, %v5595, 0
    %5623 = vmatprep.subr.bf16.mxu0 0
    %5624 = vmatpush1.bf16.msra.mxu0 0
    %5625 = vmatprep.subr.bf16.mxu0 0
    %5626 = vmatpush1.bf16.msra.mxu0 0
    %5627 = vmatprep.subr.bf16.mxu0 0
    %5628 = vmatpush1.bf16.msra.mxu0 0
    %5629 = vmatprep.subr.bf16.mxu0 0
    %5630 = vmatpush1.bf16.msra.mxu0 0
    %5631 = vmatprep.subr.bf16.mxu0 %v5615
    %5632 = vmatpush1.bf16.msra.mxu0 %v5612
    %5633 = vmatprep.subr.bf16.mxu0 %v5589
    %5634 = vmatpush1.bf16.msra.mxu0 %v5588
    %5635 = vmatprep.subr.bf16.mxu0 %v5585
    %5636 = vmatpush1.bf16.msra.mxu0 %v5584
    %5637 = vmatprep.subr.bf16.mxu0 %v5581
    %5638 = vmatpush1.bf16.msra.mxu0 %v5580
    %5639 = vmatprep.subr.bf16.mxu0 0
    %5640 = vmatpush2.bf16.msra.mxu0 0
    %5641 = vmatprep.subr.bf16.mxu0 0
    %5642 = vmatpush2.bf16.msra.mxu0 0
    %5643 = vmatprep.subr.bf16.mxu0 0
    %5644 = vmatpush2.bf16.msra.mxu0 0
    %5645 = vmatprep.subr.bf16.mxu0 0
    %5646 = vmatpush2.bf16.msra.mxu0 0
    %5647 = vmatprep.subr.bf16.mxu0 0
    %5648 = vmatpush2.bf16.msra.mxu0 0
    %5649 = vmatprep.subr.bf16.mxu0 0
    %5650 = vmatpush2.bf16.msra.mxu0 0
    %5651 = vmatprep.subr.bf16.mxu0 0
    %5652 = vmatpush2.bf16.msra.mxu0 0
    %5653 = vmatprep.subr.bf16.mxu0 0
    %5654 = vmatpush2.bf16.msra.mxu0 0
    %5655 = vmatprep.mubr.bf16.mxu0 0
    %5656 = vmatmul.mubr.bf16.gmra.mxu0 %v5609
    %v5657 = vpop.f32.mrf.mxu0
    %v5658 = vadd.f32 0.0, %v5657
    %v5659 = vpop.f32.mrf.mxu0
    %v5660 = vadd.f32 0.0, %v5659
    %v5661 = vpop.f32.mrf.mxu0
    %v5662 = vpop.f32.mrf.mxu0
    %5663 = vdwg.mxu0
    %5664 = vmatprep.subr.bf16.mxu0 0
    %5665 = vmatpush1.bf16.msra.mxu0 0
    %5666 = vmatprep.subr.bf16.mxu0 0
    %5667 = vmatpush1.bf16.msra.mxu0 0
    %5668 = vmatprep.subr.bf16.mxu0 0
    %5669 = vmatpush1.bf16.msra.mxu0 0
    %5670 = vmatprep.subr.bf16.mxu0 0
    %5671 = vmatpush1.bf16.msra.mxu0 0
    %5672 = vmatprep.subr.bf16.mxu0 %v5621
    %5673 = vmatpush1.bf16.msra.mxu0 %v5618
    %5674 = vmatprep.subr.bf16.mxu0 %v5591
    %5675 = vmatpush1.bf16.msra.mxu0 %v5590
    %5676 = vmatprep.subr.bf16.mxu0 %v5587
    %5677 = vmatpush1.bf16.msra.mxu0 %v5586
    %5678 = vmatprep.subr.bf16.mxu0 %v5583
    %5679 = vmatpush1.bf16.msra.mxu0 %v5582
    %5680 = vmatprep.subr.bf16.mxu0 0
    %5681 = vmatpush2.bf16.msra.mxu0 0
    %5682 = vmatprep.subr.bf16.mxu0 0
    %5683 = vmatpush2.bf16.msra.mxu0 0
    %5684 = vmatprep.subr.bf16.mxu0 0
    %5685 = vmatpush2.bf16.msra.mxu0 0
    %5686 = vmatprep.subr.bf16.mxu0 0
    %5687 = vmatpush2.bf16.msra.mxu0 0
    %5688 = vmatprep.subr.bf16.mxu0 0
    %5689 = vmatpush2.bf16.msra.mxu0 0
    %5690 = vmatprep.subr.bf16.mxu0 0
    %5691 = vmatpush2.bf16.msra.mxu0 0
    %5692 = vmatprep.subr.bf16.mxu0 0
    %5693 = vmatpush2.bf16.msra.mxu0 0
    %5694 = vmatprep.subr.bf16.mxu0 0
    %5695 = vmatpush2.bf16.msra.mxu0 0
    %5696 = vmatprep.mubr.bf16.mxu0 0
    %5697 = vmatmul.mubr.bf16.gmra.mxu0 %v5609
    %v5698 = vpop.f32.mrf.mxu0
    %v5699 = vadd.f32 0.0, %v5698
    %v5700 = vpop.f32.mrf.mxu0
    %v5701 = vadd.f32 0.0, %v5700
    %v5702 = vpop.f32.mrf.mxu0
    %v5703 = vpop.f32.mrf.mxu0
    %5704 = vdwg.mxu0
    %v5705 = vadd.f32 %v5514, %v5658
    %v5706 = vadd.f32 %v5515, %v5660
    %v5707 = vadd.f32 %v5516, %v5699
    %v5708 = vadd.f32 %v5517, %v5701
    %v5709 = vld [vmem:[#allocation3 + $0x18] sm:$0x1]
    %s5710 = scalar_lea.vmem %s2, 2688
    %v5711 = vld [vmem:[%s5710] sm:$0xff]
    %v5712 = vld [vmem:[%s5710 + $0x8] sm:$0xff]
    %v5713 = vld [vmem:[%s5710 + $0x10] sm:$0xff]
    %v5714 = vld [vmem:[%s5710 + $0x18] sm:$0xff]
    %v5715 = vld [vmem:[%s5710 + $0x20] sm:$0xff]
    %v5716 = vld [vmem:[%s5710 + $0x28] sm:$0xff]
    %v5717 = vld [vmem:[%s5710 + $0x30] sm:$0xff]
    %v5718 = vld [vmem:[%s5710 + $0x38] sm:$0xff]
    %v5719 = vld [vmem:[%s5710 + $0x40] sm:$0xff]
    %v5720 = vld [vmem:[%s5710 + $0x48] sm:$0xff]
    %v5721 = vld [vmem:[%s5710 + $0x50] sm:$0xff]
    %v5722 = vld [vmem:[%s5710 + $0x58] sm:$0xff]
    %v5723 = vld [vmem:[%s5710 + $0x60] sm:$0x11]
    %v5724 = vld [vmem:[%s5710 + $0x68] sm:$0x11]
    %v5739 = vunpack.c.l.b16 %v5711
    %v5740 = vunpack.c.h.b16 %v5711
    %v5741 = vunpack.c.l.b16 %v5712
    %v5742 = vunpack.c.h.b16 %v5712
    %v5743 = vunpack.c.l.b16 %v5713
    %v5744 = vunpack.c.h.b16 %v5713
    %v5745 = vunpack.c.l.b16 %v5714
    %v5746 = vunpack.c.h.b16 %v5714
    %v5747 = vunpack.c.l.b16 %v5715
    %v5748 = vunpack.c.h.b16 %v5715
    %v5749 = vunpack.c.l.b16 %v5716
    %v5750 = vunpack.c.h.b16 %v5716
    %v5751 = vunpack.c.l.b16 %v5717
    %v5752 = vunpack.c.h.b16 %v5717
    %v5753 = vunpack.c.l.b16 %v5718
    %v5754 = vunpack.c.h.b16 %v5718
    %v5755 = vunpack.c.l.b16 %v5719
    %v5756 = vunpack.c.h.b16 %v5719
    %v5757 = vunpack.c.l.b16 %v5720
    %v5758 = vunpack.c.h.b16 %v5720
    %v5759 = vunpack.c.l.b16 %v5721
    %v5760 = vunpack.c.h.b16 %v5721
    %v5761 = vunpack.c.l.b16 %v5722
    %v5762 = vunpack.c.h.b16 %v5722
    %v5763 = vunpack.c.l.b16 %v5723
    %v5764 = vunpack.c.h.b16 %v5723
    %v5765 = vunpack.c.l.b16 %v5724
    %v5766 = vunpack.c.h.b16 %v5724
    %v5767 = vpack.c.b16 %v5743, %v5739
    %v5768 = vpack.c.b16 %v5744, %v5740
    %v5769 = vpack.c.b16 %v5745, %v5741
    %v5770 = vpack.c.b16 %v5746, %v5742
    %v5771 = vpack.c.b16 %v5751, %v5747
    %v5772 = vpack.c.b16 %v5752, %v5748
    %v5773 = vpack.c.b16 %v5753, %v5749
    %v5774 = vpack.c.b16 %v5754, %v5750
    %v5775 = vpack.c.b16 %v5759, %v5755
    %v5776 = vpack.c.b16 %v5760, %v5756
    %v5777 = vpack.c.b16 %v5761, %v5757
    %v5778 = vpack.c.b16 %v5762, %v5758
    %v5779 = vpack.c.b16 %v5763, %v5763
    %v5780 = vpack.c.b16 %v5764, %v5764
    %v5781 = vpack.c.b16 %v5765, %v5765
    %v5782 = vpack.c.b16 %v5766, %v5766
    %v5796 = vsel %vm881, %v5709, 0
    %v5799 = vsel %vm1265, %v5779, 0
    %v5802 = vsel %vm1265, %v5780, 0
    %v5805 = vsel %vm1265, %v5781, 0
    %v5808 = vsel %vm1265, %v5782, 0
    %5810 = vmatprep.subr.bf16.mxu0 0
    %5811 = vmatpush1.bf16.msra.mxu0 0
    %5812 = vmatprep.subr.bf16.mxu0 0
    %5813 = vmatpush1.bf16.msra.mxu0 0
    %5814 = vmatprep.subr.bf16.mxu0 0
    %5815 = vmatpush1.bf16.msra.mxu0 0
    %5816 = vmatprep.subr.bf16.mxu0 0
    %5817 = vmatpush1.bf16.msra.mxu0 0
    %5818 = vmatprep.subr.bf16.mxu0 %v5802
    %5819 = vmatpush1.bf16.msra.mxu0 %v5799
    %5820 = vmatprep.subr.bf16.mxu0 %v5776
    %5821 = vmatpush1.bf16.msra.mxu0 %v5775
    %5822 = vmatprep.subr.bf16.mxu0 %v5772
    %5823 = vmatpush1.bf16.msra.mxu0 %v5771
    %5824 = vmatprep.subr.bf16.mxu0 %v5768
    %5825 = vmatpush1.bf16.msra.mxu0 %v5767
    %5826 = vmatprep.subr.bf16.mxu0 0
    %5827 = vmatpush2.bf16.msra.mxu0 0
    %5828 = vmatprep.subr.bf16.mxu0 0
    %5829 = vmatpush2.bf16.msra.mxu0 0
    %5830 = vmatprep.subr.bf16.mxu0 0
    %5831 = vmatpush2.bf16.msra.mxu0 0
    %5832 = vmatprep.subr.bf16.mxu0 0
    %5833 = vmatpush2.bf16.msra.mxu0 0
    %5834 = vmatprep.subr.bf16.mxu0 0
    %5835 = vmatpush2.bf16.msra.mxu0 0
    %5836 = vmatprep.subr.bf16.mxu0 0
    %5837 = vmatpush2.bf16.msra.mxu0 0
    %5838 = vmatprep.subr.bf16.mxu0 0
    %5839 = vmatpush2.bf16.msra.mxu0 0
    %5840 = vmatprep.subr.bf16.mxu0 0
    %5841 = vmatpush2.bf16.msra.mxu0 0
    %5842 = vmatprep.mubr.bf16.mxu0 0
    %5843 = vmatmul.mubr.bf16.gmra.mxu0 %v5796
    %v5844 = vpop.f32.mrf.mxu0
    %v5845 = vadd.f32 0.0, %v5844
    %v5846 = vpop.f32.mrf.mxu0
    %v5847 = vadd.f32 0.0, %v5846
    %v5848 = vpop.f32.mrf.mxu0
    %v5849 = vpop.f32.mrf.mxu0
    %5850 = vdwg.mxu0
    %5851 = vmatprep.subr.bf16.mxu0 0
    %5852 = vmatpush1.bf16.msra.mxu0 0
    %5853 = vmatprep.subr.bf16.mxu0 0
    %5854 = vmatpush1.bf16.msra.mxu0 0
    %5855 = vmatprep.subr.bf16.mxu0 0
    %5856 = vmatpush1.bf16.msra.mxu0 0
    %5857 = vmatprep.subr.bf16.mxu0 0
    %5858 = vmatpush1.bf16.msra.mxu0 0
    %5859 = vmatprep.subr.bf16.mxu0 %v5808
    %5860 = vmatpush1.bf16.msra.mxu0 %v5805
    %5861 = vmatprep.subr.bf16.mxu0 %v5778
    %5862 = vmatpush1.bf16.msra.mxu0 %v5777
    %5863 = vmatprep.subr.bf16.mxu0 %v5774
    %5864 = vmatpush1.bf16.msra.mxu0 %v5773
    %5865 = vmatprep.subr.bf16.mxu0 %v5770
    %5866 = vmatpush1.bf16.msra.mxu0 %v5769
    %5867 = vmatprep.subr.bf16.mxu0 0
    %5868 = vmatpush2.bf16.msra.mxu0 0
    %5869 = vmatprep.subr.bf16.mxu0 0
    %5870 = vmatpush2.bf16.msra.mxu0 0
    %5871 = vmatprep.subr.bf16.mxu0 0
    %5872 = vmatpush2.bf16.msra.mxu0 0
    %5873 = vmatprep.subr.bf16.mxu0 0
    %5874 = vmatpush2.bf16.msra.mxu0 0
    %5875 = vmatprep.subr.bf16.mxu0 0
    %5876 = vmatpush2.bf16.msra.mxu0 0
    %5877 = vmatprep.subr.bf16.mxu0 0
    %5878 = vmatpush2.bf16.msra.mxu0 0
    %5879 = vmatprep.subr.bf16.mxu0 0
    %5880 = vmatpush2.bf16.msra.mxu0 0
    %5881 = vmatprep.subr.bf16.mxu0 0
    %5882 = vmatpush2.bf16.msra.mxu0 0
    %5883 = vmatprep.mubr.bf16.mxu0 0
    %5884 = vmatmul.mubr.bf16.gmra.mxu0 %v5796
    %v5885 = vpop.f32.mrf.mxu0
    %v5886 = vadd.f32 0.0, %v5885
    %v5887 = vpop.f32.mrf.mxu0
    %v5888 = vadd.f32 0.0, %v5887
    %v5889 = vpop.f32.mrf.mxu0
    %v5890 = vpop.f32.mrf.mxu0
    %5891 = vdwg.mxu0
    %v5892 = vadd.f32 %v5705, %v5845
    %v5893 = vadd.f32 %v5706, %v5847
    %v5894 = vadd.f32 %v5707, %v5886
    %v5895 = vadd.f32 %v5708, %v5888
    %v5896 = vsel %vm605, %v5892, 0.0
    %v5897 = vrot.slane %v5896, 4
    %v5898 = vadd.f32 %v5896, %v5897
    %v5899 = vrot.slane %v5898, 2
    %v5900 = vadd.f32 %v5898, %v5899
    %v5901 = vrot.slane %v5900, 1
    %v5902 = vadd.f32 %v5900, %v5901
    %v5903 = vsel %vm605, %v5893, 0.0
    %v5904 = vrot.slane %v5903, 4
    %v5905 = vadd.f32 %v5903, %v5904
    %v5906 = vrot.slane %v5905, 2
    %v5907 = vadd.f32 %v5905, %v5906
    %v5908 = vrot.slane %v5907, 1
    %v5909 = vadd.f32 %v5907, %v5908
    %v5910 = vsel %vm605, %v5894, 0.0
    %v5911 = vrot.slane %v5910, 4
    %v5912 = vadd.f32 %v5910, %v5911
    %v5913 = vrot.slane %v5912, 2
    %v5914 = vadd.f32 %v5912, %v5913
    %v5915 = vrot.slane %v5914, 1
    %v5916 = vadd.f32 %v5914, %v5915
    %vm5917 = vcmask 943104
    %v5918 = vsel %vm5917, %v5895, 0.0
    %v5919 = vrot.slane %v5918, 4
    %v5920 = vadd.f32 %v5918, %v5919
    %v5921 = vrot.slane %v5920, 2
    %v5922 = vadd.f32 %v5920, %v5921
    %v5923 = vrot.slane %v5922, 1
    %v5924 = vadd.f32 %v5922, %v5923
    %v5925 = vrcp.pop 2.0
    %v5926 = vmul.f32 %v5902, %v5925
    %v5927 = vmul.f32 %v5909, %v5925
    %v5928 = vmul.f32 %v5916, %v5925
    %v5929 = vmul.f32 %v5924, %v5925
    %v5930 = vmul.f32 %v5892, %v5892
    %v5931 = vmul.f32 %v5893, %v5893
    %v5932 = vmul.f32 %v5894, %v5894
    %v5933 = vmul.f32 %v5895, %v5895
    %v5934 = vsel %vm605, %v5930, 0.0
    %v5935 = vrot.slane %v5934, 4
    %v5936 = vadd.f32 %v5934, %v5935
    %v5937 = vrot.slane %v5936, 2
    %v5938 = vadd.f32 %v5936, %v5937
    %v5939 = vrot.slane %v5938, 1
    %v5940 = vadd.f32 %v5938, %v5939
    %v5941 = vsel %vm605, %v5931, 0.0
    %v5942 = vrot.slane %v5941, 4
    %v5943 = vadd.f32 %v5941, %v5942
    %v5944 = vrot.slane %v5943, 2
    %v5945 = vadd.f32 %v5943, %v5944
    %v5946 = vrot.slane %v5945, 1
    %v5947 = vadd.f32 %v5945, %v5946
    %v5948 = vsel %vm605, %v5932, 0.0
    %v5949 = vrot.slane %v5948, 4
    %v5950 = vadd.f32 %v5948, %v5949
    %v5951 = vrot.slane %v5950, 2
    %v5952 = vadd.f32 %v5950, %v5951
    %v5953 = vrot.slane %v5952, 1
    %v5954 = vadd.f32 %v5952, %v5953
    %v5955 = vsel %vm5917, %v5933, 0.0
    %v5956 = vrot.slane %v5955, 4
    %v5957 = vadd.f32 %v5955, %v5956
    %v5958 = vrot.slane %v5957, 2
    %v5959 = vadd.f32 %v5957, %v5958
    %v5960 = vrot.slane %v5959, 1
    %v5961 = vadd.f32 %v5959, %v5960
    %v5962 = vmul.f32 %v5940, %v5925
    %v5963 = vmul.f32 %v5947, %v5925
    %v5964 = vmul.f32 %v5954, %v5925
    %v5965 = vmul.f32 %v5961, %v5925
    %v5966 = vmul.f32 %v5926, %v5926
    %v5967 = vmul.f32 %v5927, %v5927
    %v5968 = vmul.f32 %v5928, %v5928
    %v5969 = vmul.f32 %v5929, %v5929
    %v5970 = vsub.f32 %v5962, %v5966
    %v5971 = vsub.f32 %v5963, %v5967
    %v5972 = vsub.f32 %v5964, %v5968
    %v5973 = vsub.f32 %v5965, %v5969
    %v5974 = vmax.f32 %v5970, 0.0
    %v5975 = vmax.f32 %v5971, 0.0
    %v5976 = vmax.f32 %v5972, 0.0
    %v5977 = vmax.f32 %v5973, 0.0
    %v5978 = vsub.f32 %v5892, %v5926
    %v5979 = vsub.f32 %v5893, %v5927
    %v5980 = vsub.f32 %v5894, %v5928
    %v5981 = vsub.f32 %v5895, %v5929
    %v5982 = vadd.f32 %v5974, 1e-05
    %v5983 = vadd.f32 %v5975, 1e-05
    %v5984 = vadd.f32 %v5976, 1e-05
    %v5985 = vadd.f32 %v5977, 1e-05
    %v5986 = vrsqrt.pop %v5982
    %v5987 = vrsqrt.pop %v5983
    %v5988 = vrsqrt.pop %v5984
    %v5989 = vrsqrt.pop %v5985
    %v5990 = vmul.f32 %v5978, %v5986
    %v5991 = vmul.f32 %v5979, %v5987
    %v5992 = vmul.f32 %v5980, %v5988
    %v5993 = vmul.f32 %v5981, %v5989
    %v5994 = vmax.f32 %v5990, 0.0
    %v5995 = vmax.f32 %v5991, 0.0
    %v5996 = vmax.f32 %v5992, 0.0
    %v5997 = vmax.f32 %v5993, 0.0
    %v5998 = vpack.c.bf16 %v5994, %v5994
    %v5999 = vpack.c.bf16 %v5995, %v5995
    %v6000 = vpack.c.bf16 %v5996, %v5996
    %v6001 = vpack.c.bf16 %v5997, %v5997
    %v6002 = vld [vmem:[%s3] sm:$0xf]
    %v6003 = vld [vmem:[%s3 + $0x4] sm:$0xf]
    %v6004 = vld [vmem:[%s3 + $0x8] sm:$0xf]
    %v6005 = vld [vmem:[%s3 + $0xc] sm:$0xf]
    %v6006 = vld [vmem:[%s3 + $0x10] sm:$0xf]
    %v6007 = vld [vmem:[%s3 + $0x14] sm:$0xf]
    %v6008 = vld [vmem:[%s3 + $0x18] sm:$0xf]
    %v6009 = vld [vmem:[%s3 + $0x1c] sm:$0xf]
    %v6010 = vld [vmem:[%s3 + $0x20] sm:$0xf]
    %v6011 = vld [vmem:[%s3 + $0x24] sm:$0xf]
    %v6012 = vld [vmem:[%s3 + $0x28] sm:$0xf]
    %v6013 = vld [vmem:[%s3 + $0x2c] sm:$0xf]
    %v6014 = vld [vmem:[%s3 + $0x30] sm:$0xf]
    %v6015 = vld [vmem:[%s3 + $0x34] sm:$0xf]
    %v6016 = vld [vmem:[%s3 + $0x38] sm:$0xf]
    %v6017 = vld [vmem:[%s3 + $0x3c] sm:$0xf]
    %v6018 = vld [vmem:[%s3 + $0x40] sm:$0xf]
    %v6019 = vld [vmem:[%s3 + $0x44] sm:$0xf]
    %v6020 = vld [vmem:[%s3 + $0x48] sm:$0xf]
    %v6021 = vld [vmem:[%s3 + $0x4c] sm:$0xf]
    %v6022 = vld [vmem:[%s3 + $0x50] sm:$0xf]
    %v6023 = vld [vmem:[%s3 + $0x54] sm:$0xf]
    %v6024 = vld [vmem:[%s3 + $0x58] sm:$0xf]
    %v6025 = vld [vmem:[%s3 + $0x5c] sm:$0xf]
    %v6026 = vld [vmem:[%s3 + $0x60] sm:$0xf]
    %v6027 = vld [vmem:[%s3 + $0x64] sm:$0xf]
    %v6028 = vld [vmem:[%s3 + $0x68] sm:$0xf]
    %v6029 = vld [vmem:[%s3 + $0x6c] sm:$0xf]
    %v6030 = vld [vmem:[%s3 + $0x70] sm:$0xf]
    %v6031 = vld [vmem:[%s3 + $0x74] sm:$0xf]
    %v6032 = vld [vmem:[%s3 + $0x78] sm:$0xf]
    %v6033 = vld [vmem:[%s3 + $0x7c] sm:$0xf]
    %v6034 = vld [vmem:[%s3 + $0x80] sm:$0xf]
    %v6035 = vld [vmem:[%s3 + $0x84] sm:$0xf]
    %v6036 = vld [vmem:[%s3 + $0x88] sm:$0xf]
    %v6037 = vld [vmem:[%s3 + $0x8c] sm:$0xf]
    %v6038 = vld [vmem:[%s3 + $0x90] sm:$0xf]
    %v6039 = vld [vmem:[%s3 + $0x94] sm:$0xf]
    %v6040 = vld [vmem:[%s3 + $0x98] sm:$0xf]
    %v6041 = vld [vmem:[%s3 + $0x9c] sm:$0xf]
    %v6042 = vld [vmem:[%s3 + $0xa0] sm:$0xf]
    %v6043 = vld [vmem:[%s3 + $0xa4] sm:$0xf]
    %v6044 = vld [vmem:[%s3 + $0xa8] sm:$0xf]
    %v6045 = vld [vmem:[%s3 + $0xac] sm:$0xf]
    %v6046 = vld [vmem:[%s3 + $0xb0] sm:$0xf]
    %v6047 = vld [vmem:[%s3 + $0xb4] sm:$0xf]
    %v6048 = vld [vmem:[%s3 + $0xb8] sm:$0xf]
    %v6049 = vld [vmem:[%s3 + $0xbc] sm:$0xf]
    %v6050 = vld [vmem:[%s3 + $0xc0] sm:$0xf]
    %v6051 = vld [vmem:[%s3 + $0xc4] sm:$0xf]
    %v6052 = vld [vmem:[%s3 + $0xc8] sm:$0xf]
    %v6053 = vld [vmem:[%s3 + $0xcc] sm:$0xf]
    %v6054 = vld [vmem:[%s3 + $0xd0] sm:$0xf]
    %v6055 = vld [vmem:[%s3 + $0xd4] sm:$0xf]
    %v6056 = vld [vmem:[%s3 + $0xd8] sm:$0xf]
    %v6057 = vld [vmem:[%s3 + $0xdc] sm:$0xf]
    %v6058 = vld [vmem:[%s3 + $0xe0] sm:$0xf]
    %v6059 = vld [vmem:[%s3 + $0xe4] sm:$0xf]
    %v6060 = vld [vmem:[%s3 + $0xe8] sm:$0xf]
    %v6061 = vld [vmem:[%s3 + $0xec] sm:$0xf]
    %v6062 = vld [vmem:[%s3 + $0xf0] sm:$0xf]
    %v6063 = vld [vmem:[%s3 + $0xf4] sm:$0xf]
    %v6064 = vld [vmem:[%s3 + $0xf8] sm:$0x3]
    %v6065 = vld [vmem:[%s4] sm:$0x1]
    %v6067 = vlaneseq
    %v6068 = vshrl.u32 %v6067, 7
    %v6069 = vsub.s32 0, %v6068
    %v6070 = vrot.slane %v6065, %v6069
    %v6135 = vunpack.c.l.b16 %v6002
    %v6136 = vunpack.c.l.b16 %v6003
    %v6137 = vunpack.c.l.b16 %v6004
    %v6138 = vunpack.c.l.b16 %v6005
    %v6139 = vunpack.c.l.b16 %v6006
    %v6140 = vunpack.c.l.b16 %v6007
    %v6141 = vunpack.c.l.b16 %v6008
    %v6142 = vunpack.c.l.b16 %v6009
    %v6143 = vunpack.c.l.b16 %v6010
    %v6144 = vunpack.c.l.b16 %v6011
    %v6145 = vunpack.c.l.b16 %v6012
    %v6146 = vunpack.c.l.b16 %v6013
    %v6147 = vunpack.c.l.b16 %v6014
    %v6148 = vunpack.c.l.b16 %v6015
    %v6149 = vunpack.c.l.b16 %v6016
    %v6150 = vunpack.c.l.b16 %v6017
    %v6151 = vunpack.c.l.b16 %v6018
    %v6152 = vunpack.c.l.b16 %v6019
    %v6153 = vunpack.c.l.b16 %v6020
    %v6154 = vunpack.c.l.b16 %v6021
    %v6155 = vunpack.c.l.b16 %v6022
    %v6156 = vunpack.c.l.b16 %v6023
    %v6157 = vunpack.c.l.b16 %v6024
    %v6158 = vunpack.c.l.b16 %v6025
    %v6159 = vunpack.c.l.b16 %v6026
    %v6160 = vunpack.c.l.b16 %v6027
    %v6161 = vunpack.c.l.b16 %v6028
    %v6162 = vunpack.c.l.b16 %v6029
    %v6163 = vunpack.c.l.b16 %v6030
    %v6164 = vunpack.c.l.b16 %v6031
    %v6165 = vunpack.c.l.b16 %v6032
    %v6166 = vunpack.c.l.b16 %v6033
    %v6167 = vunpack.c.l.b16 %v6034
    %v6168 = vunpack.c.l.b16 %v6035
    %v6169 = vunpack.c.l.b16 %v6036
    %v6170 = vunpack.c.l.b16 %v6037
    %v6171 = vunpack.c.l.b16 %v6038
    %v6172 = vunpack.c.l.b16 %v6039
    %v6173 = vunpack.c.l.b16 %v6040
    %v6174 = vunpack.c.l.b16 %v6041
    %v6175 = vunpack.c.l.b16 %v6042
    %v6176 = vunpack.c.l.b16 %v6043
    %v6177 = vunpack.c.l.b16 %v6044
    %v6178 = vunpack.c.l.b16 %v6045
    %v6179 = vunpack.c.l.b16 %v6046
    %v6180 = vunpack.c.l.b16 %v6047
    %v6181 = vunpack.c.l.b16 %v6048
    %v6182 = vunpack.c.l.b16 %v6049
    %v6183 = vunpack.c.l.b16 %v6050
    %v6184 = vunpack.c.l.b16 %v6051
    %v6185 = vunpack.c.l.b16 %v6052
    %v6186 = vunpack.c.l.b16 %v6053
    %v6187 = vunpack.c.l.b16 %v6054
    %v6188 = vunpack.c.l.b16 %v6055
    %v6189 = vunpack.c.l.b16 %v6056
    %v6190 = vunpack.c.l.b16 %v6057
    %v6191 = vunpack.c.l.b16 %v6058
    %v6192 = vunpack.c.l.b16 %v6059
    %v6193 = vunpack.c.l.b16 %v6060
    %v6194 = vunpack.c.l.b16 %v6061
    %v6195 = vunpack.c.l.b16 %v6062
    %v6196 = vunpack.c.l.b16 %v6063
    %v6197 = vunpack.c.l.b16 %v6064
    %v6198 = vpack.c.b16 %v6136, %v6135
    %v6199 = vpack.c.b16 %v6138, %v6137
    %v6200 = vpack.c.b16 %v6140, %v6139
    %v6201 = vpack.c.b16 %v6142, %v6141
    %v6202 = vpack.c.b16 %v6144, %v6143
    %v6203 = vpack.c.b16 %v6146, %v6145
    %v6204 = vpack.c.b16 %v6148, %v6147
    %v6205 = vpack.c.b16 %v6150, %v6149
    %v6206 = vpack.c.b16 %v6152, %v6151
    %v6207 = vpack.c.b16 %v6154, %v6153
    %v6208 = vpack.c.b16 %v6156, %v6155
    %v6209 = vpack.c.b16 %v6158, %v6157
    %v6210 = vpack.c.b16 %v6160, %v6159
    %v6211 = vpack.c.b16 %v6162, %v6161
    %v6212 = vpack.c.b16 %v6164, %v6163
    %v6213 = vpack.c.b16 %v6166, %v6165
    %v6214 = vpack.c.b16 %v6168, %v6167
    %v6215 = vpack.c.b16 %v6170, %v6169
    %v6216 = vpack.c.b16 %v6172, %v6171
    %v6217 = vpack.c.b16 %v6174, %v6173
    %v6218 = vpack.c.b16 %v6176, %v6175
    %v6219 = vpack.c.b16 %v6178, %v6177
    %v6220 = vpack.c.b16 %v6180, %v6179
    %v6221 = vpack.c.b16 %v6182, %v6181
    %v6222 = vpack.c.b16 %v6184, %v6183
    %v6223 = vpack.c.b16 %v6186, %v6185
    %v6224 = vpack.c.b16 %v6188, %v6187
    %v6225 = vpack.c.b16 %v6190, %v6189
    %v6226 = vpack.c.b16 %v6192, %v6191
    %v6227 = vpack.c.b16 %v6194, %v6193
    %v6228 = vpack.c.b16 %v6196, %v6195
    %v6229 = vpack.c.b16 %v6197, %v6197
    %v6262 = vsel %vm565, %v6001, 0
    %v6265 = vsel %vm605, %v6229, 0
    %6267 = vmatprep.subr.bf16.mxu0 0
    %6268 = vmatpush1.bf16.msra.mxu0 %v6205
    %6269 = vmatprep.subr.bf16.mxu0 0
    %6270 = vmatpush1.bf16.msra.mxu0 %v6204
    %6271 = vmatprep.subr.bf16.mxu0 0
    %6272 = vmatpush1.bf16.msra.mxu0 %v6203
    %6273 = vmatprep.subr.bf16.mxu0 0
    %6274 = vmatpush1.bf16.msra.mxu0 %v6202
    %6275 = vmatprep.subr.bf16.mxu0 0
    %6276 = vmatpush1.bf16.msra.mxu0 %v6201
    %6277 = vmatprep.subr.bf16.mxu0 0
    %6278 = vmatpush1.bf16.msra.mxu0 %v6200
    %6279 = vmatprep.subr.bf16.mxu0 0
    %6280 = vmatpush1.bf16.msra.mxu0 %v6199
    %6281 = vmatprep.subr.bf16.mxu0 0
    %6282 = vmatpush1.bf16.msra.mxu0 %v6198
    %6283 = vmatprep.subr.bf16.mxu0 0
    %6284 = vmatpush2.bf16.msra.mxu0 %v6213
    %6285 = vmatprep.subr.bf16.mxu0 0
    %6286 = vmatpush2.bf16.msra.mxu0 %v6212
    %6287 = vmatprep.subr.bf16.mxu0 0
    %6288 = vmatpush2.bf16.msra.mxu0 %v6211
    %6289 = vmatprep.subr.bf16.mxu0 0
    %6290 = vmatpush2.bf16.msra.mxu0 %v6210
    %6291 = vmatprep.subr.bf16.mxu0 0
    %6292 = vmatpush2.bf16.msra.mxu0 %v6209
    %6293 = vmatprep.subr.bf16.mxu0 0
    %6294 = vmatpush2.bf16.msra.mxu0 %v6208
    %6295 = vmatprep.subr.bf16.mxu0 0
    %6296 = vmatpush2.bf16.msra.mxu0 %v6207
    %6297 = vmatprep.subr.bf16.mxu0 0
    %6298 = vmatpush2.bf16.msra.mxu0 %v6206
    %6299 = vmatprep.mubr.bf16.mxu0 %v5999
    %6300 = vmatmul.mubr.bf16.gmra.mxu0 %v5998
    %v6301 = vpop.f32.mrf.mxu0
    %v6302 = vadd.f32 %v6070, %v6301
    %v6303 = vpop.f32.mrf.mxu0
    %v6304 = vpop.f32.mrf.mxu0
    %v6305 = vpop.f32.mrf.mxu0
    %6306 = vdwg.mxu0
    %6307 = vmatprep.subr.bf16.mxu0 0
    %6308 = vmatpush1.bf16.msra.mxu0 %v6221
    %6309 = vmatprep.subr.bf16.mxu0 0
    %6310 = vmatpush1.bf16.msra.mxu0 %v6220
    %6311 = vmatprep.subr.bf16.mxu0 0
    %6312 = vmatpush1.bf16.msra.mxu0 %v6219
    %6313 = vmatprep.subr.bf16.mxu0 0
    %6314 = vmatpush1.bf16.msra.mxu0 %v6218
    %6315 = vmatprep.subr.bf16.mxu0 0
    %6316 = vmatpush1.bf16.msra.mxu0 %v6217
    %6317 = vmatprep.subr.bf16.mxu0 0
    %6318 = vmatpush1.bf16.msra.mxu0 %v6216
    %6319 = vmatprep.subr.bf16.mxu0 0
    %6320 = vmatpush1.bf16.msra.mxu0 %v6215
    %6321 = vmatprep.subr.bf16.mxu0 0
    %6322 = vmatpush1.bf16.msra.mxu0 %v6214
    %6323 = vmatprep.subr.bf16.mxu0 0
    %6324 = vmatpush2.bf16.msra.mxu0 %v6265
    %6325 = vmatprep.subr.bf16.mxu0 0
    %6326 = vmatpush2.bf16.msra.mxu0 %v6228
    %6327 = vmatprep.subr.bf16.mxu0 0
    %6328 = vmatpush2.bf16.msra.mxu0 %v6227
    %6329 = vmatprep.subr.bf16.mxu0 0
    %6330 = vmatpush2.bf16.msra.mxu0 %v6226
    %6331 = vmatprep.subr.bf16.mxu0 0
    %6332 = vmatpush2.bf16.msra.mxu0 %v6225
    %6333 = vmatprep.subr.bf16.mxu0 0
    %6334 = vmatpush2.bf16.msra.mxu0 %v6224
    %6335 = vmatprep.subr.bf16.mxu0 0
    %6336 = vmatpush2.bf16.msra.mxu0 %v6223
    %6337 = vmatprep.subr.bf16.mxu0 0
    %6338 = vmatpush2.bf16.msra.mxu0 %v6222
    %6339 = vmatprep.mubr.bf16.mxu0 %v6262
    %6340 = vmatmul.mubr.bf16.gmra.mxu0 %v6000
    %v6341 = vpop.f32.mrf.mxu0
    %v6342 = vadd.f32 %v6302, %v6341
    %v6343 = vpop.f32.mrf.mxu0
    %v6344 = vpop.f32.mrf.mxu0
    %v6345 = vpop.f32.mrf.mxu0
    %6346 = vdwg.mxu0
    %vm6347 = vcmask 74752
    %6348 = vst.msk [vmem:[#allocation4] sm:$0x3] %vm6347, %v6342
    // Predicated region
    $region22: #{lenet5_fc_variance_unif_forward.3} parent=1 // pred_check
      _
    $region23: #{lenet5_fc_variance_unif_forward.3} parent=1 // pred_check_branch
      %6350 = sbr.rel (0) target = $region25
    $region24: #{lenet5_fc_variance_unif_forward.3} parent=1 // pred_region
      %s6352 = ssub.s32 32, 32
      %6353 = vsyncadd [#allocation5], %s6352
      %s6355 = sshll.u32 [#allocation4], 4
      %s6356 = int_to_ptr.vmem [resolvable:$true] %s6355
      %6358 = dma.vmem_to_hbm [thread:$0]  %s6356, 32, %s5, [#allocation5]
    $region25: #{lenet5_fc_variance_unif_forward.3} parent=1 // pred_fallthru
      _
    // Predicated region
    $region26: #{lenet5_fc_variance_unif_forward.3} parent=1 // pred_check
      _
    $region27: #{lenet5_fc_variance_unif_forward.3} parent=1 // pred_check_branch
      %6360 = sbr.rel (0) target = $region29
    $region28: #{lenet5_fc_variance_unif_forward.3} parent=1 // pred_region
      %6361 = dma.done [#allocation5], 32
    $region29: #{lenet5_fc_variance_unif_forward.3} parent=1 // pred_fallthru
      _
    %6362 = vsyncpa [#allocation5], 1

</llo_original>
